<compile_context>
chip_gen: v6e
topology: v6e:2x2x1
jax: 0.10.0
libtpu: 0.0.40
codegen_flags: <defaults>
</compile_context>

<pallas_src>
import functools

import jax
import jax.numpy as jnp
from jax.experimental import pallas as pl
from jax.experimental.pallas import tpu as pltpu

EPS = 1e-5
NEG_SLOPE = 0.2
_VMEM_LIMIT = 32 * 1024 * 1024   # safe on v7x (64 MiB VMEM); v5e/v6e could go higher


def _choose_tile(n, candidates):
    """Largest candidate tile that divides n, else the full extent (always legal)."""
    for c in candidates:
        if n % c == 0:
            return c
    return n


def _leaky(h, slope):
    return jnp.maximum(h, slope * h)     # 2 VALU ops (valid for slope in [0,1])


# ----------------------------------------------------------------------------------
# Kernel 1: tiled negative squared pairwise distances (for kNN)
#   dist[b,i,j] = -||x_i||^2 + 2 x_i.x_j - ||x_j||^2   (matches the PyTorch knn())
# ----------------------------------------------------------------------------------
def _pdist_kernel(xr_ref, xc_ref, o_ref):
    xr = xr_ref[0]                                                 # (tr, C) f32
    xc = xc_ref[0]                                                 # (tc, C) f32
    g = jax.lax.dot_general(xr, xc, (((1,), (1,)), ((), ())),
                            preferred_element_type=jnp.float32)    # (tr, tc)
    sr = jnp.sum(xr * xr, axis=-1, keepdims=True)                  # (tr, 1)
    sc = jnp.sum(xc * xc, axis=-1, keepdims=True)                  # (tc, 1)
    o_ref[0] = 2.0 * g - sr - sc.T


def pairwise_neg_sqdist(x_cl):
    """x_cl: (B, N, C) -> (B, N, N) negative squared distances (f32, exact)."""
    B, N, C = x_cl.shape
    t = _choose_tile(N, (512, 256, 128))
    x32 = x_cl.astype(jnp.float32)
    return pl.pallas_call(
        _pdist_kernel,
        out_shape=jax.ShapeDtypeStruct((B, N, N), jnp.float32),
        grid=(B, N // t, N // t),
        in_specs=[
            pl.BlockSpec((1, t, C), lambda b, i, j: (b, i, 0)),
            pl.BlockSpec((1, t, C), lambda b, i, j: (b, j, 0)),
        ],
        out_specs=pl.BlockSpec((1, t, t), lambda b, i, j: (b, i, j)),
        compiler_params=pltpu.CompilerParams(
            dimension_semantics=("parallel", "parallel", "parallel"),
            vmem_limit_bytes=_VMEM_LIMIT),
    )(x32, x32)


def knn_idx(x_cl, k):
    dist = pairwise_neg_sqdist(x_cl)          # (B, N, N)
    _, idx = jax.lax.top_k(dist, k)           # (B, N, k)  exact, matches PyTorch topk
    return idx


def gather_neighbors(x_src, idx):
    """x_src: (B, N, C), idx: (B, N, K) -> (B, K, N, C) (leading-K layout, dtype of x_src)."""
    idx_t = jnp.transpose(idx, (0, 2, 1))                          # (B, K, N)
    return jax.vmap(lambda xt, ix: xt[ix])(x_src, idx_t)           # (B, K, N, C)


# ----------------------------------------------------------------------------------
# Kernel 2: fused EdgeConv = edge feature + (1 or 2) 1x1 convs (BN folded) + LeakyReLU
#           + max over K.  The K axis is folded into one big-M matmul; nothing
#           K-inflated reaches HBM except the bf16 gathered-neighbor input.
# ----------------------------------------------------------------------------------
def _edgeconv_kernel(*refs, slope, nconv):
    if nconv == 2:
        ctr_ref, nbr_ref, wa_ref, wd_ref, b1_ref, w2_ref, b2_ref, o_ref = refs
    else:
        ctr_ref, nbr_ref, wa_ref, wd_ref, b1_ref, o_ref = refs
        w2_ref = b2_ref = None

    K, tn, C = nbr_ref.shape[1], nbr_ref.shape[2], nbr_ref.shape[3]
    C1 = wa_ref.shape[1]

    ctr = ctr_ref[0]                                               # (tn, C) f32
    # center contribution: computed once per tile (not per neighbor)
    base = jnp.dot(ctr.astype(jnp.bfloat16), wd_ref[...],
                   preferred_element_type=jnp.float32) + b1_ref[...]          # (tn, C1)

    # one (K*tn, C) x (C, C1) matmul instead of K small ones
    nbr = nbr_ref[0].reshape(K * tn, C)                            # (K*tn, C) bf16
    h = jnp.dot(nbr, wa_ref[...], preferred_element_type=jnp.float32)         # (K*tn, C1)
    h = h.reshape(K, tn, C1) + base[None]
    h = _leaky(h, slope)
    if nconv == 2:
        C2 = w2_ref.shape[1]
        h = jnp.dot(h.reshape(K * tn, C1).astype(jnp.bfloat16), w2_ref[...],
                    preferred_element_type=jnp.float32)
        h = h.reshape(K, tn, C2) + b2_ref[...]
        h = _leaky(h, slope)

    o_ref[0] = jnp.max(h, axis=0).astype(o_ref.dtype)              # max over K


def edge_conv(ctr, nbr, w1, b1, w2=None, b2=None, slope=NEG_SLOPE):
    """
    ctr: (B, N, C) f32 center features; nbr: (B, K, N, C) bf16 gathered neighbors.
    w1: (2C, C1) f32 (BN-folded), b1: (1, C1) f32; optional second conv w2 (C1, C2), b2.
    Returns (B, N, Cout) f32 = max_K( fused conv stack on concat(nbr-ctr, ctr) ).
    """
    B, N, C = ctr.shape
    K = nbr.shape[1]
    C1 = w1.shape[1]
    nconv = 2 if w2 is not None else 1
    cout = w2.shape[1] if nconv == 2 else C1

    # split the 2C-row weight: concat(nbr-ctr, ctr) @ W == nbr @ wa + ctr @ (wb - wa)
    wa = w1[:C].astype(jnp.bfloat16)
    wd = (w1[C:] - w1[:C]).astype(jnp.bfloat16)     # difference taken in f32, cast for MXU

    tn = _choose_tile(N, (256, 128))                # moderate tile: K*tn rows feed the MXU
    in_specs = [
        pl.BlockSpec((1, tn, C), lambda b, i: (b, i, 0)),
        pl.BlockSpec((1, K, tn, C), lambda b, i: (b, 0, i, 0)),
        pl.BlockSpec((C, C1), lambda b, i: (0, 0)),
        pl.BlockSpec((C, C1), lambda b, i: (0, 0)),
        pl.BlockSpec((1, C1), lambda b, i: (0, 0)),
    ]
    args = [ctr.astype(jnp.float32), nbr, wa, wd, b1]
    if nconv == 2:
        in_specs += [pl.BlockSpec((C1, cout), lambda b, i: (0, 0)),
                     pl.BlockSpec((1, cout), lambda b, i: (0, 0))]
        args += [w2.astype(jnp.bfloat16), b2]

    return pl.pallas_call(
        functools.partial(_edgeconv_kernel, slope=slope, nconv=nconv),
        out_shape=jax.ShapeDtypeStruct((B, N, cout), jnp.float32),
        grid=(B, N // tn),
        in_specs=in_specs,
        out_specs=pl.BlockSpec((1, tn, cout), lambda b, i: (b, i, 0)),
        compiler_params=pltpu.CompilerParams(
            dimension_semantics=("parallel", "parallel"),
            vmem_limit_bytes=_VMEM_LIMIT),
    )(*args)


# ----------------------------------------------------------------------------------
# Kernel 3: (multi-input) matmul + LeakyReLU + max over all points, with an
#           output-resident max accumulator.  Cout is tiled on a parallel grid axis,
#           rows are chunked inside the kernel so the full (tn, Cout) activation never
#           materializes.  Used for Transform_Net conv3 and conv6 (virtual concat).
# ----------------------------------------------------------------------------------
def _mm_rowmax_kernel(*refs, slope, n_in, cins, rchunk):
    x_refs = refs[:n_in]
    w_ref, b_ref, o_ref = refs[n_in], refs[n_in + 1], refs[n_in + 2]

    @pl.when(pl.program_id(2) == 0)
    def _():
        o_ref[...] = jnp.full(o_ref.shape, -jnp.inf, o_ref.dtype)

    tn = x_refs[0].shape[1]
    offs = [0]
    for c in cins:
        offs.append(offs[-1] + c)

    m = None
    for r0 in range(0, tn, rchunk):                 # small static loop: chunked rows
        r1 = min(r0 + rchunk, tn)
        acc = None
        for xi in range(n_in):                      # virtual channel-concat of the inputs
            xc = x_refs[xi][0, r0:r1, :].astype(jnp.bfloat16)
            part = jnp.dot(xc, w_ref[offs[xi]:offs[xi + 1], :],
                           preferred_element_type=jnp.float32)
            acc = part if acc is None else acc + part
        h = _leaky(acc + b_ref[...], slope)
        mc = jnp.max(h, axis=0, keepdims=True)      # (1, tc)
        m = mc if m is None else jnp.maximum(m, mc)

    o_ref[0] = jnp.maximum(o_ref[0], m)


def matmul_rowmax(xs, w, b, slope=NEG_SLOPE):
    """xs: list of (B, N, Cin_i) f32 arrays (virtually channel-concatenated);
       w: (sum(Cin_i), Cout) f32 (BN-folded); b: (1, Cout) f32.
       Returns (B, 1, Cout) f32 = max over N of LeakyReLU(concat(xs, -1) @ w + b).
       Pre-max activations never leave VMEM."""
    B, N, _ = xs[0].shape
    cins = tuple(x.shape[2] for x in xs)
    cin_total, cout = w.shape
    assert sum(cins) == cin_total
    n_in = len(xs)

    tn = _choose_tile(N, (512, 256, 128))
    tc = _choose_tile(cout, (512, 256, 128))
    rchunk = min(128, tn)

    in_specs = [pl.BlockSpec((1, tn, c), lambda b_, c_, i_: (b_, i_, 0)) for c in cins]
    in_specs += [pl.BlockSpec((cin_total, tc), lambda b_, c_, i_: (0, c_)),
                 pl.BlockSpec((1, tc), lambda b_, c_, i_: (0, c_))]

    return pl.pallas_call(
        functools.partial(_mm_rowmax_kernel, slope=slope, n_in=n_in,
                          cins=cins, rchunk=rchunk),
        out_shape=jax.ShapeDtypeStruct((B, 1, cout), jnp.float32),
        grid=(B, cout // tc, N // tn),
        in_specs=in_specs,
        out_specs=pl.BlockSpec((1, 1, tc), lambda b_, c_, i_: (b_, 0, c_)),
        compiler_params=pltpu.CompilerParams(
            dimension_semantics=("parallel", "parallel", "arbitrary"),
            vmem_limit_bytes=_VMEM_LIMIT),
    )(*xs, w.astype(jnp.bfloat16), b)


# ----------------------------------------------------------------------------------
# Kernel 4: Transform_Net MLP head (1024->512->256->9) fused in one tiny kernel.
# ----------------------------------------------------------------------------------
def _head_kernel(x_ref, w1_ref, b1_ref, w2_ref, b2_ref, wt_ref, bt_ref, o_ref, *, slope):
    h = jnp.dot(x_ref[...].astype(jnp.bfloat16), w1_ref[...],
                preferred_element_type=jnp.float32) + b1_ref[...]
    h = _leaky(h, slope)
    h = jnp.dot(h.astype(jnp.bfloat16), w2_ref[...],
                preferred_element_type=jnp.float32) + b2_ref[...]
    h = _leaky(h, slope)
    o_ref[...] = jnp.dot(h.astype(jnp.bfloat16), wt_ref[...],
                         preferred_element_type=jnp.float32) + bt_ref[...]


def transform_head(pooled, p, slope=NEG_SLOPE):
    """pooled: (B, 1024) -> (B, 3, 3) learned transform."""
    B = pooled.shape[0]
    out = pl.pallas_call(
        functools.partial(_head_kernel, slope=slope),
        out_shape=jax.ShapeDtypeStruct((B, 9), jnp.float32),
    )(pooled,
      p["l1_w"].astype(jnp.bfloat16), p["l1_b"],
      p["l2_w"].astype(jnp.bfloat16), p["l2_b"],
      p["tr_w"].astype(jnp.bfloat16), p["tr_b"])
    return out.reshape(B, 3, 3)


# ----------------------------------------------------------------------------------
# Kernel 5: fused output assembly: channels-first (B, emb+192, N) tiles written
#           directly from hmax (repeated over points), x1, x2, x3 — one HBM pass,
#           lane-dense stores (N on the lane axis).
# ----------------------------------------------------------------------------------
def _assemble_kernel(hmax_ref, x1_ref, x2_ref, x3_ref, o_ref):
    emb = hmax_ref.shape[1]
    tn = o_ref.shape[2]
    o_ref[0, :emb, :] = jnp.broadcast_to(hmax_ref[0], (emb, tn))   # repeat over points
    c = emb
    for xr in (x1_ref, x2_ref, x3_ref):
        ci = xr.shape[2]
        o_ref[0, c:c + ci, :] = jnp.transpose(xr[0], (1, 0))       # (tn,ci) -> (ci,tn)
        c += ci


def assemble_output(hmax, x1, x2, x3):
    """hmax: (B,1,emb); x1/x2/x3: (B,N,64) -> (B, emb+192, N) channels-first f32."""
    B, N, c1 = x1.shape
    emb = hmax.shape[2]
    cout = emb + c1 + x2.shape[2] + x3.shape[2]
    hmax_t = jnp.transpose(hmax, (0, 2, 1))                        # (B, emb, 1), tiny
    tn = _choose_tile(N, (512, 256, 128))
    return pl.pallas_call(
        _assemble_kernel,
        out_shape=jax.ShapeDtypeStruct((B, cout, N), jnp.float32),
        grid=(B, N // tn),
        in_specs=[
            pl.BlockSpec((1, emb, 1), lambda b, i: (b, 0, 0)),
            pl.BlockSpec((1, tn, x1.shape[2]), lambda b, i: (b, i, 0)),
            pl.BlockSpec((1, tn, x2.shape[2]), lambda b, i: (b, i, 0)),
            pl.BlockSpec((1, tn, x3.shape[2]), lambda b, i: (b, i, 0)),
        ],
        out_specs=pl.BlockSpec((1, cout, tn), lambda b, i: (b, 0, i)),
        compiler_params=pltpu.CompilerParams(
            dimension_semantics=("parallel", "parallel"),
            vmem_limit_bytes=_VMEM_LIMIT),
    )(hmax_t, x1, x2, x3)


# ----------------------------------------------------------------------------------
# Parameters (deterministic, synthetic).  Eval-mode BatchNorm with PyTorch-default stats
# (gamma=1, beta=0, mean=0, var=1) is folded (in f32) into the weights:
#   w <- w / sqrt(1+eps), bias = 0.
# ----------------------------------------------------------------------------------
def init_params(emb_dims):
    key = jax.random.PRNGKey(0)
    keys = jax.random.split(key, 16)
    bn_scale = 1.0 / jnp.sqrt(jnp.float32(1.0 + EPS))

    def folded(k_, cin, cout):
        w = 0.05 * jax.random.normal(k_, (cin, cout), jnp.float32)
        return w * bn_scale, jnp.zeros((1, cout), jnp.float32)

    p = {}
    # Transform_Net
    p["t1_w"], p["t1_b"] = folded(keys[0], 6, 64)
    p["t2_w"], p["t2_b"] = folded(keys[1], 64, 128)
    p["t3_w"], p["t3_b"] = folded(keys[2], 128, 1024)
    p["l1_w"], p["l1_b"] = folded(keys[3], 1024, 512)
    p["l2_w"], p["l2_b"] = folded(keys[4], 512, 256)
    p["tr_w"] = jnp.zeros((256, 9), jnp.float32)                   # init.constant_(weight, 0)
    p["tr_b"] = jnp.eye(3, dtype=jnp.float32).reshape(1, 9)        # init.eye_(bias.view(3,3))
    # DGCNN_feat
    p["c1_w"], p["c1_b"] = folded(keys[5], 6, 64)
    p["c2_w"], p["c2_b"] = folded(keys[6], 64, 64)
    p["c3_w"], p["c3_b"] = folded(keys[7], 128, 64)
    p["c4_w"], p["c4_b"] = folded(keys[8], 64, 64)
    p["c5_w"], p["c5_b"] = folded(keys[9], 128, 64)
    p["c6_w"], p["c6_b"] = folded(keys[10], 192, emb_dims)
    return p


# ----------------------------------------------------------------------------------
# Forward pass
# ----------------------------------------------------------------------------------
def dgcnn_feat_forward(x, p, k, emb_dims):
    """x: (B, 3, N) channels-first (PyTorch convention). Returns (B, emb_dims + 192, N)."""
    B, _, N = x.shape
    x_cl = jnp.transpose(x, (0, 2, 1)).astype(jnp.float32)         # (B, N, 3)

    # ---- Transform_Net ----
    idx0 = knn_idx(x_cl, k)
    nbr0 = gather_neighbors(x_cl.astype(jnp.bfloat16), idx0)       # (B, K, N, 3) bf16
    tfeat = edge_conv(x_cl, nbr0, p["t1_w"], p["t1_b"],
                      p["t2_w"], p["t2_b"])                        # conv1+conv2 + max_K -> (B,N,128)
    pooled = matmul_rowmax([tfeat], p["t3_w"], p["t3_b"])          # conv3 + max over N -> (B,1,1024)
    t = transform_head(pooled.reshape(B, -1), p)                   # (B, 3, 3)

    x_cl = jnp.einsum("bnc,bcd->bnd", x_cl, t)                     # bmm(x^T, t)

    # ---- EdgeConv 1: conv1 + conv2 + max_K ----
    idx1 = knn_idx(x_cl, k)
    nbr1 = gather_neighbors(x_cl.astype(jnp.bfloat16), idx1)
    x1 = edge_conv(x_cl, nbr1, p["c1_w"], p["c1_b"], p["c2_w"], p["c2_b"])    # (B, N, 64)

    # ---- EdgeConv 2: conv3 + conv4 + max_K ----
    idx2 = knn_idx(x1, k)
    nbr2 = gather_neighbors(x1.astype(jnp.bfloat16), idx2)
    x2 = edge_conv(x1, nbr2, p["c3_w"], p["c3_b"], p["c4_w"], p["c4_b"])      # (B, N, 64)

    # ---- EdgeConv 3: conv5 + max_K ----
    idx3 = knn_idx(x2, k)
    nbr3 = gather_neighbors(x2.astype(jnp.bfloat16), idx3)
    x3 = edge_conv(x2, nbr3, p["c5_w"], p["c5_b"])                            # (B, N, 64)

    # ---- conv6 + global max (virtual concat; (B,N,192) and (B,N,emb) never hit HBM) ----
    hmax = matmul_rowmax([x1, x2, x3], p["c6_w"], p["c6_b"])       # (B, 1, emb)

    # ---- fused output assembly: repeat + concat + channels-first transpose, one pass ----
    return assemble_output(hmax, x1, x2, x3)                       # (B, emb + 192, N)


# ----------------------------------------------------------------------------------
if __name__ == "__main__":
    B, N = 2, 16          # batch, num_points
    K_NEIGHBORS = 8       # k (<= N)
    EMB_DIMS = 128        # emb_dims (small for the test)

    key = jax.random.PRNGKey(0)
    x = jax.random.normal(key, (B, 3, N), jnp.float32)             # point cloud, NCW like PyTorch

    params = init_params(EMB_DIMS)
    fwd = jax.jit(functools.partial(dgcnn_feat_forward, k=K_NEIGHBORS, emb_dims=EMB_DIMS))
    out = jax.block_until_ready(fwd(x, params))

    assert out.shape == (B, EMB_DIMS + 192, N), out.shape
    assert bool(jnp.all(jnp.isfinite(out)))
    print("KERNEL_OK")
</pallas_src>

<mosaic_0001>
module attributes {stable_mosaic.version = 11 : i64} {
  func.func @_pdist_kernel(%arg0: i32, %arg1: i32, %arg2: i32, %arg3: memref<1x16x3xf32, #tpu.memory_space<vmem>>, %arg4: memref<1x16x3xf32, #tpu.memory_space<vmem>>, %arg5: memref<1x16x16xf32, #tpu.memory_space<vmem>>) attributes {dimension_semantics = [#tpu.dimension_semantics<parallel>, #tpu.dimension_semantics<parallel>, #tpu.dimension_semantics<parallel>], iteration_bounds = array<i64: 2, 1, 1>, scalar_prefetch = 0 : i64, scratch_operands = 0 : i64, tpu.core_type = #tpu.core_type<tc>, window_params = [{transform_indices = @transform_0, window_bounds = array<i64: 1, 16, 3>}, {transform_indices = @transform_1, window_bounds = array<i64: 1, 16, 3>}, {transform_indices = @transform_2, window_bounds = array<i64: 1, 16, 16>}]} {
    %c0 = arith.constant 0 : index
    %c0_0 = arith.constant 0 : index
    %c0_1 = arith.constant 0 : index
    %0 = vector.load %arg3[%c0, %c0_0, %c0_1] : memref<1x16x3xf32, #tpu.memory_space<vmem>>, vector<1x16x3xf32>
    %1 = vector.shape_cast %0 : vector<1x16x3xf32> to vector<16x3xf32>
    %c0_2 = arith.constant 0 : index
    %c0_3 = arith.constant 0 : index
    %c0_4 = arith.constant 0 : index
    %2 = vector.load %arg4[%c0_2, %c0_3, %c0_4] : memref<1x16x3xf32, #tpu.memory_space<vmem>>, vector<1x16x3xf32>
    %3 = vector.shape_cast %2 : vector<1x16x3xf32> to vector<16x3xf32>
    %cst = arith.constant dense<0.000000e+00> : vector<16x16xf32>
    %4 = tpu.matmul %1, %3, %cst {dimension_numbers = #tpu.dot_dimension_numbers<[1], [1], [0], [0], [0, 0, 1, 0], [], []>} : vector<16x3xf32>, vector<16x3xf32>, vector<16x16xf32> -> vector<16x16xf32>
    %5 = arith.mulf %1, %1 : vector<16x3xf32>
    %cst_5 = arith.constant dense<0.000000e+00> : vector<16xf32>
    %6 = vector.multi_reduction <add>, %5, %cst_5 [1] : vector<16x3xf32> to vector<16xf32>
    %7 = vector.shape_cast %6 : vector<16xf32> to vector<16x1xf32>
    %8 = arith.mulf %3, %3 : vector<16x3xf32>
    %cst_6 = arith.constant dense<0.000000e+00> : vector<16xf32>
    %9 = vector.multi_reduction <add>, %8, %cst_6 [1] : vector<16x3xf32> to vector<16xf32>
    %10 = vector.shape_cast %9 : vector<16xf32> to vector<16x1xf32>
    %cst_7 = arith.constant 2.000000e+00 : f32
    %11 = vector.broadcast %cst_7 : f32 to vector<16x16xf32>
    %12 = arith.mulf %11, %4 : vector<16x16xf32>
    %13 = vector.broadcast %7 : vector<16x1xf32> to vector<16x16xf32>
    %14 = arith.subf %12, %13 : vector<16x16xf32>
    %15 = tpu.transpose %10, [1, 0] : vector<16x1xf32> -> vector<1x16xf32>
    %16 = vector.broadcast %15 : vector<1x16xf32> to vector<16x16xf32>
    %17 = arith.subf %14, %16 : vector<16x16xf32>
    %c0_8 = arith.constant 0 : index
    %c0_9 = arith.constant 0 : index
    %c0_10 = arith.constant 0 : index
    %18 = vector.load %arg5[%c0_8, %c0_9, %c0_10] : memref<1x16x16xf32, #tpu.memory_space<vmem>>, vector<1x16x16xf32>
    %19 = vector.shape_cast %18 : vector<1x16x16xf32> to vector<16x16xf32>
    %20 = vector.shape_cast %17 : vector<16x16xf32> to vector<1x16x16xf32>
    tpu.vector_store %arg5[%c0_8, %c0_9, %c0_10], %20 {strides = array<i32>} : memref<1x16x16xf32, #tpu.memory_space<vmem>>, vector<1x16x16xf32>,
    return
  }
  func.func @transform_0(%arg0: i32, %arg1: i32, %arg2: i32) -> (i32, i32, i32) {
    %c0_i32 = arith.constant 0 : i32
    %c0_i32_0 = arith.constant 0 : i32
    return %arg0, %arg1, %c0_i32 : i32, i32, i32
  }
  func.func @transform_1(%arg0: i32, %arg1: i32, %arg2: i32) -> (i32, i32, i32) {
    %c0_i32 = arith.constant 0 : i32
    %c0_i32_0 = arith.constant 0 : i32
    return %arg0, %arg2, %c0_i32 : i32, i32, i32
  }
  func.func @transform_2(%arg0: i32, %arg1: i32, %arg2: i32) -> (i32, i32, i32) {
    %c0_i32 = arith.constant 0 : i32
    return %arg0, %arg1, %arg2 : i32, i32, i32
  }
}

module attributes {stable_mosaic.version = 11 : i64} {
  func.func @_edgeconv_kernel(%arg0: i32, %arg1: i32, %arg2: memref<1x16x3xf32, #tpu.memory_space<vmem>>, %arg3: memref<1x8x16x3xbf16, #tpu.memory_space<vmem>>, %arg4: memref<3x64xbf16, #tpu.memory_space<vmem>>, %arg5: memref<3x64xbf16, #tpu.memory_space<vmem>>, %arg6: memref<1x64xf32, #tpu.memory_space<vmem>>, %arg7: memref<64x128xbf16, #tpu.memory_space<vmem>>, %arg8: memref<1x128xf32, #tpu.memory_space<vmem>>, %arg9: memref<1x16x128xf32, #tpu.memory_space<vmem>>) attributes {dimension_semantics = [#tpu.dimension_semantics<parallel>, #tpu.dimension_semantics<parallel>], iteration_bounds = array<i64: 2, 1>, scalar_prefetch = 0 : i64, scratch_operands = 0 : i64, tpu.core_type = #tpu.core_type<tc>, window_params = [{transform_indices = @transform_0, window_bounds = array<i64: 1, 16, 3>}, {transform_indices = @transform_1, window_bounds = array<i64: 1, 8, 16, 3>}, {pipeline_mode = #tpu.pipeline_mode<synchronous>, transform_indices = @transform_2, window_bounds = array<i64: 3, 64>}, {pipeline_mode = #tpu.pipeline_mode<synchronous>, transform_indices = @transform_3, window_bounds = array<i64: 3, 64>}, {pipeline_mode = #tpu.pipeline_mode<synchronous>, transform_indices = @transform_4, window_bounds = array<i64: 1, 64>}, {pipeline_mode = #tpu.pipeline_mode<synchronous>, transform_indices = @transform_5, window_bounds = array<i64: 64, 128>}, {pipeline_mode = #tpu.pipeline_mode<synchronous>, transform_indices = @transform_6, window_bounds = array<i64: 1, 128>}, {transform_indices = @transform_7, window_bounds = array<i64: 1, 16, 128>}]} {
    %c0 = arith.constant 0 : index
    %c0_0 = arith.constant 0 : index
    %c0_1 = arith.constant 0 : index
    %0 = vector.load %arg2[%c0, %c0_0, %c0_1] : memref<1x16x3xf32, #tpu.memory_space<vmem>>, vector<1x16x3xf32>
    %1 = vector.shape_cast %0 : vector<1x16x3xf32> to vector<16x3xf32>
    %2 = arith.truncf %1 : vector<16x3xf32> to vector<16x3xbf16>
    %c0_2 = arith.constant 0 : index
    %c0_3 = arith.constant 0 : index
    %3 = vector.load %arg5[%c0_2, %c0_3] : memref<3x64xbf16, #tpu.memory_space<vmem>>, vector<3x64xbf16>
    %cst = arith.constant dense<0.000000e+00> : vector<16x64xf32>
    %4 = tpu.matmul %2, %3, %cst {dimension_numbers = #tpu.dot_dimension_numbers<[1], [0], [0], [1], [0, 0, 1, 1], [], []>} : vector<16x3xbf16>, vector<3x64xbf16>, vector<16x64xf32> -> vector<16x64xf32>
    %c0_4 = arith.constant 0 : index
    %c0_5 = arith.constant 0 : index
    %5 = vector.load %arg6[%c0_4, %c0_5] : memref<1x64xf32, #tpu.memory_space<vmem>>, vector<1x64xf32>
    %6 = vector.broadcast %5 : vector<1x64xf32> to vector<16x64xf32>
    %7 = arith.addf %4, %6 : vector<16x64xf32>
    %c0_6 = arith.constant 0 : index
    %c0_7 = arith.constant 0 : index
    %c0_8 = arith.constant 0 : index
    %c0_9 = arith.constant 0 : index
    %8 = vector.load %arg3[%c0_6, %c0_7, %c0_8, %c0_9] : memref<1x8x16x3xbf16, #tpu.memory_space<vmem>>, vector<1x8x16x3xbf16>
    %9 = vector.shape_cast %8 : vector<1x8x16x3xbf16> to vector<8x16x3xbf16>
    %10 = vector.shape_cast %9 : vector<8x16x3xbf16> to vector<128x3xbf16>
    %c0_10 = arith.constant 0 : index
    %c0_11 = arith.constant 0 : index
    %11 = vector.load %arg4[%c0_10, %c0_11] : memref<3x64xbf16, #tpu.memory_space<vmem>>, vector<3x64xbf16>
    %cst_12 = arith.constant dense<0.000000e+00> : vector<128x64xf32>
    %12 = tpu.matmul %10, %11, %cst_12 {dimension_numbers = #tpu.dot_dimension_numbers<[1], [0], [0], [1], [0, 0, 1, 1], [], []>} : vector<128x3xbf16>, vector<3x64xbf16>, vector<128x64xf32> -> vector<128x64xf32>
    %13 = vector.shape_cast %12 : vector<128x64xf32> to vector<8x16x64xf32>
    %14 = vector.shape_cast %7 : vector<16x64xf32> to vector<1x16x64xf32>
    %15 = vector.broadcast %14 : vector<1x16x64xf32> to vector<8x16x64xf32>
    %16 = arith.addf %13, %15 : vector<8x16x64xf32>
    %cst_13 = arith.constant 2.000000e-01 : f32
    %17 = vector.broadcast %cst_13 : f32 to vector<8x16x64xf32>
    %18 = arith.mulf %17, %16 : vector<8x16x64xf32>
    %19 = arith.maximumf %16, %18 : vector<8x16x64xf32>
    %20 = vector.shape_cast %19 : vector<8x16x64xf32> to vector<128x64xf32>
    %21 = arith.truncf %20 : vector<128x64xf32> to vector<128x64xbf16>
    %c0_14 = arith.constant 0 : index
    %c0_15 = arith.constant 0 : index
    %22 = vector.load %arg7[%c0_14, %c0_15] : memref<64x128xbf16, #tpu.memory_space<vmem>>, vector<64x128xbf16>
    %cst_16 = arith.constant dense<0.000000e+00> : vector<128x128xf32>
    %23 = tpu.matmul %21, %22, %cst_16 {dimension_numbers = #tpu.dot_dimension_numbers<[1], [0], [0], [1], [0, 0, 1, 1], [], []>} : vector<128x64xbf16>, vector<64x128xbf16>, vector<128x128xf32> -> vector<128x128xf32>
    %24 = vector.shape_cast %23 : vector<128x128xf32> to vector<8x16x128xf32>
    %c0_17 = arith.constant 0 : index
    %c0_18 = arith.constant 0 : index
    %25 = vector.load %arg8[%c0_17, %c0_18] : memref<1x128xf32, #tpu.memory_space<vmem>>, vector<1x128xf32>
    %26 = vector.shape_cast %25 : vector<1x128xf32> to vector<1x1x128xf32>
    %27 = vector.broadcast %26 : vector<1x1x128xf32> to vector<8x16x128xf32>
    %28 = arith.addf %24, %27 : vector<8x16x128xf32>
    %cst_19 = arith.constant 2.000000e-01 : f32
    %29 = vector.broadcast %cst_19 : f32 to vector<8x16x128xf32>
    %30 = arith.mulf %29, %28 : vector<8x16x128xf32>
    %31 = arith.maximumf %28, %30 : vector<8x16x128xf32>
    %cst_20 = arith.constant dense<0xFF800000> : vector<16x128xf32>
    %32 = vector.multi_reduction <maximumf>, %31, %cst_20 [0] : vector<8x16x128xf32> to vector<16x128xf32>
    %c0_21 = arith.constant 0 : index
    %c0_22 = arith.constant 0 : index
    %c0_23 = arith.constant 0 : index
    %33 = vector.load %arg9[%c0_21, %c0_22, %c0_23] : memref<1x16x128xf32, #tpu.memory_space<vmem>>, vector<1x16x128xf32>
    %34 = vector.shape_cast %33 : vector<1x16x128xf32> to vector<16x128xf32>
    %35 = vector.shape_cast %32 : vector<16x128xf32> to vector<1x16x128xf32>
    tpu.vector_store %arg9[%c0_21, %c0_22, %c0_23], %35 {strides = array<i32>} : memref<1x16x128xf32, #tpu.memory_space<vmem>>, vector<1x16x128xf32>,
    return
  }
  func.func @transform_0(%arg0: i32, %arg1: i32) -> (i32, i32, i32) {
    %c0_i32 = arith.constant 0 : i32
    %c0_i32_0 = arith.constant 0 : i32
    return %arg0, %arg1, %c0_i32 : i32, i32, i32
  }
  func.func @transform_1(%arg0: i32, %arg1: i32) -> (i32, i32, i32, i32) {
    %c0_i32 = arith.constant 0 : i32
    %c0_i32_0 = arith.constant 0 : i32
    %c0_i32_1 = arith.constant 0 : i32
    return %arg0, %c0_i32, %arg1, %c0_i32_0 : i32, i32, i32, i32
  }
  func.func @transform_2(%arg0: i32, %arg1: i32) -> (i32, i32) {
    %c0_i32 = arith.constant 0 : i32
    %c0_i32_0 = arith.constant 0 : i32
    %c0_i32_1 = arith.constant 0 : i32
    return %c0_i32, %c0_i32_0 : i32, i32
  }
  func.func @transform_3(%arg0: i32, %arg1: i32) -> (i32, i32) {
    %c0_i32 = arith.constant 0 : i32
    %c0_i32_0 = arith.constant 0 : i32
    %c0_i32_1 = arith.constant 0 : i32
    return %c0_i32, %c0_i32_0 : i32, i32
  }
  func.func @transform_4(%arg0: i32, %arg1: i32) -> (i32, i32) {
    %c0_i32 = arith.constant 0 : i32
    %c0_i32_0 = arith.constant 0 : i32
    %c0_i32_1 = arith.constant 0 : i32
    return %c0_i32, %c0_i32_0 : i32, i32
  }
  func.func @transform_5(%arg0: i32, %arg1: i32) -> (i32, i32) {
    %c0_i32 = arith.constant 0 : i32
    %c0_i32_0 = arith.constant 0 : i32
    %c0_i32_1 = arith.constant 0 : i32
    return %c0_i32, %c0_i32_0 : i32, i32
  }
  func.func @transform_6(%arg0: i32, %arg1: i32) -> (i32, i32) {
    %c0_i32 = arith.constant 0 : i32
    %c0_i32_0 = arith.constant 0 : i32
    %c0_i32_1 = arith.constant 0 : i32
    return %c0_i32, %c0_i32_0 : i32, i32
  }
  func.func @transform_7(%arg0: i32, %arg1: i32) -> (i32, i32, i32) {
    %c0_i32 = arith.constant 0 : i32
    %c0_i32_0 = arith.constant 0 : i32
    return %arg0, %arg1, %c0_i32 : i32, i32, i32
  }
}

module attributes {stable_mosaic.version = 11 : i64} {
  func.func @_mm_rowmax_kernel(%arg0: i32, %arg1: i32, %arg2: i32, %arg3: memref<1x16x128xf32, #tpu.memory_space<vmem>>, %arg4: memref<128x512xbf16, #tpu.memory_space<vmem>>, %arg5: memref<1x512xf32, #tpu.memory_space<vmem>>, %arg6: memref<1x1x512xf32, #tpu.memory_space<vmem>>) attributes {dimension_semantics = [#tpu.dimension_semantics<parallel>, #tpu.dimension_semantics<parallel>, #tpu.dimension_semantics<arbitrary>], iteration_bounds = array<i64: 2, 2, 1>, scalar_prefetch = 0 : i64, scratch_operands = 0 : i64, tpu.core_type = #tpu.core_type<tc>, window_params = [{transform_indices = @transform_0, window_bounds = array<i64: 1, 16, 128>}, {transform_indices = @transform_1, window_bounds = array<i64: 128, 512>}, {transform_indices = @transform_2, window_bounds = array<i64: 1, 512>}, {transform_indices = @transform_3, window_bounds = array<i64: 1, 1, 512>}]} {
    %c0_i32 = arith.constant 0 : i32
    %0 = arith.cmpi eq, %arg2, %c0_i32 : i32
    %1 = arith.extui %0 : i1 to i32
    %c0_i32_0 = arith.constant 0 : i32
    %2 = arith.cmpi ne, %1, %c0_i32_0 : i32
    scf.if %2 {
      %cst_15 = arith.constant 0xFF800000 : f32
      %22 = vector.broadcast %cst_15 : f32 to vector<1x1x512xf32>
      %c0_16 = arith.constant 0 : index
      %c0_17 = arith.constant 0 : index
      %c0_18 = arith.constant 0 : index
      %23 = vector.load %arg6[%c0_16, %c0_17, %c0_18] : memref<1x1x512xf32, #tpu.memory_space<vmem>>, vector<1x1x512xf32>
      tpu.vector_store %arg6[%c0_16, %c0_17, %c0_18], %22 {strides = array<i32>} : memref<1x1x512xf32, #tpu.memory_space<vmem>>, vector<1x1x512xf32>,
    } else {
    }
    %c0 = arith.constant 0 : index
    %c0_1 = arith.constant 0 : index
    %c0_2 = arith.constant 0 : index
    %3 = vector.load %arg3[%c0, %c0_1, %c0_2] : memref<1x16x128xf32, #tpu.memory_space<vmem>>, vector<1x16x128xf32>
    %4 = vector.shape_cast %3 : vector<1x16x128xf32> to vector<16x128xf32>
    %5 = arith.truncf %4 : vector<16x128xf32> to vector<16x128xbf16>
    %c0_3 = arith.constant 0 : index
    %c0_4 = arith.constant 0 : index
    %6 = vector.load %arg4[%c0_3, %c0_4] : memref<128x512xbf16, #tpu.memory_space<vmem>>, vector<128x512xbf16>
    %cst = arith.constant dense<0.000000e+00> : vector<16x512xf32>
    %7 = tpu.matmul %5, %6, %cst {dimension_numbers = #tpu.dot_dimension_numbers<[1], [0], [0], [1], [0, 0, 1, 1], [], []>} : vector<16x128xbf16>, vector<128x512xbf16>, vector<16x512xf32> -> vector<16x512xf32>
    %c0_5 = arith.constant 0 : index
    %c0_6 = arith.constant 0 : index
    %8 = vector.load %arg5[%c0_5, %c0_6] : memref<1x512xf32, #tpu.memory_space<vmem>>, vector<1x512xf32>
    %9 = vector.broadcast %8 : vector<1x512xf32> to vector<16x512xf32>
    %10 = arith.addf %7, %9 : vector<16x512xf32>
    %cst_7 = arith.constant 2.000000e-01 : f32
    %11 = vector.broadcast %cst_7 : f32 to vector<16x512xf32>
    %12 = arith.mulf %11, %10 : vector<16x512xf32>
    %13 = arith.maximumf %10, %12 : vector<16x512xf32>
    %cst_8 = arith.constant dense<0xFF800000> : vector<512xf32>
    %14 = vector.multi_reduction <maximumf>, %13, %cst_8 [0] : vector<16x512xf32> to vector<512xf32>
    %15 = vector.shape_cast %14 : vector<512xf32> to vector<1x512xf32>
    %c0_9 = arith.constant 0 : index
    %c0_10 = arith.constant 0 : index
    %c0_11 = arith.constant 0 : index
    %16 = vector.load %arg6[%c0_9, %c0_10, %c0_11] : memref<1x1x512xf32, #tpu.memory_space<vmem>>, vector<1x1x512xf32>
    %17 = vector.shape_cast %16 : vector<1x1x512xf32> to vector<1x512xf32>
    %18 = arith.maximumf %17, %15 : vector<1x512xf32>
    %c0_12 = arith.constant 0 : index
    %c0_13 = arith.constant 0 : index
    %c0_14 = arith.constant 0 : index
    %19 = vector.load %arg6[%c0_12, %c0_13, %c0_14] : memref<1x1x512xf32, #tpu.memory_space<vmem>>, vector<1x1x512xf32>
    %20 = vector.shape_cast %19 : vector<1x1x512xf32> to vector<1x512xf32>
    %21 = vector.shape_cast %18 : vector<1x512xf32> to vector<1x1x512xf32>
    tpu.vector_store %arg6[%c0_12, %c0_13, %c0_14], %21 {strides = array<i32>} : memref<1x1x512xf32, #tpu.memory_space<vmem>>, vector<1x1x512xf32>,
    return
  }
  func.func @transform_0(%arg0: i32, %arg1: i32, %arg2: i32) -> (i32, i32, i32) {
    %c0_i32 = arith.constant 0 : i32
    %c0_i32_0 = arith.constant 0 : i32
    return %arg0, %arg2, %c0_i32 : i32, i32, i32
  }
  func.func @transform_1(%arg0: i32, %arg1: i32, %arg2: i32) -> (i32, i32) {
    %c0_i32 = arith.constant 0 : i32
    %c0_i32_0 = arith.constant 0 : i32
    return %c0_i32, %arg1 : i32, i32
  }
  func.func @transform_2(%arg0: i32, %arg1: i32, %arg2: i32) -> (i32, i32) {
    %c0_i32 = arith.constant 0 : i32
    %c0_i32_0 = arith.constant 0 : i32
    return %c0_i32, %arg1 : i32, i32
  }
  func.func @transform_3(%arg0: i32, %arg1: i32, %arg2: i32) -> (i32, i32, i32) {
    %c0_i32 = arith.constant 0 : i32
    %c0_i32_0 = arith.constant 0 : i32
    return %arg0, %c0_i32, %arg1 : i32, i32, i32
  }
}

module attributes {stable_mosaic.version = 11 : i64} {
  func.func @_head_kernel(%arg0: memref<2x1024xf32, #tpu.memory_space<vmem>>, %arg1: memref<1024x512xbf16, #tpu.memory_space<vmem>>, %arg2: memref<1x512xf32, #tpu.memory_space<vmem>>, %arg3: memref<512x256xbf16, #tpu.memory_space<vmem>>, %arg4: memref<1x256xf32, #tpu.memory_space<vmem>>, %arg5: memref<256x9xbf16, #tpu.memory_space<vmem>>, %arg6: memref<1x9xf32, #tpu.memory_space<vmem>>, %arg7: memref<2x9xf32, #tpu.memory_space<vmem>>) attributes {dimension_semantics = [], scalar_prefetch = 0 : i64, scratch_operands = 0 : i64, tpu.core_type = #tpu.core_type<tc>} {
    %c0 = arith.constant 0 : index
    %c0_0 = arith.constant 0 : index
    %0 = vector.load %arg0[%c0, %c0_0] : memref<2x1024xf32, #tpu.memory_space<vmem>>, vector<2x1024xf32>
    %1 = arith.truncf %0 : vector<2x1024xf32> to vector<2x1024xbf16>
    %c0_1 = arith.constant 0 : index
    %c0_2 = arith.constant 0 : index
    %2 = vector.load %arg1[%c0_1, %c0_2] : memref<1024x512xbf16, #tpu.memory_space<vmem>>, vector<1024x512xbf16>
    %cst = arith.constant dense<0.000000e+00> : vector<2x512xf32>
    %3 = tpu.matmul %1, %2, %cst {dimension_numbers = #tpu.dot_dimension_numbers<[1], [0], [0], [1], [0, 0, 1, 1], [], []>} : vector<2x1024xbf16>, vector<1024x512xbf16>, vector<2x512xf32> -> vector<2x512xf32>
    %c0_3 = arith.constant 0 : index
    %c0_4 = arith.constant 0 : index
    %4 = vector.load %arg2[%c0_3, %c0_4] : memref<1x512xf32, #tpu.memory_space<vmem>>, vector<1x512xf32>
    %5 = vector.broadcast %4 : vector<1x512xf32> to vector<2x512xf32>
    %6 = arith.addf %3, %5 : vector<2x512xf32>
    %cst_5 = arith.constant 2.000000e-01 : f32
    %7 = vector.broadcast %cst_5 : f32 to vector<2x512xf32>
    %8 = arith.mulf %7, %6 : vector<2x512xf32>
    %9 = arith.maximumf %6, %8 : vector<2x512xf32>
    %10 = arith.truncf %9 : vector<2x512xf32> to vector<2x512xbf16>
    %c0_6 = arith.constant 0 : index
    %c0_7 = arith.constant 0 : index
    %11 = vector.load %arg3[%c0_6, %c0_7] : memref<512x256xbf16, #tpu.memory_space<vmem>>, vector<512x256xbf16>
    %cst_8 = arith.constant dense<0.000000e+00> : vector<2x256xf32>
    %12 = tpu.matmul %10, %11, %cst_8 {dimension_numbers = #tpu.dot_dimension_numbers<[1], [0], [0], [1], [0, 0, 1, 1], [], []>} : vector<2x512xbf16>, vector<512x256xbf16>, vector<2x256xf32> -> vector<2x256xf32>
    %c0_9 = arith.constant 0 : index
    %c0_10 = arith.constant 0 : index
    %13 = vector.load %arg4[%c0_9, %c0_10] : memref<1x256xf32, #tpu.memory_space<vmem>>, vector<1x256xf32>
    %14 = vector.broadcast %13 : vector<1x256xf32> to vector<2x256xf32>
    %15 = arith.addf %12, %14 : vector<2x256xf32>
    %cst_11 = arith.constant 2.000000e-01 : f32
    %16 = vector.broadcast %cst_11 : f32 to vector<2x256xf32>
    %17 = arith.mulf %16, %15 : vector<2x256xf32>
    %18 = arith.maximumf %15, %17 : vector<2x256xf32>
    %19 = arith.truncf %18 : vector<2x256xf32> to vector<2x256xbf16>
    %c0_12 = arith.constant 0 : index
    %c0_13 = arith.constant 0 : index
    %20 = vector.load %arg5[%c0_12, %c0_13] : memref<256x9xbf16, #tpu.memory_space<vmem>>, vector<256x9xbf16>
    %cst_14 = arith.constant dense<0.000000e+00> : vector<2x9xf32>
    %21 = tpu.matmul %19, %20, %cst_14 {dimension_numbers = #tpu.dot_dimension_numbers<[1], [0], [0], [1], [0, 0, 1, 1], [], []>} : vector<2x256xbf16>, vector<256x9xbf16>, vector<2x9xf32> -> vector<2x9xf32>
    %c0_15 = arith.constant 0 : index
    %c0_16 = arith.constant 0 : index
    %22 = vector.load %arg6[%c0_15, %c0_16] : memref<1x9xf32, #tpu.memory_space<vmem>>, vector<1x9xf32>
    %23 = vector.broadcast %22 : vector<1x9xf32> to vector<2x9xf32>
    %24 = arith.addf %21, %23 : vector<2x9xf32>
    %c0_17 = arith.constant 0 : index
    %c0_18 = arith.constant 0 : index
    %25 = vector.load %arg7[%c0_17, %c0_18] : memref<2x9xf32, #tpu.memory_space<vmem>>, vector<2x9xf32>
    tpu.vector_store %arg7[%c0_17, %c0_18], %24 {strides = array<i32>} : memref<2x9xf32, #tpu.memory_space<vmem>>, vector<2x9xf32>,
    return
  }
}

module attributes {stable_mosaic.version = 11 : i64} {
  func.func @_edgeconv_kernel(%arg0: i32, %arg1: i32, %arg2: memref<1x16x3xf32, #tpu.memory_space<vmem>>, %arg3: memref<1x8x16x3xbf16, #tpu.memory_space<vmem>>, %arg4: memref<3x64xbf16, #tpu.memory_space<vmem>>, %arg5: memref<3x64xbf16, #tpu.memory_space<vmem>>, %arg6: memref<1x64xf32, #tpu.memory_space<vmem>>, %arg7: memref<64x64xbf16, #tpu.memory_space<vmem>>, %arg8: memref<1x64xf32, #tpu.memory_space<vmem>>, %arg9: memref<1x16x64xf32, #tpu.memory_space<vmem>>) attributes {dimension_semantics = [#tpu.dimension_semantics<parallel>, #tpu.dimension_semantics<parallel>], iteration_bounds = array<i64: 2, 1>, scalar_prefetch = 0 : i64, scratch_operands = 0 : i64, tpu.core_type = #tpu.core_type<tc>, window_params = [{transform_indices = @transform_0, window_bounds = array<i64: 1, 16, 3>}, {transform_indices = @transform_1, window_bounds = array<i64: 1, 8, 16, 3>}, {pipeline_mode = #tpu.pipeline_mode<synchronous>, transform_indices = @transform_2, window_bounds = array<i64: 3, 64>}, {pipeline_mode = #tpu.pipeline_mode<synchronous>, transform_indices = @transform_3, window_bounds = array<i64: 3, 64>}, {pipeline_mode = #tpu.pipeline_mode<synchronous>, transform_indices = @transform_4, window_bounds = array<i64: 1, 64>}, {pipeline_mode = #tpu.pipeline_mode<synchronous>, transform_indices = @transform_5, window_bounds = array<i64: 64, 64>}, {pipeline_mode = #tpu.pipeline_mode<synchronous>, transform_indices = @transform_6, window_bounds = array<i64: 1, 64>}, {transform_indices = @transform_7, window_bounds = array<i64: 1, 16, 64>}]} {
    %c0 = arith.constant 0 : index
    %c0_0 = arith.constant 0 : index
    %c0_1 = arith.constant 0 : index
    %0 = vector.load %arg2[%c0, %c0_0, %c0_1] : memref<1x16x3xf32, #tpu.memory_space<vmem>>, vector<1x16x3xf32>
    %1 = vector.shape_cast %0 : vector<1x16x3xf32> to vector<16x3xf32>
    %2 = arith.truncf %1 : vector<16x3xf32> to vector<16x3xbf16>
    %c0_2 = arith.constant 0 : index
    %c0_3 = arith.constant 0 : index
    %3 = vector.load %arg5[%c0_2, %c0_3] : memref<3x64xbf16, #tpu.memory_space<vmem>>, vector<3x64xbf16>
    %cst = arith.constant dense<0.000000e+00> : vector<16x64xf32>
    %4 = tpu.matmul %2, %3, %cst {dimension_numbers = #tpu.dot_dimension_numbers<[1], [0], [0], [1], [0, 0, 1, 1], [], []>} : vector<16x3xbf16>, vector<3x64xbf16>, vector<16x64xf32> -> vector<16x64xf32>
    %c0_4 = arith.constant 0 : index
    %c0_5 = arith.constant 0 : index
    %5 = vector.load %arg6[%c0_4, %c0_5] : memref<1x64xf32, #tpu.memory_space<vmem>>, vector<1x64xf32>
    %6 = vector.broadcast %5 : vector<1x64xf32> to vector<16x64xf32>
    %7 = arith.addf %4, %6 : vector<16x64xf32>
    %c0_6 = arith.constant 0 : index
    %c0_7 = arith.constant 0 : index
    %c0_8 = arith.constant 0 : index
    %c0_9 = arith.constant 0 : index
    %8 = vector.load %arg3[%c0_6, %c0_7, %c0_8, %c0_9] : memref<1x8x16x3xbf16, #tpu.memory_space<vmem>>, vector<1x8x16x3xbf16>
    %9 = vector.shape_cast %8 : vector<1x8x16x3xbf16> to vector<8x16x3xbf16>
    %10 = vector.shape_cast %9 : vector<8x16x3xbf16> to vector<128x3xbf16>
    %c0_10 = arith.constant 0 : index
    %c0_11 = arith.constant 0 : index
    %11 = vector.load %arg4[%c0_10, %c0_11] : memref<3x64xbf16, #tpu.memory_space<vmem>>, vector<3x64xbf16>
    %cst_12 = arith.constant dense<0.000000e+00> : vector<128x64xf32>
    %12 = tpu.matmul %10, %11, %cst_12 {dimension_numbers = #tpu.dot_dimension_numbers<[1], [0], [0], [1], [0, 0, 1, 1], [], []>} : vector<128x3xbf16>, vector<3x64xbf16>, vector<128x64xf32> -> vector<128x64xf32>
    %13 = vector.shape_cast %12 : vector<128x64xf32> to vector<8x16x64xf32>
    %14 = vector.shape_cast %7 : vector<16x64xf32> to vector<1x16x64xf32>
    %15 = vector.broadcast %14 : vector<1x16x64xf32> to vector<8x16x64xf32>
    %16 = arith.addf %13, %15 : vector<8x16x64xf32>
    %cst_13 = arith.constant 2.000000e-01 : f32
    %17 = vector.broadcast %cst_13 : f32 to vector<8x16x64xf32>
    %18 = arith.mulf %17, %16 : vector<8x16x64xf32>
    %19 = arith.maximumf %16, %18 : vector<8x16x64xf32>
    %20 = vector.shape_cast %19 : vector<8x16x64xf32> to vector<128x64xf32>
    %21 = arith.truncf %20 : vector<128x64xf32> to vector<128x64xbf16>
    %c0_14 = arith.constant 0 : index
    %c0_15 = arith.constant 0 : index
    %22 = vector.load %arg7[%c0_14, %c0_15] : memref<64x64xbf16, #tpu.memory_space<vmem>>, vector<64x64xbf16>
    %cst_16 = arith.constant dense<0.000000e+00> : vector<128x64xf32>
    %23 = tpu.matmul %21, %22, %cst_16 {dimension_numbers = #tpu.dot_dimension_numbers<[1], [0], [0], [1], [0, 0, 1, 1], [], []>} : vector<128x64xbf16>, vector<64x64xbf16>, vector<128x64xf32> -> vector<128x64xf32>
    %24 = vector.shape_cast %23 : vector<128x64xf32> to vector<8x16x64xf32>
    %c0_17 = arith.constant 0 : index
    %c0_18 = arith.constant 0 : index
    %25 = vector.load %arg8[%c0_17, %c0_18] : memref<1x64xf32, #tpu.memory_space<vmem>>, vector<1x64xf32>
    %26 = vector.shape_cast %25 : vector<1x64xf32> to vector<1x1x64xf32>
    %27 = vector.broadcast %26 : vector<1x1x64xf32> to vector<8x16x64xf32>
    %28 = arith.addf %24, %27 : vector<8x16x64xf32>
    %cst_19 = arith.constant 2.000000e-01 : f32
    %29 = vector.broadcast %cst_19 : f32 to vector<8x16x64xf32>
    %30 = arith.mulf %29, %28 : vector<8x16x64xf32>
    %31 = arith.maximumf %28, %30 : vector<8x16x64xf32>
    %cst_20 = arith.constant dense<0xFF800000> : vector<16x64xf32>
    %32 = vector.multi_reduction <maximumf>, %31, %cst_20 [0] : vector<8x16x64xf32> to vector<16x64xf32>
    %c0_21 = arith.constant 0 : index
    %c0_22 = arith.constant 0 : index
    %c0_23 = arith.constant 0 : index
    %33 = vector.load %arg9[%c0_21, %c0_22, %c0_23] : memref<1x16x64xf32, #tpu.memory_space<vmem>>, vector<1x16x64xf32>
    %34 = vector.shape_cast %33 : vector<1x16x64xf32> to vector<16x64xf32>
    %35 = vector.shape_cast %32 : vector<16x64xf32> to vector<1x16x64xf32>
    tpu.vector_store %arg9[%c0_21, %c0_22, %c0_23], %35 {strides = array<i32>} : memref<1x16x64xf32, #tpu.memory_space<vmem>>, vector<1x16x64xf32>,
    return
  }
  func.func @transform_0(%arg0: i32, %arg1: i32) -> (i32, i32, i32) {
    %c0_i32 = arith.constant 0 : i32
    %c0_i32_0 = arith.constant 0 : i32
    return %arg0, %arg1, %c0_i32 : i32, i32, i32
  }
  func.func @transform_1(%arg0: i32, %arg1: i32) -> (i32, i32, i32, i32) {
    %c0_i32 = arith.constant 0 : i32
    %c0_i32_0 = arith.constant 0 : i32
    %c0_i32_1 = arith.constant 0 : i32
    return %arg0, %c0_i32, %arg1, %c0_i32_0 : i32, i32, i32, i32
  }
  func.func @transform_2(%arg0: i32, %arg1: i32) -> (i32, i32) {
    %c0_i32 = arith.constant 0 : i32
    %c0_i32_0 = arith.constant 0 : i32
    %c0_i32_1 = arith.constant 0 : i32
    return %c0_i32, %c0_i32_0 : i32, i32
  }
  func.func @transform_3(%arg0: i32, %arg1: i32) -> (i32, i32) {
    %c0_i32 = arith.constant 0 : i32
    %c0_i32_0 = arith.constant 0 : i32
    %c0_i32_1 = arith.constant 0 : i32
    return %c0_i32, %c0_i32_0 : i32, i32
  }
  func.func @transform_4(%arg0: i32, %arg1: i32) -> (i32, i32) {
    %c0_i32 = arith.constant 0 : i32
    %c0_i32_0 = arith.constant 0 : i32
    %c0_i32_1 = arith.constant 0 : i32
    return %c0_i32, %c0_i32_0 : i32, i32
  }
  func.func @transform_5(%arg0: i32, %arg1: i32) -> (i32, i32) {
    %c0_i32 = arith.constant 0 : i32
    %c0_i32_0 = arith.constant 0 : i32
    %c0_i32_1 = arith.constant 0 : i32
    return %c0_i32, %c0_i32_0 : i32, i32
  }
  func.func @transform_6(%arg0: i32, %arg1: i32) -> (i32, i32) {
    %c0_i32 = arith.constant 0 : i32
    %c0_i32_0 = arith.constant 0 : i32
    %c0_i32_1 = arith.constant 0 : i32
    return %c0_i32, %c0_i32_0 : i32, i32
  }
  func.func @transform_7(%arg0: i32, %arg1: i32) -> (i32, i32, i32) {
    %c0_i32 = arith.constant 0 : i32
    %c0_i32_0 = arith.constant 0 : i32
    return %arg0, %arg1, %c0_i32 : i32, i32, i32
  }
}

module attributes {stable_mosaic.version = 11 : i64} {
  func.func @_pdist_kernel(%arg0: i32, %arg1: i32, %arg2: i32, %arg3: memref<1x16x64xf32, #tpu.memory_space<vmem>>, %arg4: memref<1x16x64xf32, #tpu.memory_space<vmem>>, %arg5: memref<1x16x16xf32, #tpu.memory_space<vmem>>) attributes {dimension_semantics = [#tpu.dimension_semantics<parallel>, #tpu.dimension_semantics<parallel>, #tpu.dimension_semantics<parallel>], iteration_bounds = array<i64: 2, 1, 1>, scalar_prefetch = 0 : i64, scratch_operands = 0 : i64, tpu.core_type = #tpu.core_type<tc>, window_params = [{transform_indices = @transform_0, window_bounds = array<i64: 1, 16, 64>}, {transform_indices = @transform_1, window_bounds = array<i64: 1, 16, 64>}, {transform_indices = @transform_2, window_bounds = array<i64: 1, 16, 16>}]} {
    %c0 = arith.constant 0 : index
    %c0_0 = arith.constant 0 : index
    %c0_1 = arith.constant 0 : index
    %0 = vector.load %arg3[%c0, %c0_0, %c0_1] : memref<1x16x64xf32, #tpu.memory_space<vmem>>, vector<1x16x64xf32>
    %1 = vector.shape_cast %0 : vector<1x16x64xf32> to vector<16x64xf32>
    %c0_2 = arith.constant 0 : index
    %c0_3 = arith.constant 0 : index
    %c0_4 = arith.constant 0 : index
    %2 = vector.load %arg4[%c0_2, %c0_3, %c0_4] : memref<1x16x64xf32, #tpu.memory_space<vmem>>, vector<1x16x64xf32>
    %3 = vector.shape_cast %2 : vector<1x16x64xf32> to vector<16x64xf32>
    %cst = arith.constant dense<0.000000e+00> : vector<16x16xf32>
    %4 = tpu.matmul %1, %3, %cst {dimension_numbers = #tpu.dot_dimension_numbers<[1], [1], [0], [0], [0, 0, 1, 0], [], []>} : vector<16x64xf32>, vector<16x64xf32>, vector<16x16xf32> -> vector<16x16xf32>
    %5 = arith.mulf %1, %1 : vector<16x64xf32>
    %cst_5 = arith.constant dense<0.000000e+00> : vector<16xf32>
    %6 = vector.multi_reduction <add>, %5, %cst_5 [1] : vector<16x64xf32> to vector<16xf32>
    %7 = vector.shape_cast %6 : vector<16xf32> to vector<16x1xf32>
    %8 = arith.mulf %3, %3 : vector<16x64xf32>
    %cst_6 = arith.constant dense<0.000000e+00> : vector<16xf32>
    %9 = vector.multi_reduction <add>, %8, %cst_6 [1] : vector<16x64xf32> to vector<16xf32>
    %10 = vector.shape_cast %9 : vector<16xf32> to vector<16x1xf32>
    %cst_7 = arith.constant 2.000000e+00 : f32
    %11 = vector.broadcast %cst_7 : f32 to vector<16x16xf32>
    %12 = arith.mulf %11, %4 : vector<16x16xf32>
    %13 = vector.broadcast %7 : vector<16x1xf32> to vector<16x16xf32>
    %14 = arith.subf %12, %13 : vector<16x16xf32>
    %15 = tpu.transpose %10, [1, 0] : vector<16x1xf32> -> vector<1x16xf32>
    %16 = vector.broadcast %15 : vector<1x16xf32> to vector<16x16xf32>
    %17 = arith.subf %14, %16 : vector<16x16xf32>
    %c0_8 = arith.constant 0 : index
    %c0_9 = arith.constant 0 : index
    %c0_10 = arith.constant 0 : index
    %18 = vector.load %arg5[%c0_8, %c0_9, %c0_10] : memref<1x16x16xf32, #tpu.memory_space<vmem>>, vector<1x16x16xf32>
    %19 = vector.shape_cast %18 : vector<1x16x16xf32> to vector<16x16xf32>
    %20 = vector.shape_cast %17 : vector<16x16xf32> to vector<1x16x16xf32>
    tpu.vector_store %arg5[%c0_8, %c0_9, %c0_10], %20 {strides = array<i32>} : memref<1x16x16xf32, #tpu.memory_space<vmem>>, vector<1x16x16xf32>,
    return
  }
  func.func @transform_0(%arg0: i32, %arg1: i32, %arg2: i32) -> (i32, i32, i32) {
    %c0_i32 = arith.constant 0 : i32
    %c0_i32_0 = arith.constant 0 : i32
    return %arg0, %arg1, %c0_i32 : i32, i32, i32
  }
  func.func @transform_1(%arg0: i32, %arg1: i32, %arg2: i32) -> (i32, i32, i32) {
    %c0_i32 = arith.constant 0 : i32
    %c0_i32_0 = arith.constant 0 : i32
    return %arg0, %arg2, %c0_i32 : i32, i32, i32
  }
  func.func @transform_2(%arg0: i32, %arg1: i32, %arg2: i32) -> (i32, i32, i32) {
    %c0_i32 = arith.constant 0 : i32
    return %arg0, %arg1, %arg2 : i32, i32, i32
  }
}

module attributes {stable_mosaic.version = 11 : i64} {
  func.func @_edgeconv_kernel(%arg0: i32, %arg1: i32, %arg2: memref<1x16x64xf32, #tpu.memory_space<vmem>>, %arg3: memref<1x8x16x64xbf16, #tpu.memory_space<vmem>>, %arg4: memref<64x64xbf16, #tpu.memory_space<vmem>>, %arg5: memref<64x64xbf16, #tpu.memory_space<vmem>>, %arg6: memref<1x64xf32, #tpu.memory_space<vmem>>, %arg7: memref<1x16x64xf32, #tpu.memory_space<vmem>>) attributes {dimension_semantics = [#tpu.dimension_semantics<parallel>, #tpu.dimension_semantics<parallel>], iteration_bounds = array<i64: 2, 1>, scalar_prefetch = 0 : i64, scratch_operands = 0 : i64, tpu.core_type = #tpu.core_type<tc>, window_params = [{transform_indices = @transform_0, window_bounds = array<i64: 1, 16, 64>}, {transform_indices = @transform_1, window_bounds = array<i64: 1, 8, 16, 64>}, {pipeline_mode = #tpu.pipeline_mode<synchronous>, transform_indices = @transform_2, window_bounds = array<i64: 64, 64>}, {pipeline_mode = #tpu.pipeline_mode<synchronous>, transform_indices = @transform_3, window_bounds = array<i64: 64, 64>}, {pipeline_mode = #tpu.pipeline_mode<synchronous>, transform_indices = @transform_4, window_bounds = array<i64: 1, 64>}, {transform_indices = @transform_5, window_bounds = array<i64: 1, 16, 64>}]} {
    %c0 = arith.constant 0 : index
    %c0_0 = arith.constant 0 : index
    %c0_1 = arith.constant 0 : index
    %0 = vector.load %arg2[%c0, %c0_0, %c0_1] : memref<1x16x64xf32, #tpu.memory_space<vmem>>, vector<1x16x64xf32>
    %1 = vector.shape_cast %0 : vector<1x16x64xf32> to vector<16x64xf32>
    %2 = arith.truncf %1 : vector<16x64xf32> to vector<16x64xbf16>
    %c0_2 = arith.constant 0 : index
    %c0_3 = arith.constant 0 : index
    %3 = vector.load %arg5[%c0_2, %c0_3] : memref<64x64xbf16, #tpu.memory_space<vmem>>, vector<64x64xbf16>
    %cst = arith.constant dense<0.000000e+00> : vector<16x64xf32>
    %4 = tpu.matmul %2, %3, %cst {dimension_numbers = #tpu.dot_dimension_numbers<[1], [0], [0], [1], [0, 0, 1, 1], [], []>} : vector<16x64xbf16>, vector<64x64xbf16>, vector<16x64xf32> -> vector<16x64xf32>
    %c0_4 = arith.constant 0 : index
    %c0_5 = arith.constant 0 : index
    %5 = vector.load %arg6[%c0_4, %c0_5] : memref<1x64xf32, #tpu.memory_space<vmem>>, vector<1x64xf32>
    %6 = vector.broadcast %5 : vector<1x64xf32> to vector<16x64xf32>
    %7 = arith.addf %4, %6 : vector<16x64xf32>
    %c0_6 = arith.constant 0 : index
    %c0_7 = arith.constant 0 : index
    %c0_8 = arith.constant 0 : index
    %c0_9 = arith.constant 0 : index
    %8 = vector.load %arg3[%c0_6, %c0_7, %c0_8, %c0_9] : memref<1x8x16x64xbf16, #tpu.memory_space<vmem>>, vector<1x8x16x64xbf16>
    %9 = vector.shape_cast %8 : vector<1x8x16x64xbf16> to vector<8x16x64xbf16>
    %10 = vector.shape_cast %9 : vector<8x16x64xbf16> to vector<128x64xbf16>
    %c0_10 = arith.constant 0 : index
    %c0_11 = arith.constant 0 : index
    %11 = vector.load %arg4[%c0_10, %c0_11] : memref<64x64xbf16, #tpu.memory_space<vmem>>, vector<64x64xbf16>
    %cst_12 = arith.constant dense<0.000000e+00> : vector<128x64xf32>
    %12 = tpu.matmul %10, %11, %cst_12 {dimension_numbers = #tpu.dot_dimension_numbers<[1], [0], [0], [1], [0, 0, 1, 1], [], []>} : vector<128x64xbf16>, vector<64x64xbf16>, vector<128x64xf32> -> vector<128x64xf32>
    %13 = vector.shape_cast %12 : vector<128x64xf32> to vector<8x16x64xf32>
    %14 = vector.shape_cast %7 : vector<16x64xf32> to vector<1x16x64xf32>
    %15 = vector.broadcast %14 : vector<1x16x64xf32> to vector<8x16x64xf32>
    %16 = arith.addf %13, %15 : vector<8x16x64xf32>
    %cst_13 = arith.constant 2.000000e-01 : f32
    %17 = vector.broadcast %cst_13 : f32 to vector<8x16x64xf32>
    %18 = arith.mulf %17, %16 : vector<8x16x64xf32>
    %19 = arith.maximumf %16, %18 : vector<8x16x64xf32>
    %cst_14 = arith.constant dense<0xFF800000> : vector<16x64xf32>
    %20 = vector.multi_reduction <maximumf>, %19, %cst_14 [0] : vector<8x16x64xf32> to vector<16x64xf32>
    %c0_15 = arith.constant 0 : index
    %c0_16 = arith.constant 0 : index
    %c0_17 = arith.constant 0 : index
    %21 = vector.load %arg7[%c0_15, %c0_16, %c0_17] : memref<1x16x64xf32, #tpu.memory_space<vmem>>, vector<1x16x64xf32>
    %22 = vector.shape_cast %21 : vector<1x16x64xf32> to vector<16x64xf32>
    %23 = vector.shape_cast %20 : vector<16x64xf32> to vector<1x16x64xf32>
    tpu.vector_store %arg7[%c0_15, %c0_16, %c0_17], %23 {strides = array<i32>} : memref<1x16x64xf32, #tpu.memory_space<vmem>>, vector<1x16x64xf32>,
    return
  }
  func.func @transform_0(%arg0: i32, %arg1: i32) -> (i32, i32, i32) {
    %c0_i32 = arith.constant 0 : i32
    %c0_i32_0 = arith.constant 0 : i32
    return %arg0, %arg1, %c0_i32 : i32, i32, i32
  }
  func.func @transform_1(%arg0: i32, %arg1: i32) -> (i32, i32, i32, i32) {
    %c0_i32 = arith.constant 0 : i32
    %c0_i32_0 = arith.constant 0 : i32
    %c0_i32_1 = arith.constant 0 : i32
    return %arg0, %c0_i32, %arg1, %c0_i32_0 : i32, i32, i32, i32
  }
  func.func @transform_2(%arg0: i32, %arg1: i32) -> (i32, i32) {
    %c0_i32 = arith.constant 0 : i32
    %c0_i32_0 = arith.constant 0 : i32
    %c0_i32_1 = arith.constant 0 : i32
    return %c0_i32, %c0_i32_0 : i32, i32
  }
  func.func @transform_3(%arg0: i32, %arg1: i32) -> (i32, i32) {
    %c0_i32 = arith.constant 0 : i32
    %c0_i32_0 = arith.constant 0 : i32
    %c0_i32_1 = arith.constant 0 : i32
    return %c0_i32, %c0_i32_0 : i32, i32
  }
  func.func @transform_4(%arg0: i32, %arg1: i32) -> (i32, i32) {
    %c0_i32 = arith.constant 0 : i32
    %c0_i32_0 = arith.constant 0 : i32
    %c0_i32_1 = arith.constant 0 : i32
    return %c0_i32, %c0_i32_0 : i32, i32
  }
  func.func @transform_5(%arg0: i32, %arg1: i32) -> (i32, i32, i32) {
    %c0_i32 = arith.constant 0 : i32
    %c0_i32_0 = arith.constant 0 : i32
    return %arg0, %arg1, %c0_i32 : i32, i32, i32
  }
}

module attributes {stable_mosaic.version = 11 : i64} {
  func.func @_edgeconv_kernel(%arg0: i32, %arg1: i32, %arg2: memref<1x16x64xf32, #tpu.memory_space<vmem>>, %arg3: memref<1x8x16x64xbf16, #tpu.memory_space<vmem>>, %arg4: memref<64x64xbf16, #tpu.memory_space<vmem>>, %arg5: memref<64x64xbf16, #tpu.memory_space<vmem>>, %arg6: memref<1x64xf32, #tpu.memory_space<vmem>>, %arg7: memref<64x64xbf16, #tpu.memory_space<vmem>>, %arg8: memref<1x64xf32, #tpu.memory_space<vmem>>, %arg9: memref<1x16x64xf32, #tpu.memory_space<vmem>>) attributes {dimension_semantics = [#tpu.dimension_semantics<parallel>, #tpu.dimension_semantics<parallel>], iteration_bounds = array<i64: 2, 1>, scalar_prefetch = 0 : i64, scratch_operands = 0 : i64, tpu.core_type = #tpu.core_type<tc>, window_params = [{transform_indices = @transform_0, window_bounds = array<i64: 1, 16, 64>}, {transform_indices = @transform_1, window_bounds = array<i64: 1, 8, 16, 64>}, {pipeline_mode = #tpu.pipeline_mode<synchronous>, transform_indices = @transform_2, window_bounds = array<i64: 64, 64>}, {pipeline_mode = #tpu.pipeline_mode<synchronous>, transform_indices = @transform_3, window_bounds = array<i64: 64, 64>}, {pipeline_mode = #tpu.pipeline_mode<synchronous>, transform_indices = @transform_4, window_bounds = array<i64: 1, 64>}, {pipeline_mode = #tpu.pipeline_mode<synchronous>, transform_indices = @transform_5, window_bounds = array<i64: 64, 64>}, {pipeline_mode = #tpu.pipeline_mode<synchronous>, transform_indices = @transform_6, window_bounds = array<i64: 1, 64>}, {transform_indices = @transform_7, window_bounds = array<i64: 1, 16, 64>}]} {
    %c0 = arith.constant 0 : index
    %c0_0 = arith.constant 0 : index
    %c0_1 = arith.constant 0 : index
    %0 = vector.load %arg2[%c0, %c0_0, %c0_1] : memref<1x16x64xf32, #tpu.memory_space<vmem>>, vector<1x16x64xf32>
    %1 = vector.shape_cast %0 : vector<1x16x64xf32> to vector<16x64xf32>
    %2 = arith.truncf %1 : vector<16x64xf32> to vector<16x64xbf16>
    %c0_2 = arith.constant 0 : index
    %c0_3 = arith.constant 0 : index
    %3 = vector.load %arg5[%c0_2, %c0_3] : memref<64x64xbf16, #tpu.memory_space<vmem>>, vector<64x64xbf16>
    %cst = arith.constant dense<0.000000e+00> : vector<16x64xf32>
    %4 = tpu.matmul %2, %3, %cst {dimension_numbers = #tpu.dot_dimension_numbers<[1], [0], [0], [1], [0, 0, 1, 1], [], []>} : vector<16x64xbf16>, vector<64x64xbf16>, vector<16x64xf32> -> vector<16x64xf32>
    %c0_4 = arith.constant 0 : index
    %c0_5 = arith.constant 0 : index
    %5 = vector.load %arg6[%c0_4, %c0_5] : memref<1x64xf32, #tpu.memory_space<vmem>>, vector<1x64xf32>
    %6 = vector.broadcast %5 : vector<1x64xf32> to vector<16x64xf32>
    %7 = arith.addf %4, %6 : vector<16x64xf32>
    %c0_6 = arith.constant 0 : index
    %c0_7 = arith.constant 0 : index
    %c0_8 = arith.constant 0 : index
    %c0_9 = arith.constant 0 : index
    %8 = vector.load %arg3[%c0_6, %c0_7, %c0_8, %c0_9] : memref<1x8x16x64xbf16, #tpu.memory_space<vmem>>, vector<1x8x16x64xbf16>
    %9 = vector.shape_cast %8 : vector<1x8x16x64xbf16> to vector<8x16x64xbf16>
    %10 = vector.shape_cast %9 : vector<8x16x64xbf16> to vector<128x64xbf16>
    %c0_10 = arith.constant 0 : index
    %c0_11 = arith.constant 0 : index
    %11 = vector.load %arg4[%c0_10, %c0_11] : memref<64x64xbf16, #tpu.memory_space<vmem>>, vector<64x64xbf16>
    %cst_12 = arith.constant dense<0.000000e+00> : vector<128x64xf32>
    %12 = tpu.matmul %10, %11, %cst_12 {dimension_numbers = #tpu.dot_dimension_numbers<[1], [0], [0], [1], [0, 0, 1, 1], [], []>} : vector<128x64xbf16>, vector<64x64xbf16>, vector<128x64xf32> -> vector<128x64xf32>
    %13 = vector.shape_cast %12 : vector<128x64xf32> to vector<8x16x64xf32>
    %14 = vector.shape_cast %7 : vector<16x64xf32> to vector<1x16x64xf32>
    %15 = vector.broadcast %14 : vector<1x16x64xf32> to vector<8x16x64xf32>
    %16 = arith.addf %13, %15 : vector<8x16x64xf32>
    %cst_13 = arith.constant 2.000000e-01 : f32
    %17 = vector.broadcast %cst_13 : f32 to vector<8x16x64xf32>
    %18 = arith.mulf %17, %16 : vector<8x16x64xf32>
    %19 = arith.maximumf %16, %18 : vector<8x16x64xf32>
    %20 = vector.shape_cast %19 : vector<8x16x64xf32> to vector<128x64xf32>
    %21 = arith.truncf %20 : vector<128x64xf32> to vector<128x64xbf16>
    %c0_14 = arith.constant 0 : index
    %c0_15 = arith.constant 0 : index
    %22 = vector.load %arg7[%c0_14, %c0_15] : memref<64x64xbf16, #tpu.memory_space<vmem>>, vector<64x64xbf16>
    %cst_16 = arith.constant dense<0.000000e+00> : vector<128x64xf32>
    %23 = tpu.matmul %21, %22, %cst_16 {dimension_numbers = #tpu.dot_dimension_numbers<[1], [0], [0], [1], [0, 0, 1, 1], [], []>} : vector<128x64xbf16>, vector<64x64xbf16>, vector<128x64xf32> -> vector<128x64xf32>
    %24 = vector.shape_cast %23 : vector<128x64xf32> to vector<8x16x64xf32>
    %c0_17 = arith.constant 0 : index
    %c0_18 = arith.constant 0 : index
    %25 = vector.load %arg8[%c0_17, %c0_18] : memref<1x64xf32, #tpu.memory_space<vmem>>, vector<1x64xf32>
    %26 = vector.shape_cast %25 : vector<1x64xf32> to vector<1x1x64xf32>
    %27 = vector.broadcast %26 : vector<1x1x64xf32> to vector<8x16x64xf32>
    %28 = arith.addf %24, %27 : vector<8x16x64xf32>
    %cst_19 = arith.constant 2.000000e-01 : f32
    %29 = vector.broadcast %cst_19 : f32 to vector<8x16x64xf32>
    %30 = arith.mulf %29, %28 : vector<8x16x64xf32>
    %31 = arith.maximumf %28, %30 : vector<8x16x64xf32>
    %cst_20 = arith.constant dense<0xFF800000> : vector<16x64xf32>
    %32 = vector.multi_reduction <maximumf>, %31, %cst_20 [0] : vector<8x16x64xf32> to vector<16x64xf32>
    %c0_21 = arith.constant 0 : index
    %c0_22 = arith.constant 0 : index
    %c0_23 = arith.constant 0 : index
    %33 = vector.load %arg9[%c0_21, %c0_22, %c0_23] : memref<1x16x64xf32, #tpu.memory_space<vmem>>, vector<1x16x64xf32>
    %34 = vector.shape_cast %33 : vector<1x16x64xf32> to vector<16x64xf32>
    %35 = vector.shape_cast %32 : vector<16x64xf32> to vector<1x16x64xf32>
    tpu.vector_store %arg9[%c0_21, %c0_22, %c0_23], %35 {strides = array<i32>} : memref<1x16x64xf32, #tpu.memory_space<vmem>>, vector<1x16x64xf32>,
    return
  }
  func.func @transform_0(%arg0: i32, %arg1: i32) -> (i32, i32, i32) {
    %c0_i32 = arith.constant 0 : i32
    %c0_i32_0 = arith.constant 0 : i32
    return %arg0, %arg1, %c0_i32 : i32, i32, i32
  }
  func.func @transform_1(%arg0: i32, %arg1: i32) -> (i32, i32, i32, i32) {
    %c0_i32 = arith.constant 0 : i32
    %c0_i32_0 = arith.constant 0 : i32
    %c0_i32_1 = arith.constant 0 : i32
    return %arg0, %c0_i32, %arg1, %c0_i32_0 : i32, i32, i32, i32
  }
  func.func @transform_2(%arg0: i32, %arg1: i32) -> (i32, i32) {
    %c0_i32 = arith.constant 0 : i32
    %c0_i32_0 = arith.constant 0 : i32
    %c0_i32_1 = arith.constant 0 : i32
    return %c0_i32, %c0_i32_0 : i32, i32
  }
  func.func @transform_3(%arg0: i32, %arg1: i32) -> (i32, i32) {
    %c0_i32 = arith.constant 0 : i32
    %c0_i32_0 = arith.constant 0 : i32
    %c0_i32_1 = arith.constant 0 : i32
    return %c0_i32, %c0_i32_0 : i32, i32
  }
  func.func @transform_4(%arg0: i32, %arg1: i32) -> (i32, i32) {
    %c0_i32 = arith.constant 0 : i32
    %c0_i32_0 = arith.constant 0 : i32
    %c0_i32_1 = arith.constant 0 : i32
    return %c0_i32, %c0_i32_0 : i32, i32
  }
  func.func @transform_5(%arg0: i32, %arg1: i32) -> (i32, i32) {
    %c0_i32 = arith.constant 0 : i32
    %c0_i32_0 = arith.constant 0 : i32
    %c0_i32_1 = arith.constant 0 : i32
    return %c0_i32, %c0_i32_0 : i32, i32
  }
  func.func @transform_6(%arg0: i32, %arg1: i32) -> (i32, i32) {
    %c0_i32 = arith.constant 0 : i32
    %c0_i32_0 = arith.constant 0 : i32
    %c0_i32_1 = arith.constant 0 : i32
    return %c0_i32, %c0_i32_0 : i32, i32
  }
  func.func @transform_7(%arg0: i32, %arg1: i32) -> (i32, i32, i32) {
    %c0_i32 = arith.constant 0 : i32
    %c0_i32_0 = arith.constant 0 : i32
    return %arg0, %arg1, %c0_i32 : i32, i32, i32
  }
}

module attributes {stable_mosaic.version = 11 : i64} {
  func.func @_mm_rowmax_kernel(%arg0: i32, %arg1: i32, %arg2: i32, %arg3: memref<1x16x64xf32, #tpu.memory_space<vmem>>, %arg4: memref<1x16x64xf32, #tpu.memory_space<vmem>>, %arg5: memref<1x16x64xf32, #tpu.memory_space<vmem>>, %arg6: memref<192x128xbf16, #tpu.memory_space<vmem>>, %arg7: memref<1x128xf32, #tpu.memory_space<vmem>>, %arg8: memref<1x1x128xf32, #tpu.memory_space<vmem>>) attributes {dimension_semantics = [#tpu.dimension_semantics<parallel>, #tpu.dimension_semantics<parallel>, #tpu.dimension_semantics<arbitrary>], iteration_bounds = array<i64: 2, 1, 1>, scalar_prefetch = 0 : i64, scratch_operands = 0 : i64, tpu.core_type = #tpu.core_type<tc>, window_params = [{transform_indices = @transform_0, window_bounds = array<i64: 1, 16, 64>}, {transform_indices = @transform_1, window_bounds = array<i64: 1, 16, 64>}, {transform_indices = @transform_2, window_bounds = array<i64: 1, 16, 64>}, {transform_indices = @transform_3, window_bounds = array<i64: 192, 128>}, {transform_indices = @transform_4, window_bounds = array<i64: 1, 128>}, {transform_indices = @transform_5, window_bounds = array<i64: 1, 1, 128>}]} {
    %c0_i32 = arith.constant 0 : i32
    %0 = arith.cmpi eq, %arg2, %c0_i32 : i32
    %1 = arith.extui %0 : i1 to i32
    %c0_i32_0 = arith.constant 0 : i32
    %2 = arith.cmpi ne, %1, %c0_i32_0 : i32
    scf.if %2 {
      %cst_25 = arith.constant 0xFF800000 : f32
      %34 = vector.broadcast %cst_25 : f32 to vector<1x1x128xf32>
      %c0_26 = arith.constant 0 : index
      %c0_27 = arith.constant 0 : index
      %c0_28 = arith.constant 0 : index
      %35 = vector.load %arg8[%c0_26, %c0_27, %c0_28] : memref<1x1x128xf32, #tpu.memory_space<vmem>>, vector<1x1x128xf32>
      tpu.vector_store %arg8[%c0_26, %c0_27, %c0_28], %34 {strides = array<i32>} : memref<1x1x128xf32, #tpu.memory_space<vmem>>, vector<1x1x128xf32>,
    } else {
    }
    %c0 = arith.constant 0 : index
    %c0_1 = arith.constant 0 : index
    %c0_2 = arith.constant 0 : index
    %3 = vector.load %arg3[%c0, %c0_1, %c0_2] : memref<1x16x64xf32, #tpu.memory_space<vmem>>, vector<1x16x64xf32>
    %4 = vector.shape_cast %3 : vector<1x16x64xf32> to vector<16x64xf32>
    %5 = arith.truncf %4 : vector<16x64xf32> to vector<16x64xbf16>
    %c0_3 = arith.constant 0 : index
    %c0_4 = arith.constant 0 : index
    %6 = vector.load %arg6[%c0_3, %c0_4] : memref<192x128xbf16, #tpu.memory_space<vmem>>, vector<64x128xbf16>
    %cst = arith.constant dense<0.000000e+00> : vector<16x128xf32>
    %7 = tpu.matmul %5, %6, %cst {dimension_numbers = #tpu.dot_dimension_numbers<[1], [0], [0], [1], [0, 0, 1, 1], [], []>} : vector<16x64xbf16>, vector<64x128xbf16>, vector<16x128xf32> -> vector<16x128xf32>
    %c0_5 = arith.constant 0 : index
    %c0_6 = arith.constant 0 : index
    %c0_7 = arith.constant 0 : index
    %8 = vector.load %arg4[%c0_5, %c0_6, %c0_7] : memref<1x16x64xf32, #tpu.memory_space<vmem>>, vector<1x16x64xf32>
    %9 = vector.shape_cast %8 : vector<1x16x64xf32> to vector<16x64xf32>
    %10 = arith.truncf %9 : vector<16x64xf32> to vector<16x64xbf16>
    %c64 = arith.constant 64 : index
    %c0_8 = arith.constant 0 : index
    %11 = vector.load %arg6[%c64, %c0_8] : memref<192x128xbf16, #tpu.memory_space<vmem>>, vector<64x128xbf16>
    %cst_9 = arith.constant dense<0.000000e+00> : vector<16x128xf32>
    %12 = tpu.matmul %10, %11, %cst_9 {dimension_numbers = #tpu.dot_dimension_numbers<[1], [0], [0], [1], [0, 0, 1, 1], [], []>} : vector<16x64xbf16>, vector<64x128xbf16>, vector<16x128xf32> -> vector<16x128xf32>
    %13 = arith.addf %7, %12 : vector<16x128xf32>
    %c0_10 = arith.constant 0 : index
    %c0_11 = arith.constant 0 : index
    %c0_12 = arith.constant 0 : index
    %14 = vector.load %arg5[%c0_10, %c0_11, %c0_12] : memref<1x16x64xf32, #tpu.memory_space<vmem>>, vector<1x16x64xf32>
    %15 = vector.shape_cast %14 : vector<1x16x64xf32> to vector<16x64xf32>
    %16 = arith.truncf %15 : vector<16x64xf32> to vector<16x64xbf16>
    %c128 = arith.constant 128 : index
    %c0_13 = arith.constant 0 : index
    %17 = vector.load %arg6[%c128, %c0_13] : memref<192x128xbf16, #tpu.memory_space<vmem>>, vector<64x128xbf16>
    %cst_14 = arith.constant dense<0.000000e+00> : vector<16x128xf32>
    %18 = tpu.matmul %16, %17, %cst_14 {dimension_numbers = #tpu.dot_dimension_numbers<[1], [0], [0], [1], [0, 0, 1, 1], [], []>} : vector<16x64xbf16>, vector<64x128xbf16>, vector<16x128xf32> -> vector<16x128xf32>
    %19 = arith.addf %13, %18 : vector<16x128xf32>
    %c0_15 = arith.constant 0 : index
    %c0_16 = arith.constant 0 : index
    %20 = vector.load %arg7[%c0_15, %c0_16] : memref<1x128xf32, #tpu.memory_space<vmem>>, vector<1x128xf32>
    %21 = vector.broadcast %20 : vector<1x128xf32> to vector<16x128xf32>
    %22 = arith.addf %19, %21 : vector<16x128xf32>
    %cst_17 = arith.constant 2.000000e-01 : f32
    %23 = vector.broadcast %cst_17 : f32 to vector<16x128xf32>
    %24 = arith.mulf %23, %22 : vector<16x128xf32>
    %25 = arith.maximumf %22, %24 : vector<16x128xf32>
    %cst_18 = arith.constant dense<0xFF800000> : vector<128xf32>
    %26 = vector.multi_reduction <maximumf>, %25, %cst_18 [0] : vector<16x128xf32> to vector<128xf32>
    %27 = vector.shape_cast %26 : vector<128xf32> to vector<1x128xf32>
    %c0_19 = arith.constant 0 : index
    %c0_20 = arith.constant 0 : index
    %c0_21 = arith.constant 0 : index
    %28 = vector.load %arg8[%c0_19, %c0_20, %c0_21] : memref<1x1x128xf32, #tpu.memory_space<vmem>>, vector<1x1x128xf32>
    %29 = vector.shape_cast %28 : vector<1x1x128xf32> to vector<1x128xf32>
    %30 = arith.maximumf %29, %27 : vector<1x128xf32>
    %c0_22 = arith.constant 0 : index
    %c0_23 = arith.constant 0 : index
    %c0_24 = arith.constant 0 : index
    %31 = vector.load %arg8[%c0_22, %c0_23, %c0_24] : memref<1x1x128xf32, #tpu.memory_space<vmem>>, vector<1x1x128xf32>
    %32 = vector.shape_cast %31 : vector<1x1x128xf32> to vector<1x128xf32>
    %33 = vector.shape_cast %30 : vector<1x128xf32> to vector<1x1x128xf32>
    tpu.vector_store %arg8[%c0_22, %c0_23, %c0_24], %33 {strides = array<i32>} : memref<1x1x128xf32, #tpu.memory_space<vmem>>, vector<1x1x128xf32>,
    return
  }
  func.func @transform_0(%arg0: i32, %arg1: i32, %arg2: i32) -> (i32, i32, i32) {
    %c0_i32 = arith.constant 0 : i32
    %c0_i32_0 = arith.constant 0 : i32
    return %arg0, %arg2, %c0_i32 : i32, i32, i32
  }
  func.func @transform_1(%arg0: i32, %arg1: i32, %arg2: i32) -> (i32, i32, i32) {
    %c0_i32 = arith.constant 0 : i32
    %c0_i32_0 = arith.constant 0 : i32
    return %arg0, %arg2, %c0_i32 : i32, i32, i32
  }
  func.func @transform_2(%arg0: i32, %arg1: i32, %arg2: i32) -> (i32, i32, i32) {
    %c0_i32 = arith.constant 0 : i32
    %c0_i32_0 = arith.constant 0 : i32
    return %arg0, %arg2, %c0_i32 : i32, i32, i32
  }
  func.func @transform_3(%arg0: i32, %arg1: i32, %arg2: i32) -> (i32, i32) {
    %c0_i32 = arith.constant 0 : i32
    %c0_i32_0 = arith.constant 0 : i32
    return %c0_i32, %arg1 : i32, i32
  }
  func.func @transform_4(%arg0: i32, %arg1: i32, %arg2: i32) -> (i32, i32) {
    %c0_i32 = arith.constant 0 : i32
    %c0_i32_0 = arith.constant 0 : i32
    return %c0_i32, %arg1 : i32, i32
  }
  func.func @transform_5(%arg0: i32, %arg1: i32, %arg2: i32) -> (i32, i32, i32) {
    %c0_i32 = arith.constant 0 : i32
    %c0_i32_0 = arith.constant 0 : i32
    return %arg0, %c0_i32, %arg1 : i32, i32, i32
  }
}

module attributes {stable_mosaic.version = 11 : i64} {
  func.func @_assemble_kernel(%arg0: i32, %arg1: i32, %arg2: memref<1x128x1xf32, #tpu.memory_space<vmem>>, %arg3: memref<1x16x64xf32, #tpu.memory_space<vmem>>, %arg4: memref<1x16x64xf32, #tpu.memory_space<vmem>>, %arg5: memref<1x16x64xf32, #tpu.memory_space<vmem>>, %arg6: memref<1x320x16xf32, #tpu.memory_space<vmem>>) attributes {dimension_semantics = [#tpu.dimension_semantics<parallel>, #tpu.dimension_semantics<parallel>], iteration_bounds = array<i64: 2, 1>, scalar_prefetch = 0 : i64, scratch_operands = 0 : i64, tpu.core_type = #tpu.core_type<tc>, window_params = [{transform_indices = @transform_0, window_bounds = array<i64: 1, 128, 1>}, {transform_indices = @transform_1, window_bounds = array<i64: 1, 16, 64>}, {transform_indices = @transform_2, window_bounds = array<i64: 1, 16, 64>}, {transform_indices = @transform_3, window_bounds = array<i64: 1, 16, 64>}, {transform_indices = @transform_4, window_bounds = array<i64: 1, 320, 16>}]} {
    %c0 = arith.constant 0 : index
    %c0_0 = arith.constant 0 : index
    %c0_1 = arith.constant 0 : index
    %0 = vector.load %arg2[%c0, %c0_0, %c0_1] : memref<1x128x1xf32, #tpu.memory_space<vmem>>, vector<1x128x1xf32>
    %1 = vector.shape_cast %0 : vector<1x128x1xf32> to vector<128x1xf32>
    %2 = vector.shape_cast %1 : vector<128x1xf32> to vector<128x1xf32>
    %3 = vector.broadcast %2 : vector<128x1xf32> to vector<128x16xf32>
    %c0_2 = arith.constant 0 : index
    %c0_3 = arith.constant 0 : index
    %c0_4 = arith.constant 0 : index
    %4 = vector.load %arg6[%c0_2, %c0_3, %c0_4] : memref<1x320x16xf32, #tpu.memory_space<vmem>>, vector<1x128x16xf32>
    %5 = vector.shape_cast %4 : vector<1x128x16xf32> to vector<128x16xf32>
    %6 = vector.shape_cast %3 : vector<128x16xf32> to vector<1x128x16xf32>
    tpu.vector_store %arg6[%c0_2, %c0_3, %c0_4], %6 {strides = array<i32>} : memref<1x320x16xf32, #tpu.memory_space<vmem>>, vector<1x128x16xf32>,
    %c0_5 = arith.constant 0 : index
    %c0_6 = arith.constant 0 : index
    %c0_7 = arith.constant 0 : index
    %7 = vector.load %arg3[%c0_5, %c0_6, %c0_7] : memref<1x16x64xf32, #tpu.memory_space<vmem>>, vector<1x16x64xf32>
    %8 = vector.shape_cast %7 : vector<1x16x64xf32> to vector<16x64xf32>
    %9 = tpu.transpose %8, [1, 0] : vector<16x64xf32> -> vector<64x16xf32>
    %c0_8 = arith.constant 0 : index
    %c128 = arith.constant 128 : index
    %c0_9 = arith.constant 0 : index
    %10 = vector.load %arg6[%c0_8, %c128, %c0_9] : memref<1x320x16xf32, #tpu.memory_space<vmem>>, vector<1x64x16xf32>
    %11 = vector.shape_cast %10 : vector<1x64x16xf32> to vector<64x16xf32>
    %12 = vector.shape_cast %9 : vector<64x16xf32> to vector<1x64x16xf32>
    tpu.vector_store %arg6[%c0_8, %c128, %c0_9], %12 {strides = array<i32>} : memref<1x320x16xf32, #tpu.memory_space<vmem>>, vector<1x64x16xf32>,
    %c0_10 = arith.constant 0 : index
    %c0_11 = arith.constant 0 : index
    %c0_12 = arith.constant 0 : index
    %13 = vector.load %arg4[%c0_10, %c0_11, %c0_12] : memref<1x16x64xf32, #tpu.memory_space<vmem>>, vector<1x16x64xf32>
    %14 = vector.shape_cast %13 : vector<1x16x64xf32> to vector<16x64xf32>
    %15 = tpu.transpose %14, [1, 0] : vector<16x64xf32> -> vector<64x16xf32>
    %c0_13 = arith.constant 0 : index
    %c192 = arith.constant 192 : index
    %c0_14 = arith.constant 0 : index
    %16 = vector.load %arg6[%c0_13, %c192, %c0_14] : memref<1x320x16xf32, #tpu.memory_space<vmem>>, vector<1x64x16xf32>
    %17 = vector.shape_cast %16 : vector<1x64x16xf32> to vector<64x16xf32>
    %18 = vector.shape_cast %15 : vector<64x16xf32> to vector<1x64x16xf32>
    tpu.vector_store %arg6[%c0_13, %c192, %c0_14], %18 {strides = array<i32>} : memref<1x320x16xf32, #tpu.memory_space<vmem>>, vector<1x64x16xf32>,
    %c0_15 = arith.constant 0 : index
    %c0_16 = arith.constant 0 : index
    %c0_17 = arith.constant 0 : index
    %19 = vector.load %arg5[%c0_15, %c0_16, %c0_17] : memref<1x16x64xf32, #tpu.memory_space<vmem>>, vector<1x16x64xf32>
    %20 = vector.shape_cast %19 : vector<1x16x64xf32> to vector<16x64xf32>
    %21 = tpu.transpose %20, [1, 0] : vector<16x64xf32> -> vector<64x16xf32>
    %c0_18 = arith.constant 0 : index
    %c256 = arith.constant 256 : index
    %c0_19 = arith.constant 0 : index
    %22 = vector.load %arg6[%c0_18, %c256, %c0_19] : memref<1x320x16xf32, #tpu.memory_space<vmem>>, vector<1x64x16xf32>
    %23 = vector.shape_cast %22 : vector<1x64x16xf32> to vector<64x16xf32>
    %24 = vector.shape_cast %21 : vector<64x16xf32> to vector<1x64x16xf32>
    tpu.vector_store %arg6[%c0_18, %c256, %c0_19], %24 {strides = array<i32>} : memref<1x320x16xf32, #tpu.memory_space<vmem>>, vector<1x64x16xf32>,
    return
  }
  func.func @transform_0(%arg0: i32, %arg1: i32) -> (i32, i32, i32) {
    %c0_i32 = arith.constant 0 : i32
    %c0_i32_0 = arith.constant 0 : i32
    %c0_i32_1 = arith.constant 0 : i32
    return %arg0, %c0_i32, %c0_i32_0 : i32, i32, i32
  }
  func.func @transform_1(%arg0: i32, %arg1: i32) -> (i32, i32, i32) {
    %c0_i32 = arith.constant 0 : i32
    %c0_i32_0 = arith.constant 0 : i32
    return %arg0, %arg1, %c0_i32 : i32, i32, i32
  }
  func.func @transform_2(%arg0: i32, %arg1: i32) -> (i32, i32, i32) {
    %c0_i32 = arith.constant 0 : i32
    %c0_i32_0 = arith.constant 0 : i32
    return %arg0, %arg1, %c0_i32 : i32, i32, i32
  }
  func.func @transform_3(%arg0: i32, %arg1: i32) -> (i32, i32, i32) {
    %c0_i32 = arith.constant 0 : i32
    %c0_i32_0 = arith.constant 0 : i32
    return %arg0, %arg1, %c0_i32 : i32, i32, i32
  }
  func.func @transform_4(%arg0: i32, %arg1: i32) -> (i32, i32, i32) {
    %c0_i32 = arith.constant 0 : i32
    %c0_i32_0 = arith.constant 0 : i32
    return %arg0, %c0_i32, %arg1 : i32, i32, i32
  }
}

</mosaic_0001>

<llo_original>
// kernel: dgcnn_feat_forward.12
$region0: #{dgcnn_feat_forward.12}
  #allocation0 [shape = 'u32[]', space=smem, size = 0x4, offset = 0x4, fixed_abs, tag = 'smem constant byte address 0x4 - core index']
  #allocation1 [shape = 'u32[144,128]{1,0:T(1,128)}', space=vmem, size = 0x12000, scoped, tag = 'internal scratch']
  %s0 = inlined_call_operand.vmem [shape: f32[2,16,3], index: 0, kind: input, shape index: {}, may-alias: {0,1}]
  %s1 = inlined_call_operand.vmem [shape: f32[2,16,3], index: 1, kind: input, shape index: {}, may-alias: {0,1}]
  %s2 = inlined_call_operand.vmem [shape: f32[2,16,16], index: 2, kind: output, shape index: {}]
  %s3 = sld [smem:[#allocation0]]
  $region41: #{dgcnn_feat_forward.12} parent=0
    _
  %s5 = ssub.s32 1, %s3
  %s6 = scalar_select 0, %s5, %s3
  loop: start=0, step=1, limit=4
  $region2: #{dgcnn_feat_forward.12} parent=0 // loop_pre_header
    _
  $region3: #{dgcnn_feat_forward.12} parent=0 // loop_header
    %s8 = sphi 0, %s12
    %p9 = scmp.ge.s32.totalorder %s8, 4
    %s15 = sphi 0, %s34
    %s16 = sphi 0, %s30
    %s17 = sphi 0, %s26
    %s18 = sphi 0, %s15
    %s19 = sphi 0, %s16
    %s20 = sphi 0, %s17
    %s21 = sphi 0, %s18
    %s22 = sphi 0, %s19
    %s23 = sphi 0, %s20
    %s39 = sphi 0, %s41
    %s42 = sphi 0, %s39
    %s43 = sphi 0, %s42
    %s59 = sphi 0, %s43
    %s67 = sphi 0, %s69
    %s70 = sphi 0, %s67
    %s71 = sphi 0, %s70
    %s87 = sphi 0, %s71
    %s97 = sphi 0, %s99
    %s100 = sphi 0, %s97
    %s101 = sphi 0, %s100
    %s117 = sphi 0, %s101
  $region4: #{dgcnn_feat_forward.12} parent=0 // loop_header_branch
    %11 = sbr.rel (%p9) target = $region8
  $region5: #{dgcnn_feat_forward.12} parent=0 // loop_body
    %s13 = ssub.s32 %s8, 1
    %s14 = ssub.s32 %s8, 2
    %s24 = sadd.s32 1, %s17
    %p25 = scmp.ge.s32.totalorder %s24, 1
    %s26 = scalar_select %p25, 0, %s24
    %s27 = sadd.s32 1, %s16
    %s28 = scalar_select %p25, %s27, %s16
    %p29 = scmp.ge.s32.totalorder %s28, 1
    %s30 = scalar_select %p29, 0, %s28
    %s31 = sadd.s32 1, %s15
    %s32 = scalar_select %p29, %s31, %s15
    %p33 = scmp.ge.s32.totalorder %s32, 2
    %s34 = scalar_select %p33, 0, %s32
    %s35 = ssub.s32 %s15, %s34
    %s36 = ssub.s32 %s16, %s30
    %s37 = sor.u32 %s35, %s36
    %p38 = scmp.eq.s32.totalorder %s37, 0
    %s40 = sadd.s32 %s39, 1
    %s41 = scalar_select %p38, %s39, %s40
    %p44 = pneg %p38
    %p45 = scmp.eq.s32.totalorder %s8, 1
    %p46 = por %p44, %p45
    %p47 = scmp.ne.s32.totalorder %s39, %s42
    %p48 = scmp.eq.s32.totalorder %s8, 0
    %p49 = por %p47, %p48
    %p50 = scmp.ne.s32.totalorder %s39, %s42
    %p51 = scmp.eq.s32.totalorder %s13, 1
    %p52 = por %p50, %p51
    %p53 = scmp.ne.s32.totalorder %s42, %s43
    %p54 = scmp.eq.s32.totalorder %s13, 0
    %p55 = por %p53, %p54
    %p56 = scmp.ne.s32.totalorder %s42, %s43
    %p57 = scmp.eq.s32.totalorder %s14, 1
    %p58 = por %p56, %p57
    %p60 = scmp.ne.s32.totalorder %s43, %s59
    %p61 = scmp.eq.s32.totalorder %s14, 0
    %p62 = por %p60, %p61
    %s63 = ssub.s32 %s15, %s34
    %s64 = ssub.s32 %s17, %s26
    %s65 = sor.u32 %s63, %s64
    %p66 = scmp.eq.s32.totalorder %s65, 0
    %s68 = sadd.s32 %s67, 1
    %s69 = scalar_select %p66, %s67, %s68
    %p72 = pneg %p66
    %p73 = scmp.eq.s32.totalorder %s8, 1
    %p74 = por %p72, %p73
    %p75 = scmp.ne.s32.totalorder %s67, %s70
    %p76 = scmp.eq.s32.totalorder %s8, 0
    %p77 = por %p75, %p76
    %p78 = scmp.ne.s32.totalorder %s67, %s70
    %p79 = scmp.eq.s32.totalorder %s13, 1
    %p80 = por %p78, %p79
    %p81 = scmp.ne.s32.totalorder %s70, %s71
    %p82 = scmp.eq.s32.totalorder %s13, 0
    %p83 = por %p81, %p82
    %p84 = scmp.ne.s32.totalorder %s70, %s71
    %p85 = scmp.eq.s32.totalorder %s14, 1
    %p86 = por %p84, %p85
    %p88 = scmp.ne.s32.totalorder %s71, %s87
    %p89 = scmp.eq.s32.totalorder %s14, 0
    %p90 = por %p88, %p89
    %s91 = ssub.s32 %s15, %s34
    %s92 = ssub.s32 %s16, %s30
    %s93 = sor.u32 %s91, %s92
    %s94 = ssub.s32 %s17, %s26
    %s95 = sor.u32 %s93, %s94
    %p96 = scmp.eq.s32.totalorder %s95, 0
    %s98 = sadd.s32 %s97, 1
    %s99 = scalar_select %p96, %s97, %s98
    %p102 = pneg %p96
    %p103 = scmp.eq.s32.totalorder %s8, 1
    %p104 = por %p102, %p103
    %p105 = scmp.ne.s32.totalorder %s97, %s100
    %p106 = scmp.eq.s32.totalorder %s8, 0
    %p107 = por %p105, %p106
    %p108 = scmp.ne.s32.totalorder %s97, %s100
    %p109 = scmp.eq.s32.totalorder %s13, 1
    %p110 = por %p108, %p109
    %p111 = scmp.ne.s32.totalorder %s100, %s101
    %p112 = scmp.eq.s32.totalorder %s13, 0
    %p113 = por %p111, %p112
    %p114 = scmp.ne.s32.totalorder %s100, %s101
    %p115 = scmp.eq.s32.totalorder %s14, 1
    %p116 = por %p114, %p115
    %p118 = scmp.ne.s32.totalorder %s101, %s117
    %p119 = scmp.eq.s32.totalorder %s14, 0
    %p120 = por %p118, %p119
    %p121 = scmp.le.s32.totalorder 1, %s8
    %p122 = scmp.lt.s32.totalorder %s8, 3
    %p123 = pnand %p121, %p122
    %p124 = pneg %p123
    // Predicated region
    $region9: #{dgcnn_feat_forward.12} parent=5 // pred_check
      _
    $region10: #{dgcnn_feat_forward.12} parent=5 // pred_check_branch
      %126 = sbr.rel (%p123) target = $region12
    $region11: #{dgcnn_feat_forward.12} parent=5 // pred_region
      %s127 = ssub.s32 %s8, 1
    $region12: #{dgcnn_feat_forward.12} parent=5 // pred_fallthru
      _
    %p128 = scmp.lt.s32.totalorder %s8, 2
    // Predicated region
    $region13: #{dgcnn_feat_forward.12} parent=5 // pred_check
      %p129 = pneg %p128
    $region14: #{dgcnn_feat_forward.12} parent=5 // pred_check_branch
      %131 = sbr.rel (%p129) target = $region16
    $region15: #{dgcnn_feat_forward.12} parent=5 // pred_region
      // Predicated region
      $region17: #{dgcnn_feat_forward.12} parent=15 // pred_check
        %p132 = pneg %p49
      $region18: #{dgcnn_feat_forward.12} parent=15 // pred_check_branch
        %134 = sbr.rel (%p132) target = $region20
      $region19: #{dgcnn_feat_forward.12} parent=15 // pred_region
        %s135 = smul.u32 2, %s16
        %p136 = scmp.lt.s32.totalorder %s15, 1
        %s137 = scalar_select %p136, %s15, 1
        %p138 = scmp.lt.s32.totalorder %s135, 1
        %s139 = scalar_select %p138, %s135, 1
        %s140 = smul.addr %s137, 2
        %s141 = sadd.s32 %s139, %s140
        %s142 = smul.addr %s141, 8
        %s143 = scalar_lea.vmem %s0, %s142
        %s144 = smul.u32 2, %s16
      $region20: #{dgcnn_feat_forward.12} parent=15 // pred_fallthru
        _
      // Predicated region
      $region21: #{dgcnn_feat_forward.12} parent=15 // pred_check
        %p145 = pneg %p77
      $region22: #{dgcnn_feat_forward.12} parent=15 // pred_check_branch
        %147 = sbr.rel (%p145) target = $region24
      $region23: #{dgcnn_feat_forward.12} parent=15 // pred_region
        %s148 = smul.u32 2, %s17
        %p149 = scmp.lt.s32.totalorder %s15, 1
        %s150 = scalar_select %p149, %s15, 1
        %p151 = scmp.lt.s32.totalorder %s148, 1
        %s152 = scalar_select %p151, %s148, 1
        %s153 = smul.addr %s150, 2
        %s154 = sadd.s32 %s152, %s153
        %s155 = smul.addr %s154, 8
        %s156 = scalar_lea.vmem %s1, %s155
        %s157 = smul.u32 2, %s17
      $region24: #{dgcnn_feat_forward.12} parent=15 // pred_fallthru
        _
    $region16: #{dgcnn_feat_forward.12} parent=5 // pred_fallthru
      _
    %p158 = scmp.le.s32.totalorder 1, %s8
    %p159 = scmp.lt.s32.totalorder %s8, 3
    %p160 = pnand %p158, %p159
    %p161 = pneg %p160
    // Predicated region
    $region25: #{dgcnn_feat_forward.12} parent=5 // pred_check
      _
    $region26: #{dgcnn_feat_forward.12} parent=5 // pred_check_branch
      %163 = sbr.rel (%p160) target = $region28
    $region27: #{dgcnn_feat_forward.12} parent=5 // pred_region
      %s164 = ssub.s32 %s8, 1
      %s165 = smul.u32 2, %s19
      %p166 = scmp.lt.s32.totalorder %s18, 1
      %s167 = scalar_select %p166, %s18, 1
      %p168 = scmp.lt.s32.totalorder %s165, 1
      %s169 = scalar_select %p168, %s165, 1
      %s170 = smul.addr %s167, 2
      %s171 = sadd.s32 %s169, %s170
      %s172 = smul.addr %s171, 8
      %s173 = scalar_lea.vmem %s0, %s172
      %p174 = pneg %p55
      %p175 = pneg %p52
      %s176 = smul.u32 2, %s20
      %p177 = scmp.lt.s32.totalorder %s18, 1
      %s178 = scalar_select %p177, %s18, 1
      %p179 = scmp.lt.s32.totalorder %s176, 1
      %s180 = scalar_select %p179, %s176, 1
      %s181 = smul.addr %s178, 2
      %s182 = sadd.s32 %s180, %s181
      %s183 = smul.addr %s182, 8
      %s184 = scalar_lea.vmem %s1, %s183
      %p185 = pneg %p83
      %p186 = pneg %p80
      %p187 = pneg %p113
      %p188 = pneg %p110
      %s189 = smul.u32 2, %s19
      %p190 = scmp.lt.s32.totalorder %s18, 1
      %s191 = scalar_select %p190, %s18, 1
      %p192 = scmp.lt.s32.totalorder %s189, 1
      %s193 = scalar_select %p192, %s189, 1
      %p194 = scmp.lt.s32.totalorder %s20, 0
      %s195 = scalar_select %p194, %s20, 0
      %s196 = sadd.s32 %s195, %s193
      %s197 = smul.addr %s191, 2
      %s198 = sadd.s32 %s196, %s197
      %s199 = smul.addr %s198, 8
      %s200 = scalar_lea.vmem %s2, %s199
      %s201 = smul.u32 2, %s19
      %p202 = scmp.lt.s32.totalorder %s18, 1
      %s203 = scalar_select %p202, %s18, 1
      %p204 = scmp.lt.s32.totalorder %s201, 1
      %s205 = scalar_select %p204, %s201, 1
      %s206 = smul.addr %s203, 2
      %s207 = sadd.s32 %s205, %s206
      %s208 = smul.addr %s207, 8
      %s209 = scalar_lea.vmem %s0, %s208
      %s210 = smul.u32 2, %s19
      %s211 = smul.u32 2, %s20
      %p212 = scmp.lt.s32.totalorder %s18, 1
      %s213 = scalar_select %p212, %s18, 1
      %p214 = scmp.lt.s32.totalorder %s211, 1
      %s215 = scalar_select %p214, %s211, 1
      %s216 = smul.addr %s213, 2
      %s217 = sadd.s32 %s215, %s216
      %s218 = smul.addr %s217, 8
      %s219 = scalar_lea.vmem %s1, %s218
      %s220 = smul.u32 2, %s20
      %s221 = smul.u32 2, %s19
      %p222 = scmp.lt.s32.totalorder %s18, 1
      %s223 = scalar_select %p222, %s18, 1
      %p224 = scmp.lt.s32.totalorder %s221, 1
      %s225 = scalar_select %p224, %s221, 1
      %p226 = scmp.lt.s32.totalorder %s20, 0
      %s227 = scalar_select %p226, %s20, 0
      %s228 = sadd.s32 %s227, %s225
      %s229 = smul.addr %s223, 2
      %s230 = sadd.s32 %s228, %s229
      %s231 = smul.addr %s230, 8
      %s232 = scalar_lea.vmem %s2, %s231
      %s233 = smul.u32 2, %s19
      %v234 = vld [vmem:[%s209] sm:$0xff]
      %v235 = vld [vmem:[%s209 + $0x8] sm:$0xff]
      %v236 = vld [vmem:[%s219] sm:$0xff]
      %v237 = vld [vmem:[%s219 + $0x8] sm:$0xff]
      %vm238 = vcmask 23552
      %v240 = vsel %vm238, %v234, 0
      %v243 = vsel %vm238, %v235, 0
      %v246 = vsel %vm238, %v236, 0
      %v249 = vsel %vm238, %v237, 0
      %251 = vmatprep.subr.mxu0 0.0
      %252 = vmatpush1.xpose.msra.mxu0 0.0
      %253 = vmatprep.subr.mxu0 0.0
      %254 = vmatpush1.xpose.msra.mxu0 0.0
      %255 = vmatprep.subr.mxu0 0.0
      %256 = vmatpush1.xpose.msra.mxu0 0.0
      %257 = vmatprep.subr.mxu0 0.0
      %258 = vmatpush1.xpose.msra.mxu0 0.0
      %259 = vmatprep.subr.mxu0 0.0
      %260 = vmatpush1.xpose.msra.mxu0 0.0
      %261 = vmatprep.subr.mxu0 0.0
      %262 = vmatpush1.xpose.msra.mxu0 0.0
      %263 = vmatprep.subr.mxu0 0.0
      %264 = vmatpush1.xpose.msra.mxu0 0.0
      %265 = vmatprep.subr.mxu0 0.0
      %266 = vmatpush1.xpose.msra.mxu0 0.0
      %267 = vmatprep.subr.mxu0 0.0
      %268 = vmatpush1.xpose.msra.mxu0 0.0
      %269 = vmatprep.subr.mxu0 0.0
      %270 = vmatpush1.xpose.msra.mxu0 0.0
      %271 = vmatprep.subr.mxu0 0.0
      %272 = vmatpush1.xpose.msra.mxu0 0.0
      %273 = vmatprep.subr.mxu0 0.0
      %274 = vmatpush1.xpose.msra.mxu0 0.0
      %275 = vmatprep.subr.mxu0 0.0
      %276 = vmatpush1.xpose.msra.mxu0 0.0
      %277 = vmatprep.subr.mxu0 0.0
      %278 = vmatpush1.xpose.msra.mxu0 0.0
      %279 = vmatprep.subr.mxu0 0.0
      %280 = vmatpush1.xpose.msra.mxu0 %v249
      %281 = vmatprep.subr.mxu0 0.0
      %282 = vmatpush1.xpose.msra.mxu0 %v246
      %283 = vmatprep.subr.mxu0 0.0
      %284 = vmatpush2.xpose.msra.mxu0 0.0
      %285 = vmatprep.subr.mxu0 0.0
      %286 = vmatpush2.xpose.msra.mxu0 0.0
      %287 = vmatprep.subr.mxu0 0.0
      %288 = vmatpush2.xpose.msra.mxu0 0.0
      %289 = vmatprep.subr.mxu0 0.0
      %290 = vmatpush2.xpose.msra.mxu0 0.0
      %291 = vmatprep.subr.mxu0 0.0
      %292 = vmatpush2.xpose.msra.mxu0 0.0
      %293 = vmatprep.subr.mxu0 0.0
      %294 = vmatpush2.xpose.msra.mxu0 0.0
      %295 = vmatprep.subr.mxu0 0.0
      %296 = vmatpush2.xpose.msra.mxu0 0.0
      %297 = vmatprep.subr.mxu0 0.0
      %298 = vmatpush2.xpose.msra.mxu0 0.0
      %299 = vmatprep.subr.mxu0 0.0
      %300 = vmatpush2.xpose.msra.mxu0 0.0
      %301 = vmatprep.subr.mxu0 0.0
      %302 = vmatpush2.xpose.msra.mxu0 0.0
      %303 = vmatprep.subr.mxu0 0.0
      %304 = vmatpush2.xpose.msra.mxu0 0.0
      %305 = vmatprep.subr.mxu0 0.0
      %306 = vmatpush2.xpose.msra.mxu0 0.0
      %307 = vmatprep.subr.mxu0 0.0
      %308 = vmatpush2.xpose.msra.mxu0 0.0
      %309 = vmatprep.subr.mxu0 0.0
      %310 = vmatpush2.xpose.msra.mxu0 0.0
      %311 = vmatprep.subr.mxu0 0.0
      %312 = vmatpush2.xpose.msra.mxu0 0.0
      %313 = vmatprep.subr.mxu0 0.0
      %314 = vmatpush2.xpose.msra.mxu0 0.0
      %315 = vmatprep.mubr.f32.mxu0 0.0
      %316 = vmatmul.mubr.f32.gmra.mxu0 %v240
      %v317 = vpop.f32.mrf.mxu0
      %v318 = vadd.f32 0.0, %v317
      %v319 = vpop.f32.mrf.mxu0
      %320 = vmatprep.mubr.f32.mxu0 0.0
      %321 = vmatmul.mubr.f32.gmra.mxu0 %v243
      %v322 = vpop.f32.mrf.mxu0
      %v323 = vadd.f32 0.0, %v322
      %v324 = vpop.f32.mrf.mxu0
      %325 = vdwg.mxu0
      %v326 = vmul.f32 %v234, %v234
      %v327 = vmul.f32 %v235, %v235
      %v328 = vsel %vm238, %v326, 0.0
      %329 = vadd.xlane.f32.xlu0 %v328
      %v330 = vpop.xlane.xlu0 %329
      %v331 = vsel %vm238, %v327, 0.0
      %332 = vadd.xlane.f32.xlu0 %v331
      %v333 = vpop.xlane.xlu0 %332
      %v334 = vmul.f32 %v236, %v236
      %v335 = vmul.f32 %v237, %v237
      %v336 = vsel %vm238, %v334, 0.0
      %337 = vadd.xlane.f32.xlu0 %v336
      %v338 = vpop.xlane.xlu0 %337
      %v339 = vsel %vm238, %v335, 0.0
      %340 = vadd.xlane.f32.xlu0 %v339
      %v341 = vpop.xlane.xlu0 %340
      %v342 = vmul.f32 %v318, 2.0
      %v343 = vmul.f32 %v323, 2.0
      %v344 = vsub.f32 %v342, %v330
      %v345 = vsub.f32 %v343, %v333
      %346 = vxpose.xlu0.b32.start [1/16] %v338, 128
      %347 = vxpose.xlu0.b32.cont [2/16] %v341, 128
      %348 = vxpose.xlu0.b32.cont [3/16] 0.0, 128
      %349 = vxpose.xlu0.b32.cont [4/16] 0.0, 128
      %350 = vxpose.xlu0.b32.cont [5/16] 0.0, 128
      %351 = vxpose.xlu0.b32.cont [6/16] 0.0, 128
      %352 = vxpose.xlu0.b32.cont [7/16] 0.0, 128
      %353 = vxpose.xlu0.b32.cont [8/16] 0.0, 128
      %354 = vxpose.xlu0.b32.cont [9/16] 0.0, 128
      %355 = vxpose.xlu0.b32.cont [10/16] 0.0, 128
      %356 = vxpose.xlu0.b32.cont [11/16] 0.0, 128
      %357 = vxpose.xlu0.b32.cont [12/16] 0.0, 128
      %358 = vxpose.xlu0.b32.cont [13/16] 0.0, 128
      %359 = vxpose.xlu0.b32.cont [14/16] 0.0, 128
      %360 = vxpose.xlu0.b32.cont [15/16] 0.0, 128
      %361 = vxpose.xlu0.b32.end [16/16] 0.0, 128
      %v362 = vpop.trf.xlu0
      %v363 = vpop.trf.xlu0
      %v364 = vpop.trf.xlu0
      %v365 = vpop.trf.xlu0
      %v366 = vpop.trf.xlu0
      %v367 = vpop.trf.xlu0
      %v368 = vpop.trf.xlu0
      %v369 = vpop.trf.xlu0
      %v370 = vpop.trf.xlu0
      %v371 = vpop.trf.xlu0
      %v372 = vpop.trf.xlu0
      %v373 = vpop.trf.xlu0
      %v374 = vpop.trf.xlu0
      %v375 = vpop.trf.xlu0
      %v376 = vpop.trf.xlu0
      %v377 = vpop.trf.xlu0
      %v378 = vlaneseq
      %v379 = vshrl.u32 %v378, 7
      %v380 = vsub.s32 0, %v379
      %v381 = vrot.slane %v362, %v380
      %v382 = vsub.f32 %v344, %v381
      %v383 = vsub.f32 %v345, %v381
      %vm384 = vcmask 130048
      %385 = vst.msk [vmem:[%s232] sm:$0xff] %vm384, %v382
      %386 = vst.msk [vmem:[%s232 + $0x8] sm:$0xff] %vm384, %v383
      %s387 = smul.u32 2, %s19
      %p388 = scmp.lt.s32.totalorder %s18, 1
      %s389 = scalar_select %p388, %s18, 1
      %p390 = scmp.lt.s32.totalorder %s387, 1
      %s391 = scalar_select %p390, %s387, 1
      %p392 = scmp.lt.s32.totalorder %s20, 0
      %s393 = scalar_select %p392, %s20, 0
      %s394 = sadd.s32 %s393, %s391
      %s395 = smul.addr %s389, 2
      %s396 = sadd.s32 %s394, %s395
      %s397 = smul.addr %s396, 8
      %s398 = scalar_lea.vmem %s2, %s397
      // Predicated region
      $region29: #{dgcnn_feat_forward.12} parent=27 // pred_check
        %p399 = pneg %p110
      $region30: #{dgcnn_feat_forward.12} parent=27 // pred_check_branch
        %401 = sbr.rel (%p399) target = $region32
      $region31: #{dgcnn_feat_forward.12} parent=27 // pred_region
        %s402 = smul.u32 2, %s19
      $region32: #{dgcnn_feat_forward.12} parent=27 // pred_fallthru
        _
    $region28: #{dgcnn_feat_forward.12} parent=5 // pred_fallthru
      _
    %p403 = scmp.le.s32.totalorder 2, %s8
    // Predicated region
    $region33: #{dgcnn_feat_forward.12} parent=5 // pred_check
      %p404 = pneg %p403
    $region34: #{dgcnn_feat_forward.12} parent=5 // pred_check_branch
      %406 = sbr.rel (%p404) target = $region36
    $region35: #{dgcnn_feat_forward.12} parent=5 // pred_region
      %s407 = ssub.s32 %s8, 2
      // Predicated region
      $region37: #{dgcnn_feat_forward.12} parent=35 // pred_check
        %p408 = pneg %p116
      $region38: #{dgcnn_feat_forward.12} parent=35 // pred_check_branch
        %410 = sbr.rel (%p408) target = $region40
      $region39: #{dgcnn_feat_forward.12} parent=35 // pred_region
        %s411 = smul.u32 2, %s22
        %p412 = scmp.lt.s32.totalorder %s21, 1
        %s413 = scalar_select %p412, %s21, 1
        %p414 = scmp.lt.s32.totalorder %s411, 1
        %s415 = scalar_select %p414, %s411, 1
        %p416 = scmp.lt.s32.totalorder %s23, 0
        %s417 = scalar_select %p416, %s23, 0
        %s418 = sadd.s32 %s417, %s415
        %s419 = smul.addr %s413, 2
        %s420 = sadd.s32 %s418, %s419
        %s421 = smul.addr %s420, 8
        %s422 = scalar_lea.vmem %s2, %s421
      $region40: #{dgcnn_feat_forward.12} parent=35 // pred_fallthru
        _
    $region36: #{dgcnn_feat_forward.12} parent=5 // pred_fallthru
      _
  $region6: #{dgcnn_feat_forward.12} parent=0 // loop_footer
    %s12 = sadd.s32 1, %s8
  $region7: #{dgcnn_feat_forward.12} parent=0 // loop_footer_branch
    %7 = sbr.rel target = $region3
  $region8: #{dgcnn_feat_forward.12} parent=0 // loop_exit
    _

// kernel: dgcnn_feat_forward.13
$region0: #{dgcnn_feat_forward.13}
  #allocation0 [shape = 'u32[]', space=smem, size = 0x4, offset = 0x4, fixed_abs, tag = 'smem constant byte address 0x4 - core index']
  #allocation1 [shape = 'u32[144,128]{1,0:T(1,128)}', space=vmem, size = 0x12000, scoped, tag = 'internal scratch']
  %s0 = inlined_call_operand.vmem [shape: f32[2,16,3], index: 0, kind: input, shape index: {}]
  %s1 = inlined_call_operand.vmem [shape: bf16[2,8,16,3], index: 1, kind: input, shape index: {}]
  %s2 = inlined_call_operand.vmem [shape: bf16[3,64], index: 2, kind: input, shape index: {}]
  %s3 = inlined_call_operand.vmem [shape: bf16[3,64], index: 3, kind: input, shape index: {}]
  %s4 = inlined_call_operand.hbm [shape: f32[1,64], index: 4, kind: input, shape index: {}]
  %s5 = inlined_call_operand.vmem [shape: bf16[64,128], index: 5, kind: input, shape index: {}]
  %s6 = inlined_call_operand.hbm [shape: f32[1,128], index: 6, kind: input, shape index: {}]
  %s7 = inlined_call_operand.vmem [shape: f32[2,16,128], index: 7, kind: output, shape index: {}]
  %s8 = sld [smem:[#allocation0]]
  $region69: #{dgcnn_feat_forward.13} parent=0
    _
  %s10 = ssub.s32 1, %s8
  %s11 = scalar_select 0, %s10, %s8
  $region1: #{dgcnn_feat_forward.13} parent=0
    #allocation2 [shape = 'u8[512]{0}', space=vmem, size = 0x400, scoped, tag = 'input window, operand 4, single buffered']
    #allocation3 [shape = 's32[2]{0}', space=sflag, size = 0x8, scoped, tag = 'scoped memory for dgcnn_feat_forward.13']
    #allocation4 [shape = 'u8[512]{0}', space=vmem, size = 0x400, scoped, tag = 'input window, operand 6, single buffered']
    #allocation5 [shape = 's32[1]{0}', space=sflag, size = 0x4, scoped, tag = 'scoped memory for dgcnn_feat_forward.13']
    %12 = vsyncpa [#allocation3], 0
    %13 = vsyncpa [#allocation5], 0
    loop: start=0, step=1, limit=4
    $region2: #{dgcnn_feat_forward.13} parent=1 // loop_pre_header
      _
    $region3: #{dgcnn_feat_forward.13} parent=1 // loop_header
      %s15 = sphi 0, %s19
      %p16 = scmp.ge.s32.totalorder %s15, 4
      %s22 = sphi 0, %s34
      %s23 = sphi 0, %s30
      %s24 = sphi 0, %s22
      %s25 = sphi 0, %s23
      %s26 = sphi 0, %s24
      %s27 = sphi 0, %s25
      %s39 = sphi 0, %s41
      %s42 = sphi 0, %s39
      %s43 = sphi 0, %s42
      %s59 = sphi 0, %s43
      %s67 = sphi 0, %s69
      %s70 = sphi 0, %s67
      %s71 = sphi 0, %s70
      %s87 = sphi 0, %s71
      %s91 = sphi 0, %s91
      %s93 = sphi 0, %s91
      %s94 = sphi 0, %s93
      %s108 = sphi 0, %s94
      %s112 = sphi 0, %s112
      %s114 = sphi 0, %s112
      %s115 = sphi 0, %s114
      %s129 = sphi 0, %s115
      %s133 = sphi 0, %s133
      %s135 = sphi 0, %s133
      %s136 = sphi 0, %s135
      %s150 = sphi 0, %s136
      %s154 = sphi 0, %s154
      %s156 = sphi 0, %s154
      %s157 = sphi 0, %s156
      %s171 = sphi 0, %s157
      %s175 = sphi 0, %s175
      %s177 = sphi 0, %s175
      %s178 = sphi 0, %s177
      %s192 = sphi 0, %s178
      %s200 = sphi 0, %s202
      %s203 = sphi 0, %s200
      %s204 = sphi 0, %s203
      %s220 = sphi 0, %s204
    $region4: #{dgcnn_feat_forward.13} parent=1 // loop_header_branch
      %18 = sbr.rel (%p16) target = $region8
    $region5: #{dgcnn_feat_forward.13} parent=1 // loop_body
      %s20 = ssub.s32 %s15, 1
      %s21 = ssub.s32 %s15, 2
      %s28 = sadd.s32 1, %s23
      %p29 = scmp.ge.s32.totalorder %s28, 1
      %s30 = scalar_select %p29, 0, %s28
      %s31 = sadd.s32 1, %s22
      %s32 = scalar_select %p29, %s31, %s22
      %p33 = scmp.ge.s32.totalorder %s32, 2
      %s34 = scalar_select %p33, 0, %s32
      %s35 = ssub.s32 %s22, %s34
      %s36 = ssub.s32 %s23, %s30
      %s37 = sor.u32 %s35, %s36
      %p38 = scmp.eq.s32.totalorder %s37, 0
      %s40 = sadd.s32 %s39, 1
      %s41 = scalar_select %p38, %s39, %s40
      %p44 = pneg %p38
      %p45 = scmp.eq.s32.totalorder %s15, 1
      %p46 = por %p44, %p45
      %p47 = scmp.ne.s32.totalorder %s39, %s42
      %p48 = scmp.eq.s32.totalorder %s15, 0
      %p49 = por %p47, %p48
      %p50 = scmp.ne.s32.totalorder %s39, %s42
      %p51 = scmp.eq.s32.totalorder %s20, 1
      %p52 = por %p50, %p51
      %p53 = scmp.ne.s32.totalorder %s42, %s43
      %p54 = scmp.eq.s32.totalorder %s20, 0
      %p55 = por %p53, %p54
      %p56 = scmp.ne.s32.totalorder %s42, %s43
      %p57 = scmp.eq.s32.totalorder %s21, 1
      %p58 = por %p56, %p57
      %p60 = scmp.ne.s32.totalorder %s43, %s59
      %p61 = scmp.eq.s32.totalorder %s21, 0
      %p62 = por %p60, %p61
      %s63 = ssub.s32 %s22, %s34
      %s64 = ssub.s32 %s23, %s30
      %s65 = sor.u32 %s63, %s64
      %p66 = scmp.eq.s32.totalorder %s65, 0
      %s68 = sadd.s32 %s67, 1
      %s69 = scalar_select %p66, %s67, %s68
      %p72 = pneg %p66
      %p73 = scmp.eq.s32.totalorder %s15, 1
      %p74 = por %p72, %p73
      %p75 = scmp.ne.s32.totalorder %s67, %s70
      %p76 = scmp.eq.s32.totalorder %s15, 0
      %p77 = por %p75, %p76
      %p78 = scmp.ne.s32.totalorder %s67, %s70
      %p79 = scmp.eq.s32.totalorder %s20, 1
      %p80 = por %p78, %p79
      %p81 = scmp.ne.s32.totalorder %s70, %s71
      %p82 = scmp.eq.s32.totalorder %s20, 0
      %p83 = por %p81, %p82
      %p84 = scmp.ne.s32.totalorder %s70, %s71
      %p85 = scmp.eq.s32.totalorder %s21, 1
      %p86 = por %p84, %p85
      %p88 = scmp.ne.s32.totalorder %s71, %s87
      %p89 = scmp.eq.s32.totalorder %s21, 0
      %p90 = por %p88, %p89
      %s92 = sadd.s32 %s91, 1
      %p95 = scmp.eq.s32.totalorder %s15, 1
      %p96 = scmp.ne.s32.totalorder %s91, %s93
      %p97 = scmp.eq.s32.totalorder %s15, 0
      %p98 = por %p96, %p97
      %p99 = scmp.ne.s32.totalorder %s91, %s93
      %p100 = scmp.eq.s32.totalorder %s20, 1
      %p101 = por %p99, %p100
      %p102 = scmp.ne.s32.totalorder %s93, %s94
      %p103 = scmp.eq.s32.totalorder %s20, 0
      %p104 = por %p102, %p103
      %p105 = scmp.ne.s32.totalorder %s93, %s94
      %p106 = scmp.eq.s32.totalorder %s21, 1
      %p107 = por %p105, %p106
      %p109 = scmp.ne.s32.totalorder %s94, %s108
      %p110 = scmp.eq.s32.totalorder %s21, 0
      %p111 = por %p109, %p110
      %s113 = sadd.s32 %s112, 1
      %p116 = scmp.eq.s32.totalorder %s15, 1
      %p117 = scmp.ne.s32.totalorder %s112, %s114
      %p118 = scmp.eq.s32.totalorder %s15, 0
      %p119 = por %p117, %p118
      %p120 = scmp.ne.s32.totalorder %s112, %s114
      %p121 = scmp.eq.s32.totalorder %s20, 1
      %p122 = por %p120, %p121
      %p123 = scmp.ne.s32.totalorder %s114, %s115
      %p124 = scmp.eq.s32.totalorder %s20, 0
      %p125 = por %p123, %p124
      %p126 = scmp.ne.s32.totalorder %s114, %s115
      %p127 = scmp.eq.s32.totalorder %s21, 1
      %p128 = por %p126, %p127
      %p130 = scmp.ne.s32.totalorder %s115, %s129
      %p131 = scmp.eq.s32.totalorder %s21, 0
      %p132 = por %p130, %p131
      %s134 = sadd.s32 %s133, 1
      %p137 = scmp.eq.s32.totalorder %s15, 1
      %p138 = scmp.ne.s32.totalorder %s133, %s135
      %p139 = scmp.eq.s32.totalorder %s15, 0
      %p140 = por %p138, %p139
      %p141 = scmp.ne.s32.totalorder %s133, %s135
      %p142 = scmp.eq.s32.totalorder %s20, 1
      %p143 = por %p141, %p142
      %p144 = scmp.ne.s32.totalorder %s135, %s136
      %p145 = scmp.eq.s32.totalorder %s20, 0
      %p146 = por %p144, %p145
      %p147 = scmp.ne.s32.totalorder %s135, %s136
      %p148 = scmp.eq.s32.totalorder %s21, 1
      %p149 = por %p147, %p148
      %p151 = scmp.ne.s32.totalorder %s136, %s150
      %p152 = scmp.eq.s32.totalorder %s21, 0
      %p153 = por %p151, %p152
      %s155 = sadd.s32 %s154, 1
      %p158 = scmp.eq.s32.totalorder %s15, 1
      %p159 = scmp.ne.s32.totalorder %s154, %s156
      %p160 = scmp.eq.s32.totalorder %s15, 0
      %p161 = por %p159, %p160
      %p162 = scmp.ne.s32.totalorder %s154, %s156
      %p163 = scmp.eq.s32.totalorder %s20, 1
      %p164 = por %p162, %p163
      %p165 = scmp.ne.s32.totalorder %s156, %s157
      %p166 = scmp.eq.s32.totalorder %s20, 0
      %p167 = por %p165, %p166
      %p168 = scmp.ne.s32.totalorder %s156, %s157
      %p169 = scmp.eq.s32.totalorder %s21, 1
      %p170 = por %p168, %p169
      %p172 = scmp.ne.s32.totalorder %s157, %s171
      %p173 = scmp.eq.s32.totalorder %s21, 0
      %p174 = por %p172, %p173
      %s176 = sadd.s32 %s175, 1
      %p179 = scmp.eq.s32.totalorder %s15, 1
      %p180 = scmp.ne.s32.totalorder %s175, %s177
      %p181 = scmp.eq.s32.totalorder %s15, 0
      %p182 = por %p180, %p181
      %p183 = scmp.ne.s32.totalorder %s175, %s177
      %p184 = scmp.eq.s32.totalorder %s20, 1
      %p185 = por %p183, %p184
      %p186 = scmp.ne.s32.totalorder %s177, %s178
      %p187 = scmp.eq.s32.totalorder %s20, 0
      %p188 = por %p186, %p187
      %p189 = scmp.ne.s32.totalorder %s177, %s178
      %p190 = scmp.eq.s32.totalorder %s21, 1
      %p191 = por %p189, %p190
      %p193 = scmp.ne.s32.totalorder %s178, %s192
      %p194 = scmp.eq.s32.totalorder %s21, 0
      %p195 = por %p193, %p194
      %s196 = ssub.s32 %s22, %s34
      %s197 = ssub.s32 %s23, %s30
      %s198 = sor.u32 %s196, %s197
      %p199 = scmp.eq.s32.totalorder %s198, 0
      %s201 = sadd.s32 %s200, 1
      %s202 = scalar_select %p199, %s200, %s201
      %p205 = pneg %p199
      %p206 = scmp.eq.s32.totalorder %s15, 1
      %p207 = por %p205, %p206
      %p208 = scmp.ne.s32.totalorder %s200, %s203
      %p209 = scmp.eq.s32.totalorder %s15, 0
      %p210 = por %p208, %p209
      %p211 = scmp.ne.s32.totalorder %s200, %s203
      %p212 = scmp.eq.s32.totalorder %s20, 1
      %p213 = por %p211, %p212
      %p214 = scmp.ne.s32.totalorder %s203, %s204
      %p215 = scmp.eq.s32.totalorder %s20, 0
      %p216 = por %p214, %p215
      %p217 = scmp.ne.s32.totalorder %s203, %s204
      %p218 = scmp.eq.s32.totalorder %s21, 1
      %p219 = por %p217, %p218
      %p221 = scmp.ne.s32.totalorder %s204, %s220
      %p222 = scmp.eq.s32.totalorder %s21, 0
      %p223 = por %p221, %p222
      %p224 = scmp.le.s32.totalorder 1, %s15
      %p225 = scmp.lt.s32.totalorder %s15, 3
      %p226 = pnand %p224, %p225
      %p227 = pneg %p226
      // Predicated region
      $region9: #{dgcnn_feat_forward.13} parent=5 // pred_check
        _
      $region10: #{dgcnn_feat_forward.13} parent=5 // pred_check_branch
        %229 = sbr.rel (%p226) target = $region12
      $region11: #{dgcnn_feat_forward.13} parent=5 // pred_region
        %s230 = ssub.s32 %s15, 1
        // Predicated region
        $region13: #{dgcnn_feat_forward.13} parent=11 // pred_check
          %p231 = pneg %p104
        $region14: #{dgcnn_feat_forward.13} parent=11 // pred_check_branch
          %233 = sbr.rel (%p231) target = $region16
        $region15: #{dgcnn_feat_forward.13} parent=11 // pred_region
          _
        $region16: #{dgcnn_feat_forward.13} parent=11 // pred_fallthru
          _
        // Predicated region
        $region17: #{dgcnn_feat_forward.13} parent=11 // pred_check
          %p234 = pneg %p125
        $region18: #{dgcnn_feat_forward.13} parent=11 // pred_check_branch
          %236 = sbr.rel (%p234) target = $region20
        $region19: #{dgcnn_feat_forward.13} parent=11 // pred_region
          _
        $region20: #{dgcnn_feat_forward.13} parent=11 // pred_fallthru
          _
        // Predicated region
        $region21: #{dgcnn_feat_forward.13} parent=11 // pred_check
          %p237 = pneg %p146
        $region22: #{dgcnn_feat_forward.13} parent=11 // pred_check_branch
          %239 = sbr.rel (%p237) target = $region24
        $region23: #{dgcnn_feat_forward.13} parent=11 // pred_region
          %s241 = ssub.s32 16, 16
          %242 = vsyncadd [#allocation3], %s241
          %s244 = sshll.u32 [#allocation2], 4
          %s245 = int_to_ptr.vmem [resolvable:$true] %s244
          %247 = dma.hbm_to_vmem [thread:$0]  %s4, 16, %s245, [#allocation3]
        $region24: #{dgcnn_feat_forward.13} parent=11 // pred_fallthru
          _
        // Predicated region
        $region25: #{dgcnn_feat_forward.13} parent=11 // pred_check
          %p248 = pneg %p167
        $region26: #{dgcnn_feat_forward.13} parent=11 // pred_check_branch
          %250 = sbr.rel (%p248) target = $region28
        $region27: #{dgcnn_feat_forward.13} parent=11 // pred_region
          _
        $region28: #{dgcnn_feat_forward.13} parent=11 // pred_fallthru
          _
        // Predicated region
        $region29: #{dgcnn_feat_forward.13} parent=11 // pred_check
          %p251 = pneg %p188
        $region30: #{dgcnn_feat_forward.13} parent=11 // pred_check_branch
          %253 = sbr.rel (%p251) target = $region32
        $region31: #{dgcnn_feat_forward.13} parent=11 // pred_region
          %s255 = ssub.s32 16, 16
          %256 = vsyncadd [#allocation5], %s255
          %s258 = sshll.u32 [#allocation4], 4
          %s259 = int_to_ptr.vmem [resolvable:$true] %s258
          %261 = dma.hbm_to_vmem [thread:$0]  %s6, 16, %s259, [#allocation5]
        $region32: #{dgcnn_feat_forward.13} parent=11 // pred_fallthru
          _
      $region12: #{dgcnn_feat_forward.13} parent=5 // pred_fallthru
        _
      %p262 = scmp.lt.s32.totalorder %s15, 2
      // Predicated region
      $region33: #{dgcnn_feat_forward.13} parent=5 // pred_check
        %p263 = pneg %p262
      $region34: #{dgcnn_feat_forward.13} parent=5 // pred_check_branch
        %265 = sbr.rel (%p263) target = $region36
      $region35: #{dgcnn_feat_forward.13} parent=5 // pred_region
        // Predicated region
        $region37: #{dgcnn_feat_forward.13} parent=35 // pred_check
          %p266 = pneg %p49
        $region38: #{dgcnn_feat_forward.13} parent=35 // pred_check_branch
          %268 = sbr.rel (%p266) target = $region40
        $region39: #{dgcnn_feat_forward.13} parent=35 // pred_region
          %s269 = smul.u32 2, %s23
          %p270 = scmp.lt.s32.totalorder %s22, 1
          %s271 = scalar_select %p270, %s22, 1
          %p272 = scmp.lt.s32.totalorder %s269, 1
          %s273 = scalar_select %p272, %s269, 1
          %s274 = smul.addr %s271, 2
          %s275 = sadd.s32 %s273, %s274
          %s276 = smul.addr %s275, 8
          %s277 = scalar_lea.vmem %s0, %s276
          %s278 = smul.u32 2, %s23
        $region40: #{dgcnn_feat_forward.13} parent=35 // pred_fallthru
          _
        // Predicated region
        $region41: #{dgcnn_feat_forward.13} parent=35 // pred_check
          %p279 = pneg %p77
        $region42: #{dgcnn_feat_forward.13} parent=35 // pred_check_branch
          %281 = sbr.rel (%p279) target = $region44
        $region43: #{dgcnn_feat_forward.13} parent=35 // pred_region
          %s282 = smul.u32 2, %s23
          %p283 = scmp.lt.s32.totalorder %s22, 1
          %s284 = scalar_select %p283, %s22, 1
          %p285 = scmp.lt.s32.totalorder %s282, 1
          %s286 = scalar_select %p285, %s282, 1
          %s287 = smul.addr %s284, 16
          %s288 = sadd.s32 %s286, %s287
          %s289 = smul.addr %s288, 4
          %s290 = scalar_lea.vmem %s1, %s289
          %s291 = smul.u32 2, %s23
        $region44: #{dgcnn_feat_forward.13} parent=35 // pred_fallthru
          _
      $region36: #{dgcnn_feat_forward.13} parent=5 // pred_fallthru
        _
      %p292 = scmp.le.s32.totalorder 1, %s15
      %p293 = scmp.lt.s32.totalorder %s15, 3
      %p294 = pnand %p292, %p293
      %p295 = pneg %p294
      // Predicated region
      $region45: #{dgcnn_feat_forward.13} parent=5 // pred_check
        _
      $region46: #{dgcnn_feat_forward.13} parent=5 // pred_check_branch
        %297 = sbr.rel (%p294) target = $region48
      $region47: #{dgcnn_feat_forward.13} parent=5 // pred_region
        %s298 = ssub.s32 %s15, 1
        // Predicated region
        $region49: #{dgcnn_feat_forward.13} parent=47 // pred_check
          %p299 = pneg %p146
        $region50: #{dgcnn_feat_forward.13} parent=47 // pred_check_branch
          %301 = sbr.rel (%p299) target = $region52
        $region51: #{dgcnn_feat_forward.13} parent=47 // pred_region
          %302 = dma.done [#allocation3], 16
        $region52: #{dgcnn_feat_forward.13} parent=47 // pred_fallthru
          _
        // Predicated region
        $region53: #{dgcnn_feat_forward.13} parent=47 // pred_check
          %p303 = pneg %p188
        $region54: #{dgcnn_feat_forward.13} parent=47 // pred_check_branch
          %305 = sbr.rel (%p303) target = $region56
        $region55: #{dgcnn_feat_forward.13} parent=47 // pred_region
          %306 = dma.done [#allocation5], 16
        $region56: #{dgcnn_feat_forward.13} parent=47 // pred_fallthru
          _
        %s307 = smul.u32 2, %s25
        %p308 = scmp.lt.s32.totalorder %s24, 1
        %s309 = scalar_select %p308, %s24, 1
        %p310 = scmp.lt.s32.totalorder %s307, 1
        %s311 = scalar_select %p310, %s307, 1
        %s312 = smul.addr %s309, 2
        %s313 = sadd.s32 %s311, %s312
        %s314 = smul.addr %s313, 8
        %s315 = scalar_lea.vmem %s0, %s314
        %p316 = pneg %p55
        %p317 = pneg %p52
        %s318 = smul.u32 2, %s25
        %p319 = scmp.lt.s32.totalorder %s24, 1
        %s320 = scalar_select %p319, %s24, 1
        %p321 = scmp.lt.s32.totalorder %s318, 1
        %s322 = scalar_select %p321, %s318, 1
        %s323 = smul.addr %s320, 16
        %s324 = sadd.s32 %s322, %s323
        %s325 = smul.addr %s324, 4
        %s326 = scalar_lea.vmem %s1, %s325
        %p327 = pneg %p83
        %p328 = pneg %p80
        %p329 = pneg %p104
        %p330 = pneg %p101
        %p331 = pneg %p125
        %p332 = pneg %p122
        %p333 = pneg %p146
        %p334 = pneg %p143
        %p335 = pneg %p167
        %p336 = pneg %p164
        %p337 = pneg %p188
        %p338 = pneg %p185
        %p339 = pneg %p216
        %p340 = pneg %p213
        %s341 = smul.u32 2, %s25
        %p342 = scmp.lt.s32.totalorder %s24, 1
        %s343 = scalar_select %p342, %s24, 1
        %p344 = scmp.lt.s32.totalorder %s341, 1
        %s345 = scalar_select %p344, %s341, 1
        %s346 = smul.addr %s343, 2
        %s347 = sadd.s32 %s345, %s346
        %s348 = smul.addr %s347, 8
        %s349 = scalar_lea.vmem %s7, %s348
        %s350 = smul.u32 2, %s25
        %p351 = scmp.lt.s32.totalorder %s24, 1
        %s352 = scalar_select %p351, %s24, 1
        %p353 = scmp.lt.s32.totalorder %s350, 1
        %s354 = scalar_select %p353, %s350, 1
        %s355 = smul.addr %s352, 2
        %s356 = sadd.s32 %s354, %s355
        %s357 = smul.addr %s356, 8
        %s358 = scalar_lea.vmem %s0, %s357
        %s359 = smul.u32 2, %s25
        %s360 = smul.u32 2, %s25
        %p361 = scmp.lt.s32.totalorder %s24, 1
        %s362 = scalar_select %p361, %s24, 1
        %p363 = scmp.lt.s32.totalorder %s360, 1
        %s364 = scalar_select %p363, %s360, 1
        %s365 = smul.addr %s362, 16
        %s366 = sadd.s32 %s364, %s365
        %s367 = smul.addr %s366, 4
        %s368 = scalar_lea.vmem %s1, %s367
        %s369 = smul.u32 2, %s25
        %s370 = smul.u32 2, %s25
        %p371 = scmp.lt.s32.totalorder %s24, 1
        %s372 = scalar_select %p371, %s24, 1
        %p373 = scmp.lt.s32.totalorder %s370, 1
        %s374 = scalar_select %p373, %s370, 1
        %s375 = smul.addr %s372, 2
        %s376 = sadd.s32 %s374, %s375
        %s377 = smul.addr %s376, 8
        %s378 = scalar_lea.vmem %s7, %s377
        %s379 = smul.u32 2, %s25
        %v381 = vld [vmem:[%s358] sm:$0xff]
        %v382 = vld [vmem:[%s358 + $0x8] sm:$0xff]
        %v383 = vpack.c.bf16 %v382, %v381
        %v384 = vld [vmem:[%s3] sm:$0x3]
        %v385 = vld [vmem:[#allocation2] sm:$0x1]
        %v387 = vlaneseq
        %v388 = vshrl.u32 %v387, 7
        %v389 = vsub.s32 0, %v388
        %v390 = vrot.slane %v385, %v389
        %vm392 = vcmask 23552
        %v394 = vsel %vm392, %v383, 0
        %vm396 = vcmask 1040384
        %vm397 = vcmask 1041408
        %v398 = vsel %vm396, 4294967295, 65535
        %v399 = vsel %vm397, %v398, 0
        %v401 = vand.u32 %v384, %v399
        %403 = vmatprep.subr.bf16.mxu0 0
        %404 = vmatpush1.bf16.msra.mxu0 0
        %405 = vmatprep.subr.bf16.mxu0 0
        %406 = vmatpush1.bf16.msra.mxu0 0
        %407 = vmatprep.subr.bf16.mxu0 0
        %408 = vmatpush1.bf16.msra.mxu0 0
        %409 = vmatprep.subr.bf16.mxu0 0
        %410 = vmatpush1.bf16.msra.mxu0 0
        %411 = vmatprep.subr.bf16.mxu0 0
        %412 = vmatpush1.bf16.msra.mxu0 0
        %413 = vmatprep.subr.bf16.mxu0 0
        %414 = vmatpush1.bf16.msra.mxu0 0
        %415 = vmatprep.subr.bf16.mxu0 0
        %416 = vmatpush1.bf16.msra.mxu0 0
        %417 = vmatprep.subr.bf16.mxu0 0
        %418 = vmatpush1.bf16.msra.mxu0 %v401
        %419 = vmatprep.subr.bf16.mxu0 0
        %420 = vmatpush2.bf16.msra.mxu0 0
        %421 = vmatprep.subr.bf16.mxu0 0
        %422 = vmatpush2.bf16.msra.mxu0 0
        %423 = vmatprep.subr.bf16.mxu0 0
        %424 = vmatpush2.bf16.msra.mxu0 0
        %425 = vmatprep.subr.bf16.mxu0 0
        %426 = vmatpush2.bf16.msra.mxu0 0
        %427 = vmatprep.subr.bf16.mxu0 0
        %428 = vmatpush2.bf16.msra.mxu0 0
        %429 = vmatprep.subr.bf16.mxu0 0
        %430 = vmatpush2.bf16.msra.mxu0 0
        %431 = vmatprep.subr.bf16.mxu0 0
        %432 = vmatpush2.bf16.msra.mxu0 0
        %433 = vmatprep.subr.bf16.mxu0 0
        %434 = vmatpush2.bf16.msra.mxu0 0
        %435 = vmatprep.mubr.bf16.mxu0 0
        %436 = vmatmul.mubr.bf16.gmra.mxu0 %v394
        %v437 = vpop.f32.mrf.mxu0
        %v438 = vadd.f32 %v390, %v437
        %v439 = vpop.f32.mrf.mxu0
        %v440 = vpop.f32.mrf.mxu0
        %v441 = vadd.f32 %v390, %v440
        %v442 = vpop.f32.mrf.mxu0
        %443 = vdwg.mxu0
        %v444 = vld [vmem:[%s368] sm:$0xf]
        %v445 = vld [vmem:[%s368 + $0x4] sm:$0xf]
        %v446 = vld [vmem:[%s368 + $0x8] sm:$0xf]
        %v447 = vld [vmem:[%s368 + $0xc] sm:$0xf]
        %v448 = vld [vmem:[%s368 + $0x10] sm:$0xf]
        %v449 = vld [vmem:[%s368 + $0x14] sm:$0xf]
        %v450 = vld [vmem:[%s368 + $0x18] sm:$0xf]
        %v451 = vld [vmem:[%s368 + $0x1c] sm:$0xf]
        %v452 = vld [vmem:[%s368 + $0x20] sm:$0xf]
        %v453 = vld [vmem:[%s368 + $0x24] sm:$0xf]
        %v454 = vld [vmem:[%s368 + $0x28] sm:$0xf]
        %v455 = vld [vmem:[%s368 + $0x2c] sm:$0xf]
        %v456 = vld [vmem:[%s368 + $0x30] sm:$0xf]
        %v457 = vld [vmem:[%s368 + $0x34] sm:$0xf]
        %v458 = vld [vmem:[%s368 + $0x38] sm:$0xf]
        %v459 = vld [vmem:[%s368 + $0x3c] sm:$0xf]
        %v460 = vld [vmem:[%s2] sm:$0x3]
        %v477 = vunpack.c.l.b16 %v444
        %v478 = vunpack.c.l.b16 %v445
        %v479 = vunpack.c.l.b16 %v446
        %v480 = vunpack.c.l.b16 %v447
        %v481 = vunpack.c.l.b16 %v448
        %v482 = vunpack.c.l.b16 %v449
        %v483 = vunpack.c.l.b16 %v450
        %v484 = vunpack.c.l.b16 %v451
        %v485 = vunpack.c.l.b16 %v452
        %v486 = vunpack.c.l.b16 %v453
        %v487 = vunpack.c.l.b16 %v454
        %v488 = vunpack.c.l.b16 %v455
        %v489 = vunpack.c.l.b16 %v456
        %v490 = vunpack.c.l.b16 %v457
        %v491 = vunpack.c.l.b16 %v458
        %v492 = vunpack.c.l.b16 %v459
        %v493 = vpack.c.b16 %v478, %v477
        %v494 = vpack.c.b16 %v480, %v479
        %v495 = vpack.c.b16 %v482, %v481
        %v496 = vpack.c.b16 %v484, %v483
        %v497 = vpack.c.b16 %v486, %v485
        %v498 = vpack.c.b16 %v488, %v487
        %v499 = vpack.c.b16 %v490, %v489
        %v500 = vpack.c.b16 %v492, %v491
        %v502 = vsel %vm392, %v493, 0
        %v505 = vsel %vm392, %v494, 0
        %v508 = vsel %vm392, %v495, 0
        %v511 = vsel %vm392, %v496, 0
        %v514 = vsel %vm392, %v497, 0
        %v517 = vsel %vm392, %v498, 0
        %v520 = vsel %vm392, %v499, 0
        %v523 = vsel %vm392, %v500, 0
        %v526 = vand.u32 %v460, %v399
        %528 = vmatprep.subr.bf16.mxu0 0
        %529 = vmatpush1.bf16.msra.mxu0 0
        %530 = vmatprep.subr.bf16.mxu0 0
        %531 = vmatpush1.bf16.msra.mxu0 0
        %532 = vmatprep.subr.bf16.mxu0 0
        %533 = vmatpush1.bf16.msra.mxu0 0
        %534 = vmatprep.subr.bf16.mxu0 0
        %535 = vmatpush1.bf16.msra.mxu0 0
        %536 = vmatprep.subr.bf16.mxu0 0
        %537 = vmatpush1.bf16.msra.mxu0 0
        %538 = vmatprep.subr.bf16.mxu0 0
        %539 = vmatpush1.bf16.msra.mxu0 0
        %540 = vmatprep.subr.bf16.mxu0 0
        %541 = vmatpush1.bf16.msra.mxu0 0
        %542 = vmatprep.subr.bf16.mxu0 0
        %543 = vmatpush1.bf16.msra.mxu0 %v526
        %544 = vmatprep.subr.bf16.mxu0 0
        %545 = vmatpush2.bf16.msra.mxu0 0
        %546 = vmatprep.subr.bf16.mxu0 0
        %547 = vmatpush2.bf16.msra.mxu0 0
        %548 = vmatprep.subr.bf16.mxu0 0
        %549 = vmatpush2.bf16.msra.mxu0 0
        %550 = vmatprep.subr.bf16.mxu0 0
        %551 = vmatpush2.bf16.msra.mxu0 0
        %552 = vmatprep.subr.bf16.mxu0 0
        %553 = vmatpush2.bf16.msra.mxu0 0
        %554 = vmatprep.subr.bf16.mxu0 0
        %555 = vmatpush2.bf16.msra.mxu0 0
        %556 = vmatprep.subr.bf16.mxu0 0
        %557 = vmatpush2.bf16.msra.mxu0 0
        %558 = vmatprep.subr.bf16.mxu0 0
        %559 = vmatpush2.bf16.msra.mxu0 0
        %560 = vmatprep.mubr.bf16.mxu0 0
        %561 = vmatmul.mubr.bf16.gmra.mxu0 %v502
        %v562 = vpop.f32.mrf.mxu0
        %v563 = vadd.f32 0.0, %v562
        %v564 = vpop.f32.mrf.mxu0
        %v565 = vpop.f32.mrf.mxu0
        %v566 = vadd.f32 0.0, %v565
        %v567 = vpop.f32.mrf.mxu0
        %568 = vmatprep.mubr.bf16.mxu0 0
        %569 = vmatmul.mubr.bf16.gmra.mxu0 %v505
        %v570 = vpop.f32.mrf.mxu0
        %v571 = vadd.f32 0.0, %v570
        %v572 = vpop.f32.mrf.mxu0
        %v573 = vpop.f32.mrf.mxu0
        %v574 = vadd.f32 0.0, %v573
        %v575 = vpop.f32.mrf.mxu0
        %576 = vmatprep.mubr.bf16.mxu0 0
        %577 = vmatmul.mubr.bf16.gmra.mxu0 %v508
        %v578 = vpop.f32.mrf.mxu0
        %v579 = vadd.f32 0.0, %v578
        %v580 = vpop.f32.mrf.mxu0
        %v581 = vpop.f32.mrf.mxu0
        %v582 = vadd.f32 0.0, %v581
        %v583 = vpop.f32.mrf.mxu0
        %584 = vmatprep.mubr.bf16.mxu0 0
        %585 = vmatmul.mubr.bf16.gmra.mxu0 %v511
        %v586 = vpop.f32.mrf.mxu0
        %v587 = vadd.f32 0.0, %v586
        %v588 = vpop.f32.mrf.mxu0
        %v589 = vpop.f32.mrf.mxu0
        %v590 = vadd.f32 0.0, %v589
        %v591 = vpop.f32.mrf.mxu0
        %592 = vmatprep.mubr.bf16.mxu0 0
        %593 = vmatmul.mubr.bf16.gmra.mxu0 %v514
        %v594 = vpop.f32.mrf.mxu0
        %v595 = vadd.f32 0.0, %v594
        %v596 = vpop.f32.mrf.mxu0
        %v597 = vpop.f32.mrf.mxu0
        %v598 = vadd.f32 0.0, %v597
        %v599 = vpop.f32.mrf.mxu0
        %600 = vmatprep.mubr.bf16.mxu0 0
        %601 = vmatmul.mubr.bf16.gmra.mxu0 %v517
        %v602 = vpop.f32.mrf.mxu0
        %v603 = vadd.f32 0.0, %v602
        %v604 = vpop.f32.mrf.mxu0
        %v605 = vpop.f32.mrf.mxu0
        %v606 = vadd.f32 0.0, %v605
        %v607 = vpop.f32.mrf.mxu0
        %608 = vmatprep.mubr.bf16.mxu0 0
        %609 = vmatmul.mubr.bf16.gmra.mxu0 %v520
        %v610 = vpop.f32.mrf.mxu0
        %v611 = vadd.f32 0.0, %v610
        %v612 = vpop.f32.mrf.mxu0
        %v613 = vpop.f32.mrf.mxu0
        %v614 = vadd.f32 0.0, %v613
        %v615 = vpop.f32.mrf.mxu0
        %616 = vmatprep.mubr.bf16.mxu0 0
        %617 = vmatmul.mubr.bf16.gmra.mxu0 %v523
        %v618 = vpop.f32.mrf.mxu0
        %v619 = vadd.f32 0.0, %v618
        %v620 = vpop.f32.mrf.mxu0
        %v621 = vpop.f32.mrf.mxu0
        %v622 = vadd.f32 0.0, %v621
        %v623 = vpop.f32.mrf.mxu0
        %624 = vdwg.mxu0
        %v625 = vadd.f32 %v563, %v438
        %v626 = vadd.f32 %v566, %v441
        %v627 = vadd.f32 %v571, %v438
        %v628 = vadd.f32 %v574, %v441
        %v629 = vadd.f32 %v579, %v438
        %v630 = vadd.f32 %v582, %v441
        %v631 = vadd.f32 %v587, %v438
        %v632 = vadd.f32 %v590, %v441
        %v633 = vadd.f32 %v595, %v438
        %v634 = vadd.f32 %v598, %v441
        %v635 = vadd.f32 %v603, %v438
        %v636 = vadd.f32 %v606, %v441
        %v637 = vadd.f32 %v611, %v438
        %v638 = vadd.f32 %v614, %v441
        %v639 = vadd.f32 %v619, %v438
        %v640 = vadd.f32 %v622, %v441
        %v641 = vmul.f32 %v625, 0.2
        %v642 = vmul.f32 %v626, 0.2
        %v643 = vmul.f32 %v627, 0.2
        %v644 = vmul.f32 %v628, 0.2
        %v645 = vmul.f32 %v629, 0.2
        %v646 = vmul.f32 %v630, 0.2
        %v647 = vmul.f32 %v631, 0.2
        %v648 = vmul.f32 %v632, 0.2
        %v649 = vmul.f32 %v633, 0.2
        %v650 = vmul.f32 %v634, 0.2
        %v651 = vmul.f32 %v635, 0.2
        %v652 = vmul.f32 %v636, 0.2
        %v653 = vmul.f32 %v637, 0.2
        %v654 = vmul.f32 %v638, 0.2
        %v655 = vmul.f32 %v639, 0.2
        %v656 = vmul.f32 %v640, 0.2
        %v657 = vmax.f32 %v625, %v641
        %v658 = vmax.f32 %v626, %v642
        %v659 = vmax.f32 %v627, %v643
        %v660 = vmax.f32 %v628, %v644
        %v661 = vmax.f32 %v629, %v645
        %v662 = vmax.f32 %v630, %v646
        %v663 = vmax.f32 %v631, %v647
        %v664 = vmax.f32 %v632, %v648
        %v665 = vmax.f32 %v633, %v649
        %v666 = vmax.f32 %v634, %v650
        %v667 = vmax.f32 %v635, %v651
        %v668 = vmax.f32 %v636, %v652
        %v669 = vmax.f32 %v637, %v653
        %v670 = vmax.f32 %v638, %v654
        %v671 = vmax.f32 %v639, %v655
        %v672 = vmax.f32 %v640, %v656
        %v673 = vpack.c.bf16 %v658, %v657
        %v674 = vpack.c.bf16 %v660, %v659
        %v675 = vpack.c.bf16 %v662, %v661
        %v676 = vpack.c.bf16 %v664, %v663
        %v677 = vpack.c.bf16 %v666, %v665
        %v678 = vpack.c.bf16 %v668, %v667
        %v679 = vpack.c.bf16 %v670, %v669
        %v680 = vpack.c.bf16 %v672, %v671
        %v681 = vld [vmem:[%s5] sm:$0xf]
        %v682 = vld [vmem:[%s5 + $0x4] sm:$0xf]
        %v683 = vld [vmem:[%s5 + $0x8] sm:$0xf]
        %v684 = vld [vmem:[%s5 + $0xc] sm:$0xf]
        %v685 = vld [vmem:[%s5 + $0x10] sm:$0xf]
        %v686 = vld [vmem:[%s5 + $0x14] sm:$0xf]
        %v687 = vld [vmem:[%s5 + $0x18] sm:$0xf]
        %v688 = vld [vmem:[%s5 + $0x1c] sm:$0xf]
        %v697 = vunpack.c.l.b16 %v681
        %v698 = vunpack.c.l.b16 %v682
        %v699 = vunpack.c.l.b16 %v683
        %v700 = vunpack.c.l.b16 %v684
        %v701 = vunpack.c.l.b16 %v685
        %v702 = vunpack.c.l.b16 %v686
        %v703 = vunpack.c.l.b16 %v687
        %v704 = vunpack.c.l.b16 %v688
        %v705 = vpack.c.b16 %v698, %v697
        %v706 = vpack.c.b16 %v700, %v699
        %v707 = vpack.c.b16 %v702, %v701
        %v708 = vpack.c.b16 %v704, %v703
        %vm713 = vcmask 523264
        %v715 = vsel %vm713, %v673, 0
        %v718 = vsel %vm713, %v674, 0
        %v721 = vsel %vm713, %v675, 0
        %v724 = vsel %vm713, %v676, 0
        %v727 = vsel %vm713, %v677, 0
        %v730 = vsel %vm713, %v678, 0
        %v733 = vsel %vm713, %v679, 0
        %v736 = vsel %vm713, %v680, 0
        %738 = vmatprep.subr.bf16.mxu0 0
        %739 = vmatpush1.bf16.msra.mxu0 0
        %740 = vmatprep.subr.bf16.mxu0 0
        %741 = vmatpush1.bf16.msra.mxu0 0
        %742 = vmatprep.subr.bf16.mxu0 0
        %743 = vmatpush1.bf16.msra.mxu0 0
        %744 = vmatprep.subr.bf16.mxu0 0
        %745 = vmatpush1.bf16.msra.mxu0 0
        %746 = vmatprep.subr.bf16.mxu0 0
        %747 = vmatpush1.bf16.msra.mxu0 %v708
        %748 = vmatprep.subr.bf16.mxu0 0
        %749 = vmatpush1.bf16.msra.mxu0 %v707
        %750 = vmatprep.subr.bf16.mxu0 0
        %751 = vmatpush1.bf16.msra.mxu0 %v706
        %752 = vmatprep.subr.bf16.mxu0 0
        %753 = vmatpush1.bf16.msra.mxu0 %v705
        %754 = vmatprep.subr.bf16.mxu0 0
        %755 = vmatpush2.bf16.msra.mxu0 0
        %756 = vmatprep.subr.bf16.mxu0 0
        %757 = vmatpush2.bf16.msra.mxu0 0
        %758 = vmatprep.subr.bf16.mxu0 0
        %759 = vmatpush2.bf16.msra.mxu0 0
        %760 = vmatprep.subr.bf16.mxu0 0
        %761 = vmatpush2.bf16.msra.mxu0 0
        %762 = vmatprep.subr.bf16.mxu0 0
        %763 = vmatpush2.bf16.msra.mxu0 0
        %764 = vmatprep.subr.bf16.mxu0 0
        %765 = vmatpush2.bf16.msra.mxu0 0
        %766 = vmatprep.subr.bf16.mxu0 0
        %767 = vmatpush2.bf16.msra.mxu0 0
        %768 = vmatprep.subr.bf16.mxu0 0
        %769 = vmatpush2.bf16.msra.mxu0 0
        %770 = vmatprep.mubr.bf16.mxu0 0
        %771 = vmatmul.mubr.bf16.gmra.mxu0 %v715
        %v772 = vpop.f32.mrf.mxu0
        %v773 = vadd.f32 0.0, %v772
        %v774 = vpop.f32.mrf.mxu0
        %v775 = vpop.f32.mrf.mxu0
        %v776 = vadd.f32 0.0, %v775
        %v777 = vpop.f32.mrf.mxu0
        %778 = vmatprep.mubr.bf16.mxu0 0
        %779 = vmatmul.mubr.bf16.gmra.mxu0 %v718
        %v780 = vpop.f32.mrf.mxu0
        %v781 = vadd.f32 0.0, %v780
        %v782 = vpop.f32.mrf.mxu0
        %v783 = vpop.f32.mrf.mxu0
        %v784 = vadd.f32 0.0, %v783
        %v785 = vpop.f32.mrf.mxu0
        %786 = vmatprep.mubr.bf16.mxu0 0
        %787 = vmatmul.mubr.bf16.gmra.mxu0 %v721
        %v788 = vpop.f32.mrf.mxu0
        %v789 = vadd.f32 0.0, %v788
        %v790 = vpop.f32.mrf.mxu0
        %v791 = vpop.f32.mrf.mxu0
        %v792 = vadd.f32 0.0, %v791
        %v793 = vpop.f32.mrf.mxu0
        %794 = vmatprep.mubr.bf16.mxu0 0
        %795 = vmatmul.mubr.bf16.gmra.mxu0 %v724
        %v796 = vpop.f32.mrf.mxu0
        %v797 = vadd.f32 0.0, %v796
        %v798 = vpop.f32.mrf.mxu0
        %v799 = vpop.f32.mrf.mxu0
        %v800 = vadd.f32 0.0, %v799
        %v801 = vpop.f32.mrf.mxu0
        %802 = vmatprep.mubr.bf16.mxu0 0
        %803 = vmatmul.mubr.bf16.gmra.mxu0 %v727
        %v804 = vpop.f32.mrf.mxu0
        %v805 = vadd.f32 0.0, %v804
        %v806 = vpop.f32.mrf.mxu0
        %v807 = vpop.f32.mrf.mxu0
        %v808 = vadd.f32 0.0, %v807
        %v809 = vpop.f32.mrf.mxu0
        %810 = vmatprep.mubr.bf16.mxu0 0
        %811 = vmatmul.mubr.bf16.gmra.mxu0 %v730
        %v812 = vpop.f32.mrf.mxu0
        %v813 = vadd.f32 0.0, %v812
        %v814 = vpop.f32.mrf.mxu0
        %v815 = vpop.f32.mrf.mxu0
        %v816 = vadd.f32 0.0, %v815
        %v817 = vpop.f32.mrf.mxu0
        %818 = vmatprep.mubr.bf16.mxu0 0
        %819 = vmatmul.mubr.bf16.gmra.mxu0 %v733
        %v820 = vpop.f32.mrf.mxu0
        %v821 = vadd.f32 0.0, %v820
        %v822 = vpop.f32.mrf.mxu0
        %v823 = vpop.f32.mrf.mxu0
        %v824 = vadd.f32 0.0, %v823
        %v825 = vpop.f32.mrf.mxu0
        %826 = vmatprep.mubr.bf16.mxu0 0
        %827 = vmatmul.mubr.bf16.gmra.mxu0 %v736
        %v828 = vpop.f32.mrf.mxu0
        %v829 = vadd.f32 0.0, %v828
        %v830 = vpop.f32.mrf.mxu0
        %v831 = vpop.f32.mrf.mxu0
        %v832 = vadd.f32 0.0, %v831
        %v833 = vpop.f32.mrf.mxu0
        %834 = vdwg.mxu0
        %v835 = vld [vmem:[#allocation4] sm:$0x1]
        %v837 = vlaneseq
        %v838 = vshrl.u32 %v837, 7
        %v839 = vsub.s32 0, %v838
        %v840 = vrot.slane %v835, %v839
        %v842 = vadd.f32 %v773, %v840
        %v843 = vadd.f32 %v776, %v840
        %v844 = vadd.f32 %v781, %v840
        %v845 = vadd.f32 %v784, %v840
        %v846 = vadd.f32 %v789, %v840
        %v847 = vadd.f32 %v792, %v840
        %v848 = vadd.f32 %v797, %v840
        %v849 = vadd.f32 %v800, %v840
        %v850 = vadd.f32 %v805, %v840
        %v851 = vadd.f32 %v808, %v840
        %v852 = vadd.f32 %v813, %v840
        %v853 = vadd.f32 %v816, %v840
        %v854 = vadd.f32 %v821, %v840
        %v855 = vadd.f32 %v824, %v840
        %v856 = vadd.f32 %v829, %v840
        %v857 = vadd.f32 %v832, %v840
        %v858 = vmul.f32 %v842, 0.2
        %v859 = vmul.f32 %v843, 0.2
        %v860 = vmul.f32 %v844, 0.2
        %v861 = vmul.f32 %v845, 0.2
        %v862 = vmul.f32 %v846, 0.2
        %v863 = vmul.f32 %v847, 0.2
        %v864 = vmul.f32 %v848, 0.2
        %v865 = vmul.f32 %v849, 0.2
        %v866 = vmul.f32 %v850, 0.2
        %v867 = vmul.f32 %v851, 0.2
        %v868 = vmul.f32 %v852, 0.2
        %v869 = vmul.f32 %v853, 0.2
        %v870 = vmul.f32 %v854, 0.2
        %v871 = vmul.f32 %v855, 0.2
        %v872 = vmul.f32 %v856, 0.2
        %v873 = vmul.f32 %v857, 0.2
        %v874 = vmax.f32 %v842, %v858
        %v875 = vmax.f32 %v843, %v859
        %v876 = vmax.f32 %v844, %v860
        %v877 = vmax.f32 %v845, %v861
        %v878 = vmax.f32 %v846, %v862
        %v879 = vmax.f32 %v847, %v863
        %v880 = vmax.f32 %v848, %v864
        %v881 = vmax.f32 %v849, %v865
        %v882 = vmax.f32 %v850, %v866
        %v883 = vmax.f32 %v851, %v867
        %v884 = vmax.f32 %v852, %v868
        %v885 = vmax.f32 %v853, %v869
        %v886 = vmax.f32 %v854, %v870
        %v887 = vmax.f32 %v855, %v871
        %v888 = vmax.f32 %v856, %v872
        %v889 = vmax.f32 %v857, %v873
        %v890 = vmax.f32 %v874, %v878
        %v891 = vmax.f32 %v876, %v880
        %v892 = vmax.f32 %v890, %v882
        %v893 = vmax.f32 %v891, %v884
        %v894 = vmax.f32 %v892, %v886
        %v895 = vmax.f32 %v893, %v888
        %v896 = vmax.f32 %v894, %v895
        %v897 = vmax.f32 %v875, %v879
        %v898 = vmax.f32 %v877, %v881
        %v899 = vmax.f32 %v897, %v883
        %v900 = vmax.f32 %v898, %v885
        %v901 = vmax.f32 %v899, %v887
        %v902 = vmax.f32 %v900, %v889
        %v903 = vmax.f32 %v901, %v902
        %904 = vst [vmem:[%s378] sm:$0xff] %v896
        %905 = vst [vmem:[%s378 + $0x8] sm:$0xff] %v903
        %s906 = smul.u32 2, %s25
        %p907 = scmp.lt.s32.totalorder %s24, 1
        %s908 = scalar_select %p907, %s24, 1
        %p909 = scmp.lt.s32.totalorder %s906, 1
        %s910 = scalar_select %p909, %s906, 1
        %s911 = smul.addr %s908, 2
        %s912 = sadd.s32 %s910, %s911
        %s913 = smul.addr %s912, 8
        %s914 = scalar_lea.vmem %s7, %s913
        // Predicated region
        $region57: #{dgcnn_feat_forward.13} parent=47 // pred_check
          %p915 = pneg %p213
        $region58: #{dgcnn_feat_forward.13} parent=47 // pred_check_branch
          %917 = sbr.rel (%p915) target = $region60
        $region59: #{dgcnn_feat_forward.13} parent=47 // pred_region
          %s918 = smul.u32 2, %s25
        $region60: #{dgcnn_feat_forward.13} parent=47 // pred_fallthru
          _
      $region48: #{dgcnn_feat_forward.13} parent=5 // pred_fallthru
        _
      %p919 = scmp.le.s32.totalorder 2, %s15
      // Predicated region
      $region61: #{dgcnn_feat_forward.13} parent=5 // pred_check
        %p920 = pneg %p919
      $region62: #{dgcnn_feat_forward.13} parent=5 // pred_check_branch
        %922 = sbr.rel (%p920) target = $region64
      $region63: #{dgcnn_feat_forward.13} parent=5 // pred_region
        %s923 = ssub.s32 %s15, 2
        // Predicated region
        $region65: #{dgcnn_feat_forward.13} parent=63 // pred_check
          %p924 = pneg %p219
        $region66: #{dgcnn_feat_forward.13} parent=63 // pred_check_branch
          %926 = sbr.rel (%p924) target = $region68
        $region67: #{dgcnn_feat_forward.13} parent=63 // pred_region
          %s927 = smul.u32 2, %s27
          %p928 = scmp.lt.s32.totalorder %s26, 1
          %s929 = scalar_select %p928, %s26, 1
          %p930 = scmp.lt.s32.totalorder %s927, 1
          %s931 = scalar_select %p930, %s927, 1
          %s932 = smul.addr %s929, 2
          %s933 = sadd.s32 %s931, %s932
          %s934 = smul.addr %s933, 8
          %s935 = scalar_lea.vmem %s7, %s934
        $region68: #{dgcnn_feat_forward.13} parent=63 // pred_fallthru
          _
      $region64: #{dgcnn_feat_forward.13} parent=5 // pred_fallthru
        _
    $region6: #{dgcnn_feat_forward.13} parent=1 // loop_footer
      %s19 = sadd.s32 1, %s15
    $region7: #{dgcnn_feat_forward.13} parent=1 // loop_footer_branch
      %14 = sbr.rel target = $region3
    $region8: #{dgcnn_feat_forward.13} parent=1 // loop_exit
      _
    %936 = vsyncpa [#allocation3], 1
    %s937 = scalar_lea.sflag [#allocation3], 1
    %938 = vsyncpa %s937, 1
    %939 = vsyncpa [#allocation5], 1

// kernel: dgcnn_feat_forward.14
$region0: #{dgcnn_feat_forward.14}
  #allocation0 [shape = 'u32[]', space=smem, size = 0x4, offset = 0x4, fixed_abs, tag = 'smem constant byte address 0x4 - core index']
  #allocation1 [shape = 'u32[144,128]{1,0:T(1,128)}', space=vmem, size = 0x12000, scoped, tag = 'internal scratch']
  %s0 = inlined_call_operand.vmem [shape: f32[2,16,128], index: 0, kind: input, shape index: {}]
  %s1 = inlined_call_operand.vmem [shape: bf16[128,1024], index: 1, kind: input, shape index: {}]
  %s2 = inlined_call_operand.hbm [shape: f32[1,1024], index: 2, kind: input, shape index: {}]
  %s3 = inlined_call_operand.vmem [shape: f32[2,1,1024], index: 3, kind: output, shape index: {}]
  %s4 = sld [smem:[#allocation0]]
  $region76: #{dgcnn_feat_forward.14} parent=0
    _
  %s6 = ssub.s32 1, %s4
  %s7 = scalar_select 0, %s6, %s4
  $region1: #{dgcnn_feat_forward.14} parent=0
    #allocation2 [shape = 'u8[262144]{0}', space=vmem, size = 0x40000, scoped, tag = 'input window, operand 1']
    #allocation3 [shape = 'u8[4096]{0}', space=vmem, size = 0x1000, scoped, tag = 'input window, operand 2']
    #allocation4 [shape = 's32[2]{0}', space=sflag, size = 0x8, scoped, tag = 'scoped memory for dgcnn_feat_forward.14']
    %8 = vsyncpa [#allocation4], 0
    %s9 = scalar_lea.sflag [#allocation4], 1
    %10 = vsyncpa %s9, 0
    loop: start=0, step=1, limit=6
    $region2: #{dgcnn_feat_forward.14} parent=1 // loop_pre_header
      _
    $region3: #{dgcnn_feat_forward.14} parent=1 // loop_header
      %s12 = sphi 0, %s16
      %p13 = scmp.ge.s32.totalorder %s12, 6
      %s19 = sphi 0, %s38
      %s20 = sphi 0, %s34
      %s21 = sphi 0, %s30
      %s22 = sphi 0, %s19
      %s23 = sphi 0, %s20
      %s24 = sphi 0, %s21
      %s25 = sphi 0, %s22
      %s26 = sphi 0, %s23
      %s27 = sphi 0, %s24
      %s43 = sphi 0, %s45
      %s46 = sphi 0, %s43
      %s47 = sphi 0, %s46
      %s63 = sphi 0, %s47
      %s69 = sphi 0, %s71
      %s72 = sphi 0, %s69
      %s73 = sphi 0, %s72
      %s89 = sphi 0, %s73
      %s95 = sphi 0, %s97
      %s98 = sphi 0, %s95
      %s99 = sphi 0, %s98
      %s115 = sphi 0, %s99
      %s123 = sphi 0, %s125
      %s126 = sphi 0, %s123
      %s127 = sphi 0, %s126
      %s143 = sphi 0, %s127
    $region4: #{dgcnn_feat_forward.14} parent=1 // loop_header_branch
      %15 = sbr.rel (%p13) target = $region8
    $region5: #{dgcnn_feat_forward.14} parent=1 // loop_body
      %s17 = ssub.s32 %s12, 1
      %s18 = ssub.s32 %s12, 2
      %s28 = sadd.s32 1, %s21
      %p29 = scmp.ge.s32.totalorder %s28, 1
      %s30 = scalar_select %p29, 0, %s28
      %s31 = sadd.s32 1, %s20
      %s32 = scalar_select %p29, %s31, %s20
      %p33 = scmp.ge.s32.totalorder %s32, 2
      %s34 = scalar_select %p33, 0, %s32
      %s35 = sadd.s32 1, %s19
      %s36 = scalar_select %p33, %s35, %s19
      %p37 = scmp.ge.s32.totalorder %s36, 2
      %s38 = scalar_select %p37, 0, %s36
      %s39 = ssub.s32 %s19, %s38
      %s40 = ssub.s32 %s21, %s30
      %s41 = sor.u32 %s39, %s40
      %p42 = scmp.eq.s32.totalorder %s41, 0
      %s44 = sadd.s32 %s43, 1
      %s45 = scalar_select %p42, %s43, %s44
      %p48 = pneg %p42
      %p49 = scmp.eq.s32.totalorder %s12, 3
      %p50 = por %p48, %p49
      %p51 = scmp.ne.s32.totalorder %s43, %s46
      %p52 = scmp.eq.s32.totalorder %s12, 0
      %p53 = por %p51, %p52
      %p54 = scmp.ne.s32.totalorder %s43, %s46
      %p55 = scmp.eq.s32.totalorder %s17, 3
      %p56 = por %p54, %p55
      %p57 = scmp.ne.s32.totalorder %s46, %s47
      %p58 = scmp.eq.s32.totalorder %s17, 0
      %p59 = por %p57, %p58
      %p60 = scmp.ne.s32.totalorder %s46, %s47
      %p61 = scmp.eq.s32.totalorder %s18, 3
      %p62 = por %p60, %p61
      %p64 = scmp.ne.s32.totalorder %s47, %s63
      %p65 = scmp.eq.s32.totalorder %s18, 0
      %p66 = por %p64, %p65
      %s67 = ssub.s32 %s20, %s34
      %p68 = scmp.eq.s32.totalorder %s67, 0
      %s70 = sadd.s32 %s69, 1
      %s71 = scalar_select %p68, %s69, %s70
      %p74 = pneg %p68
      %p75 = scmp.eq.s32.totalorder %s12, 3
      %p76 = por %p74, %p75
      %p77 = scmp.ne.s32.totalorder %s69, %s72
      %p78 = scmp.eq.s32.totalorder %s12, 0
      %p79 = por %p77, %p78
      %p80 = scmp.ne.s32.totalorder %s69, %s72
      %p81 = scmp.eq.s32.totalorder %s17, 3
      %p82 = por %p80, %p81
      %p83 = scmp.ne.s32.totalorder %s72, %s73
      %p84 = scmp.eq.s32.totalorder %s17, 0
      %p85 = por %p83, %p84
      %p86 = scmp.ne.s32.totalorder %s72, %s73
      %p87 = scmp.eq.s32.totalorder %s18, 3
      %p88 = por %p86, %p87
      %p90 = scmp.ne.s32.totalorder %s73, %s89
      %p91 = scmp.eq.s32.totalorder %s18, 0
      %p92 = por %p90, %p91
      %s93 = ssub.s32 %s20, %s34
      %p94 = scmp.eq.s32.totalorder %s93, 0
      %s96 = sadd.s32 %s95, 1
      %s97 = scalar_select %p94, %s95, %s96
      %p100 = pneg %p94
      %p101 = scmp.eq.s32.totalorder %s12, 3
      %p102 = por %p100, %p101
      %p103 = scmp.ne.s32.totalorder %s95, %s98
      %p104 = scmp.eq.s32.totalorder %s12, 0
      %p105 = por %p103, %p104
      %p106 = scmp.ne.s32.totalorder %s95, %s98
      %p107 = scmp.eq.s32.totalorder %s17, 3
      %p108 = por %p106, %p107
      %p109 = scmp.ne.s32.totalorder %s98, %s99
      %p110 = scmp.eq.s32.totalorder %s17, 0
      %p111 = por %p109, %p110
      %p112 = scmp.ne.s32.totalorder %s98, %s99
      %p113 = scmp.eq.s32.totalorder %s18, 3
      %p114 = por %p112, %p113
      %p116 = scmp.ne.s32.totalorder %s99, %s115
      %p117 = scmp.eq.s32.totalorder %s18, 0
      %p118 = por %p116, %p117
      %s119 = ssub.s32 %s19, %s38
      %s120 = ssub.s32 %s20, %s34
      %s121 = sor.u32 %s119, %s120
      %p122 = scmp.eq.s32.totalorder %s121, 0
      %s124 = sadd.s32 %s123, 1
      %s125 = scalar_select %p122, %s123, %s124
      %p128 = pneg %p122
      %p129 = scmp.eq.s32.totalorder %s12, 3
      %p130 = por %p128, %p129
      %p131 = scmp.ne.s32.totalorder %s123, %s126
      %p132 = scmp.eq.s32.totalorder %s12, 0
      %p133 = por %p131, %p132
      %p134 = scmp.ne.s32.totalorder %s123, %s126
      %p135 = scmp.eq.s32.totalorder %s17, 3
      %p136 = por %p134, %p135
      %p137 = scmp.ne.s32.totalorder %s126, %s127
      %p138 = scmp.eq.s32.totalorder %s17, 0
      %p139 = por %p137, %p138
      %p140 = scmp.ne.s32.totalorder %s126, %s127
      %p141 = scmp.eq.s32.totalorder %s18, 3
      %p142 = por %p140, %p141
      %p144 = scmp.ne.s32.totalorder %s127, %s143
      %p145 = scmp.eq.s32.totalorder %s18, 0
      %p146 = por %p144, %p145
      %p147 = scmp.le.s32.totalorder 1, %s12
      %p148 = scmp.lt.s32.totalorder %s12, 5
      %p149 = pnand %p147, %p148
      %p150 = pneg %p149
      // Predicated region
      $region9: #{dgcnn_feat_forward.14} parent=5 // pred_check
        _
      $region10: #{dgcnn_feat_forward.14} parent=5 // pred_check_branch
        %152 = sbr.rel (%p149) target = $region12
      $region11: #{dgcnn_feat_forward.14} parent=5 // pred_region
        %s153 = ssub.s32 %s12, 1
      $region12: #{dgcnn_feat_forward.14} parent=5 // pred_fallthru
        _
      %p154 = scmp.lt.s32.totalorder %s12, 4
      // Predicated region
      $region13: #{dgcnn_feat_forward.14} parent=5 // pred_check
        %p155 = pneg %p154
      $region14: #{dgcnn_feat_forward.14} parent=5 // pred_check_branch
        %157 = sbr.rel (%p155) target = $region16
      $region15: #{dgcnn_feat_forward.14} parent=5 // pred_region
        // Predicated region
        $region17: #{dgcnn_feat_forward.14} parent=15 // pred_check
          %p158 = pneg %p53
        $region18: #{dgcnn_feat_forward.14} parent=15 // pred_check_branch
          %160 = sbr.rel (%p158) target = $region20
        $region19: #{dgcnn_feat_forward.14} parent=15 // pred_region
          %s161 = smul.u32 2, %s21
          %p162 = scmp.lt.s32.totalorder %s19, 1
          %s163 = scalar_select %p162, %s19, 1
          %p164 = scmp.lt.s32.totalorder %s161, 1
          %s165 = scalar_select %p164, %s161, 1
          %s166 = smul.addr %s163, 2
          %s167 = sadd.s32 %s165, %s166
          %s168 = smul.addr %s167, 8
          %s169 = scalar_lea.vmem %s0, %s168
          %s170 = smul.u32 2, %s21
        $region20: #{dgcnn_feat_forward.14} parent=15 // pred_fallthru
          _
        // Predicated region
        $region21: #{dgcnn_feat_forward.14} parent=15 // pred_check
          %p171 = pneg %p79
        $region22: #{dgcnn_feat_forward.14} parent=15 // pred_check_branch
          %173 = sbr.rel (%p171) target = $region24
        $region23: #{dgcnn_feat_forward.14} parent=15 // pred_region
          %s174 = sand.u32 %s69, 1
          %s175 = sand.u32 %s69, 1
          %s176 = smul.addr %s175, 256
          %s177 = scalar_lea.vmem [#allocation2], %s176
          %s178 = smul.u32 4, %s20
          %s179 = smul.addr %s178, 4
          %s180 = scalar_lea.vmem %s1, %s179
          // Predicated region
          $region25: #{dgcnn_feat_forward.14} parent=23 // pred_check
            _
          $region26: #{dgcnn_feat_forward.14} parent=23 // pred_check_branch
            %182 = sbr.rel (0) target = $region28
          $region27: #{dgcnn_feat_forward.14} parent=23 // pred_region
            // Predicated region
            $region29: #{dgcnn_feat_forward.14} parent=27 // pred_check
              _
            $region30: #{dgcnn_feat_forward.14} parent=27 // pred_check_branch
              %184 = sbr.rel (0) target = $region32
            $region31: #{dgcnn_feat_forward.14} parent=27 // pred_region
              loop: start=0, step=1, limit=1
              $region33: #{dgcnn_feat_forward.14} parent=31 // loop_pre_header
                _
              $region34: #{dgcnn_feat_forward.14} parent=31 // loop_header
                %s186 = sphi 0, %s190
                %p187 = scmp.ge.s32.totalorder %s186, 1
                %s191 = sphi %s180, %s180
                %s192 = sphi %s177, %s177
              $region35: #{dgcnn_feat_forward.14} parent=31 // loop_header_branch
                %189 = sbr.rel (%p187) target = $region39
              $region36: #{dgcnn_feat_forward.14} parent=31 // loop_body
                %v193 = vld [vmem:[%s191] sm:$0xff]
                %194 = vst [vmem:[%s192] sm:$0xff] %v193
                %v195 = vld [vmem:[%s191 + $0x8] sm:$0xff]
                %196 = vst [vmem:[%s192 + $0x8] sm:$0xff] %v195
                %v197 = vld [vmem:[%s191 + $0x20] sm:$0xff]
                %198 = vst [vmem:[%s192 + $0x10] sm:$0xff] %v197
                %v199 = vld [vmem:[%s191 + $0x28] sm:$0xff]
                %200 = vst [vmem:[%s192 + $0x18] sm:$0xff] %v199
                %v201 = vld [vmem:[%s191 + $0x40] sm:$0xff]
                %202 = vst [vmem:[%s192 + $0x20] sm:$0xff] %v201
                %v203 = vld [vmem:[%s191 + $0x48] sm:$0xff]
                %204 = vst [vmem:[%s192 + $0x28] sm:$0xff] %v203
                %v205 = vld [vmem:[%s191 + $0x60] sm:$0xff]
                %206 = vst [vmem:[%s192 + $0x30] sm:$0xff] %v205
                %v207 = vld [vmem:[%s191 + $0x68] sm:$0xff]
                %208 = vst [vmem:[%s192 + $0x38] sm:$0xff] %v207
                %v209 = vld [vmem:[%s191 + $0x80] sm:$0xff]
                %210 = vst [vmem:[%s192 + $0x40] sm:$0xff] %v209
                %v211 = vld [vmem:[%s191 + $0x88] sm:$0xff]
                %212 = vst [vmem:[%s192 + $0x48] sm:$0xff] %v211
                %v213 = vld [vmem:[%s191 + $0xa0] sm:$0xff]
                %214 = vst [vmem:[%s192 + $0x50] sm:$0xff] %v213
                %v215 = vld [vmem:[%s191 + $0xa8] sm:$0xff]
                %216 = vst [vmem:[%s192 + $0x58] sm:$0xff] %v215
                %v217 = vld [vmem:[%s191 + $0xc0] sm:$0xff]
                %218 = vst [vmem:[%s192 + $0x60] sm:$0xff] %v217
                %v219 = vld [vmem:[%s191 + $0xc8] sm:$0xff]
                %220 = vst [vmem:[%s192 + $0x68] sm:$0xff] %v219
                %v221 = vld [vmem:[%s191 + $0xe0] sm:$0xff]
                %222 = vst [vmem:[%s192 + $0x70] sm:$0xff] %v221
                %v223 = vld [vmem:[%s191 + $0xe8] sm:$0xff]
                %224 = vst [vmem:[%s192 + $0x78] sm:$0xff] %v223
                %v225 = vld [vmem:[%s191 + $0x100] sm:$0xff]
                %226 = vst [vmem:[%s192 + $0x80] sm:$0xff] %v225
                %v227 = vld [vmem:[%s191 + $0x108] sm:$0xff]
                %228 = vst [vmem:[%s192 + $0x88] sm:$0xff] %v227
                %v229 = vld [vmem:[%s191 + $0x120] sm:$0xff]
                %230 = vst [vmem:[%s192 + $0x90] sm:$0xff] %v229
                %v231 = vld [vmem:[%s191 + $0x128] sm:$0xff]
                %232 = vst [vmem:[%s192 + $0x98] sm:$0xff] %v231
                %v233 = vld [vmem:[%s191 + $0x140] sm:$0xff]
                %234 = vst [vmem:[%s192 + $0xa0] sm:$0xff] %v233
                %v235 = vld [vmem:[%s191 + $0x148] sm:$0xff]
                %236 = vst [vmem:[%s192 + $0xa8] sm:$0xff] %v235
                %v237 = vld [vmem:[%s191 + $0x160] sm:$0xff]
                %238 = vst [vmem:[%s192 + $0xb0] sm:$0xff] %v237
                %v239 = vld [vmem:[%s191 + $0x168] sm:$0xff]
                %240 = vst [vmem:[%s192 + $0xb8] sm:$0xff] %v239
                %v241 = vld [vmem:[%s191 + $0x180] sm:$0xff]
                %242 = vst [vmem:[%s192 + $0xc0] sm:$0xff] %v241
                %v243 = vld [vmem:[%s191 + $0x188] sm:$0xff]
                %244 = vst [vmem:[%s192 + $0xc8] sm:$0xff] %v243
                %v245 = vld [vmem:[%s191 + $0x1a0] sm:$0xff]
                %246 = vst [vmem:[%s192 + $0xd0] sm:$0xff] %v245
                %v247 = vld [vmem:[%s191 + $0x1a8] sm:$0xff]
                %248 = vst [vmem:[%s192 + $0xd8] sm:$0xff] %v247
                %v249 = vld [vmem:[%s191 + $0x1c0] sm:$0xff]
                %250 = vst [vmem:[%s192 + $0xe0] sm:$0xff] %v249
                %v251 = vld [vmem:[%s191 + $0x1c8] sm:$0xff]
                %252 = vst [vmem:[%s192 + $0xe8] sm:$0xff] %v251
                %v253 = vld [vmem:[%s191 + $0x1e0] sm:$0xff]
                %254 = vst [vmem:[%s192 + $0xf0] sm:$0xff] %v253
                %v255 = vld [vmem:[%s191 + $0x1e8] sm:$0xff]
                %256 = vst [vmem:[%s192 + $0xf8] sm:$0xff] %v255
              $region37: #{dgcnn_feat_forward.14} parent=31 // loop_footer
                %s190 = sadd.s32 1, %s186
              $region38: #{dgcnn_feat_forward.14} parent=31 // loop_footer_branch
                %185 = sbr.rel target = $region34
              $region39: #{dgcnn_feat_forward.14} parent=31 // loop_exit
                _
            $region32: #{dgcnn_feat_forward.14} parent=27 // pred_fallthru
              _
            // Predicated region
            $region40: #{dgcnn_feat_forward.14} parent=27 // pred_check
              _
            $region41: #{dgcnn_feat_forward.14} parent=27 // pred_check_branch
              %258 = sbr.rel target = $region43
            $region42: #{dgcnn_feat_forward.14} parent=27 // pred_region
              _
            $region43: #{dgcnn_feat_forward.14} parent=27 // pred_fallthru
              _
          $region28: #{dgcnn_feat_forward.14} parent=23 // pred_fallthru
            _
          %259 = vnop
        $region24: #{dgcnn_feat_forward.14} parent=15 // pred_fallthru
          _
        // Predicated region
        $region44: #{dgcnn_feat_forward.14} parent=15 // pred_check
          %p260 = pneg %p105
        $region45: #{dgcnn_feat_forward.14} parent=15 // pred_check_branch
          %262 = sbr.rel (%p260) target = $region47
        $region46: #{dgcnn_feat_forward.14} parent=15 // pred_region
          %s263 = sand.u32 %s95, 1
          %s264 = scalar_lea.sflag [#allocation4], %s263
          %s265 = sand.u32 %s95, 1
          %s266 = smul.addr %s265, 4
          %s267 = scalar_lea.vmem [#allocation3], %s266
          %s268 = smul.u32 4, %s20
          %s270 = ssub.s32 64, 64
          %271 = vsyncadd %s264, %s270
          %s272 = smul.addr %s268, 16
          %s273 = scalar_lea.hbm %s2, %s272
          %s275 = sshll.u32 %s267, 4
          %s276 = int_to_ptr.vmem [resolvable:$true] %s275
          %278 = dma.hbm_to_vmem [thread:$0]  %s273, 64, %s276, %s264
        $region47: #{dgcnn_feat_forward.14} parent=15 // pred_fallthru
          _
      $region16: #{dgcnn_feat_forward.14} parent=5 // pred_fallthru
        _
      %p279 = scmp.le.s32.totalorder 1, %s12
      %p280 = scmp.lt.s32.totalorder %s12, 5
      %p281 = pnand %p279, %p280
      %p282 = pneg %p281
      // Predicated region
      $region48: #{dgcnn_feat_forward.14} parent=5 // pred_check
        _
      $region49: #{dgcnn_feat_forward.14} parent=5 // pred_check_branch
        %284 = sbr.rel (%p281) target = $region51
      $region50: #{dgcnn_feat_forward.14} parent=5 // pred_region
        %s285 = ssub.s32 %s12, 1
        %s286 = sand.u32 %s72, 1
        %s287 = sand.u32 %s72, 1
        %s288 = smul.addr %s287, 256
        %s289 = scalar_lea.vmem [#allocation2], %s288
        // Predicated region
        $region52: #{dgcnn_feat_forward.14} parent=50 // pred_check
          %p290 = pneg %p85
        $region53: #{dgcnn_feat_forward.14} parent=50 // pred_check_branch
          %292 = sbr.rel (%p290) target = $region55
        $region54: #{dgcnn_feat_forward.14} parent=50 // pred_region
          _
        $region55: #{dgcnn_feat_forward.14} parent=50 // pred_fallthru
          _
        %s293 = sand.u32 %s98, 1
        %s294 = scalar_lea.sflag [#allocation4], %s293
        %s295 = sand.u32 %s98, 1
        %s296 = smul.addr %s295, 4
        %s297 = scalar_lea.vmem [#allocation3], %s296
        // Predicated region
        $region56: #{dgcnn_feat_forward.14} parent=50 // pred_check
          %p298 = pneg %p111
        $region57: #{dgcnn_feat_forward.14} parent=50 // pred_check_branch
          %300 = sbr.rel (%p298) target = $region59
        $region58: #{dgcnn_feat_forward.14} parent=50 // pred_region
          %301 = dma.done %s294, 64
        $region59: #{dgcnn_feat_forward.14} parent=50 // pred_fallthru
          _
        %s302 = smul.u32 2, %s24
        %p303 = scmp.lt.s32.totalorder %s22, 1
        %s304 = scalar_select %p303, %s22, 1
        %p305 = scmp.lt.s32.totalorder %s302, 1
        %s306 = scalar_select %p305, %s302, 1
        %s307 = smul.addr %s304, 2
        %s308 = sadd.s32 %s306, %s307
        %s309 = smul.addr %s308, 8
        %s310 = scalar_lea.vmem %s0, %s309
        %p311 = pneg %p59
        %p312 = pneg %p56
        %s313 = sand.u32 %s72, 1
        %s314 = sand.u32 %s72, 1
        %s315 = smul.addr %s314, 256
        %s316 = scalar_lea.vmem [#allocation2], %s315
        %p317 = pneg %p85
        %p318 = pneg %p82
        %s319 = sand.u32 %s98, 1
        %s320 = scalar_lea.sflag [#allocation4], %s319
        %s321 = sand.u32 %s98, 1
        %s322 = smul.addr %s321, 4
        %s323 = scalar_lea.vmem [#allocation3], %s322
        %p324 = pneg %p111
        %p325 = pneg %p108
        %p326 = pneg %p139
        %p327 = pneg %p136
        %s328 = smul.u32 4, %s23
        %p329 = scmp.lt.s32.totalorder %s22, 1
        %s330 = scalar_select %p329, %s22, 1
        %p331 = scmp.lt.s32.totalorder %s328, 7
        %s332 = scalar_select %p331, %s328, 7
        %s333 = smul.addr %s330, 8
        %s334 = sadd.s32 %s332, %s333
        %s335 = scalar_lea.vmem %s3, %s334
        %s336 = smul.u32 2, %s24
        %p337 = scmp.lt.s32.totalorder %s22, 1
        %s338 = scalar_select %p337, %s22, 1
        %p339 = scmp.lt.s32.totalorder %s336, 1
        %s340 = scalar_select %p339, %s336, 1
        %s341 = smul.addr %s338, 2
        %s342 = sadd.s32 %s340, %s341
        %s343 = smul.addr %s342, 8
        %s344 = scalar_lea.vmem %s0, %s343
        %s345 = smul.u32 2, %s24
        %s346 = smul.u32 4, %s23
        %s347 = smul.u32 4, %s23
        %s348 = smul.u32 4, %s23
        %p349 = scmp.lt.s32.totalorder %s22, 1
        %s350 = scalar_select %p349, %s22, 1
        %p351 = scmp.lt.s32.totalorder %s348, 7
        %s352 = scalar_select %p351, %s348, 7
        %s353 = smul.addr %s350, 8
        %s354 = sadd.s32 %s352, %s353
        %s355 = scalar_lea.vmem %s3, %s354
        %s356 = smul.u32 4, %s23
        %p358 = scmp.eq.s32.totalorder %s24, 0
        // Predicated region
        $region60: #{dgcnn_feat_forward.14} parent=50 // pred_check
          %p359 = pneg %p358
        $region61: #{dgcnn_feat_forward.14} parent=50 // pred_check_branch
          %361 = sbr.rel (%p359) target = $region63
        $region62: #{dgcnn_feat_forward.14} parent=50 // pred_region
          %v362 = vlaneseq
          %vm363 = vcmp.ge.s32.totalorder %v362, 0
          %vm364 = vcmp.lt.s32.totalorder %v362, 512
          %vm365 = vmand %vm363, %vm364
          %366 = vst.msk [vmem:[%s355] sm:$0xf] %vm365, -inf
        $region63: #{dgcnn_feat_forward.14} parent=50 // pred_fallthru
          _
        %v367 = vld [vmem:[%s344] sm:$0xff]
        %v368 = vld [vmem:[%s344 + $0x8] sm:$0xff]
        %v369 = vpack.c.bf16 %v368, %v367
        %v370 = vld [vmem:[%s289] sm:$0xff]
        %v371 = vld [vmem:[%s289 + $0x8] sm:$0xff]
        %v372 = vld [vmem:[%s289 + $0x10] sm:$0xff]
        %v373 = vld [vmem:[%s289 + $0x18] sm:$0xff]
        %v374 = vld [vmem:[%s289 + $0x20] sm:$0xff]
        %v375 = vld [vmem:[%s289 + $0x28] sm:$0xff]
        %v376 = vld [vmem:[%s289 + $0x30] sm:$0xff]
        %v377 = vld [vmem:[%s289 + $0x38] sm:$0xff]
        %v378 = vld [vmem:[%s289 + $0x40] sm:$0xff]
        %v379 = vld [vmem:[%s289 + $0x48] sm:$0xff]
        %v380 = vld [vmem:[%s289 + $0x50] sm:$0xff]
        %v381 = vld [vmem:[%s289 + $0x58] sm:$0xff]
        %v382 = vld [vmem:[%s289 + $0x60] sm:$0xff]
        %v383 = vld [vmem:[%s289 + $0x68] sm:$0xff]
        %v384 = vld [vmem:[%s289 + $0x70] sm:$0xff]
        %v385 = vld [vmem:[%s289 + $0x78] sm:$0xff]
        %v386 = vld [vmem:[%s289 + $0x80] sm:$0xff]
        %v387 = vld [vmem:[%s289 + $0x88] sm:$0xff]
        %v388 = vld [vmem:[%s289 + $0x90] sm:$0xff]
        %v389 = vld [vmem:[%s289 + $0x98] sm:$0xff]
        %v390 = vld [vmem:[%s289 + $0xa0] sm:$0xff]
        %v391 = vld [vmem:[%s289 + $0xa8] sm:$0xff]
        %v392 = vld [vmem:[%s289 + $0xb0] sm:$0xff]
        %v393 = vld [vmem:[%s289 + $0xb8] sm:$0xff]
        %v394 = vld [vmem:[%s289 + $0xc0] sm:$0xff]
        %v395 = vld [vmem:[%s289 + $0xc8] sm:$0xff]
        %v396 = vld [vmem:[%s289 + $0xd0] sm:$0xff]
        %v397 = vld [vmem:[%s289 + $0xd8] sm:$0xff]
        %v398 = vld [vmem:[%s289 + $0xe0] sm:$0xff]
        %v399 = vld [vmem:[%s289 + $0xe8] sm:$0xff]
        %v400 = vld [vmem:[%s289 + $0xf0] sm:$0xff]
        %v401 = vld [vmem:[%s289 + $0xf8] sm:$0xff]
        %v402 = vld [vmem:[%s297] sm:$0xf]
        %v404 = vlaneseq
        %v405 = vshrl.u32 %v404, 7
        %v406 = vsub.s32 0, %v405
        %v407 = vrot.slane %v402, %v406
        %v408 = vlaneseq
        %v409 = vshrl.u32 %v408, 7
        %v410 = vsub.s32 1, %v409
        %v411 = vrot.slane %v402, %v410
        %v412 = vlaneseq
        %v413 = vshrl.u32 %v412, 7
        %v414 = vsub.s32 2, %v413
        %v415 = vrot.slane %v402, %v414
        %v416 = vlaneseq
        %v417 = vshrl.u32 %v416, 7
        %v418 = vsub.s32 3, %v417
        %v419 = vrot.slane %v402, %v418
        %v456 = vunpack.c.l.b16 %v370
        %v457 = vunpack.c.h.b16 %v370
        %v458 = vunpack.c.l.b16 %v371
        %v459 = vunpack.c.h.b16 %v371
        %v460 = vunpack.c.l.b16 %v372
        %v461 = vunpack.c.h.b16 %v372
        %v462 = vunpack.c.l.b16 %v373
        %v463 = vunpack.c.h.b16 %v373
        %v464 = vunpack.c.l.b16 %v374
        %v465 = vunpack.c.h.b16 %v374
        %v466 = vunpack.c.l.b16 %v375
        %v467 = vunpack.c.h.b16 %v375
        %v468 = vunpack.c.l.b16 %v376
        %v469 = vunpack.c.h.b16 %v376
        %v470 = vunpack.c.l.b16 %v377
        %v471 = vunpack.c.h.b16 %v377
        %v472 = vunpack.c.l.b16 %v378
        %v473 = vunpack.c.h.b16 %v378
        %v474 = vunpack.c.l.b16 %v379
        %v475 = vunpack.c.h.b16 %v379
        %v476 = vunpack.c.l.b16 %v380
        %v477 = vunpack.c.h.b16 %v380
        %v478 = vunpack.c.l.b16 %v381
        %v479 = vunpack.c.h.b16 %v381
        %v480 = vunpack.c.l.b16 %v382
        %v481 = vunpack.c.h.b16 %v382
        %v482 = vunpack.c.l.b16 %v383
        %v483 = vunpack.c.h.b16 %v383
        %v484 = vunpack.c.l.b16 %v384
        %v485 = vunpack.c.h.b16 %v384
        %v486 = vunpack.c.l.b16 %v385
        %v487 = vunpack.c.h.b16 %v385
        %v488 = vunpack.c.l.b16 %v386
        %v489 = vunpack.c.h.b16 %v386
        %v490 = vunpack.c.l.b16 %v387
        %v491 = vunpack.c.h.b16 %v387
        %v492 = vunpack.c.l.b16 %v388
        %v493 = vunpack.c.h.b16 %v388
        %v494 = vunpack.c.l.b16 %v389
        %v495 = vunpack.c.h.b16 %v389
        %v496 = vunpack.c.l.b16 %v390
        %v497 = vunpack.c.h.b16 %v390
        %v498 = vunpack.c.l.b16 %v391
        %v499 = vunpack.c.h.b16 %v391
        %v500 = vunpack.c.l.b16 %v392
        %v501 = vunpack.c.h.b16 %v392
        %v502 = vunpack.c.l.b16 %v393
        %v503 = vunpack.c.h.b16 %v393
        %v504 = vunpack.c.l.b16 %v394
        %v505 = vunpack.c.h.b16 %v394
        %v506 = vunpack.c.l.b16 %v395
        %v507 = vunpack.c.h.b16 %v395
        %v508 = vunpack.c.l.b16 %v396
        %v509 = vunpack.c.h.b16 %v396
        %v510 = vunpack.c.l.b16 %v397
        %v511 = vunpack.c.h.b16 %v397
        %v512 = vunpack.c.l.b16 %v398
        %v513 = vunpack.c.h.b16 %v398
        %v514 = vunpack.c.l.b16 %v399
        %v515 = vunpack.c.h.b16 %v399
        %v516 = vunpack.c.l.b16 %v400
        %v517 = vunpack.c.h.b16 %v400
        %v518 = vunpack.c.l.b16 %v401
        %v519 = vunpack.c.h.b16 %v401
        %v520 = vpack.c.b16 %v460, %v456
        %v521 = vpack.c.b16 %v461, %v457
        %v522 = vpack.c.b16 %v462, %v458
        %v523 = vpack.c.b16 %v463, %v459
        %v524 = vpack.c.b16 %v468, %v464
        %v525 = vpack.c.b16 %v469, %v465
        %v526 = vpack.c.b16 %v470, %v466
        %v527 = vpack.c.b16 %v471, %v467
        %v528 = vpack.c.b16 %v476, %v472
        %v529 = vpack.c.b16 %v477, %v473
        %v530 = vpack.c.b16 %v478, %v474
        %v531 = vpack.c.b16 %v479, %v475
        %v532 = vpack.c.b16 %v484, %v480
        %v533 = vpack.c.b16 %v485, %v481
        %v534 = vpack.c.b16 %v486, %v482
        %v535 = vpack.c.b16 %v487, %v483
        %v536 = vpack.c.b16 %v492, %v488
        %v537 = vpack.c.b16 %v493, %v489
        %v538 = vpack.c.b16 %v494, %v490
        %v539 = vpack.c.b16 %v495, %v491
        %v540 = vpack.c.b16 %v500, %v496
        %v541 = vpack.c.b16 %v501, %v497
        %v542 = vpack.c.b16 %v502, %v498
        %v543 = vpack.c.b16 %v503, %v499
        %v544 = vpack.c.b16 %v508, %v504
        %v545 = vpack.c.b16 %v509, %v505
        %v546 = vpack.c.b16 %v510, %v506
        %v547 = vpack.c.b16 %v511, %v507
        %v548 = vpack.c.b16 %v516, %v512
        %v549 = vpack.c.b16 %v517, %v513
        %v550 = vpack.c.b16 %v518, %v514
        %v551 = vpack.c.b16 %v519, %v515
        %584 = vmatprep.subr.bf16.mxu0 %v549
        %585 = vmatpush1.bf16.msra.mxu0 %v548
        %586 = vmatprep.subr.bf16.mxu0 %v545
        %587 = vmatpush1.bf16.msra.mxu0 %v544
        %588 = vmatprep.subr.bf16.mxu0 %v541
        %589 = vmatpush1.bf16.msra.mxu0 %v540
        %590 = vmatprep.subr.bf16.mxu0 %v537
        %591 = vmatpush1.bf16.msra.mxu0 %v536
        %592 = vmatprep.subr.bf16.mxu0 %v533
        %593 = vmatpush1.bf16.msra.mxu0 %v532
        %594 = vmatprep.subr.bf16.mxu0 %v529
        %595 = vmatpush1.bf16.msra.mxu0 %v528
        %596 = vmatprep.subr.bf16.mxu0 %v525
        %597 = vmatpush1.bf16.msra.mxu0 %v524
        %598 = vmatprep.subr.bf16.mxu0 %v521
        %599 = vmatpush1.bf16.msra.mxu0 %v520
        %600 = vmatprep.subr.bf16.mxu0 0
        %601 = vmatpush2.bf16.msra.mxu0 0
        %602 = vmatprep.subr.bf16.mxu0 0
        %603 = vmatpush2.bf16.msra.mxu0 0
        %604 = vmatprep.subr.bf16.mxu0 0
        %605 = vmatpush2.bf16.msra.mxu0 0
        %606 = vmatprep.subr.bf16.mxu0 0
        %607 = vmatpush2.bf16.msra.mxu0 0
        %608 = vmatprep.subr.bf16.mxu0 0
        %609 = vmatpush2.bf16.msra.mxu0 0
        %610 = vmatprep.subr.bf16.mxu0 0
        %611 = vmatpush2.bf16.msra.mxu0 0
        %612 = vmatprep.subr.bf16.mxu0 0
        %613 = vmatpush2.bf16.msra.mxu0 0
        %614 = vmatprep.subr.bf16.mxu0 0
        %615 = vmatpush2.bf16.msra.mxu0 0
        %616 = vmatprep.mubr.bf16.mxu0 0
        %617 = vmatmul.mubr.bf16.gmra.mxu0 %v369
        %v618 = vpop.f32.mrf.mxu0
        %v619 = vadd.f32 %v407, %v618
        %v620 = vpop.f32.mrf.mxu0
        %v621 = vadd.f32 %v411, %v620
        %v622 = vpop.f32.mrf.mxu0
        %v623 = vadd.f32 %v407, %v622
        %v624 = vpop.f32.mrf.mxu0
        %v625 = vadd.f32 %v411, %v624
        %626 = vdwg.mxu0
        %627 = vmatprep.subr.bf16.mxu0 %v551
        %628 = vmatpush1.bf16.msra.mxu0 %v550
        %629 = vmatprep.subr.bf16.mxu0 %v547
        %630 = vmatpush1.bf16.msra.mxu0 %v546
        %631 = vmatprep.subr.bf16.mxu0 %v543
        %632 = vmatpush1.bf16.msra.mxu0 %v542
        %633 = vmatprep.subr.bf16.mxu0 %v539
        %634 = vmatpush1.bf16.msra.mxu0 %v538
        %635 = vmatprep.subr.bf16.mxu0 %v535
        %636 = vmatpush1.bf16.msra.mxu0 %v534
        %637 = vmatprep.subr.bf16.mxu0 %v531
        %638 = vmatpush1.bf16.msra.mxu0 %v530
        %639 = vmatprep.subr.bf16.mxu0 %v527
        %640 = vmatpush1.bf16.msra.mxu0 %v526
        %641 = vmatprep.subr.bf16.mxu0 %v523
        %642 = vmatpush1.bf16.msra.mxu0 %v522
        %643 = vmatprep.subr.bf16.mxu0 0
        %644 = vmatpush2.bf16.msra.mxu0 0
        %645 = vmatprep.subr.bf16.mxu0 0
        %646 = vmatpush2.bf16.msra.mxu0 0
        %647 = vmatprep.subr.bf16.mxu0 0
        %648 = vmatpush2.bf16.msra.mxu0 0
        %649 = vmatprep.subr.bf16.mxu0 0
        %650 = vmatpush2.bf16.msra.mxu0 0
        %651 = vmatprep.subr.bf16.mxu0 0
        %652 = vmatpush2.bf16.msra.mxu0 0
        %653 = vmatprep.subr.bf16.mxu0 0
        %654 = vmatpush2.bf16.msra.mxu0 0
        %655 = vmatprep.subr.bf16.mxu0 0
        %656 = vmatpush2.bf16.msra.mxu0 0
        %657 = vmatprep.subr.bf16.mxu0 0
        %658 = vmatpush2.bf16.msra.mxu0 0
        %659 = vmatprep.mubr.bf16.mxu0 0
        %660 = vmatmul.mubr.bf16.gmra.mxu0 %v369
        %v661 = vpop.f32.mrf.mxu0
        %v662 = vadd.f32 %v415, %v661
        %v663 = vpop.f32.mrf.mxu0
        %v664 = vadd.f32 %v419, %v663
        %v665 = vpop.f32.mrf.mxu0
        %v666 = vadd.f32 %v415, %v665
        %v667 = vpop.f32.mrf.mxu0
        %v668 = vadd.f32 %v419, %v667
        %669 = vdwg.mxu0
        %v670 = vmul.f32 %v619, 0.2
        %v671 = vmul.f32 %v621, 0.2
        %v672 = vmul.f32 %v662, 0.2
        %v673 = vmul.f32 %v664, 0.2
        %v674 = vmul.f32 %v623, 0.2
        %v675 = vmul.f32 %v625, 0.2
        %v676 = vmul.f32 %v666, 0.2
        %v677 = vmul.f32 %v668, 0.2
        %v678 = vmax.f32 %v619, %v670
        %v679 = vmax.f32 %v621, %v671
        %v680 = vmax.f32 %v662, %v672
        %v681 = vmax.f32 %v664, %v673
        %v682 = vmax.f32 %v623, %v674
        %v683 = vmax.f32 %v625, %v675
        %v684 = vmax.f32 %v666, %v676
        %v685 = vmax.f32 %v668, %v677
        %v686 = vmax.f32 %v678, %v682
        %v687 = vrot.slane %v686, 4
        %v688 = vmax.f32 %v686, %v687
        %v689 = vrot.slane %v688, 2
        %v690 = vmax.f32 %v688, %v689
        %v691 = vrot.slane %v690, 1
        %v692 = vmax.f32 %v690, %v691
        %v693 = vmax.f32 %v679, %v683
        %v694 = vrot.slane %v693, 4
        %v695 = vmax.f32 %v693, %v694
        %v696 = vrot.slane %v695, 2
        %v697 = vmax.f32 %v695, %v696
        %v698 = vrot.slane %v697, 1
        %v699 = vmax.f32 %v697, %v698
        %v700 = vmax.f32 %v680, %v684
        %v701 = vrot.slane %v700, 4
        %v702 = vmax.f32 %v700, %v701
        %v703 = vrot.slane %v702, 2
        %v704 = vmax.f32 %v702, %v703
        %v705 = vrot.slane %v704, 1
        %v706 = vmax.f32 %v704, %v705
        %v707 = vmax.f32 %v681, %v685
        %v708 = vrot.slane %v707, 4
        %v709 = vmax.f32 %v707, %v708
        %v710 = vrot.slane %v709, 2
        %v711 = vmax.f32 %v709, %v710
        %v712 = vrot.slane %v711, 1
        %v713 = vmax.f32 %v711, %v712
        %v714 = vld [vmem:[%s355] sm:$0xf]
        %v719 = vcombine.low %v692, %v699
        %v720 = vcombine.low %v706, %v713
        %v722 = vunpack.c.l.s4 1966171168
        %v723 = vunpack.c.0.s8 %v722
        %v724 = vlaneseq
        %v725 = vshrl.u32 %v724, 7
        %v726 = vsub.s32 %v723, %v725
        %v727 = vrot.slane %v719, %v726
        %v729 = vunpack.c.l.s4 1966171168
        %v730 = vunpack.c.0.s8 %v729
        %v731 = vlaneseq
        %v732 = vshrl.u32 %v731, 7
        %v733 = vsub.s32 %v730, %v732
        %v734 = vrot.slane %v720, %v733
        %v735 = vcombine.low %v727, %v734
        %v737 = vunpack.c.l.s4 1966171168
        %v738 = vunpack.c.0.s8 %v737
        %v739 = vlaneseq
        %v740 = vshrl.u32 %v739, 7
        %v741 = vsub.s32 %v738, %v740
        %v742 = vrot.slane %v735, %v741
        %v744 = vmax.f32 %v714, %v742
        %v745 = vlaneseq
        %vm746 = vcmp.ge.s32.totalorder %v745, 0
        %vm747 = vcmp.lt.s32.totalorder %v745, 512
        %vm748 = vmand %vm746, %vm747
        %749 = vst.msk [vmem:[%s355] sm:$0xf] %vm748, %v744
        %s750 = smul.u32 4, %s23
        %p751 = scmp.lt.s32.totalorder %s22, 1
        %s752 = scalar_select %p751, %s22, 1
        %p753 = scmp.lt.s32.totalorder %s750, 7
        %s754 = scalar_select %p753, %s750, 7
        %s755 = smul.addr %s752, 8
        %s756 = sadd.s32 %s754, %s755
        %s757 = scalar_lea.vmem %s3, %s756
        // Predicated region
        $region64: #{dgcnn_feat_forward.14} parent=50 // pred_check
          %p758 = pneg %p136
        $region65: #{dgcnn_feat_forward.14} parent=50 // pred_check_branch
          %760 = sbr.rel (%p758) target = $region67
        $region66: #{dgcnn_feat_forward.14} parent=50 // pred_region
          %s761 = smul.u32 4, %s23
        $region67: #{dgcnn_feat_forward.14} parent=50 // pred_fallthru
          _
      $region51: #{dgcnn_feat_forward.14} parent=5 // pred_fallthru
        _
      %p762 = scmp.le.s32.totalorder 2, %s12
      // Predicated region
      $region68: #{dgcnn_feat_forward.14} parent=5 // pred_check
        %p763 = pneg %p762
      $region69: #{dgcnn_feat_forward.14} parent=5 // pred_check_branch
        %765 = sbr.rel (%p763) target = $region71
      $region70: #{dgcnn_feat_forward.14} parent=5 // pred_region
        %s766 = ssub.s32 %s12, 2
        // Predicated region
        $region72: #{dgcnn_feat_forward.14} parent=70 // pred_check
          %p767 = pneg %p142
        $region73: #{dgcnn_feat_forward.14} parent=70 // pred_check_branch
          %769 = sbr.rel (%p767) target = $region75
        $region74: #{dgcnn_feat_forward.14} parent=70 // pred_region
          %s770 = smul.u32 4, %s26
          %p771 = scmp.lt.s32.totalorder %s25, 1
          %s772 = scalar_select %p771, %s25, 1
          %p773 = scmp.lt.s32.totalorder %s770, 7
          %s774 = scalar_select %p773, %s770, 7
          %s775 = smul.addr %s772, 8
          %s776 = sadd.s32 %s774, %s775
          %s777 = scalar_lea.vmem %s3, %s776
        $region75: #{dgcnn_feat_forward.14} parent=70 // pred_fallthru
          _
      $region71: #{dgcnn_feat_forward.14} parent=5 // pred_fallthru
        _
    $region6: #{dgcnn_feat_forward.14} parent=1 // loop_footer
      %s16 = sadd.s32 1, %s12
    $region7: #{dgcnn_feat_forward.14} parent=1 // loop_footer_branch
      %11 = sbr.rel target = $region3
    $region8: #{dgcnn_feat_forward.14} parent=1 // loop_exit
      _
    %778 = vsyncpa [#allocation4], 1
    %s779 = scalar_lea.sflag [#allocation4], 1
    %780 = vsyncpa %s779, 1

// kernel: dgcnn_feat_forward.17
$region0: #{dgcnn_feat_forward.17}
  #allocation0 [shape = 'u32[]', space=smem, size = 0x4, offset = 0x4, fixed_abs, tag = 'smem constant byte address 0x4 - core index']
  #allocation1 [shape = 'u32[144,128]{1,0:T(1,128)}', space=vmem, size = 0x12000, scoped, tag = 'internal scratch']
  %s0 = inlined_call_operand.vmem [shape: f32[2,16,3], index: 0, kind: input, shape index: {}]
  %s1 = inlined_call_operand.vmem [shape: bf16[2,8,16,3], index: 1, kind: input, shape index: {}]
  %s2 = inlined_call_operand.vmem [shape: bf16[3,64], index: 2, kind: input, shape index: {}]
  %s3 = inlined_call_operand.vmem [shape: bf16[3,64], index: 3, kind: input, shape index: {}]
  %s4 = inlined_call_operand.vmem [shape: f32[1,64], index: 4, kind: input, shape index: {}]
  %s5 = inlined_call_operand.vmem [shape: bf16[64,64], index: 5, kind: input, shape index: {}]
  %s6 = inlined_call_operand.vmem [shape: f32[1,64], index: 6, kind: input, shape index: {}]
  %s7 = inlined_call_operand.vmem [shape: f32[2,16,64], index: 7, kind: output, shape index: {}]
  %s8 = sld [smem:[#allocation0]]
  $region61: #{dgcnn_feat_forward.17} parent=0
    _
  %s10 = ssub.s32 1, %s8
  %s11 = scalar_select 0, %s10, %s8
  loop: start=0, step=1, limit=4
  $region2: #{dgcnn_feat_forward.17} parent=0 // loop_pre_header
    _
  $region3: #{dgcnn_feat_forward.17} parent=0 // loop_header
    %s13 = sphi 0, %s17
    %p14 = scmp.ge.s32.totalorder %s13, 4
    %s20 = sphi 0, %s32
    %s21 = sphi 0, %s28
    %s22 = sphi 0, %s20
    %s23 = sphi 0, %s21
    %s24 = sphi 0, %s22
    %s25 = sphi 0, %s23
    %s37 = sphi 0, %s39
    %s40 = sphi 0, %s37
    %s41 = sphi 0, %s40
    %s57 = sphi 0, %s41
    %s65 = sphi 0, %s67
    %s68 = sphi 0, %s65
    %s69 = sphi 0, %s68
    %s85 = sphi 0, %s69
    %s89 = sphi 0, %s89
    %s91 = sphi 0, %s89
    %s92 = sphi 0, %s91
    %s106 = sphi 0, %s92
    %s110 = sphi 0, %s110
    %s112 = sphi 0, %s110
    %s113 = sphi 0, %s112
    %s127 = sphi 0, %s113
    %s131 = sphi 0, %s131
    %s133 = sphi 0, %s131
    %s134 = sphi 0, %s133
    %s148 = sphi 0, %s134
    %s152 = sphi 0, %s152
    %s154 = sphi 0, %s152
    %s155 = sphi 0, %s154
    %s169 = sphi 0, %s155
    %s173 = sphi 0, %s173
    %s175 = sphi 0, %s173
    %s176 = sphi 0, %s175
    %s190 = sphi 0, %s176
    %s198 = sphi 0, %s200
    %s201 = sphi 0, %s198
    %s202 = sphi 0, %s201
    %s218 = sphi 0, %s202
  $region4: #{dgcnn_feat_forward.17} parent=0 // loop_header_branch
    %16 = sbr.rel (%p14) target = $region8
  $region5: #{dgcnn_feat_forward.17} parent=0 // loop_body
    %s18 = ssub.s32 %s13, 1
    %s19 = ssub.s32 %s13, 2
    %s26 = sadd.s32 1, %s21
    %p27 = scmp.ge.s32.totalorder %s26, 1
    %s28 = scalar_select %p27, 0, %s26
    %s29 = sadd.s32 1, %s20
    %s30 = scalar_select %p27, %s29, %s20
    %p31 = scmp.ge.s32.totalorder %s30, 2
    %s32 = scalar_select %p31, 0, %s30
    %s33 = ssub.s32 %s20, %s32
    %s34 = ssub.s32 %s21, %s28
    %s35 = sor.u32 %s33, %s34
    %p36 = scmp.eq.s32.totalorder %s35, 0
    %s38 = sadd.s32 %s37, 1
    %s39 = scalar_select %p36, %s37, %s38
    %p42 = pneg %p36
    %p43 = scmp.eq.s32.totalorder %s13, 1
    %p44 = por %p42, %p43
    %p45 = scmp.ne.s32.totalorder %s37, %s40
    %p46 = scmp.eq.s32.totalorder %s13, 0
    %p47 = por %p45, %p46
    %p48 = scmp.ne.s32.totalorder %s37, %s40
    %p49 = scmp.eq.s32.totalorder %s18, 1
    %p50 = por %p48, %p49
    %p51 = scmp.ne.s32.totalorder %s40, %s41
    %p52 = scmp.eq.s32.totalorder %s18, 0
    %p53 = por %p51, %p52
    %p54 = scmp.ne.s32.totalorder %s40, %s41
    %p55 = scmp.eq.s32.totalorder %s19, 1
    %p56 = por %p54, %p55
    %p58 = scmp.ne.s32.totalorder %s41, %s57
    %p59 = scmp.eq.s32.totalorder %s19, 0
    %p60 = por %p58, %p59
    %s61 = ssub.s32 %s20, %s32
    %s62 = ssub.s32 %s21, %s28
    %s63 = sor.u32 %s61, %s62
    %p64 = scmp.eq.s32.totalorder %s63, 0
    %s66 = sadd.s32 %s65, 1
    %s67 = scalar_select %p64, %s65, %s66
    %p70 = pneg %p64
    %p71 = scmp.eq.s32.totalorder %s13, 1
    %p72 = por %p70, %p71
    %p73 = scmp.ne.s32.totalorder %s65, %s68
    %p74 = scmp.eq.s32.totalorder %s13, 0
    %p75 = por %p73, %p74
    %p76 = scmp.ne.s32.totalorder %s65, %s68
    %p77 = scmp.eq.s32.totalorder %s18, 1
    %p78 = por %p76, %p77
    %p79 = scmp.ne.s32.totalorder %s68, %s69
    %p80 = scmp.eq.s32.totalorder %s18, 0
    %p81 = por %p79, %p80
    %p82 = scmp.ne.s32.totalorder %s68, %s69
    %p83 = scmp.eq.s32.totalorder %s19, 1
    %p84 = por %p82, %p83
    %p86 = scmp.ne.s32.totalorder %s69, %s85
    %p87 = scmp.eq.s32.totalorder %s19, 0
    %p88 = por %p86, %p87
    %s90 = sadd.s32 %s89, 1
    %p93 = scmp.eq.s32.totalorder %s13, 1
    %p94 = scmp.ne.s32.totalorder %s89, %s91
    %p95 = scmp.eq.s32.totalorder %s13, 0
    %p96 = por %p94, %p95
    %p97 = scmp.ne.s32.totalorder %s89, %s91
    %p98 = scmp.eq.s32.totalorder %s18, 1
    %p99 = por %p97, %p98
    %p100 = scmp.ne.s32.totalorder %s91, %s92
    %p101 = scmp.eq.s32.totalorder %s18, 0
    %p102 = por %p100, %p101
    %p103 = scmp.ne.s32.totalorder %s91, %s92
    %p104 = scmp.eq.s32.totalorder %s19, 1
    %p105 = por %p103, %p104
    %p107 = scmp.ne.s32.totalorder %s92, %s106
    %p108 = scmp.eq.s32.totalorder %s19, 0
    %p109 = por %p107, %p108
    %s111 = sadd.s32 %s110, 1
    %p114 = scmp.eq.s32.totalorder %s13, 1
    %p115 = scmp.ne.s32.totalorder %s110, %s112
    %p116 = scmp.eq.s32.totalorder %s13, 0
    %p117 = por %p115, %p116
    %p118 = scmp.ne.s32.totalorder %s110, %s112
    %p119 = scmp.eq.s32.totalorder %s18, 1
    %p120 = por %p118, %p119
    %p121 = scmp.ne.s32.totalorder %s112, %s113
    %p122 = scmp.eq.s32.totalorder %s18, 0
    %p123 = por %p121, %p122
    %p124 = scmp.ne.s32.totalorder %s112, %s113
    %p125 = scmp.eq.s32.totalorder %s19, 1
    %p126 = por %p124, %p125
    %p128 = scmp.ne.s32.totalorder %s113, %s127
    %p129 = scmp.eq.s32.totalorder %s19, 0
    %p130 = por %p128, %p129
    %s132 = sadd.s32 %s131, 1
    %p135 = scmp.eq.s32.totalorder %s13, 1
    %p136 = scmp.ne.s32.totalorder %s131, %s133
    %p137 = scmp.eq.s32.totalorder %s13, 0
    %p138 = por %p136, %p137
    %p139 = scmp.ne.s32.totalorder %s131, %s133
    %p140 = scmp.eq.s32.totalorder %s18, 1
    %p141 = por %p139, %p140
    %p142 = scmp.ne.s32.totalorder %s133, %s134
    %p143 = scmp.eq.s32.totalorder %s18, 0
    %p144 = por %p142, %p143
    %p145 = scmp.ne.s32.totalorder %s133, %s134
    %p146 = scmp.eq.s32.totalorder %s19, 1
    %p147 = por %p145, %p146
    %p149 = scmp.ne.s32.totalorder %s134, %s148
    %p150 = scmp.eq.s32.totalorder %s19, 0
    %p151 = por %p149, %p150
    %s153 = sadd.s32 %s152, 1
    %p156 = scmp.eq.s32.totalorder %s13, 1
    %p157 = scmp.ne.s32.totalorder %s152, %s154
    %p158 = scmp.eq.s32.totalorder %s13, 0
    %p159 = por %p157, %p158
    %p160 = scmp.ne.s32.totalorder %s152, %s154
    %p161 = scmp.eq.s32.totalorder %s18, 1
    %p162 = por %p160, %p161
    %p163 = scmp.ne.s32.totalorder %s154, %s155
    %p164 = scmp.eq.s32.totalorder %s18, 0
    %p165 = por %p163, %p164
    %p166 = scmp.ne.s32.totalorder %s154, %s155
    %p167 = scmp.eq.s32.totalorder %s19, 1
    %p168 = por %p166, %p167
    %p170 = scmp.ne.s32.totalorder %s155, %s169
    %p171 = scmp.eq.s32.totalorder %s19, 0
    %p172 = por %p170, %p171
    %s174 = sadd.s32 %s173, 1
    %p177 = scmp.eq.s32.totalorder %s13, 1
    %p178 = scmp.ne.s32.totalorder %s173, %s175
    %p179 = scmp.eq.s32.totalorder %s13, 0
    %p180 = por %p178, %p179
    %p181 = scmp.ne.s32.totalorder %s173, %s175
    %p182 = scmp.eq.s32.totalorder %s18, 1
    %p183 = por %p181, %p182
    %p184 = scmp.ne.s32.totalorder %s175, %s176
    %p185 = scmp.eq.s32.totalorder %s18, 0
    %p186 = por %p184, %p185
    %p187 = scmp.ne.s32.totalorder %s175, %s176
    %p188 = scmp.eq.s32.totalorder %s19, 1
    %p189 = por %p187, %p188
    %p191 = scmp.ne.s32.totalorder %s176, %s190
    %p192 = scmp.eq.s32.totalorder %s19, 0
    %p193 = por %p191, %p192
    %s194 = ssub.s32 %s20, %s32
    %s195 = ssub.s32 %s21, %s28
    %s196 = sor.u32 %s194, %s195
    %p197 = scmp.eq.s32.totalorder %s196, 0
    %s199 = sadd.s32 %s198, 1
    %s200 = scalar_select %p197, %s198, %s199
    %p203 = pneg %p197
    %p204 = scmp.eq.s32.totalorder %s13, 1
    %p205 = por %p203, %p204
    %p206 = scmp.ne.s32.totalorder %s198, %s201
    %p207 = scmp.eq.s32.totalorder %s13, 0
    %p208 = por %p206, %p207
    %p209 = scmp.ne.s32.totalorder %s198, %s201
    %p210 = scmp.eq.s32.totalorder %s18, 1
    %p211 = por %p209, %p210
    %p212 = scmp.ne.s32.totalorder %s201, %s202
    %p213 = scmp.eq.s32.totalorder %s18, 0
    %p214 = por %p212, %p213
    %p215 = scmp.ne.s32.totalorder %s201, %s202
    %p216 = scmp.eq.s32.totalorder %s19, 1
    %p217 = por %p215, %p216
    %p219 = scmp.ne.s32.totalorder %s202, %s218
    %p220 = scmp.eq.s32.totalorder %s19, 0
    %p221 = por %p219, %p220
    %p222 = scmp.le.s32.totalorder 1, %s13
    %p223 = scmp.lt.s32.totalorder %s13, 3
    %p224 = pnand %p222, %p223
    %p225 = pneg %p224
    // Predicated region
    $region9: #{dgcnn_feat_forward.17} parent=5 // pred_check
      _
    $region10: #{dgcnn_feat_forward.17} parent=5 // pred_check_branch
      %227 = sbr.rel (%p224) target = $region12
    $region11: #{dgcnn_feat_forward.17} parent=5 // pred_region
      %s228 = ssub.s32 %s13, 1
      // Predicated region
      $region13: #{dgcnn_feat_forward.17} parent=11 // pred_check
        %p229 = pneg %p102
      $region14: #{dgcnn_feat_forward.17} parent=11 // pred_check_branch
        %231 = sbr.rel (%p229) target = $region16
      $region15: #{dgcnn_feat_forward.17} parent=11 // pred_region
        _
      $region16: #{dgcnn_feat_forward.17} parent=11 // pred_fallthru
        _
      // Predicated region
      $region17: #{dgcnn_feat_forward.17} parent=11 // pred_check
        %p232 = pneg %p123
      $region18: #{dgcnn_feat_forward.17} parent=11 // pred_check_branch
        %234 = sbr.rel (%p232) target = $region20
      $region19: #{dgcnn_feat_forward.17} parent=11 // pred_region
        _
      $region20: #{dgcnn_feat_forward.17} parent=11 // pred_fallthru
        _
      // Predicated region
      $region21: #{dgcnn_feat_forward.17} parent=11 // pred_check
        %p235 = pneg %p144
      $region22: #{dgcnn_feat_forward.17} parent=11 // pred_check_branch
        %237 = sbr.rel (%p235) target = $region24
      $region23: #{dgcnn_feat_forward.17} parent=11 // pred_region
        _
      $region24: #{dgcnn_feat_forward.17} parent=11 // pred_fallthru
        _
      // Predicated region
      $region25: #{dgcnn_feat_forward.17} parent=11 // pred_check
        %p238 = pneg %p165
      $region26: #{dgcnn_feat_forward.17} parent=11 // pred_check_branch
        %240 = sbr.rel (%p238) target = $region28
      $region27: #{dgcnn_feat_forward.17} parent=11 // pred_region
        _
      $region28: #{dgcnn_feat_forward.17} parent=11 // pred_fallthru
        _
      // Predicated region
      $region29: #{dgcnn_feat_forward.17} parent=11 // pred_check
        %p241 = pneg %p186
      $region30: #{dgcnn_feat_forward.17} parent=11 // pred_check_branch
        %243 = sbr.rel (%p241) target = $region32
      $region31: #{dgcnn_feat_forward.17} parent=11 // pred_region
        _
      $region32: #{dgcnn_feat_forward.17} parent=11 // pred_fallthru
        _
    $region12: #{dgcnn_feat_forward.17} parent=5 // pred_fallthru
      _
    %p244 = scmp.lt.s32.totalorder %s13, 2
    // Predicated region
    $region33: #{dgcnn_feat_forward.17} parent=5 // pred_check
      %p245 = pneg %p244
    $region34: #{dgcnn_feat_forward.17} parent=5 // pred_check_branch
      %247 = sbr.rel (%p245) target = $region36
    $region35: #{dgcnn_feat_forward.17} parent=5 // pred_region
      // Predicated region
      $region37: #{dgcnn_feat_forward.17} parent=35 // pred_check
        %p248 = pneg %p47
      $region38: #{dgcnn_feat_forward.17} parent=35 // pred_check_branch
        %250 = sbr.rel (%p248) target = $region40
      $region39: #{dgcnn_feat_forward.17} parent=35 // pred_region
        %s251 = smul.u32 2, %s21
        %p252 = scmp.lt.s32.totalorder %s20, 1
        %s253 = scalar_select %p252, %s20, 1
        %p254 = scmp.lt.s32.totalorder %s251, 1
        %s255 = scalar_select %p254, %s251, 1
        %s256 = smul.addr %s253, 2
        %s257 = sadd.s32 %s255, %s256
        %s258 = smul.addr %s257, 8
        %s259 = scalar_lea.vmem %s0, %s258
        %s260 = smul.u32 2, %s21
      $region40: #{dgcnn_feat_forward.17} parent=35 // pred_fallthru
        _
      // Predicated region
      $region41: #{dgcnn_feat_forward.17} parent=35 // pred_check
        %p261 = pneg %p75
      $region42: #{dgcnn_feat_forward.17} parent=35 // pred_check_branch
        %263 = sbr.rel (%p261) target = $region44
      $region43: #{dgcnn_feat_forward.17} parent=35 // pred_region
        %s264 = smul.u32 2, %s21
        %p265 = scmp.lt.s32.totalorder %s20, 1
        %s266 = scalar_select %p265, %s20, 1
        %p267 = scmp.lt.s32.totalorder %s264, 1
        %s268 = scalar_select %p267, %s264, 1
        %s269 = smul.addr %s266, 16
        %s270 = sadd.s32 %s268, %s269
        %s271 = smul.addr %s270, 4
        %s272 = scalar_lea.vmem %s1, %s271
        %s273 = smul.u32 2, %s21
      $region44: #{dgcnn_feat_forward.17} parent=35 // pred_fallthru
        _
    $region36: #{dgcnn_feat_forward.17} parent=5 // pred_fallthru
      _
    %p274 = scmp.le.s32.totalorder 1, %s13
    %p275 = scmp.lt.s32.totalorder %s13, 3
    %p276 = pnand %p274, %p275
    %p277 = pneg %p276
    // Predicated region
    $region45: #{dgcnn_feat_forward.17} parent=5 // pred_check
      _
    $region46: #{dgcnn_feat_forward.17} parent=5 // pred_check_branch
      %279 = sbr.rel (%p276) target = $region48
    $region47: #{dgcnn_feat_forward.17} parent=5 // pred_region
      %s280 = ssub.s32 %s13, 1
      %s281 = smul.u32 2, %s23
      %p282 = scmp.lt.s32.totalorder %s22, 1
      %s283 = scalar_select %p282, %s22, 1
      %p284 = scmp.lt.s32.totalorder %s281, 1
      %s285 = scalar_select %p284, %s281, 1
      %s286 = smul.addr %s283, 2
      %s287 = sadd.s32 %s285, %s286
      %s288 = smul.addr %s287, 8
      %s289 = scalar_lea.vmem %s0, %s288
      %p290 = pneg %p53
      %p291 = pneg %p50
      %s292 = smul.u32 2, %s23
      %p293 = scmp.lt.s32.totalorder %s22, 1
      %s294 = scalar_select %p293, %s22, 1
      %p295 = scmp.lt.s32.totalorder %s292, 1
      %s296 = scalar_select %p295, %s292, 1
      %s297 = smul.addr %s294, 16
      %s298 = sadd.s32 %s296, %s297
      %s299 = smul.addr %s298, 4
      %s300 = scalar_lea.vmem %s1, %s299
      %p301 = pneg %p81
      %p302 = pneg %p78
      %p303 = pneg %p102
      %p304 = pneg %p99
      %p305 = pneg %p123
      %p306 = pneg %p120
      %p307 = pneg %p144
      %p308 = pneg %p141
      %p309 = pneg %p165
      %p310 = pneg %p162
      %p311 = pneg %p186
      %p312 = pneg %p183
      %p313 = pneg %p214
      %p314 = pneg %p211
      %s315 = smul.u32 2, %s23
      %p316 = scmp.lt.s32.totalorder %s22, 1
      %s317 = scalar_select %p316, %s22, 1
      %p318 = scmp.lt.s32.totalorder %s315, 1
      %s319 = scalar_select %p318, %s315, 1
      %s320 = smul.addr %s317, 2
      %s321 = sadd.s32 %s319, %s320
      %s322 = smul.addr %s321, 8
      %s323 = scalar_lea.vmem %s7, %s322
      %s324 = smul.u32 2, %s23
      %p325 = scmp.lt.s32.totalorder %s22, 1
      %s326 = scalar_select %p325, %s22, 1
      %p327 = scmp.lt.s32.totalorder %s324, 1
      %s328 = scalar_select %p327, %s324, 1
      %s329 = smul.addr %s326, 2
      %s330 = sadd.s32 %s328, %s329
      %s331 = smul.addr %s330, 8
      %s332 = scalar_lea.vmem %s0, %s331
      %s333 = smul.u32 2, %s23
      %s334 = smul.u32 2, %s23
      %p335 = scmp.lt.s32.totalorder %s22, 1
      %s336 = scalar_select %p335, %s22, 1
      %p337 = scmp.lt.s32.totalorder %s334, 1
      %s338 = scalar_select %p337, %s334, 1
      %s339 = smul.addr %s336, 16
      %s340 = sadd.s32 %s338, %s339
      %s341 = smul.addr %s340, 4
      %s342 = scalar_lea.vmem %s1, %s341
      %s343 = smul.u32 2, %s23
      %s344 = smul.u32 2, %s23
      %p345 = scmp.lt.s32.totalorder %s22, 1
      %s346 = scalar_select %p345, %s22, 1
      %p347 = scmp.lt.s32.totalorder %s344, 1
      %s348 = scalar_select %p347, %s344, 1
      %s349 = smul.addr %s346, 2
      %s350 = sadd.s32 %s348, %s349
      %s351 = smul.addr %s350, 8
      %s352 = scalar_lea.vmem %s7, %s351
      %s353 = smul.u32 2, %s23
      %v355 = vld [vmem:[%s332] sm:$0xff]
      %v356 = vld [vmem:[%s332 + $0x8] sm:$0xff]
      %v357 = vpack.c.bf16 %v356, %v355
      %v358 = vld [vmem:[%s3] sm:$0x3]
      %v359 = vld [vmem:[%s4] sm:$0x1]
      %v361 = vlaneseq
      %v362 = vshrl.u32 %v361, 7
      %v363 = vsub.s32 0, %v362
      %v364 = vrot.slane %v359, %v363
      %vm366 = vcmask 23552
      %v368 = vsel %vm366, %v357, 0
      %vm370 = vcmask 1040384
      %vm371 = vcmask 1041408
      %v372 = vsel %vm370, 4294967295, 65535
      %v373 = vsel %vm371, %v372, 0
      %v375 = vand.u32 %v358, %v373
      %377 = vmatprep.subr.bf16.mxu0 0
      %378 = vmatpush1.bf16.msra.mxu0 0
      %379 = vmatprep.subr.bf16.mxu0 0
      %380 = vmatpush1.bf16.msra.mxu0 0
      %381 = vmatprep.subr.bf16.mxu0 0
      %382 = vmatpush1.bf16.msra.mxu0 0
      %383 = vmatprep.subr.bf16.mxu0 0
      %384 = vmatpush1.bf16.msra.mxu0 0
      %385 = vmatprep.subr.bf16.mxu0 0
      %386 = vmatpush1.bf16.msra.mxu0 0
      %387 = vmatprep.subr.bf16.mxu0 0
      %388 = vmatpush1.bf16.msra.mxu0 0
      %389 = vmatprep.subr.bf16.mxu0 0
      %390 = vmatpush1.bf16.msra.mxu0 0
      %391 = vmatprep.subr.bf16.mxu0 0
      %392 = vmatpush1.bf16.msra.mxu0 %v375
      %393 = vmatprep.subr.bf16.mxu0 0
      %394 = vmatpush2.bf16.msra.mxu0 0
      %395 = vmatprep.subr.bf16.mxu0 0
      %396 = vmatpush2.bf16.msra.mxu0 0
      %397 = vmatprep.subr.bf16.mxu0 0
      %398 = vmatpush2.bf16.msra.mxu0 0
      %399 = vmatprep.subr.bf16.mxu0 0
      %400 = vmatpush2.bf16.msra.mxu0 0
      %401 = vmatprep.subr.bf16.mxu0 0
      %402 = vmatpush2.bf16.msra.mxu0 0
      %403 = vmatprep.subr.bf16.mxu0 0
      %404 = vmatpush2.bf16.msra.mxu0 0
      %405 = vmatprep.subr.bf16.mxu0 0
      %406 = vmatpush2.bf16.msra.mxu0 0
      %407 = vmatprep.subr.bf16.mxu0 0
      %408 = vmatpush2.bf16.msra.mxu0 0
      %409 = vmatprep.mubr.bf16.mxu0 0
      %410 = vmatmul.mubr.bf16.gmra.mxu0 %v368
      %v411 = vpop.f32.mrf.mxu0
      %v412 = vadd.f32 %v364, %v411
      %v413 = vpop.f32.mrf.mxu0
      %v414 = vpop.f32.mrf.mxu0
      %v415 = vadd.f32 %v364, %v414
      %v416 = vpop.f32.mrf.mxu0
      %417 = vdwg.mxu0
      %v418 = vld [vmem:[%s342] sm:$0xf]
      %v419 = vld [vmem:[%s342 + $0x4] sm:$0xf]
      %v420 = vld [vmem:[%s342 + $0x8] sm:$0xf]
      %v421 = vld [vmem:[%s342 + $0xc] sm:$0xf]
      %v422 = vld [vmem:[%s342 + $0x10] sm:$0xf]
      %v423 = vld [vmem:[%s342 + $0x14] sm:$0xf]
      %v424 = vld [vmem:[%s342 + $0x18] sm:$0xf]
      %v425 = vld [vmem:[%s342 + $0x1c] sm:$0xf]
      %v426 = vld [vmem:[%s342 + $0x20] sm:$0xf]
      %v427 = vld [vmem:[%s342 + $0x24] sm:$0xf]
      %v428 = vld [vmem:[%s342 + $0x28] sm:$0xf]
      %v429 = vld [vmem:[%s342 + $0x2c] sm:$0xf]
      %v430 = vld [vmem:[%s342 + $0x30] sm:$0xf]
      %v431 = vld [vmem:[%s342 + $0x34] sm:$0xf]
      %v432 = vld [vmem:[%s342 + $0x38] sm:$0xf]
      %v433 = vld [vmem:[%s342 + $0x3c] sm:$0xf]
      %v434 = vld [vmem:[%s2] sm:$0x3]
      %v451 = vunpack.c.l.b16 %v418
      %v452 = vunpack.c.l.b16 %v419
      %v453 = vunpack.c.l.b16 %v420
      %v454 = vunpack.c.l.b16 %v421
      %v455 = vunpack.c.l.b16 %v422
      %v456 = vunpack.c.l.b16 %v423
      %v457 = vunpack.c.l.b16 %v424
      %v458 = vunpack.c.l.b16 %v425
      %v459 = vunpack.c.l.b16 %v426
      %v460 = vunpack.c.l.b16 %v427
      %v461 = vunpack.c.l.b16 %v428
      %v462 = vunpack.c.l.b16 %v429
      %v463 = vunpack.c.l.b16 %v430
      %v464 = vunpack.c.l.b16 %v431
      %v465 = vunpack.c.l.b16 %v432
      %v466 = vunpack.c.l.b16 %v433
      %v467 = vpack.c.b16 %v452, %v451
      %v468 = vpack.c.b16 %v454, %v453
      %v469 = vpack.c.b16 %v456, %v455
      %v470 = vpack.c.b16 %v458, %v457
      %v471 = vpack.c.b16 %v460, %v459
      %v472 = vpack.c.b16 %v462, %v461
      %v473 = vpack.c.b16 %v464, %v463
      %v474 = vpack.c.b16 %v466, %v465
      %v476 = vsel %vm366, %v467, 0
      %v479 = vsel %vm366, %v468, 0
      %v482 = vsel %vm366, %v469, 0
      %v485 = vsel %vm366, %v470, 0
      %v488 = vsel %vm366, %v471, 0
      %v491 = vsel %vm366, %v472, 0
      %v494 = vsel %vm366, %v473, 0
      %v497 = vsel %vm366, %v474, 0
      %v500 = vand.u32 %v434, %v373
      %502 = vmatprep.subr.bf16.mxu0 0
      %503 = vmatpush1.bf16.msra.mxu0 0
      %504 = vmatprep.subr.bf16.mxu0 0
      %505 = vmatpush1.bf16.msra.mxu0 0
      %506 = vmatprep.subr.bf16.mxu0 0
      %507 = vmatpush1.bf16.msra.mxu0 0
      %508 = vmatprep.subr.bf16.mxu0 0
      %509 = vmatpush1.bf16.msra.mxu0 0
      %510 = vmatprep.subr.bf16.mxu0 0
      %511 = vmatpush1.bf16.msra.mxu0 0
      %512 = vmatprep.subr.bf16.mxu0 0
      %513 = vmatpush1.bf16.msra.mxu0 0
      %514 = vmatprep.subr.bf16.mxu0 0
      %515 = vmatpush1.bf16.msra.mxu0 0
      %516 = vmatprep.subr.bf16.mxu0 0
      %517 = vmatpush1.bf16.msra.mxu0 %v500
      %518 = vmatprep.subr.bf16.mxu0 0
      %519 = vmatpush2.bf16.msra.mxu0 0
      %520 = vmatprep.subr.bf16.mxu0 0
      %521 = vmatpush2.bf16.msra.mxu0 0
      %522 = vmatprep.subr.bf16.mxu0 0
      %523 = vmatpush2.bf16.msra.mxu0 0
      %524 = vmatprep.subr.bf16.mxu0 0
      %525 = vmatpush2.bf16.msra.mxu0 0
      %526 = vmatprep.subr.bf16.mxu0 0
      %527 = vmatpush2.bf16.msra.mxu0 0
      %528 = vmatprep.subr.bf16.mxu0 0
      %529 = vmatpush2.bf16.msra.mxu0 0
      %530 = vmatprep.subr.bf16.mxu0 0
      %531 = vmatpush2.bf16.msra.mxu0 0
      %532 = vmatprep.subr.bf16.mxu0 0
      %533 = vmatpush2.bf16.msra.mxu0 0
      %534 = vmatprep.mubr.bf16.mxu0 0
      %535 = vmatmul.mubr.bf16.gmra.mxu0 %v476
      %v536 = vpop.f32.mrf.mxu0
      %v537 = vadd.f32 0.0, %v536
      %v538 = vpop.f32.mrf.mxu0
      %v539 = vpop.f32.mrf.mxu0
      %v540 = vadd.f32 0.0, %v539
      %v541 = vpop.f32.mrf.mxu0
      %542 = vmatprep.mubr.bf16.mxu0 0
      %543 = vmatmul.mubr.bf16.gmra.mxu0 %v479
      %v544 = vpop.f32.mrf.mxu0
      %v545 = vadd.f32 0.0, %v544
      %v546 = vpop.f32.mrf.mxu0
      %v547 = vpop.f32.mrf.mxu0
      %v548 = vadd.f32 0.0, %v547
      %v549 = vpop.f32.mrf.mxu0
      %550 = vmatprep.mubr.bf16.mxu0 0
      %551 = vmatmul.mubr.bf16.gmra.mxu0 %v482
      %v552 = vpop.f32.mrf.mxu0
      %v553 = vadd.f32 0.0, %v552
      %v554 = vpop.f32.mrf.mxu0
      %v555 = vpop.f32.mrf.mxu0
      %v556 = vadd.f32 0.0, %v555
      %v557 = vpop.f32.mrf.mxu0
      %558 = vmatprep.mubr.bf16.mxu0 0
      %559 = vmatmul.mubr.bf16.gmra.mxu0 %v485
      %v560 = vpop.f32.mrf.mxu0
      %v561 = vadd.f32 0.0, %v560
      %v562 = vpop.f32.mrf.mxu0
      %v563 = vpop.f32.mrf.mxu0
      %v564 = vadd.f32 0.0, %v563
      %v565 = vpop.f32.mrf.mxu0
      %566 = vmatprep.mubr.bf16.mxu0 0
      %567 = vmatmul.mubr.bf16.gmra.mxu0 %v488
      %v568 = vpop.f32.mrf.mxu0
      %v569 = vadd.f32 0.0, %v568
      %v570 = vpop.f32.mrf.mxu0
      %v571 = vpop.f32.mrf.mxu0
      %v572 = vadd.f32 0.0, %v571
      %v573 = vpop.f32.mrf.mxu0
      %574 = vmatprep.mubr.bf16.mxu0 0
      %575 = vmatmul.mubr.bf16.gmra.mxu0 %v491
      %v576 = vpop.f32.mrf.mxu0
      %v577 = vadd.f32 0.0, %v576
      %v578 = vpop.f32.mrf.mxu0
      %v579 = vpop.f32.mrf.mxu0
      %v580 = vadd.f32 0.0, %v579
      %v581 = vpop.f32.mrf.mxu0
      %582 = vmatprep.mubr.bf16.mxu0 0
      %583 = vmatmul.mubr.bf16.gmra.mxu0 %v494
      %v584 = vpop.f32.mrf.mxu0
      %v585 = vadd.f32 0.0, %v584
      %v586 = vpop.f32.mrf.mxu0
      %v587 = vpop.f32.mrf.mxu0
      %v588 = vadd.f32 0.0, %v587
      %v589 = vpop.f32.mrf.mxu0
      %590 = vmatprep.mubr.bf16.mxu0 0
      %591 = vmatmul.mubr.bf16.gmra.mxu0 %v497
      %v592 = vpop.f32.mrf.mxu0
      %v593 = vadd.f32 0.0, %v592
      %v594 = vpop.f32.mrf.mxu0
      %v595 = vpop.f32.mrf.mxu0
      %v596 = vadd.f32 0.0, %v595
      %v597 = vpop.f32.mrf.mxu0
      %598 = vdwg.mxu0
      %v599 = vadd.f32 %v537, %v412
      %v600 = vadd.f32 %v540, %v415
      %v601 = vadd.f32 %v545, %v412
      %v602 = vadd.f32 %v548, %v415
      %v603 = vadd.f32 %v553, %v412
      %v604 = vadd.f32 %v556, %v415
      %v605 = vadd.f32 %v561, %v412
      %v606 = vadd.f32 %v564, %v415
      %v607 = vadd.f32 %v569, %v412
      %v608 = vadd.f32 %v572, %v415
      %v609 = vadd.f32 %v577, %v412
      %v610 = vadd.f32 %v580, %v415
      %v611 = vadd.f32 %v585, %v412
      %v612 = vadd.f32 %v588, %v415
      %v613 = vadd.f32 %v593, %v412
      %v614 = vadd.f32 %v596, %v415
      %v615 = vmul.f32 %v599, 0.2
      %v616 = vmul.f32 %v600, 0.2
      %v617 = vmul.f32 %v601, 0.2
      %v618 = vmul.f32 %v602, 0.2
      %v619 = vmul.f32 %v603, 0.2
      %v620 = vmul.f32 %v604, 0.2
      %v621 = vmul.f32 %v605, 0.2
      %v622 = vmul.f32 %v606, 0.2
      %v623 = vmul.f32 %v607, 0.2
      %v624 = vmul.f32 %v608, 0.2
      %v625 = vmul.f32 %v609, 0.2
      %v626 = vmul.f32 %v610, 0.2
      %v627 = vmul.f32 %v611, 0.2
      %v628 = vmul.f32 %v612, 0.2
      %v629 = vmul.f32 %v613, 0.2
      %v630 = vmul.f32 %v614, 0.2
      %v631 = vmax.f32 %v599, %v615
      %v632 = vmax.f32 %v600, %v616
      %v633 = vmax.f32 %v601, %v617
      %v634 = vmax.f32 %v602, %v618
      %v635 = vmax.f32 %v603, %v619
      %v636 = vmax.f32 %v604, %v620
      %v637 = vmax.f32 %v605, %v621
      %v638 = vmax.f32 %v606, %v622
      %v639 = vmax.f32 %v607, %v623
      %v640 = vmax.f32 %v608, %v624
      %v641 = vmax.f32 %v609, %v625
      %v642 = vmax.f32 %v610, %v626
      %v643 = vmax.f32 %v611, %v627
      %v644 = vmax.f32 %v612, %v628
      %v645 = vmax.f32 %v613, %v629
      %v646 = vmax.f32 %v614, %v630
      %v647 = vpack.c.bf16 %v632, %v631
      %v648 = vpack.c.bf16 %v634, %v633
      %v649 = vpack.c.bf16 %v636, %v635
      %v650 = vpack.c.bf16 %v638, %v637
      %v651 = vpack.c.bf16 %v640, %v639
      %v652 = vpack.c.bf16 %v642, %v641
      %v653 = vpack.c.bf16 %v644, %v643
      %v654 = vpack.c.bf16 %v646, %v645
      %v655 = vld [vmem:[%s5] sm:$0xf]
      %v656 = vld [vmem:[%s5 + $0x4] sm:$0xf]
      %v657 = vld [vmem:[%s5 + $0x8] sm:$0xf]
      %v658 = vld [vmem:[%s5 + $0xc] sm:$0xf]
      %v659 = vld [vmem:[%s5 + $0x10] sm:$0xf]
      %v660 = vld [vmem:[%s5 + $0x14] sm:$0xf]
      %v661 = vld [vmem:[%s5 + $0x18] sm:$0xf]
      %v662 = vld [vmem:[%s5 + $0x1c] sm:$0xf]
      %v671 = vunpack.c.l.b16 %v655
      %v672 = vunpack.c.l.b16 %v656
      %v673 = vunpack.c.l.b16 %v657
      %v674 = vunpack.c.l.b16 %v658
      %v675 = vunpack.c.l.b16 %v659
      %v676 = vunpack.c.l.b16 %v660
      %v677 = vunpack.c.l.b16 %v661
      %v678 = vunpack.c.l.b16 %v662
      %v679 = vpack.c.b16 %v672, %v671
      %v680 = vpack.c.b16 %v674, %v673
      %v681 = vpack.c.b16 %v676, %v675
      %v682 = vpack.c.b16 %v678, %v677
      %vm687 = vcmask 523264
      %v689 = vsel %vm687, %v647, 0
      %v692 = vsel %vm687, %v648, 0
      %v695 = vsel %vm687, %v649, 0
      %v698 = vsel %vm687, %v650, 0
      %v701 = vsel %vm687, %v651, 0
      %v704 = vsel %vm687, %v652, 0
      %v707 = vsel %vm687, %v653, 0
      %v710 = vsel %vm687, %v654, 0
      %712 = vmatprep.subr.bf16.mxu0 0
      %713 = vmatpush1.bf16.msra.mxu0 0
      %714 = vmatprep.subr.bf16.mxu0 0
      %715 = vmatpush1.bf16.msra.mxu0 0
      %716 = vmatprep.subr.bf16.mxu0 0
      %717 = vmatpush1.bf16.msra.mxu0 0
      %718 = vmatprep.subr.bf16.mxu0 0
      %719 = vmatpush1.bf16.msra.mxu0 0
      %720 = vmatprep.subr.bf16.mxu0 0
      %721 = vmatpush1.bf16.msra.mxu0 %v682
      %722 = vmatprep.subr.bf16.mxu0 0
      %723 = vmatpush1.bf16.msra.mxu0 %v681
      %724 = vmatprep.subr.bf16.mxu0 0
      %725 = vmatpush1.bf16.msra.mxu0 %v680
      %726 = vmatprep.subr.bf16.mxu0 0
      %727 = vmatpush1.bf16.msra.mxu0 %v679
      %728 = vmatprep.subr.bf16.mxu0 0
      %729 = vmatpush2.bf16.msra.mxu0 0
      %730 = vmatprep.subr.bf16.mxu0 0
      %731 = vmatpush2.bf16.msra.mxu0 0
      %732 = vmatprep.subr.bf16.mxu0 0
      %733 = vmatpush2.bf16.msra.mxu0 0
      %734 = vmatprep.subr.bf16.mxu0 0
      %735 = vmatpush2.bf16.msra.mxu0 0
      %736 = vmatprep.subr.bf16.mxu0 0
      %737 = vmatpush2.bf16.msra.mxu0 0
      %738 = vmatprep.subr.bf16.mxu0 0
      %739 = vmatpush2.bf16.msra.mxu0 0
      %740 = vmatprep.subr.bf16.mxu0 0
      %741 = vmatpush2.bf16.msra.mxu0 0
      %742 = vmatprep.subr.bf16.mxu0 0
      %743 = vmatpush2.bf16.msra.mxu0 0
      %744 = vmatprep.mubr.bf16.mxu0 0
      %745 = vmatmul.mubr.bf16.gmra.mxu0 %v689
      %v746 = vpop.f32.mrf.mxu0
      %v747 = vadd.f32 0.0, %v746
      %v748 = vpop.f32.mrf.mxu0
      %v749 = vpop.f32.mrf.mxu0
      %v750 = vadd.f32 0.0, %v749
      %v751 = vpop.f32.mrf.mxu0
      %752 = vmatprep.mubr.bf16.mxu0 0
      %753 = vmatmul.mubr.bf16.gmra.mxu0 %v692
      %v754 = vpop.f32.mrf.mxu0
      %v755 = vadd.f32 0.0, %v754
      %v756 = vpop.f32.mrf.mxu0
      %v757 = vpop.f32.mrf.mxu0
      %v758 = vadd.f32 0.0, %v757
      %v759 = vpop.f32.mrf.mxu0
      %760 = vmatprep.mubr.bf16.mxu0 0
      %761 = vmatmul.mubr.bf16.gmra.mxu0 %v695
      %v762 = vpop.f32.mrf.mxu0
      %v763 = vadd.f32 0.0, %v762
      %v764 = vpop.f32.mrf.mxu0
      %v765 = vpop.f32.mrf.mxu0
      %v766 = vadd.f32 0.0, %v765
      %v767 = vpop.f32.mrf.mxu0
      %768 = vmatprep.mubr.bf16.mxu0 0
      %769 = vmatmul.mubr.bf16.gmra.mxu0 %v698
      %v770 = vpop.f32.mrf.mxu0
      %v771 = vadd.f32 0.0, %v770
      %v772 = vpop.f32.mrf.mxu0
      %v773 = vpop.f32.mrf.mxu0
      %v774 = vadd.f32 0.0, %v773
      %v775 = vpop.f32.mrf.mxu0
      %776 = vmatprep.mubr.bf16.mxu0 0
      %777 = vmatmul.mubr.bf16.gmra.mxu0 %v701
      %v778 = vpop.f32.mrf.mxu0
      %v779 = vadd.f32 0.0, %v778
      %v780 = vpop.f32.mrf.mxu0
      %v781 = vpop.f32.mrf.mxu0
      %v782 = vadd.f32 0.0, %v781
      %v783 = vpop.f32.mrf.mxu0
      %784 = vmatprep.mubr.bf16.mxu0 0
      %785 = vmatmul.mubr.bf16.gmra.mxu0 %v704
      %v786 = vpop.f32.mrf.mxu0
      %v787 = vadd.f32 0.0, %v786
      %v788 = vpop.f32.mrf.mxu0
      %v789 = vpop.f32.mrf.mxu0
      %v790 = vadd.f32 0.0, %v789
      %v791 = vpop.f32.mrf.mxu0
      %792 = vmatprep.mubr.bf16.mxu0 0
      %793 = vmatmul.mubr.bf16.gmra.mxu0 %v707
      %v794 = vpop.f32.mrf.mxu0
      %v795 = vadd.f32 0.0, %v794
      %v796 = vpop.f32.mrf.mxu0
      %v797 = vpop.f32.mrf.mxu0
      %v798 = vadd.f32 0.0, %v797
      %v799 = vpop.f32.mrf.mxu0
      %800 = vmatprep.mubr.bf16.mxu0 0
      %801 = vmatmul.mubr.bf16.gmra.mxu0 %v710
      %v802 = vpop.f32.mrf.mxu0
      %v803 = vadd.f32 0.0, %v802
      %v804 = vpop.f32.mrf.mxu0
      %v805 = vpop.f32.mrf.mxu0
      %v806 = vadd.f32 0.0, %v805
      %v807 = vpop.f32.mrf.mxu0
      %808 = vdwg.mxu0
      %v809 = vld [vmem:[%s6] sm:$0x1]
      %v811 = vlaneseq
      %v812 = vshrl.u32 %v811, 7
      %v813 = vsub.s32 0, %v812
      %v814 = vrot.slane %v809, %v813
      %v816 = vadd.f32 %v747, %v814
      %v817 = vadd.f32 %v750, %v814
      %v818 = vadd.f32 %v755, %v814
      %v819 = vadd.f32 %v758, %v814
      %v820 = vadd.f32 %v763, %v814
      %v821 = vadd.f32 %v766, %v814
      %v822 = vadd.f32 %v771, %v814
      %v823 = vadd.f32 %v774, %v814
      %v824 = vadd.f32 %v779, %v814
      %v825 = vadd.f32 %v782, %v814
      %v826 = vadd.f32 %v787, %v814
      %v827 = vadd.f32 %v790, %v814
      %v828 = vadd.f32 %v795, %v814
      %v829 = vadd.f32 %v798, %v814
      %v830 = vadd.f32 %v803, %v814
      %v831 = vadd.f32 %v806, %v814
      %v832 = vmul.f32 %v816, 0.2
      %v833 = vmul.f32 %v817, 0.2
      %v834 = vmul.f32 %v818, 0.2
      %v835 = vmul.f32 %v819, 0.2
      %v836 = vmul.f32 %v820, 0.2
      %v837 = vmul.f32 %v821, 0.2
      %v838 = vmul.f32 %v822, 0.2
      %v839 = vmul.f32 %v823, 0.2
      %v840 = vmul.f32 %v824, 0.2
      %v841 = vmul.f32 %v825, 0.2
      %v842 = vmul.f32 %v826, 0.2
      %v843 = vmul.f32 %v827, 0.2
      %v844 = vmul.f32 %v828, 0.2
      %v845 = vmul.f32 %v829, 0.2
      %v846 = vmul.f32 %v830, 0.2
      %v847 = vmul.f32 %v831, 0.2
      %v848 = vmax.f32 %v816, %v832
      %v849 = vmax.f32 %v817, %v833
      %v850 = vmax.f32 %v818, %v834
      %v851 = vmax.f32 %v819, %v835
      %v852 = vmax.f32 %v820, %v836
      %v853 = vmax.f32 %v821, %v837
      %v854 = vmax.f32 %v822, %v838
      %v855 = vmax.f32 %v823, %v839
      %v856 = vmax.f32 %v824, %v840
      %v857 = vmax.f32 %v825, %v841
      %v858 = vmax.f32 %v826, %v842
      %v859 = vmax.f32 %v827, %v843
      %v860 = vmax.f32 %v828, %v844
      %v861 = vmax.f32 %v829, %v845
      %v862 = vmax.f32 %v830, %v846
      %v863 = vmax.f32 %v831, %v847
      %v864 = vsel %vm687, %v848, -inf
      %v865 = vsel %vm687, %v850, -inf
      %v866 = vsel %vm687, %v852, -inf
      %v867 = vmax.f32 %v864, %v866
      %v868 = vsel %vm687, %v854, -inf
      %v869 = vmax.f32 %v865, %v868
      %v870 = vsel %vm687, %v856, -inf
      %v871 = vmax.f32 %v867, %v870
      %v872 = vsel %vm687, %v858, -inf
      %v873 = vmax.f32 %v869, %v872
      %v874 = vsel %vm687, %v860, -inf
      %v875 = vmax.f32 %v871, %v874
      %v876 = vsel %vm687, %v862, -inf
      %v877 = vmax.f32 %v873, %v876
      %v878 = vmax.f32 %v875, %v877
      %v879 = vsel %vm687, %v849, -inf
      %v880 = vsel %vm687, %v851, -inf
      %v881 = vsel %vm687, %v853, -inf
      %v882 = vmax.f32 %v879, %v881
      %v883 = vsel %vm687, %v855, -inf
      %v884 = vmax.f32 %v880, %v883
      %v885 = vsel %vm687, %v857, -inf
      %v886 = vmax.f32 %v882, %v885
      %v887 = vsel %vm687, %v859, -inf
      %v888 = vmax.f32 %v884, %v887
      %v889 = vsel %vm687, %v861, -inf
      %v890 = vmax.f32 %v886, %v889
      %v891 = vsel %vm687, %v863, -inf
      %v892 = vmax.f32 %v888, %v891
      %v893 = vmax.f32 %v890, %v892
      %894 = vst.msk [vmem:[%s352] sm:$0xff] %vm687, %v878
      %895 = vst.msk [vmem:[%s352 + $0x8] sm:$0xff] %vm687, %v893
      %s896 = smul.u32 2, %s23
      %p897 = scmp.lt.s32.totalorder %s22, 1
      %s898 = scalar_select %p897, %s22, 1
      %p899 = scmp.lt.s32.totalorder %s896, 1
      %s900 = scalar_select %p899, %s896, 1
      %s901 = smul.addr %s898, 2
      %s902 = sadd.s32 %s900, %s901
      %s903 = smul.addr %s902, 8
      %s904 = scalar_lea.vmem %s7, %s903
      // Predicated region
      $region49: #{dgcnn_feat_forward.17} parent=47 // pred_check
        %p905 = pneg %p211
      $region50: #{dgcnn_feat_forward.17} parent=47 // pred_check_branch
        %907 = sbr.rel (%p905) target = $region52
      $region51: #{dgcnn_feat_forward.17} parent=47 // pred_region
        %s908 = smul.u32 2, %s23
      $region52: #{dgcnn_feat_forward.17} parent=47 // pred_fallthru
        _
    $region48: #{dgcnn_feat_forward.17} parent=5 // pred_fallthru
      _
    %p909 = scmp.le.s32.totalorder 2, %s13
    // Predicated region
    $region53: #{dgcnn_feat_forward.17} parent=5 // pred_check
      %p910 = pneg %p909
    $region54: #{dgcnn_feat_forward.17} parent=5 // pred_check_branch
      %912 = sbr.rel (%p910) target = $region56
    $region55: #{dgcnn_feat_forward.17} parent=5 // pred_region
      %s913 = ssub.s32 %s13, 2
      // Predicated region
      $region57: #{dgcnn_feat_forward.17} parent=55 // pred_check
        %p914 = pneg %p217
      $region58: #{dgcnn_feat_forward.17} parent=55 // pred_check_branch
        %916 = sbr.rel (%p914) target = $region60
      $region59: #{dgcnn_feat_forward.17} parent=55 // pred_region
        %s917 = smul.u32 2, %s25
        %p918 = scmp.lt.s32.totalorder %s24, 1
        %s919 = scalar_select %p918, %s24, 1
        %p920 = scmp.lt.s32.totalorder %s917, 1
        %s921 = scalar_select %p920, %s917, 1
        %s922 = smul.addr %s919, 2
        %s923 = sadd.s32 %s921, %s922
        %s924 = smul.addr %s923, 8
        %s925 = scalar_lea.vmem %s7, %s924
      $region60: #{dgcnn_feat_forward.17} parent=55 // pred_fallthru
        _
    $region56: #{dgcnn_feat_forward.17} parent=5 // pred_fallthru
      _
  $region6: #{dgcnn_feat_forward.17} parent=0 // loop_footer
    %s17 = sadd.s32 1, %s13
  $region7: #{dgcnn_feat_forward.17} parent=0 // loop_footer_branch
    %12 = sbr.rel target = $region3
  $region8: #{dgcnn_feat_forward.17} parent=0 // loop_exit
    _

// kernel: dgcnn_feat_forward.15
$region0: #{dgcnn_feat_forward.15}
  #allocation0 [shape = 'u32[]', space=smem, size = 0x4, offset = 0x4, fixed_abs, tag = 'smem constant byte address 0x4 - core index']
  #allocation1 [shape = 'u32[144,128]{1,0:T(1,128)}', space=vmem, size = 0x12000, scoped, tag = 'internal scratch']
  %s0 = inlined_call_operand.vmem [shape: f32[2,1024], index: 0, kind: input, shape index: {}]
  %s1 = inlined_call_operand.vmem [shape: bf16[1024,512], index: 1, kind: input, shape index: {}]
  %s2 = inlined_call_operand.vmem [shape: f32[1,512], index: 2, kind: input, shape index: {}]
  %s3 = inlined_call_operand.vmem [shape: bf16[512,256], index: 3, kind: input, shape index: {}]
  %s4 = inlined_call_operand.vmem [shape: f32[1,256], index: 4, kind: input, shape index: {}]
  %s5 = inlined_call_operand.vmem [shape: bf16[256,9], index: 5, kind: input, shape index: {}]
  %s6 = inlined_call_operand.vmem [shape: f32[1,9], index: 6, kind: input, shape index: {}]
  %s7 = inlined_call_operand.vmem [shape: f32[2,9], index: 7, kind: output, shape index: {}]
  %s8 = sld [smem:[#allocation0]]
  $region38: #{dgcnn_feat_forward.15} parent=0
    _
  %s10 = ssub.s32 1, %s8
  %s11 = scalar_select 0, %s10, %s8
  // Predicated region
  $region2: #{dgcnn_feat_forward.15} parent=0 // pred_check
    _
  $region3: #{dgcnn_feat_forward.15} parent=0 // pred_check_branch
    %13 = sbr.rel (0) target = $region5
  $region4: #{dgcnn_feat_forward.15} parent=0 // pred_region
    _
  $region5: #{dgcnn_feat_forward.15} parent=0 // pred_fallthru
    _
  // Predicated region
  $region6: #{dgcnn_feat_forward.15} parent=0 // pred_check
    _
  $region7: #{dgcnn_feat_forward.15} parent=0 // pred_check_branch
    %15 = sbr.rel (0) target = $region9
  $region8: #{dgcnn_feat_forward.15} parent=0 // pred_region
    _
  $region9: #{dgcnn_feat_forward.15} parent=0 // pred_fallthru
    _
  // Predicated region
  $region10: #{dgcnn_feat_forward.15} parent=0 // pred_check
    _
  $region11: #{dgcnn_feat_forward.15} parent=0 // pred_check_branch
    %17 = sbr.rel (0) target = $region13
  $region12: #{dgcnn_feat_forward.15} parent=0 // pred_region
    _
  $region13: #{dgcnn_feat_forward.15} parent=0 // pred_fallthru
    _
  // Predicated region
  $region14: #{dgcnn_feat_forward.15} parent=0 // pred_check
    _
  $region15: #{dgcnn_feat_forward.15} parent=0 // pred_check_branch
    %19 = sbr.rel (0) target = $region17
  $region16: #{dgcnn_feat_forward.15} parent=0 // pred_region
    _
  $region17: #{dgcnn_feat_forward.15} parent=0 // pred_fallthru
    _
  // Predicated region
  $region18: #{dgcnn_feat_forward.15} parent=0 // pred_check
    _
  $region19: #{dgcnn_feat_forward.15} parent=0 // pred_check_branch
    %21 = sbr.rel (0) target = $region21
  $region20: #{dgcnn_feat_forward.15} parent=0 // pred_region
    _
  $region21: #{dgcnn_feat_forward.15} parent=0 // pred_fallthru
    _
  // Predicated region
  $region22: #{dgcnn_feat_forward.15} parent=0 // pred_check
    _
  $region23: #{dgcnn_feat_forward.15} parent=0 // pred_check_branch
    %23 = sbr.rel (0) target = $region25
  $region24: #{dgcnn_feat_forward.15} parent=0 // pred_region
    _
  $region25: #{dgcnn_feat_forward.15} parent=0 // pred_fallthru
    _
  // Predicated region
  $region26: #{dgcnn_feat_forward.15} parent=0 // pred_check
    _
  $region27: #{dgcnn_feat_forward.15} parent=0 // pred_check_branch
    %25 = sbr.rel (0) target = $region29
  $region28: #{dgcnn_feat_forward.15} parent=0 // pred_region
    _
  $region29: #{dgcnn_feat_forward.15} parent=0 // pred_fallthru
    _
  %v27 = vld [vmem:[%s0] sm:$0xff]
  %v28 = vld [vmem:[%s0 + $0x8] sm:$0xff]
  %v31 = vcombine.high %v27, %v27
  %v33 = vunpack.c.l.s4 1983009808
  %v34 = vunpack.c.0.s8 %v33
  %v35 = vlaneseq
  %v36 = vshrl.u32 %v35, 7
  %v37 = vsub.s32 %v34, %v36
  %v38 = vrot.slane %v27, %v37
  %v40 = vunpack.c.l.s4 1983009808
  %v41 = vunpack.c.0.s8 %v40
  %v42 = vlaneseq
  %v43 = vshrl.u32 %v42, 7
  %v44 = vsub.s32 %v41, %v43
  %v45 = vrot.slane %v31, %v44
  %v46 = vcombine.high %v38, %v38
  %v47 = vcombine.high %v45, %v45
  %v48 = vcombine.high %v28, %v28
  %v50 = vunpack.c.l.s4 1983009808
  %v51 = vunpack.c.0.s8 %v50
  %v52 = vlaneseq
  %v53 = vshrl.u32 %v52, 7
  %v54 = vsub.s32 %v51, %v53
  %v55 = vrot.slane %v28, %v54
  %v57 = vunpack.c.l.s4 1983009808
  %v58 = vunpack.c.0.s8 %v57
  %v59 = vlaneseq
  %v60 = vshrl.u32 %v59, 7
  %v61 = vsub.s32 %v58, %v60
  %v62 = vrot.slane %v48, %v61
  %v63 = vcombine.high %v55, %v55
  %v64 = vcombine.high %v62, %v62
  %v73 = vpack.c.bf16 %v38, %v38
  %v74 = vpack.c.bf16 %v46, %v46
  %v75 = vpack.c.bf16 %v45, %v45
  %v76 = vpack.c.bf16 %v47, %v47
  %v77 = vpack.c.bf16 %v55, %v55
  %v78 = vpack.c.bf16 %v63, %v63
  %v79 = vpack.c.bf16 %v62, %v62
  %v80 = vpack.c.bf16 %v64, %v64
  %v81 = vld [vmem:[%s1] sm:$0xff]
  %v82 = vld [vmem:[%s1 + $0x8] sm:$0xff]
  %v83 = vld [vmem:[%s1 + $0x10] sm:$0xff]
  %v84 = vld [vmem:[%s1 + $0x18] sm:$0xff]
  %v85 = vld [vmem:[%s1 + $0x20] sm:$0xff]
  %v86 = vld [vmem:[%s1 + $0x28] sm:$0xff]
  %v87 = vld [vmem:[%s1 + $0x30] sm:$0xff]
  %v88 = vld [vmem:[%s1 + $0x38] sm:$0xff]
  %v89 = vld [vmem:[%s1 + $0x40] sm:$0xff]
  %v90 = vld [vmem:[%s1 + $0x48] sm:$0xff]
  %v91 = vld [vmem:[%s1 + $0x50] sm:$0xff]
  %v92 = vld [vmem:[%s1 + $0x58] sm:$0xff]
  %v93 = vld [vmem:[%s1 + $0x60] sm:$0xff]
  %v94 = vld [vmem:[%s1 + $0x68] sm:$0xff]
  %v95 = vld [vmem:[%s1 + $0x70] sm:$0xff]
  %v96 = vld [vmem:[%s1 + $0x78] sm:$0xff]
  %v97 = vld [vmem:[%s1 + $0x80] sm:$0xff]
  %v98 = vld [vmem:[%s1 + $0x88] sm:$0xff]
  %v99 = vld [vmem:[%s1 + $0x90] sm:$0xff]
  %v100 = vld [vmem:[%s1 + $0x98] sm:$0xff]
  %v101 = vld [vmem:[%s1 + $0xa0] sm:$0xff]
  %v102 = vld [vmem:[%s1 + $0xa8] sm:$0xff]
  %v103 = vld [vmem:[%s1 + $0xb0] sm:$0xff]
  %v104 = vld [vmem:[%s1 + $0xb8] sm:$0xff]
  %v105 = vld [vmem:[%s1 + $0xc0] sm:$0xff]
  %v106 = vld [vmem:[%s1 + $0xc8] sm:$0xff]
  %v107 = vld [vmem:[%s1 + $0xd0] sm:$0xff]
  %v108 = vld [vmem:[%s1 + $0xd8] sm:$0xff]
  %v109 = vld [vmem:[%s1 + $0xe0] sm:$0xff]
  %v110 = vld [vmem:[%s1 + $0xe8] sm:$0xff]
  %v111 = vld [vmem:[%s1 + $0xf0] sm:$0xff]
  %v112 = vld [vmem:[%s1 + $0xf8] sm:$0xff]
  %v113 = vld [vmem:[%s1 + $0x100] sm:$0xff]
  %v114 = vld [vmem:[%s1 + $0x108] sm:$0xff]
  %v115 = vld [vmem:[%s1 + $0x110] sm:$0xff]
  %v116 = vld [vmem:[%s1 + $0x118] sm:$0xff]
  %v117 = vld [vmem:[%s1 + $0x120] sm:$0xff]
  %v118 = vld [vmem:[%s1 + $0x128] sm:$0xff]
  %v119 = vld [vmem:[%s1 + $0x130] sm:$0xff]
  %v120 = vld [vmem:[%s1 + $0x138] sm:$0xff]
  %v121 = vld [vmem:[%s1 + $0x140] sm:$0xff]
  %v122 = vld [vmem:[%s1 + $0x148] sm:$0xff]
  %v123 = vld [vmem:[%s1 + $0x150] sm:$0xff]
  %v124 = vld [vmem:[%s1 + $0x158] sm:$0xff]
  %v125 = vld [vmem:[%s1 + $0x160] sm:$0xff]
  %v126 = vld [vmem:[%s1 + $0x168] sm:$0xff]
  %v127 = vld [vmem:[%s1 + $0x170] sm:$0xff]
  %v128 = vld [vmem:[%s1 + $0x178] sm:$0xff]
  %v129 = vld [vmem:[%s1 + $0x180] sm:$0xff]
  %v130 = vld [vmem:[%s1 + $0x188] sm:$0xff]
  %v131 = vld [vmem:[%s1 + $0x190] sm:$0xff]
  %v132 = vld [vmem:[%s1 + $0x198] sm:$0xff]
  %v133 = vld [vmem:[%s1 + $0x1a0] sm:$0xff]
  %v134 = vld [vmem:[%s1 + $0x1a8] sm:$0xff]
  %v135 = vld [vmem:[%s1 + $0x1b0] sm:$0xff]
  %v136 = vld [vmem:[%s1 + $0x1b8] sm:$0xff]
  %v137 = vld [vmem:[%s1 + $0x1c0] sm:$0xff]
  %v138 = vld [vmem:[%s1 + $0x1c8] sm:$0xff]
  %v139 = vld [vmem:[%s1 + $0x1d0] sm:$0xff]
  %v140 = vld [vmem:[%s1 + $0x1d8] sm:$0xff]
  %v141 = vld [vmem:[%s1 + $0x1e0] sm:$0xff]
  %v142 = vld [vmem:[%s1 + $0x1e8] sm:$0xff]
  %v143 = vld [vmem:[%s1 + $0x1f0] sm:$0xff]
  %v144 = vld [vmem:[%s1 + $0x1f8] sm:$0xff]
  %v145 = vld [vmem:[%s1 + $0x200] sm:$0xff]
  %v146 = vld [vmem:[%s1 + $0x208] sm:$0xff]
  %v147 = vld [vmem:[%s1 + $0x210] sm:$0xff]
  %v148 = vld [vmem:[%s1 + $0x218] sm:$0xff]
  %v149 = vld [vmem:[%s1 + $0x220] sm:$0xff]
  %v150 = vld [vmem:[%s1 + $0x228] sm:$0xff]
  %v151 = vld [vmem:[%s1 + $0x230] sm:$0xff]
  %v152 = vld [vmem:[%s1 + $0x238] sm:$0xff]
  %v153 = vld [vmem:[%s1 + $0x240] sm:$0xff]
  %v154 = vld [vmem:[%s1 + $0x248] sm:$0xff]
  %v155 = vld [vmem:[%s1 + $0x250] sm:$0xff]
  %v156 = vld [vmem:[%s1 + $0x258] sm:$0xff]
  %v157 = vld [vmem:[%s1 + $0x260] sm:$0xff]
  %v158 = vld [vmem:[%s1 + $0x268] sm:$0xff]
  %v159 = vld [vmem:[%s1 + $0x270] sm:$0xff]
  %v160 = vld [vmem:[%s1 + $0x278] sm:$0xff]
  %v161 = vld [vmem:[%s1 + $0x280] sm:$0xff]
  %v162 = vld [vmem:[%s1 + $0x288] sm:$0xff]
  %v163 = vld [vmem:[%s1 + $0x290] sm:$0xff]
  %v164 = vld [vmem:[%s1 + $0x298] sm:$0xff]
  %v165 = vld [vmem:[%s1 + $0x2a0] sm:$0xff]
  %v166 = vld [vmem:[%s1 + $0x2a8] sm:$0xff]
  %v167 = vld [vmem:[%s1 + $0x2b0] sm:$0xff]
  %v168 = vld [vmem:[%s1 + $0x2b8] sm:$0xff]
  %v169 = vld [vmem:[%s1 + $0x2c0] sm:$0xff]
  %v170 = vld [vmem:[%s1 + $0x2c8] sm:$0xff]
  %v171 = vld [vmem:[%s1 + $0x2d0] sm:$0xff]
  %v172 = vld [vmem:[%s1 + $0x2d8] sm:$0xff]
  %v173 = vld [vmem:[%s1 + $0x2e0] sm:$0xff]
  %v174 = vld [vmem:[%s1 + $0x2e8] sm:$0xff]
  %v175 = vld [vmem:[%s1 + $0x2f0] sm:$0xff]
  %v176 = vld [vmem:[%s1 + $0x2f8] sm:$0xff]
  %v177 = vld [vmem:[%s1 + $0x300] sm:$0xff]
  %v178 = vld [vmem:[%s1 + $0x308] sm:$0xff]
  %v179 = vld [vmem:[%s1 + $0x310] sm:$0xff]
  %v180 = vld [vmem:[%s1 + $0x318] sm:$0xff]
  %v181 = vld [vmem:[%s1 + $0x320] sm:$0xff]
  %v182 = vld [vmem:[%s1 + $0x328] sm:$0xff]
  %v183 = vld [vmem:[%s1 + $0x330] sm:$0xff]
  %v184 = vld [vmem:[%s1 + $0x338] sm:$0xff]
  %v185 = vld [vmem:[%s1 + $0x340] sm:$0xff]
  %v186 = vld [vmem:[%s1 + $0x348] sm:$0xff]
  %v187 = vld [vmem:[%s1 + $0x350] sm:$0xff]
  %v188 = vld [vmem:[%s1 + $0x358] sm:$0xff]
  %v189 = vld [vmem:[%s1 + $0x360] sm:$0xff]
  %v190 = vld [vmem:[%s1 + $0x368] sm:$0xff]
  %v191 = vld [vmem:[%s1 + $0x370] sm:$0xff]
  %v192 = vld [vmem:[%s1 + $0x378] sm:$0xff]
  %v193 = vld [vmem:[%s1 + $0x380] sm:$0xff]
  %v194 = vld [vmem:[%s1 + $0x388] sm:$0xff]
  %v195 = vld [vmem:[%s1 + $0x390] sm:$0xff]
  %v196 = vld [vmem:[%s1 + $0x398] sm:$0xff]
  %v197 = vld [vmem:[%s1 + $0x3a0] sm:$0xff]
  %v198 = vld [vmem:[%s1 + $0x3a8] sm:$0xff]
  %v199 = vld [vmem:[%s1 + $0x3b0] sm:$0xff]
  %v200 = vld [vmem:[%s1 + $0x3b8] sm:$0xff]
  %v201 = vld [vmem:[%s1 + $0x3c0] sm:$0xff]
  %v202 = vld [vmem:[%s1 + $0x3c8] sm:$0xff]
  %v203 = vld [vmem:[%s1 + $0x3d0] sm:$0xff]
  %v204 = vld [vmem:[%s1 + $0x3d8] sm:$0xff]
  %v205 = vld [vmem:[%s1 + $0x3e0] sm:$0xff]
  %v206 = vld [vmem:[%s1 + $0x3e8] sm:$0xff]
  %v207 = vld [vmem:[%s1 + $0x3f0] sm:$0xff]
  %v208 = vld [vmem:[%s1 + $0x3f8] sm:$0xff]
  %v209 = vld [vmem:[%s1 + $0x400] sm:$0xff]
  %v210 = vld [vmem:[%s1 + $0x408] sm:$0xff]
  %v211 = vld [vmem:[%s1 + $0x410] sm:$0xff]
  %v212 = vld [vmem:[%s1 + $0x418] sm:$0xff]
  %v213 = vld [vmem:[%s1 + $0x420] sm:$0xff]
  %v214 = vld [vmem:[%s1 + $0x428] sm:$0xff]
  %v215 = vld [vmem:[%s1 + $0x430] sm:$0xff]
  %v216 = vld [vmem:[%s1 + $0x438] sm:$0xff]
  %v217 = vld [vmem:[%s1 + $0x440] sm:$0xff]
  %v218 = vld [vmem:[%s1 + $0x448] sm:$0xff]
  %v219 = vld [vmem:[%s1 + $0x450] sm:$0xff]
  %v220 = vld [vmem:[%s1 + $0x458] sm:$0xff]
  %v221 = vld [vmem:[%s1 + $0x460] sm:$0xff]
  %v222 = vld [vmem:[%s1 + $0x468] sm:$0xff]
  %v223 = vld [vmem:[%s1 + $0x470] sm:$0xff]
  %v224 = vld [vmem:[%s1 + $0x478] sm:$0xff]
  %v225 = vld [vmem:[%s1 + $0x480] sm:$0xff]
  %v226 = vld [vmem:[%s1 + $0x488] sm:$0xff]
  %v227 = vld [vmem:[%s1 + $0x490] sm:$0xff]
  %v228 = vld [vmem:[%s1 + $0x498] sm:$0xff]
  %v229 = vld [vmem:[%s1 + $0x4a0] sm:$0xff]
  %v230 = vld [vmem:[%s1 + $0x4a8] sm:$0xff]
  %v231 = vld [vmem:[%s1 + $0x4b0] sm:$0xff]
  %v232 = vld [vmem:[%s1 + $0x4b8] sm:$0xff]
  %v233 = vld [vmem:[%s1 + $0x4c0] sm:$0xff]
  %v234 = vld [vmem:[%s1 + $0x4c8] sm:$0xff]
  %v235 = vld [vmem:[%s1 + $0x4d0] sm:$0xff]
  %v236 = vld [vmem:[%s1 + $0x4d8] sm:$0xff]
  %v237 = vld [vmem:[%s1 + $0x4e0] sm:$0xff]
  %v238 = vld [vmem:[%s1 + $0x4e8] sm:$0xff]
  %v239 = vld [vmem:[%s1 + $0x4f0] sm:$0xff]
  %v240 = vld [vmem:[%s1 + $0x4f8] sm:$0xff]
  %v241 = vld [vmem:[%s1 + $0x500] sm:$0xff]
  %v242 = vld [vmem:[%s1 + $0x508] sm:$0xff]
  %v243 = vld [vmem:[%s1 + $0x510] sm:$0xff]
  %v244 = vld [vmem:[%s1 + $0x518] sm:$0xff]
  %v245 = vld [vmem:[%s1 + $0x520] sm:$0xff]
  %v246 = vld [vmem:[%s1 + $0x528] sm:$0xff]
  %v247 = vld [vmem:[%s1 + $0x530] sm:$0xff]
  %v248 = vld [vmem:[%s1 + $0x538] sm:$0xff]
  %v249 = vld [vmem:[%s1 + $0x540] sm:$0xff]
  %v250 = vld [vmem:[%s1 + $0x548] sm:$0xff]
  %v251 = vld [vmem:[%s1 + $0x550] sm:$0xff]
  %v252 = vld [vmem:[%s1 + $0x558] sm:$0xff]
  %v253 = vld [vmem:[%s1 + $0x560] sm:$0xff]
  %v254 = vld [vmem:[%s1 + $0x568] sm:$0xff]
  %v255 = vld [vmem:[%s1 + $0x570] sm:$0xff]
  %v256 = vld [vmem:[%s1 + $0x578] sm:$0xff]
  %v257 = vld [vmem:[%s1 + $0x580] sm:$0xff]
  %v258 = vld [vmem:[%s1 + $0x588] sm:$0xff]
  %v259 = vld [vmem:[%s1 + $0x590] sm:$0xff]
  %v260 = vld [vmem:[%s1 + $0x598] sm:$0xff]
  %v261 = vld [vmem:[%s1 + $0x5a0] sm:$0xff]
  %v262 = vld [vmem:[%s1 + $0x5a8] sm:$0xff]
  %v263 = vld [vmem:[%s1 + $0x5b0] sm:$0xff]
  %v264 = vld [vmem:[%s1 + $0x5b8] sm:$0xff]
  %v265 = vld [vmem:[%s1 + $0x5c0] sm:$0xff]
  %v266 = vld [vmem:[%s1 + $0x5c8] sm:$0xff]
  %v267 = vld [vmem:[%s1 + $0x5d0] sm:$0xff]
  %v268 = vld [vmem:[%s1 + $0x5d8] sm:$0xff]
  %v269 = vld [vmem:[%s1 + $0x5e0] sm:$0xff]
  %v270 = vld [vmem:[%s1 + $0x5e8] sm:$0xff]
  %v271 = vld [vmem:[%s1 + $0x5f0] sm:$0xff]
  %v272 = vld [vmem:[%s1 + $0x5f8] sm:$0xff]
  %v273 = vld [vmem:[%s1 + $0x600] sm:$0xff]
  %v274 = vld [vmem:[%s1 + $0x608] sm:$0xff]
  %v275 = vld [vmem:[%s1 + $0x610] sm:$0xff]
  %v276 = vld [vmem:[%s1 + $0x618] sm:$0xff]
  %v277 = vld [vmem:[%s1 + $0x620] sm:$0xff]
  %v278 = vld [vmem:[%s1 + $0x628] sm:$0xff]
  %v279 = vld [vmem:[%s1 + $0x630] sm:$0xff]
  %v280 = vld [vmem:[%s1 + $0x638] sm:$0xff]
  %v281 = vld [vmem:[%s1 + $0x640] sm:$0xff]
  %v282 = vld [vmem:[%s1 + $0x648] sm:$0xff]
  %v283 = vld [vmem:[%s1 + $0x650] sm:$0xff]
  %v284 = vld [vmem:[%s1 + $0x658] sm:$0xff]
  %v285 = vld [vmem:[%s1 + $0x660] sm:$0xff]
  %v286 = vld [vmem:[%s1 + $0x668] sm:$0xff]
  %v287 = vld [vmem:[%s1 + $0x670] sm:$0xff]
  %v288 = vld [vmem:[%s1 + $0x678] sm:$0xff]
  %v289 = vld [vmem:[%s1 + $0x680] sm:$0xff]
  %v290 = vld [vmem:[%s1 + $0x688] sm:$0xff]
  %v291 = vld [vmem:[%s1 + $0x690] sm:$0xff]
  %v292 = vld [vmem:[%s1 + $0x698] sm:$0xff]
  %v293 = vld [vmem:[%s1 + $0x6a0] sm:$0xff]
  %v294 = vld [vmem:[%s1 + $0x6a8] sm:$0xff]
  %v295 = vld [vmem:[%s1 + $0x6b0] sm:$0xff]
  %v296 = vld [vmem:[%s1 + $0x6b8] sm:$0xff]
  %v297 = vld [vmem:[%s1 + $0x6c0] sm:$0xff]
  %v298 = vld [vmem:[%s1 + $0x6c8] sm:$0xff]
  %v299 = vld [vmem:[%s1 + $0x6d0] sm:$0xff]
  %v300 = vld [vmem:[%s1 + $0x6d8] sm:$0xff]
  %v301 = vld [vmem:[%s1 + $0x6e0] sm:$0xff]
  %v302 = vld [vmem:[%s1 + $0x6e8] sm:$0xff]
  %v303 = vld [vmem:[%s1 + $0x6f0] sm:$0xff]
  %v304 = vld [vmem:[%s1 + $0x6f8] sm:$0xff]
  %v305 = vld [vmem:[%s1 + $0x700] sm:$0xff]
  %v306 = vld [vmem:[%s1 + $0x708] sm:$0xff]
  %v307 = vld [vmem:[%s1 + $0x710] sm:$0xff]
  %v308 = vld [vmem:[%s1 + $0x718] sm:$0xff]
  %v309 = vld [vmem:[%s1 + $0x720] sm:$0xff]
  %v310 = vld [vmem:[%s1 + $0x728] sm:$0xff]
  %v311 = vld [vmem:[%s1 + $0x730] sm:$0xff]
  %v312 = vld [vmem:[%s1 + $0x738] sm:$0xff]
  %v313 = vld [vmem:[%s1 + $0x740] sm:$0xff]
  %v314 = vld [vmem:[%s1 + $0x748] sm:$0xff]
  %v315 = vld [vmem:[%s1 + $0x750] sm:$0xff]
  %v316 = vld [vmem:[%s1 + $0x758] sm:$0xff]
  %v317 = vld [vmem:[%s1 + $0x760] sm:$0xff]
  %v318 = vld [vmem:[%s1 + $0x768] sm:$0xff]
  %v319 = vld [vmem:[%s1 + $0x770] sm:$0xff]
  %v320 = vld [vmem:[%s1 + $0x778] sm:$0xff]
  %v321 = vld [vmem:[%s1 + $0x780] sm:$0xff]
  %v322 = vld [vmem:[%s1 + $0x788] sm:$0xff]
  %v323 = vld [vmem:[%s1 + $0x790] sm:$0xff]
  %v324 = vld [vmem:[%s1 + $0x798] sm:$0xff]
  %v325 = vld [vmem:[%s1 + $0x7a0] sm:$0xff]
  %v326 = vld [vmem:[%s1 + $0x7a8] sm:$0xff]
  %v327 = vld [vmem:[%s1 + $0x7b0] sm:$0xff]
  %v328 = vld [vmem:[%s1 + $0x7b8] sm:$0xff]
  %v329 = vld [vmem:[%s1 + $0x7c0] sm:$0xff]
  %v330 = vld [vmem:[%s1 + $0x7c8] sm:$0xff]
  %v331 = vld [vmem:[%s1 + $0x7d0] sm:$0xff]
  %v332 = vld [vmem:[%s1 + $0x7d8] sm:$0xff]
  %v333 = vld [vmem:[%s1 + $0x7e0] sm:$0xff]
  %v334 = vld [vmem:[%s1 + $0x7e8] sm:$0xff]
  %v335 = vld [vmem:[%s1 + $0x7f0] sm:$0xff]
  %v336 = vld [vmem:[%s1 + $0x7f8] sm:$0xff]
  %v337 = vld [vmem:[%s2] sm:$0xf]
  %v339 = vlaneseq
  %v340 = vshrl.u32 %v339, 7
  %v341 = vsub.s32 0, %v340
  %v342 = vrot.slane %v337, %v341
  %v343 = vlaneseq
  %v344 = vshrl.u32 %v343, 7
  %v345 = vsub.s32 1, %v344
  %v346 = vrot.slane %v337, %v345
  %v347 = vlaneseq
  %v348 = vshrl.u32 %v347, 7
  %v349 = vsub.s32 2, %v348
  %v350 = vrot.slane %v337, %v349
  %v351 = vlaneseq
  %v352 = vshrl.u32 %v351, 7
  %v353 = vsub.s32 3, %v352
  %v354 = vrot.slane %v337, %v353
  %v615 = vunpack.c.l.b16 %v81
  %v616 = vunpack.c.h.b16 %v81
  %v617 = vunpack.c.l.b16 %v82
  %v618 = vunpack.c.h.b16 %v82
  %v619 = vunpack.c.l.b16 %v83
  %v620 = vunpack.c.h.b16 %v83
  %v621 = vunpack.c.l.b16 %v84
  %v622 = vunpack.c.h.b16 %v84
  %v623 = vunpack.c.l.b16 %v85
  %v624 = vunpack.c.h.b16 %v85
  %v625 = vunpack.c.l.b16 %v86
  %v626 = vunpack.c.h.b16 %v86
  %v627 = vunpack.c.l.b16 %v87
  %v628 = vunpack.c.h.b16 %v87
  %v629 = vunpack.c.l.b16 %v88
  %v630 = vunpack.c.h.b16 %v88
  %v631 = vunpack.c.l.b16 %v89
  %v632 = vunpack.c.h.b16 %v89
  %v633 = vunpack.c.l.b16 %v90
  %v634 = vunpack.c.h.b16 %v90
  %v635 = vunpack.c.l.b16 %v91
  %v636 = vunpack.c.h.b16 %v91
  %v637 = vunpack.c.l.b16 %v92
  %v638 = vunpack.c.h.b16 %v92
  %v639 = vunpack.c.l.b16 %v93
  %v640 = vunpack.c.h.b16 %v93
  %v641 = vunpack.c.l.b16 %v94
  %v642 = vunpack.c.h.b16 %v94
  %v643 = vunpack.c.l.b16 %v95
  %v644 = vunpack.c.h.b16 %v95
  %v645 = vunpack.c.l.b16 %v96
  %v646 = vunpack.c.h.b16 %v96
  %v647 = vunpack.c.l.b16 %v97
  %v648 = vunpack.c.h.b16 %v97
  %v649 = vunpack.c.l.b16 %v98
  %v650 = vunpack.c.h.b16 %v98
  %v651 = vunpack.c.l.b16 %v99
  %v652 = vunpack.c.h.b16 %v99
  %v653 = vunpack.c.l.b16 %v100
  %v654 = vunpack.c.h.b16 %v100
  %v655 = vunpack.c.l.b16 %v101
  %v656 = vunpack.c.h.b16 %v101
  %v657 = vunpack.c.l.b16 %v102
  %v658 = vunpack.c.h.b16 %v102
  %v659 = vunpack.c.l.b16 %v103
  %v660 = vunpack.c.h.b16 %v103
  %v661 = vunpack.c.l.b16 %v104
  %v662 = vunpack.c.h.b16 %v104
  %v663 = vunpack.c.l.b16 %v105
  %v664 = vunpack.c.h.b16 %v105
  %v665 = vunpack.c.l.b16 %v106
  %v666 = vunpack.c.h.b16 %v106
  %v667 = vunpack.c.l.b16 %v107
  %v668 = vunpack.c.h.b16 %v107
  %v669 = vunpack.c.l.b16 %v108
  %v670 = vunpack.c.h.b16 %v108
  %v671 = vunpack.c.l.b16 %v109
  %v672 = vunpack.c.h.b16 %v109
  %v673 = vunpack.c.l.b16 %v110
  %v674 = vunpack.c.h.b16 %v110
  %v675 = vunpack.c.l.b16 %v111
  %v676 = vunpack.c.h.b16 %v111
  %v677 = vunpack.c.l.b16 %v112
  %v678 = vunpack.c.h.b16 %v112
  %v679 = vunpack.c.l.b16 %v113
  %v680 = vunpack.c.h.b16 %v113
  %v681 = vunpack.c.l.b16 %v114
  %v682 = vunpack.c.h.b16 %v114
  %v683 = vunpack.c.l.b16 %v115
  %v684 = vunpack.c.h.b16 %v115
  %v685 = vunpack.c.l.b16 %v116
  %v686 = vunpack.c.h.b16 %v116
  %v687 = vunpack.c.l.b16 %v117
  %v688 = vunpack.c.h.b16 %v117
  %v689 = vunpack.c.l.b16 %v118
  %v690 = vunpack.c.h.b16 %v118
  %v691 = vunpack.c.l.b16 %v119
  %v692 = vunpack.c.h.b16 %v119
  %v693 = vunpack.c.l.b16 %v120
  %v694 = vunpack.c.h.b16 %v120
  %v695 = vunpack.c.l.b16 %v121
  %v696 = vunpack.c.h.b16 %v121
  %v697 = vunpack.c.l.b16 %v122
  %v698 = vunpack.c.h.b16 %v122
  %v699 = vunpack.c.l.b16 %v123
  %v700 = vunpack.c.h.b16 %v123
  %v701 = vunpack.c.l.b16 %v124
  %v702 = vunpack.c.h.b16 %v124
  %v703 = vunpack.c.l.b16 %v125
  %v704 = vunpack.c.h.b16 %v125
  %v705 = vunpack.c.l.b16 %v126
  %v706 = vunpack.c.h.b16 %v126
  %v707 = vunpack.c.l.b16 %v127
  %v708 = vunpack.c.h.b16 %v127
  %v709 = vunpack.c.l.b16 %v128
  %v710 = vunpack.c.h.b16 %v128
  %v711 = vunpack.c.l.b16 %v129
  %v712 = vunpack.c.h.b16 %v129
  %v713 = vunpack.c.l.b16 %v130
  %v714 = vunpack.c.h.b16 %v130
  %v715 = vunpack.c.l.b16 %v131
  %v716 = vunpack.c.h.b16 %v131
  %v717 = vunpack.c.l.b16 %v132
  %v718 = vunpack.c.h.b16 %v132
  %v719 = vunpack.c.l.b16 %v133
  %v720 = vunpack.c.h.b16 %v133
  %v721 = vunpack.c.l.b16 %v134
  %v722 = vunpack.c.h.b16 %v134
  %v723 = vunpack.c.l.b16 %v135
  %v724 = vunpack.c.h.b16 %v135
  %v725 = vunpack.c.l.b16 %v136
  %v726 = vunpack.c.h.b16 %v136
  %v727 = vunpack.c.l.b16 %v137
  %v728 = vunpack.c.h.b16 %v137
  %v729 = vunpack.c.l.b16 %v138
  %v730 = vunpack.c.h.b16 %v138
  %v731 = vunpack.c.l.b16 %v139
  %v732 = vunpack.c.h.b16 %v139
  %v733 = vunpack.c.l.b16 %v140
  %v734 = vunpack.c.h.b16 %v140
  %v735 = vunpack.c.l.b16 %v141
  %v736 = vunpack.c.h.b16 %v141
  %v737 = vunpack.c.l.b16 %v142
  %v738 = vunpack.c.h.b16 %v142
  %v739 = vunpack.c.l.b16 %v143
  %v740 = vunpack.c.h.b16 %v143
  %v741 = vunpack.c.l.b16 %v144
  %v742 = vunpack.c.h.b16 %v144
  %v743 = vunpack.c.l.b16 %v145
  %v744 = vunpack.c.h.b16 %v145
  %v745 = vunpack.c.l.b16 %v146
  %v746 = vunpack.c.h.b16 %v146
  %v747 = vunpack.c.l.b16 %v147
  %v748 = vunpack.c.h.b16 %v147
  %v749 = vunpack.c.l.b16 %v148
  %v750 = vunpack.c.h.b16 %v148
  %v751 = vunpack.c.l.b16 %v149
  %v752 = vunpack.c.h.b16 %v149
  %v753 = vunpack.c.l.b16 %v150
  %v754 = vunpack.c.h.b16 %v150
  %v755 = vunpack.c.l.b16 %v151
  %v756 = vunpack.c.h.b16 %v151
  %v757 = vunpack.c.l.b16 %v152
  %v758 = vunpack.c.h.b16 %v152
  %v759 = vunpack.c.l.b16 %v153
  %v760 = vunpack.c.h.b16 %v153
  %v761 = vunpack.c.l.b16 %v154
  %v762 = vunpack.c.h.b16 %v154
  %v763 = vunpack.c.l.b16 %v155
  %v764 = vunpack.c.h.b16 %v155
  %v765 = vunpack.c.l.b16 %v156
  %v766 = vunpack.c.h.b16 %v156
  %v767 = vunpack.c.l.b16 %v157
  %v768 = vunpack.c.h.b16 %v157
  %v769 = vunpack.c.l.b16 %v158
  %v770 = vunpack.c.h.b16 %v158
  %v771 = vunpack.c.l.b16 %v159
  %v772 = vunpack.c.h.b16 %v159
  %v773 = vunpack.c.l.b16 %v160
  %v774 = vunpack.c.h.b16 %v160
  %v775 = vunpack.c.l.b16 %v161
  %v776 = vunpack.c.h.b16 %v161
  %v777 = vunpack.c.l.b16 %v162
  %v778 = vunpack.c.h.b16 %v162
  %v779 = vunpack.c.l.b16 %v163
  %v780 = vunpack.c.h.b16 %v163
  %v781 = vunpack.c.l.b16 %v164
  %v782 = vunpack.c.h.b16 %v164
  %v783 = vunpack.c.l.b16 %v165
  %v784 = vunpack.c.h.b16 %v165
  %v785 = vunpack.c.l.b16 %v166
  %v786 = vunpack.c.h.b16 %v166
  %v787 = vunpack.c.l.b16 %v167
  %v788 = vunpack.c.h.b16 %v167
  %v789 = vunpack.c.l.b16 %v168
  %v790 = vunpack.c.h.b16 %v168
  %v791 = vunpack.c.l.b16 %v169
  %v792 = vunpack.c.h.b16 %v169
  %v793 = vunpack.c.l.b16 %v170
  %v794 = vunpack.c.h.b16 %v170
  %v795 = vunpack.c.l.b16 %v171
  %v796 = vunpack.c.h.b16 %v171
  %v797 = vunpack.c.l.b16 %v172
  %v798 = vunpack.c.h.b16 %v172
  %v799 = vunpack.c.l.b16 %v173
  %v800 = vunpack.c.h.b16 %v173
  %v801 = vunpack.c.l.b16 %v174
  %v802 = vunpack.c.h.b16 %v174
  %v803 = vunpack.c.l.b16 %v175
  %v804 = vunpack.c.h.b16 %v175
  %v805 = vunpack.c.l.b16 %v176
  %v806 = vunpack.c.h.b16 %v176
  %v807 = vunpack.c.l.b16 %v177
  %v808 = vunpack.c.h.b16 %v177
  %v809 = vunpack.c.l.b16 %v178
  %v810 = vunpack.c.h.b16 %v178
  %v811 = vunpack.c.l.b16 %v179
  %v812 = vunpack.c.h.b16 %v179
  %v813 = vunpack.c.l.b16 %v180
  %v814 = vunpack.c.h.b16 %v180
  %v815 = vunpack.c.l.b16 %v181
  %v816 = vunpack.c.h.b16 %v181
  %v817 = vunpack.c.l.b16 %v182
  %v818 = vunpack.c.h.b16 %v182
  %v819 = vunpack.c.l.b16 %v183
  %v820 = vunpack.c.h.b16 %v183
  %v821 = vunpack.c.l.b16 %v184
  %v822 = vunpack.c.h.b16 %v184
  %v823 = vunpack.c.l.b16 %v185
  %v824 = vunpack.c.h.b16 %v185
  %v825 = vunpack.c.l.b16 %v186
  %v826 = vunpack.c.h.b16 %v186
  %v827 = vunpack.c.l.b16 %v187
  %v828 = vunpack.c.h.b16 %v187
  %v829 = vunpack.c.l.b16 %v188
  %v830 = vunpack.c.h.b16 %v188
  %v831 = vunpack.c.l.b16 %v189
  %v832 = vunpack.c.h.b16 %v189
  %v833 = vunpack.c.l.b16 %v190
  %v834 = vunpack.c.h.b16 %v190
  %v835 = vunpack.c.l.b16 %v191
  %v836 = vunpack.c.h.b16 %v191
  %v837 = vunpack.c.l.b16 %v192
  %v838 = vunpack.c.h.b16 %v192
  %v839 = vunpack.c.l.b16 %v193
  %v840 = vunpack.c.h.b16 %v193
  %v841 = vunpack.c.l.b16 %v194
  %v842 = vunpack.c.h.b16 %v194
  %v843 = vunpack.c.l.b16 %v195
  %v844 = vunpack.c.h.b16 %v195
  %v845 = vunpack.c.l.b16 %v196
  %v846 = vunpack.c.h.b16 %v196
  %v847 = vunpack.c.l.b16 %v197
  %v848 = vunpack.c.h.b16 %v197
  %v849 = vunpack.c.l.b16 %v198
  %v850 = vunpack.c.h.b16 %v198
  %v851 = vunpack.c.l.b16 %v199
  %v852 = vunpack.c.h.b16 %v199
  %v853 = vunpack.c.l.b16 %v200
  %v854 = vunpack.c.h.b16 %v200
  %v855 = vunpack.c.l.b16 %v201
  %v856 = vunpack.c.h.b16 %v201
  %v857 = vunpack.c.l.b16 %v202
  %v858 = vunpack.c.h.b16 %v202
  %v859 = vunpack.c.l.b16 %v203
  %v860 = vunpack.c.h.b16 %v203
  %v861 = vunpack.c.l.b16 %v204
  %v862 = vunpack.c.h.b16 %v204
  %v863 = vunpack.c.l.b16 %v205
  %v864 = vunpack.c.h.b16 %v205
  %v865 = vunpack.c.l.b16 %v206
  %v866 = vunpack.c.h.b16 %v206
  %v867 = vunpack.c.l.b16 %v207
  %v868 = vunpack.c.h.b16 %v207
  %v869 = vunpack.c.l.b16 %v208
  %v870 = vunpack.c.h.b16 %v208
  %v871 = vunpack.c.l.b16 %v209
  %v872 = vunpack.c.h.b16 %v209
  %v873 = vunpack.c.l.b16 %v210
  %v874 = vunpack.c.h.b16 %v210
  %v875 = vunpack.c.l.b16 %v211
  %v876 = vunpack.c.h.b16 %v211
  %v877 = vunpack.c.l.b16 %v212
  %v878 = vunpack.c.h.b16 %v212
  %v879 = vunpack.c.l.b16 %v213
  %v880 = vunpack.c.h.b16 %v213
  %v881 = vunpack.c.l.b16 %v214
  %v882 = vunpack.c.h.b16 %v214
  %v883 = vunpack.c.l.b16 %v215
  %v884 = vunpack.c.h.b16 %v215
  %v885 = vunpack.c.l.b16 %v216
  %v886 = vunpack.c.h.b16 %v216
  %v887 = vunpack.c.l.b16 %v217
  %v888 = vunpack.c.h.b16 %v217
  %v889 = vunpack.c.l.b16 %v218
  %v890 = vunpack.c.h.b16 %v218
  %v891 = vunpack.c.l.b16 %v219
  %v892 = vunpack.c.h.b16 %v219
  %v893 = vunpack.c.l.b16 %v220
  %v894 = vunpack.c.h.b16 %v220
  %v895 = vunpack.c.l.b16 %v221
  %v896 = vunpack.c.h.b16 %v221
  %v897 = vunpack.c.l.b16 %v222
  %v898 = vunpack.c.h.b16 %v222
  %v899 = vunpack.c.l.b16 %v223
  %v900 = vunpack.c.h.b16 %v223
  %v901 = vunpack.c.l.b16 %v224
  %v902 = vunpack.c.h.b16 %v224
  %v903 = vunpack.c.l.b16 %v225
  %v904 = vunpack.c.h.b16 %v225
  %v905 = vunpack.c.l.b16 %v226
  %v906 = vunpack.c.h.b16 %v226
  %v907 = vunpack.c.l.b16 %v227
  %v908 = vunpack.c.h.b16 %v227
  %v909 = vunpack.c.l.b16 %v228
  %v910 = vunpack.c.h.b16 %v228
  %v911 = vunpack.c.l.b16 %v229
  %v912 = vunpack.c.h.b16 %v229
  %v913 = vunpack.c.l.b16 %v230
  %v914 = vunpack.c.h.b16 %v230
  %v915 = vunpack.c.l.b16 %v231
  %v916 = vunpack.c.h.b16 %v231
  %v917 = vunpack.c.l.b16 %v232
  %v918 = vunpack.c.h.b16 %v232
  %v919 = vunpack.c.l.b16 %v233
  %v920 = vunpack.c.h.b16 %v233
  %v921 = vunpack.c.l.b16 %v234
  %v922 = vunpack.c.h.b16 %v234
  %v923 = vunpack.c.l.b16 %v235
  %v924 = vunpack.c.h.b16 %v235
  %v925 = vunpack.c.l.b16 %v236
  %v926 = vunpack.c.h.b16 %v236
  %v927 = vunpack.c.l.b16 %v237
  %v928 = vunpack.c.h.b16 %v237
  %v929 = vunpack.c.l.b16 %v238
  %v930 = vunpack.c.h.b16 %v238
  %v931 = vunpack.c.l.b16 %v239
  %v932 = vunpack.c.h.b16 %v239
  %v933 = vunpack.c.l.b16 %v240
  %v934 = vunpack.c.h.b16 %v240
  %v935 = vunpack.c.l.b16 %v241
  %v936 = vunpack.c.h.b16 %v241
  %v937 = vunpack.c.l.b16 %v242
  %v938 = vunpack.c.h.b16 %v242
  %v939 = vunpack.c.l.b16 %v243
  %v940 = vunpack.c.h.b16 %v243
  %v941 = vunpack.c.l.b16 %v244
  %v942 = vunpack.c.h.b16 %v244
  %v943 = vunpack.c.l.b16 %v245
  %v944 = vunpack.c.h.b16 %v245
  %v945 = vunpack.c.l.b16 %v246
  %v946 = vunpack.c.h.b16 %v246
  %v947 = vunpack.c.l.b16 %v247
  %v948 = vunpack.c.h.b16 %v247
  %v949 = vunpack.c.l.b16 %v248
  %v950 = vunpack.c.h.b16 %v248
  %v951 = vunpack.c.l.b16 %v249
  %v952 = vunpack.c.h.b16 %v249
  %v953 = vunpack.c.l.b16 %v250
  %v954 = vunpack.c.h.b16 %v250
  %v955 = vunpack.c.l.b16 %v251
  %v956 = vunpack.c.h.b16 %v251
  %v957 = vunpack.c.l.b16 %v252
  %v958 = vunpack.c.h.b16 %v252
  %v959 = vunpack.c.l.b16 %v253
  %v960 = vunpack.c.h.b16 %v253
  %v961 = vunpack.c.l.b16 %v254
  %v962 = vunpack.c.h.b16 %v254
  %v963 = vunpack.c.l.b16 %v255
  %v964 = vunpack.c.h.b16 %v255
  %v965 = vunpack.c.l.b16 %v256
  %v966 = vunpack.c.h.b16 %v256
  %v967 = vunpack.c.l.b16 %v257
  %v968 = vunpack.c.h.b16 %v257
  %v969 = vunpack.c.l.b16 %v258
  %v970 = vunpack.c.h.b16 %v258
  %v971 = vunpack.c.l.b16 %v259
  %v972 = vunpack.c.h.b16 %v259
  %v973 = vunpack.c.l.b16 %v260
  %v974 = vunpack.c.h.b16 %v260
  %v975 = vunpack.c.l.b16 %v261
  %v976 = vunpack.c.h.b16 %v261
  %v977 = vunpack.c.l.b16 %v262
  %v978 = vunpack.c.h.b16 %v262
  %v979 = vunpack.c.l.b16 %v263
  %v980 = vunpack.c.h.b16 %v263
  %v981 = vunpack.c.l.b16 %v264
  %v982 = vunpack.c.h.b16 %v264
  %v983 = vunpack.c.l.b16 %v265
  %v984 = vunpack.c.h.b16 %v265
  %v985 = vunpack.c.l.b16 %v266
  %v986 = vunpack.c.h.b16 %v266
  %v987 = vunpack.c.l.b16 %v267
  %v988 = vunpack.c.h.b16 %v267
  %v989 = vunpack.c.l.b16 %v268
  %v990 = vunpack.c.h.b16 %v268
  %v991 = vunpack.c.l.b16 %v269
  %v992 = vunpack.c.h.b16 %v269
  %v993 = vunpack.c.l.b16 %v270
  %v994 = vunpack.c.h.b16 %v270
  %v995 = vunpack.c.l.b16 %v271
  %v996 = vunpack.c.h.b16 %v271
  %v997 = vunpack.c.l.b16 %v272
  %v998 = vunpack.c.h.b16 %v272
  %v999 = vunpack.c.l.b16 %v273
  %v1000 = vunpack.c.h.b16 %v273
  %v1001 = vunpack.c.l.b16 %v274
  %v1002 = vunpack.c.h.b16 %v274
  %v1003 = vunpack.c.l.b16 %v275
  %v1004 = vunpack.c.h.b16 %v275
  %v1005 = vunpack.c.l.b16 %v276
  %v1006 = vunpack.c.h.b16 %v276
  %v1007 = vunpack.c.l.b16 %v277
  %v1008 = vunpack.c.h.b16 %v277
  %v1009 = vunpack.c.l.b16 %v278
  %v1010 = vunpack.c.h.b16 %v278
  %v1011 = vunpack.c.l.b16 %v279
  %v1012 = vunpack.c.h.b16 %v279
  %v1013 = vunpack.c.l.b16 %v280
  %v1014 = vunpack.c.h.b16 %v280
  %v1015 = vunpack.c.l.b16 %v281
  %v1016 = vunpack.c.h.b16 %v281
  %v1017 = vunpack.c.l.b16 %v282
  %v1018 = vunpack.c.h.b16 %v282
  %v1019 = vunpack.c.l.b16 %v283
  %v1020 = vunpack.c.h.b16 %v283
  %v1021 = vunpack.c.l.b16 %v284
  %v1022 = vunpack.c.h.b16 %v284
  %v1023 = vunpack.c.l.b16 %v285
  %v1024 = vunpack.c.h.b16 %v285
  %v1025 = vunpack.c.l.b16 %v286
  %v1026 = vunpack.c.h.b16 %v286
  %v1027 = vunpack.c.l.b16 %v287
  %v1028 = vunpack.c.h.b16 %v287
  %v1029 = vunpack.c.l.b16 %v288
  %v1030 = vunpack.c.h.b16 %v288
  %v1031 = vunpack.c.l.b16 %v289
  %v1032 = vunpack.c.h.b16 %v289
  %v1033 = vunpack.c.l.b16 %v290
  %v1034 = vunpack.c.h.b16 %v290
  %v1035 = vunpack.c.l.b16 %v291
  %v1036 = vunpack.c.h.b16 %v291
  %v1037 = vunpack.c.l.b16 %v292
  %v1038 = vunpack.c.h.b16 %v292
  %v1039 = vunpack.c.l.b16 %v293
  %v1040 = vunpack.c.h.b16 %v293
  %v1041 = vunpack.c.l.b16 %v294
  %v1042 = vunpack.c.h.b16 %v294
  %v1043 = vunpack.c.l.b16 %v295
  %v1044 = vunpack.c.h.b16 %v295
  %v1045 = vunpack.c.l.b16 %v296
  %v1046 = vunpack.c.h.b16 %v296
  %v1047 = vunpack.c.l.b16 %v297
  %v1048 = vunpack.c.h.b16 %v297
  %v1049 = vunpack.c.l.b16 %v298
  %v1050 = vunpack.c.h.b16 %v298
  %v1051 = vunpack.c.l.b16 %v299
  %v1052 = vunpack.c.h.b16 %v299
  %v1053 = vunpack.c.l.b16 %v300
  %v1054 = vunpack.c.h.b16 %v300
  %v1055 = vunpack.c.l.b16 %v301
  %v1056 = vunpack.c.h.b16 %v301
  %v1057 = vunpack.c.l.b16 %v302
  %v1058 = vunpack.c.h.b16 %v302
  %v1059 = vunpack.c.l.b16 %v303
  %v1060 = vunpack.c.h.b16 %v303
  %v1061 = vunpack.c.l.b16 %v304
  %v1062 = vunpack.c.h.b16 %v304
  %v1063 = vunpack.c.l.b16 %v305
  %v1064 = vunpack.c.h.b16 %v305
  %v1065 = vunpack.c.l.b16 %v306
  %v1066 = vunpack.c.h.b16 %v306
  %v1067 = vunpack.c.l.b16 %v307
  %v1068 = vunpack.c.h.b16 %v307
  %v1069 = vunpack.c.l.b16 %v308
  %v1070 = vunpack.c.h.b16 %v308
  %v1071 = vunpack.c.l.b16 %v309
  %v1072 = vunpack.c.h.b16 %v309
  %v1073 = vunpack.c.l.b16 %v310
  %v1074 = vunpack.c.h.b16 %v310
  %v1075 = vunpack.c.l.b16 %v311
  %v1076 = vunpack.c.h.b16 %v311
  %v1077 = vunpack.c.l.b16 %v312
  %v1078 = vunpack.c.h.b16 %v312
  %v1079 = vunpack.c.l.b16 %v313
  %v1080 = vunpack.c.h.b16 %v313
  %v1081 = vunpack.c.l.b16 %v314
  %v1082 = vunpack.c.h.b16 %v314
  %v1083 = vunpack.c.l.b16 %v315
  %v1084 = vunpack.c.h.b16 %v315
  %v1085 = vunpack.c.l.b16 %v316
  %v1086 = vunpack.c.h.b16 %v316
  %v1087 = vunpack.c.l.b16 %v317
  %v1088 = vunpack.c.h.b16 %v317
  %v1089 = vunpack.c.l.b16 %v318
  %v1090 = vunpack.c.h.b16 %v318
  %v1091 = vunpack.c.l.b16 %v319
  %v1092 = vunpack.c.h.b16 %v319
  %v1093 = vunpack.c.l.b16 %v320
  %v1094 = vunpack.c.h.b16 %v320
  %v1095 = vunpack.c.l.b16 %v321
  %v1096 = vunpack.c.h.b16 %v321
  %v1097 = vunpack.c.l.b16 %v322
  %v1098 = vunpack.c.h.b16 %v322
  %v1099 = vunpack.c.l.b16 %v323
  %v1100 = vunpack.c.h.b16 %v323
  %v1101 = vunpack.c.l.b16 %v324
  %v1102 = vunpack.c.h.b16 %v324
  %v1103 = vunpack.c.l.b16 %v325
  %v1104 = vunpack.c.h.b16 %v325
  %v1105 = vunpack.c.l.b16 %v326
  %v1106 = vunpack.c.h.b16 %v326
  %v1107 = vunpack.c.l.b16 %v327
  %v1108 = vunpack.c.h.b16 %v327
  %v1109 = vunpack.c.l.b16 %v328
  %v1110 = vunpack.c.h.b16 %v328
  %v1111 = vunpack.c.l.b16 %v329
  %v1112 = vunpack.c.h.b16 %v329
  %v1113 = vunpack.c.l.b16 %v330
  %v1114 = vunpack.c.h.b16 %v330
  %v1115 = vunpack.c.l.b16 %v331
  %v1116 = vunpack.c.h.b16 %v331
  %v1117 = vunpack.c.l.b16 %v332
  %v1118 = vunpack.c.h.b16 %v332
  %v1119 = vunpack.c.l.b16 %v333
  %v1120 = vunpack.c.h.b16 %v333
  %v1121 = vunpack.c.l.b16 %v334
  %v1122 = vunpack.c.h.b16 %v334
  %v1123 = vunpack.c.l.b16 %v335
  %v1124 = vunpack.c.h.b16 %v335
  %v1125 = vunpack.c.l.b16 %v336
  %v1126 = vunpack.c.h.b16 %v336
  %v1127 = vpack.c.b16 %v619, %v615
  %v1128 = vpack.c.b16 %v620, %v616
  %v1129 = vpack.c.b16 %v621, %v617
  %v1130 = vpack.c.b16 %v622, %v618
  %v1131 = vpack.c.b16 %v627, %v623
  %v1132 = vpack.c.b16 %v628, %v624
  %v1133 = vpack.c.b16 %v629, %v625
  %v1134 = vpack.c.b16 %v630, %v626
  %v1135 = vpack.c.b16 %v635, %v631
  %v1136 = vpack.c.b16 %v636, %v632
  %v1137 = vpack.c.b16 %v637, %v633
  %v1138 = vpack.c.b16 %v638, %v634
  %v1139 = vpack.c.b16 %v643, %v639
  %v1140 = vpack.c.b16 %v644, %v640
  %v1141 = vpack.c.b16 %v645, %v641
  %v1142 = vpack.c.b16 %v646, %v642
  %v1143 = vpack.c.b16 %v651, %v647
  %v1144 = vpack.c.b16 %v652, %v648
  %v1145 = vpack.c.b16 %v653, %v649
  %v1146 = vpack.c.b16 %v654, %v650
  %v1147 = vpack.c.b16 %v659, %v655
  %v1148 = vpack.c.b16 %v660, %v656
  %v1149 = vpack.c.b16 %v661, %v657
  %v1150 = vpack.c.b16 %v662, %v658
  %v1151 = vpack.c.b16 %v667, %v663
  %v1152 = vpack.c.b16 %v668, %v664
  %v1153 = vpack.c.b16 %v669, %v665
  %v1154 = vpack.c.b16 %v670, %v666
  %v1155 = vpack.c.b16 %v675, %v671
  %v1156 = vpack.c.b16 %v676, %v672
  %v1157 = vpack.c.b16 %v677, %v673
  %v1158 = vpack.c.b16 %v678, %v674
  %v1159 = vpack.c.b16 %v683, %v679
  %v1160 = vpack.c.b16 %v684, %v680
  %v1161 = vpack.c.b16 %v685, %v681
  %v1162 = vpack.c.b16 %v686, %v682
  %v1163 = vpack.c.b16 %v691, %v687
  %v1164 = vpack.c.b16 %v692, %v688
  %v1165 = vpack.c.b16 %v693, %v689
  %v1166 = vpack.c.b16 %v694, %v690
  %v1167 = vpack.c.b16 %v699, %v695
  %v1168 = vpack.c.b16 %v700, %v696
  %v1169 = vpack.c.b16 %v701, %v697
  %v1170 = vpack.c.b16 %v702, %v698
  %v1171 = vpack.c.b16 %v707, %v703
  %v1172 = vpack.c.b16 %v708, %v704
  %v1173 = vpack.c.b16 %v709, %v705
  %v1174 = vpack.c.b16 %v710, %v706
  %v1175 = vpack.c.b16 %v715, %v711
  %v1176 = vpack.c.b16 %v716, %v712
  %v1177 = vpack.c.b16 %v717, %v713
  %v1178 = vpack.c.b16 %v718, %v714
  %v1179 = vpack.c.b16 %v723, %v719
  %v1180 = vpack.c.b16 %v724, %v720
  %v1181 = vpack.c.b16 %v725, %v721
  %v1182 = vpack.c.b16 %v726, %v722
  %v1183 = vpack.c.b16 %v731, %v727
  %v1184 = vpack.c.b16 %v732, %v728
  %v1185 = vpack.c.b16 %v733, %v729
  %v1186 = vpack.c.b16 %v734, %v730
  %v1187 = vpack.c.b16 %v739, %v735
  %v1188 = vpack.c.b16 %v740, %v736
  %v1189 = vpack.c.b16 %v741, %v737
  %v1190 = vpack.c.b16 %v742, %v738
  %v1191 = vpack.c.b16 %v747, %v743
  %v1192 = vpack.c.b16 %v748, %v744
  %v1193 = vpack.c.b16 %v749, %v745
  %v1194 = vpack.c.b16 %v750, %v746
  %v1195 = vpack.c.b16 %v755, %v751
  %v1196 = vpack.c.b16 %v756, %v752
  %v1197 = vpack.c.b16 %v757, %v753
  %v1198 = vpack.c.b16 %v758, %v754
  %v1199 = vpack.c.b16 %v763, %v759
  %v1200 = vpack.c.b16 %v764, %v760
  %v1201 = vpack.c.b16 %v765, %v761
  %v1202 = vpack.c.b16 %v766, %v762
  %v1203 = vpack.c.b16 %v771, %v767
  %v1204 = vpack.c.b16 %v772, %v768
  %v1205 = vpack.c.b16 %v773, %v769
  %v1206 = vpack.c.b16 %v774, %v770
  %v1207 = vpack.c.b16 %v779, %v775
  %v1208 = vpack.c.b16 %v780, %v776
  %v1209 = vpack.c.b16 %v781, %v777
  %v1210 = vpack.c.b16 %v782, %v778
  %v1211 = vpack.c.b16 %v787, %v783
  %v1212 = vpack.c.b16 %v788, %v784
  %v1213 = vpack.c.b16 %v789, %v785
  %v1214 = vpack.c.b16 %v790, %v786
  %v1215 = vpack.c.b16 %v795, %v791
  %v1216 = vpack.c.b16 %v796, %v792
  %v1217 = vpack.c.b16 %v797, %v793
  %v1218 = vpack.c.b16 %v798, %v794
  %v1219 = vpack.c.b16 %v803, %v799
  %v1220 = vpack.c.b16 %v804, %v800
  %v1221 = vpack.c.b16 %v805, %v801
  %v1222 = vpack.c.b16 %v806, %v802
  %v1223 = vpack.c.b16 %v811, %v807
  %v1224 = vpack.c.b16 %v812, %v808
  %v1225 = vpack.c.b16 %v813, %v809
  %v1226 = vpack.c.b16 %v814, %v810
  %v1227 = vpack.c.b16 %v819, %v815
  %v1228 = vpack.c.b16 %v820, %v816
  %v1229 = vpack.c.b16 %v821, %v817
  %v1230 = vpack.c.b16 %v822, %v818
  %v1231 = vpack.c.b16 %v827, %v823
  %v1232 = vpack.c.b16 %v828, %v824
  %v1233 = vpack.c.b16 %v829, %v825
  %v1234 = vpack.c.b16 %v830, %v826
  %v1235 = vpack.c.b16 %v835, %v831
  %v1236 = vpack.c.b16 %v836, %v832
  %v1237 = vpack.c.b16 %v837, %v833
  %v1238 = vpack.c.b16 %v838, %v834
  %v1239 = vpack.c.b16 %v843, %v839
  %v1240 = vpack.c.b16 %v844, %v840
  %v1241 = vpack.c.b16 %v845, %v841
  %v1242 = vpack.c.b16 %v846, %v842
  %v1243 = vpack.c.b16 %v851, %v847
  %v1244 = vpack.c.b16 %v852, %v848
  %v1245 = vpack.c.b16 %v853, %v849
  %v1246 = vpack.c.b16 %v854, %v850
  %v1247 = vpack.c.b16 %v859, %v855
  %v1248 = vpack.c.b16 %v860, %v856
  %v1249 = vpack.c.b16 %v861, %v857
  %v1250 = vpack.c.b16 %v862, %v858
  %v1251 = vpack.c.b16 %v867, %v863
  %v1252 = vpack.c.b16 %v868, %v864
  %v1253 = vpack.c.b16 %v869, %v865
  %v1254 = vpack.c.b16 %v870, %v866
  %v1255 = vpack.c.b16 %v875, %v871
  %v1256 = vpack.c.b16 %v876, %v872
  %v1257 = vpack.c.b16 %v877, %v873
  %v1258 = vpack.c.b16 %v878, %v874
  %v1259 = vpack.c.b16 %v883, %v879
  %v1260 = vpack.c.b16 %v884, %v880
  %v1261 = vpack.c.b16 %v885, %v881
  %v1262 = vpack.c.b16 %v886, %v882
  %v1263 = vpack.c.b16 %v891, %v887
  %v1264 = vpack.c.b16 %v892, %v888
  %v1265 = vpack.c.b16 %v893, %v889
  %v1266 = vpack.c.b16 %v894, %v890
  %v1267 = vpack.c.b16 %v899, %v895
  %v1268 = vpack.c.b16 %v900, %v896
  %v1269 = vpack.c.b16 %v901, %v897
  %v1270 = vpack.c.b16 %v902, %v898
  %v1271 = vpack.c.b16 %v907, %v903
  %v1272 = vpack.c.b16 %v908, %v904
  %v1273 = vpack.c.b16 %v909, %v905
  %v1274 = vpack.c.b16 %v910, %v906
  %v1275 = vpack.c.b16 %v915, %v911
  %v1276 = vpack.c.b16 %v916, %v912
  %v1277 = vpack.c.b16 %v917, %v913
  %v1278 = vpack.c.b16 %v918, %v914
  %v1279 = vpack.c.b16 %v923, %v919
  %v1280 = vpack.c.b16 %v924, %v920
  %v1281 = vpack.c.b16 %v925, %v921
  %v1282 = vpack.c.b16 %v926, %v922
  %v1283 = vpack.c.b16 %v931, %v927
  %v1284 = vpack.c.b16 %v932, %v928
  %v1285 = vpack.c.b16 %v933, %v929
  %v1286 = vpack.c.b16 %v934, %v930
  %v1287 = vpack.c.b16 %v939, %v935
  %v1288 = vpack.c.b16 %v940, %v936
  %v1289 = vpack.c.b16 %v941, %v937
  %v1290 = vpack.c.b16 %v942, %v938
  %v1291 = vpack.c.b16 %v947, %v943
  %v1292 = vpack.c.b16 %v948, %v944
  %v1293 = vpack.c.b16 %v949, %v945
  %v1294 = vpack.c.b16 %v950, %v946
  %v1295 = vpack.c.b16 %v955, %v951
  %v1296 = vpack.c.b16 %v956, %v952
  %v1297 = vpack.c.b16 %v957, %v953
  %v1298 = vpack.c.b16 %v958, %v954
  %v1299 = vpack.c.b16 %v963, %v959
  %v1300 = vpack.c.b16 %v964, %v960
  %v1301 = vpack.c.b16 %v965, %v961
  %v1302 = vpack.c.b16 %v966, %v962
  %v1303 = vpack.c.b16 %v971, %v967
  %v1304 = vpack.c.b16 %v972, %v968
  %v1305 = vpack.c.b16 %v973, %v969
  %v1306 = vpack.c.b16 %v974, %v970
  %v1307 = vpack.c.b16 %v979, %v975
  %v1308 = vpack.c.b16 %v980, %v976
  %v1309 = vpack.c.b16 %v981, %v977
  %v1310 = vpack.c.b16 %v982, %v978
  %v1311 = vpack.c.b16 %v987, %v983
  %v1312 = vpack.c.b16 %v988, %v984
  %v1313 = vpack.c.b16 %v989, %v985
  %v1314 = vpack.c.b16 %v990, %v986
  %v1315 = vpack.c.b16 %v995, %v991
  %v1316 = vpack.c.b16 %v996, %v992
  %v1317 = vpack.c.b16 %v997, %v993
  %v1318 = vpack.c.b16 %v998, %v994
  %v1319 = vpack.c.b16 %v1003, %v999
  %v1320 = vpack.c.b16 %v1004, %v1000
  %v1321 = vpack.c.b16 %v1005, %v1001
  %v1322 = vpack.c.b16 %v1006, %v1002
  %v1323 = vpack.c.b16 %v1011, %v1007
  %v1324 = vpack.c.b16 %v1012, %v1008
  %v1325 = vpack.c.b16 %v1013, %v1009
  %v1326 = vpack.c.b16 %v1014, %v1010
  %v1327 = vpack.c.b16 %v1019, %v1015
  %v1328 = vpack.c.b16 %v1020, %v1016
  %v1329 = vpack.c.b16 %v1021, %v1017
  %v1330 = vpack.c.b16 %v1022, %v1018
  %v1331 = vpack.c.b16 %v1027, %v1023
  %v1332 = vpack.c.b16 %v1028, %v1024
  %v1333 = vpack.c.b16 %v1029, %v1025
  %v1334 = vpack.c.b16 %v1030, %v1026
  %v1335 = vpack.c.b16 %v1035, %v1031
  %v1336 = vpack.c.b16 %v1036, %v1032
  %v1337 = vpack.c.b16 %v1037, %v1033
  %v1338 = vpack.c.b16 %v1038, %v1034
  %v1339 = vpack.c.b16 %v1043, %v1039
  %v1340 = vpack.c.b16 %v1044, %v1040
  %v1341 = vpack.c.b16 %v1045, %v1041
  %v1342 = vpack.c.b16 %v1046, %v1042
  %v1343 = vpack.c.b16 %v1051, %v1047
  %v1344 = vpack.c.b16 %v1052, %v1048
  %v1345 = vpack.c.b16 %v1053, %v1049
  %v1346 = vpack.c.b16 %v1054, %v1050
  %v1347 = vpack.c.b16 %v1059, %v1055
  %v1348 = vpack.c.b16 %v1060, %v1056
  %v1349 = vpack.c.b16 %v1061, %v1057
  %v1350 = vpack.c.b16 %v1062, %v1058
  %v1351 = vpack.c.b16 %v1067, %v1063
  %v1352 = vpack.c.b16 %v1068, %v1064
  %v1353 = vpack.c.b16 %v1069, %v1065
  %v1354 = vpack.c.b16 %v1070, %v1066
  %v1355 = vpack.c.b16 %v1075, %v1071
  %v1356 = vpack.c.b16 %v1076, %v1072
  %v1357 = vpack.c.b16 %v1077, %v1073
  %v1358 = vpack.c.b16 %v1078, %v1074
  %v1359 = vpack.c.b16 %v1083, %v1079
  %v1360 = vpack.c.b16 %v1084, %v1080
  %v1361 = vpack.c.b16 %v1085, %v1081
  %v1362 = vpack.c.b16 %v1086, %v1082
  %v1363 = vpack.c.b16 %v1091, %v1087
  %v1364 = vpack.c.b16 %v1092, %v1088
  %v1365 = vpack.c.b16 %v1093, %v1089
  %v1366 = vpack.c.b16 %v1094, %v1090
  %v1367 = vpack.c.b16 %v1099, %v1095
  %v1368 = vpack.c.b16 %v1100, %v1096
  %v1369 = vpack.c.b16 %v1101, %v1097
  %v1370 = vpack.c.b16 %v1102, %v1098
  %v1371 = vpack.c.b16 %v1107, %v1103
  %v1372 = vpack.c.b16 %v1108, %v1104
  %v1373 = vpack.c.b16 %v1109, %v1105
  %v1374 = vpack.c.b16 %v1110, %v1106
  %v1375 = vpack.c.b16 %v1115, %v1111
  %v1376 = vpack.c.b16 %v1116, %v1112
  %v1377 = vpack.c.b16 %v1117, %v1113
  %v1378 = vpack.c.b16 %v1118, %v1114
  %v1379 = vpack.c.b16 %v1123, %v1119
  %v1380 = vpack.c.b16 %v1124, %v1120
  %v1381 = vpack.c.b16 %v1125, %v1121
  %v1382 = vpack.c.b16 %v1126, %v1122
  %1639 = vmatprep.subr.bf16.mxu0 %v1156
  %1640 = vmatpush1.bf16.msra.mxu0 %v1155
  %1641 = vmatprep.subr.bf16.mxu0 %v1152
  %1642 = vmatpush1.bf16.msra.mxu0 %v1151
  %1643 = vmatprep.subr.bf16.mxu0 %v1148
  %1644 = vmatpush1.bf16.msra.mxu0 %v1147
  %1645 = vmatprep.subr.bf16.mxu0 %v1144
  %1646 = vmatpush1.bf16.msra.mxu0 %v1143
  %1647 = vmatprep.subr.bf16.mxu0 %v1140
  %1648 = vmatpush1.bf16.msra.mxu0 %v1139
  %1649 = vmatprep.subr.bf16.mxu0 %v1136
  %1650 = vmatpush1.bf16.msra.mxu0 %v1135
  %1651 = vmatprep.subr.bf16.mxu0 %v1132
  %1652 = vmatpush1.bf16.msra.mxu0 %v1131
  %1653 = vmatprep.subr.bf16.mxu0 %v1128
  %1654 = vmatpush1.bf16.msra.mxu0 %v1127
  %1655 = vmatprep.subr.bf16.mxu0 %v1188
  %1656 = vmatpush2.bf16.msra.mxu0 %v1187
  %1657 = vmatprep.subr.bf16.mxu0 %v1184
  %1658 = vmatpush2.bf16.msra.mxu0 %v1183
  %1659 = vmatprep.subr.bf16.mxu0 %v1180
  %1660 = vmatpush2.bf16.msra.mxu0 %v1179
  %1661 = vmatprep.subr.bf16.mxu0 %v1176
  %1662 = vmatpush2.bf16.msra.mxu0 %v1175
  %1663 = vmatprep.subr.bf16.mxu0 %v1172
  %1664 = vmatpush2.bf16.msra.mxu0 %v1171
  %1665 = vmatprep.subr.bf16.mxu0 %v1168
  %1666 = vmatpush2.bf16.msra.mxu0 %v1167
  %1667 = vmatprep.subr.bf16.mxu0 %v1164
  %1668 = vmatpush2.bf16.msra.mxu0 %v1163
  %1669 = vmatprep.subr.bf16.mxu0 %v1160
  %1670 = vmatpush2.bf16.msra.mxu0 %v1159
  %1671 = vmatprep.mubr.bf16.mxu0 %v74
  %1672 = vmatmul.mubr.bf16.gmra.mxu0 %v73
  %v1673 = vpop.f32.mrf.mxu0
  %v1674 = vadd.f32 %v342, %v1673
  %v1675 = vpop.f32.mrf.mxu0
  %v1676 = vadd.f32 %v346, %v1675
  %v1677 = vpop.f32.mrf.mxu0
  %v1678 = vpop.f32.mrf.mxu0
  %1679 = vdwg.mxu0
  %1680 = vmatprep.subr.bf16.mxu0 %v1220
  %1681 = vmatpush1.bf16.msra.mxu0 %v1219
  %1682 = vmatprep.subr.bf16.mxu0 %v1216
  %1683 = vmatpush1.bf16.msra.mxu0 %v1215
  %1684 = vmatprep.subr.bf16.mxu0 %v1212
  %1685 = vmatpush1.bf16.msra.mxu0 %v1211
  %1686 = vmatprep.subr.bf16.mxu0 %v1208
  %1687 = vmatpush1.bf16.msra.mxu0 %v1207
  %1688 = vmatprep.subr.bf16.mxu0 %v1204
  %1689 = vmatpush1.bf16.msra.mxu0 %v1203
  %1690 = vmatprep.subr.bf16.mxu0 %v1200
  %1691 = vmatpush1.bf16.msra.mxu0 %v1199
  %1692 = vmatprep.subr.bf16.mxu0 %v1196
  %1693 = vmatpush1.bf16.msra.mxu0 %v1195
  %1694 = vmatprep.subr.bf16.mxu0 %v1192
  %1695 = vmatpush1.bf16.msra.mxu0 %v1191
  %1696 = vmatprep.subr.bf16.mxu0 %v1252
  %1697 = vmatpush2.bf16.msra.mxu0 %v1251
  %1698 = vmatprep.subr.bf16.mxu0 %v1248
  %1699 = vmatpush2.bf16.msra.mxu0 %v1247
  %1700 = vmatprep.subr.bf16.mxu0 %v1244
  %1701 = vmatpush2.bf16.msra.mxu0 %v1243
  %1702 = vmatprep.subr.bf16.mxu0 %v1240
  %1703 = vmatpush2.bf16.msra.mxu0 %v1239
  %1704 = vmatprep.subr.bf16.mxu0 %v1236
  %1705 = vmatpush2.bf16.msra.mxu0 %v1235
  %1706 = vmatprep.subr.bf16.mxu0 %v1232
  %1707 = vmatpush2.bf16.msra.mxu0 %v1231
  %1708 = vmatprep.subr.bf16.mxu0 %v1228
  %1709 = vmatpush2.bf16.msra.mxu0 %v1227
  %1710 = vmatprep.subr.bf16.mxu0 %v1224
  %1711 = vmatpush2.bf16.msra.mxu0 %v1223
  %1712 = vmatprep.mubr.bf16.mxu0 %v76
  %1713 = vmatmul.mubr.bf16.gmra.mxu0 %v75
  %v1714 = vpop.f32.mrf.mxu0
  %v1715 = vadd.f32 %v1674, %v1714
  %v1716 = vpop.f32.mrf.mxu0
  %v1717 = vadd.f32 %v1676, %v1716
  %v1718 = vpop.f32.mrf.mxu0
  %v1719 = vpop.f32.mrf.mxu0
  %1720 = vdwg.mxu0
  %1721 = vmatprep.subr.bf16.mxu0 %v1284
  %1722 = vmatpush1.bf16.msra.mxu0 %v1283
  %1723 = vmatprep.subr.bf16.mxu0 %v1280
  %1724 = vmatpush1.bf16.msra.mxu0 %v1279
  %1725 = vmatprep.subr.bf16.mxu0 %v1276
  %1726 = vmatpush1.bf16.msra.mxu0 %v1275
  %1727 = vmatprep.subr.bf16.mxu0 %v1272
  %1728 = vmatpush1.bf16.msra.mxu0 %v1271
  %1729 = vmatprep.subr.bf16.mxu0 %v1268
  %1730 = vmatpush1.bf16.msra.mxu0 %v1267
  %1731 = vmatprep.subr.bf16.mxu0 %v1264
  %1732 = vmatpush1.bf16.msra.mxu0 %v1263
  %1733 = vmatprep.subr.bf16.mxu0 %v1260
  %1734 = vmatpush1.bf16.msra.mxu0 %v1259
  %1735 = vmatprep.subr.bf16.mxu0 %v1256
  %1736 = vmatpush1.bf16.msra.mxu0 %v1255
  %1737 = vmatprep.subr.bf16.mxu0 %v1316
  %1738 = vmatpush2.bf16.msra.mxu0 %v1315
  %1739 = vmatprep.subr.bf16.mxu0 %v1312
  %1740 = vmatpush2.bf16.msra.mxu0 %v1311
  %1741 = vmatprep.subr.bf16.mxu0 %v1308
  %1742 = vmatpush2.bf16.msra.mxu0 %v1307
  %1743 = vmatprep.subr.bf16.mxu0 %v1304
  %1744 = vmatpush2.bf16.msra.mxu0 %v1303
  %1745 = vmatprep.subr.bf16.mxu0 %v1300
  %1746 = vmatpush2.bf16.msra.mxu0 %v1299
  %1747 = vmatprep.subr.bf16.mxu0 %v1296
  %1748 = vmatpush2.bf16.msra.mxu0 %v1295
  %1749 = vmatprep.subr.bf16.mxu0 %v1292
  %1750 = vmatpush2.bf16.msra.mxu0 %v1291
  %1751 = vmatprep.subr.bf16.mxu0 %v1288
  %1752 = vmatpush2.bf16.msra.mxu0 %v1287
  %1753 = vmatprep.mubr.bf16.mxu0 %v78
  %1754 = vmatmul.mubr.bf16.gmra.mxu0 %v77
  %v1755 = vpop.f32.mrf.mxu0
  %v1756 = vadd.f32 %v1715, %v1755
  %v1757 = vpop.f32.mrf.mxu0
  %v1758 = vadd.f32 %v1717, %v1757
  %v1759 = vpop.f32.mrf.mxu0
  %v1760 = vpop.f32.mrf.mxu0
  %1761 = vdwg.mxu0
  %1762 = vmatprep.subr.bf16.mxu0 %v1348
  %1763 = vmatpush1.bf16.msra.mxu0 %v1347
  %1764 = vmatprep.subr.bf16.mxu0 %v1344
  %1765 = vmatpush1.bf16.msra.mxu0 %v1343
  %1766 = vmatprep.subr.bf16.mxu0 %v1340
  %1767 = vmatpush1.bf16.msra.mxu0 %v1339
  %1768 = vmatprep.subr.bf16.mxu0 %v1336
  %1769 = vmatpush1.bf16.msra.mxu0 %v1335
  %1770 = vmatprep.subr.bf16.mxu0 %v1332
  %1771 = vmatpush1.bf16.msra.mxu0 %v1331
  %1772 = vmatprep.subr.bf16.mxu0 %v1328
  %1773 = vmatpush1.bf16.msra.mxu0 %v1327
  %1774 = vmatprep.subr.bf16.mxu0 %v1324
  %1775 = vmatpush1.bf16.msra.mxu0 %v1323
  %1776 = vmatprep.subr.bf16.mxu0 %v1320
  %1777 = vmatpush1.bf16.msra.mxu0 %v1319
  %1778 = vmatprep.subr.bf16.mxu0 %v1380
  %1779 = vmatpush2.bf16.msra.mxu0 %v1379
  %1780 = vmatprep.subr.bf16.mxu0 %v1376
  %1781 = vmatpush2.bf16.msra.mxu0 %v1375
  %1782 = vmatprep.subr.bf16.mxu0 %v1372
  %1783 = vmatpush2.bf16.msra.mxu0 %v1371
  %1784 = vmatprep.subr.bf16.mxu0 %v1368
  %1785 = vmatpush2.bf16.msra.mxu0 %v1367
  %1786 = vmatprep.subr.bf16.mxu0 %v1364
  %1787 = vmatpush2.bf16.msra.mxu0 %v1363
  %1788 = vmatprep.subr.bf16.mxu0 %v1360
  %1789 = vmatpush2.bf16.msra.mxu0 %v1359
  %1790 = vmatprep.subr.bf16.mxu0 %v1356
  %1791 = vmatpush2.bf16.msra.mxu0 %v1355
  %1792 = vmatprep.subr.bf16.mxu0 %v1352
  %1793 = vmatpush2.bf16.msra.mxu0 %v1351
  %1794 = vmatprep.mubr.bf16.mxu0 %v80
  %1795 = vmatmul.mubr.bf16.gmra.mxu0 %v79
  %v1796 = vpop.f32.mrf.mxu0
  %v1797 = vadd.f32 %v1756, %v1796
  %v1798 = vpop.f32.mrf.mxu0
  %v1799 = vadd.f32 %v1758, %v1798
  %v1800 = vpop.f32.mrf.mxu0
  %v1801 = vpop.f32.mrf.mxu0
  %1802 = vdwg.mxu0
  %1803 = vmatprep.subr.bf16.mxu0 %v1158
  %1804 = vmatpush1.bf16.msra.mxu0 %v1157
  %1805 = vmatprep.subr.bf16.mxu0 %v1154
  %1806 = vmatpush1.bf16.msra.mxu0 %v1153
  %1807 = vmatprep.subr.bf16.mxu0 %v1150
  %1808 = vmatpush1.bf16.msra.mxu0 %v1149
  %1809 = vmatprep.subr.bf16.mxu0 %v1146
  %1810 = vmatpush1.bf16.msra.mxu0 %v1145
  %1811 = vmatprep.subr.bf16.mxu0 %v1142
  %1812 = vmatpush1.bf16.msra.mxu0 %v1141
  %1813 = vmatprep.subr.bf16.mxu0 %v1138
  %1814 = vmatpush1.bf16.msra.mxu0 %v1137
  %1815 = vmatprep.subr.bf16.mxu0 %v1134
  %1816 = vmatpush1.bf16.msra.mxu0 %v1133
  %1817 = vmatprep.subr.bf16.mxu0 %v1130
  %1818 = vmatpush1.bf16.msra.mxu0 %v1129
  %1819 = vmatprep.subr.bf16.mxu0 %v1190
  %1820 = vmatpush2.bf16.msra.mxu0 %v1189
  %1821 = vmatprep.subr.bf16.mxu0 %v1186
  %1822 = vmatpush2.bf16.msra.mxu0 %v1185
  %1823 = vmatprep.subr.bf16.mxu0 %v1182
  %1824 = vmatpush2.bf16.msra.mxu0 %v1181
  %1825 = vmatprep.subr.bf16.mxu0 %v1178
  %1826 = vmatpush2.bf16.msra.mxu0 %v1177
  %1827 = vmatprep.subr.bf16.mxu0 %v1174
  %1828 = vmatpush2.bf16.msra.mxu0 %v1173
  %1829 = vmatprep.subr.bf16.mxu0 %v1170
  %1830 = vmatpush2.bf16.msra.mxu0 %v1169
  %1831 = vmatprep.subr.bf16.mxu0 %v1166
  %1832 = vmatpush2.bf16.msra.mxu0 %v1165
  %1833 = vmatprep.subr.bf16.mxu0 %v1162
  %1834 = vmatpush2.bf16.msra.mxu0 %v1161
  %1835 = vmatprep.mubr.bf16.mxu0 %v74
  %1836 = vmatmul.mubr.bf16.gmra.mxu0 %v73
  %v1837 = vpop.f32.mrf.mxu0
  %v1838 = vadd.f32 %v350, %v1837
  %v1839 = vpop.f32.mrf.mxu0
  %v1840 = vadd.f32 %v354, %v1839
  %v1841 = vpop.f32.mrf.mxu0
  %v1842 = vpop.f32.mrf.mxu0
  %1843 = vdwg.mxu0
  %1844 = vmatprep.subr.bf16.mxu0 %v1222
  %1845 = vmatpush1.bf16.msra.mxu0 %v1221
  %1846 = vmatprep.subr.bf16.mxu0 %v1218
  %1847 = vmatpush1.bf16.msra.mxu0 %v1217
  %1848 = vmatprep.subr.bf16.mxu0 %v1214
  %1849 = vmatpush1.bf16.msra.mxu0 %v1213
  %1850 = vmatprep.subr.bf16.mxu0 %v1210
  %1851 = vmatpush1.bf16.msra.mxu0 %v1209
  %1852 = vmatprep.subr.bf16.mxu0 %v1206
  %1853 = vmatpush1.bf16.msra.mxu0 %v1205
  %1854 = vmatprep.subr.bf16.mxu0 %v1202
  %1855 = vmatpush1.bf16.msra.mxu0 %v1201
  %1856 = vmatprep.subr.bf16.mxu0 %v1198
  %1857 = vmatpush1.bf16.msra.mxu0 %v1197
  %1858 = vmatprep.subr.bf16.mxu0 %v1194
  %1859 = vmatpush1.bf16.msra.mxu0 %v1193
  %1860 = vmatprep.subr.bf16.mxu0 %v1254
  %1861 = vmatpush2.bf16.msra.mxu0 %v1253
  %1862 = vmatprep.subr.bf16.mxu0 %v1250
  %1863 = vmatpush2.bf16.msra.mxu0 %v1249
  %1864 = vmatprep.subr.bf16.mxu0 %v1246
  %1865 = vmatpush2.bf16.msra.mxu0 %v1245
  %1866 = vmatprep.subr.bf16.mxu0 %v1242
  %1867 = vmatpush2.bf16.msra.mxu0 %v1241
  %1868 = vmatprep.subr.bf16.mxu0 %v1238
  %1869 = vmatpush2.bf16.msra.mxu0 %v1237
  %1870 = vmatprep.subr.bf16.mxu0 %v1234
  %1871 = vmatpush2.bf16.msra.mxu0 %v1233
  %1872 = vmatprep.subr.bf16.mxu0 %v1230
  %1873 = vmatpush2.bf16.msra.mxu0 %v1229
  %1874 = vmatprep.subr.bf16.mxu0 %v1226
  %1875 = vmatpush2.bf16.msra.mxu0 %v1225
  %1876 = vmatprep.mubr.bf16.mxu0 %v76
  %1877 = vmatmul.mubr.bf16.gmra.mxu0 %v75
  %v1878 = vpop.f32.mrf.mxu0
  %v1879 = vadd.f32 %v1838, %v1878
  %v1880 = vpop.f32.mrf.mxu0
  %v1881 = vadd.f32 %v1840, %v1880
  %v1882 = vpop.f32.mrf.mxu0
  %v1883 = vpop.f32.mrf.mxu0
  %1884 = vdwg.mxu0
  %1885 = vmatprep.subr.bf16.mxu0 %v1286
  %1886 = vmatpush1.bf16.msra.mxu0 %v1285
  %1887 = vmatprep.subr.bf16.mxu0 %v1282
  %1888 = vmatpush1.bf16.msra.mxu0 %v1281
  %1889 = vmatprep.subr.bf16.mxu0 %v1278
  %1890 = vmatpush1.bf16.msra.mxu0 %v1277
  %1891 = vmatprep.subr.bf16.mxu0 %v1274
  %1892 = vmatpush1.bf16.msra.mxu0 %v1273
  %1893 = vmatprep.subr.bf16.mxu0 %v1270
  %1894 = vmatpush1.bf16.msra.mxu0 %v1269
  %1895 = vmatprep.subr.bf16.mxu0 %v1266
  %1896 = vmatpush1.bf16.msra.mxu0 %v1265
  %1897 = vmatprep.subr.bf16.mxu0 %v1262
  %1898 = vmatpush1.bf16.msra.mxu0 %v1261
  %1899 = vmatprep.subr.bf16.mxu0 %v1258
  %1900 = vmatpush1.bf16.msra.mxu0 %v1257
  %1901 = vmatprep.subr.bf16.mxu0 %v1318
  %1902 = vmatpush2.bf16.msra.mxu0 %v1317
  %1903 = vmatprep.subr.bf16.mxu0 %v1314
  %1904 = vmatpush2.bf16.msra.mxu0 %v1313
  %1905 = vmatprep.subr.bf16.mxu0 %v1310
  %1906 = vmatpush2.bf16.msra.mxu0 %v1309
  %1907 = vmatprep.subr.bf16.mxu0 %v1306
  %1908 = vmatpush2.bf16.msra.mxu0 %v1305
  %1909 = vmatprep.subr.bf16.mxu0 %v1302
  %1910 = vmatpush2.bf16.msra.mxu0 %v1301
  %1911 = vmatprep.subr.bf16.mxu0 %v1298
  %1912 = vmatpush2.bf16.msra.mxu0 %v1297
  %1913 = vmatprep.subr.bf16.mxu0 %v1294
  %1914 = vmatpush2.bf16.msra.mxu0 %v1293
  %1915 = vmatprep.subr.bf16.mxu0 %v1290
  %1916 = vmatpush2.bf16.msra.mxu0 %v1289
  %1917 = vmatprep.mubr.bf16.mxu0 %v78
  %1918 = vmatmul.mubr.bf16.gmra.mxu0 %v77
  %v1919 = vpop.f32.mrf.mxu0
  %v1920 = vadd.f32 %v1879, %v1919
  %v1921 = vpop.f32.mrf.mxu0
  %v1922 = vadd.f32 %v1881, %v1921
  %v1923 = vpop.f32.mrf.mxu0
  %v1924 = vpop.f32.mrf.mxu0
  %1925 = vdwg.mxu0
  %1926 = vmatprep.subr.bf16.mxu0 %v1350
  %1927 = vmatpush1.bf16.msra.mxu0 %v1349
  %1928 = vmatprep.subr.bf16.mxu0 %v1346
  %1929 = vmatpush1.bf16.msra.mxu0 %v1345
  %1930 = vmatprep.subr.bf16.mxu0 %v1342
  %1931 = vmatpush1.bf16.msra.mxu0 %v1341
  %1932 = vmatprep.subr.bf16.mxu0 %v1338
  %1933 = vmatpush1.bf16.msra.mxu0 %v1337
  %1934 = vmatprep.subr.bf16.mxu0 %v1334
  %1935 = vmatpush1.bf16.msra.mxu0 %v1333
  %1936 = vmatprep.subr.bf16.mxu0 %v1330
  %1937 = vmatpush1.bf16.msra.mxu0 %v1329
  %1938 = vmatprep.subr.bf16.mxu0 %v1326
  %1939 = vmatpush1.bf16.msra.mxu0 %v1325
  %1940 = vmatprep.subr.bf16.mxu0 %v1322
  %1941 = vmatpush1.bf16.msra.mxu0 %v1321
  %1942 = vmatprep.subr.bf16.mxu0 %v1382
  %1943 = vmatpush2.bf16.msra.mxu0 %v1381
  %1944 = vmatprep.subr.bf16.mxu0 %v1378
  %1945 = vmatpush2.bf16.msra.mxu0 %v1377
  %1946 = vmatprep.subr.bf16.mxu0 %v1374
  %1947 = vmatpush2.bf16.msra.mxu0 %v1373
  %1948 = vmatprep.subr.bf16.mxu0 %v1370
  %1949 = vmatpush2.bf16.msra.mxu0 %v1369
  %1950 = vmatprep.subr.bf16.mxu0 %v1366
  %1951 = vmatpush2.bf16.msra.mxu0 %v1365
  %1952 = vmatprep.subr.bf16.mxu0 %v1362
  %1953 = vmatpush2.bf16.msra.mxu0 %v1361
  %1954 = vmatprep.subr.bf16.mxu0 %v1358
  %1955 = vmatpush2.bf16.msra.mxu0 %v1357
  %1956 = vmatprep.subr.bf16.mxu0 %v1354
  %1957 = vmatpush2.bf16.msra.mxu0 %v1353
  %1958 = vmatprep.mubr.bf16.mxu0 %v80
  %1959 = vmatmul.mubr.bf16.gmra.mxu0 %v79
  %v1960 = vpop.f32.mrf.mxu0
  %v1961 = vadd.f32 %v1920, %v1960
  %v1962 = vpop.f32.mrf.mxu0
  %v1963 = vadd.f32 %v1922, %v1962
  %v1964 = vpop.f32.mrf.mxu0
  %v1965 = vpop.f32.mrf.mxu0
  %1966 = vdwg.mxu0
  %v1967 = vmul.f32 %v1797, 0.2
  %v1968 = vmul.f32 %v1799, 0.2
  %v1969 = vmul.f32 %v1961, 0.2
  %v1970 = vmul.f32 %v1963, 0.2
  %v1971 = vmax.f32 %v1797, %v1967
  %v1972 = vmax.f32 %v1799, %v1968
  %v1973 = vmax.f32 %v1961, %v1969
  %v1974 = vmax.f32 %v1963, %v1970
  %v1975 = vpack.c.bf16 %v1971, %v1971
  %v1976 = vpack.c.bf16 %v1972, %v1972
  %v1977 = vpack.c.bf16 %v1973, %v1973
  %v1978 = vpack.c.bf16 %v1974, %v1974
  %v1979 = vld [vmem:[%s3] sm:$0xff]
  %v1980 = vld [vmem:[%s3 + $0x8] sm:$0xff]
  %v1981 = vld [vmem:[%s3 + $0x10] sm:$0xff]
  %v1982 = vld [vmem:[%s3 + $0x18] sm:$0xff]
  %v1983 = vld [vmem:[%s3 + $0x20] sm:$0xff]
  %v1984 = vld [vmem:[%s3 + $0x28] sm:$0xff]
  %v1985 = vld [vmem:[%s3 + $0x30] sm:$0xff]
  %v1986 = vld [vmem:[%s3 + $0x38] sm:$0xff]
  %v1987 = vld [vmem:[%s3 + $0x40] sm:$0xff]
  %v1988 = vld [vmem:[%s3 + $0x48] sm:$0xff]
  %v1989 = vld [vmem:[%s3 + $0x50] sm:$0xff]
  %v1990 = vld [vmem:[%s3 + $0x58] sm:$0xff]
  %v1991 = vld [vmem:[%s3 + $0x60] sm:$0xff]
  %v1992 = vld [vmem:[%s3 + $0x68] sm:$0xff]
  %v1993 = vld [vmem:[%s3 + $0x70] sm:$0xff]
  %v1994 = vld [vmem:[%s3 + $0x78] sm:$0xff]
  %v1995 = vld [vmem:[%s3 + $0x80] sm:$0xff]
  %v1996 = vld [vmem:[%s3 + $0x88] sm:$0xff]
  %v1997 = vld [vmem:[%s3 + $0x90] sm:$0xff]
  %v1998 = vld [vmem:[%s3 + $0x98] sm:$0xff]
  %v1999 = vld [vmem:[%s3 + $0xa0] sm:$0xff]
  %v2000 = vld [vmem:[%s3 + $0xa8] sm:$0xff]
  %v2001 = vld [vmem:[%s3 + $0xb0] sm:$0xff]
  %v2002 = vld [vmem:[%s3 + $0xb8] sm:$0xff]
  %v2003 = vld [vmem:[%s3 + $0xc0] sm:$0xff]
  %v2004 = vld [vmem:[%s3 + $0xc8] sm:$0xff]
  %v2005 = vld [vmem:[%s3 + $0xd0] sm:$0xff]
  %v2006 = vld [vmem:[%s3 + $0xd8] sm:$0xff]
  %v2007 = vld [vmem:[%s3 + $0xe0] sm:$0xff]
  %v2008 = vld [vmem:[%s3 + $0xe8] sm:$0xff]
  %v2009 = vld [vmem:[%s3 + $0xf0] sm:$0xff]
  %v2010 = vld [vmem:[%s3 + $0xf8] sm:$0xff]
  %v2011 = vld [vmem:[%s3 + $0x100] sm:$0xff]
  %v2012 = vld [vmem:[%s3 + $0x108] sm:$0xff]
  %v2013 = vld [vmem:[%s3 + $0x110] sm:$0xff]
  %v2014 = vld [vmem:[%s3 + $0x118] sm:$0xff]
  %v2015 = vld [vmem:[%s3 + $0x120] sm:$0xff]
  %v2016 = vld [vmem:[%s3 + $0x128] sm:$0xff]
  %v2017 = vld [vmem:[%s3 + $0x130] sm:$0xff]
  %v2018 = vld [vmem:[%s3 + $0x138] sm:$0xff]
  %v2019 = vld [vmem:[%s3 + $0x140] sm:$0xff]
  %v2020 = vld [vmem:[%s3 + $0x148] sm:$0xff]
  %v2021 = vld [vmem:[%s3 + $0x150] sm:$0xff]
  %v2022 = vld [vmem:[%s3 + $0x158] sm:$0xff]
  %v2023 = vld [vmem:[%s3 + $0x160] sm:$0xff]
  %v2024 = vld [vmem:[%s3 + $0x168] sm:$0xff]
  %v2025 = vld [vmem:[%s3 + $0x170] sm:$0xff]
  %v2026 = vld [vmem:[%s3 + $0x178] sm:$0xff]
  %v2027 = vld [vmem:[%s3 + $0x180] sm:$0xff]
  %v2028 = vld [vmem:[%s3 + $0x188] sm:$0xff]
  %v2029 = vld [vmem:[%s3 + $0x190] sm:$0xff]
  %v2030 = vld [vmem:[%s3 + $0x198] sm:$0xff]
  %v2031 = vld [vmem:[%s3 + $0x1a0] sm:$0xff]
  %v2032 = vld [vmem:[%s3 + $0x1a8] sm:$0xff]
  %v2033 = vld [vmem:[%s3 + $0x1b0] sm:$0xff]
  %v2034 = vld [vmem:[%s3 + $0x1b8] sm:$0xff]
  %v2035 = vld [vmem:[%s3 + $0x1c0] sm:$0xff]
  %v2036 = vld [vmem:[%s3 + $0x1c8] sm:$0xff]
  %v2037 = vld [vmem:[%s3 + $0x1d0] sm:$0xff]
  %v2038 = vld [vmem:[%s3 + $0x1d8] sm:$0xff]
  %v2039 = vld [vmem:[%s3 + $0x1e0] sm:$0xff]
  %v2040 = vld [vmem:[%s3 + $0x1e8] sm:$0xff]
  %v2041 = vld [vmem:[%s3 + $0x1f0] sm:$0xff]
  %v2042 = vld [vmem:[%s3 + $0x1f8] sm:$0xff]
  %v2043 = vld [vmem:[%s4] sm:$0x3]
  %v2045 = vlaneseq
  %v2046 = vshrl.u32 %v2045, 7
  %v2047 = vsub.s32 0, %v2046
  %v2048 = vrot.slane %v2043, %v2047
  %v2049 = vlaneseq
  %v2050 = vshrl.u32 %v2049, 7
  %v2051 = vsub.s32 1, %v2050
  %v2052 = vrot.slane %v2043, %v2051
  %v2119 = vunpack.c.l.b16 %v1979
  %v2120 = vunpack.c.h.b16 %v1979
  %v2121 = vunpack.c.l.b16 %v1980
  %v2122 = vunpack.c.h.b16 %v1980
  %v2123 = vunpack.c.l.b16 %v1981
  %v2124 = vunpack.c.h.b16 %v1981
  %v2125 = vunpack.c.l.b16 %v1982
  %v2126 = vunpack.c.h.b16 %v1982
  %v2127 = vunpack.c.l.b16 %v1983
  %v2128 = vunpack.c.h.b16 %v1983
  %v2129 = vunpack.c.l.b16 %v1984
  %v2130 = vunpack.c.h.b16 %v1984
  %v2131 = vunpack.c.l.b16 %v1985
  %v2132 = vunpack.c.h.b16 %v1985
  %v2133 = vunpack.c.l.b16 %v1986
  %v2134 = vunpack.c.h.b16 %v1986
  %v2135 = vunpack.c.l.b16 %v1987
  %v2136 = vunpack.c.h.b16 %v1987
  %v2137 = vunpack.c.l.b16 %v1988
  %v2138 = vunpack.c.h.b16 %v1988
  %v2139 = vunpack.c.l.b16 %v1989
  %v2140 = vunpack.c.h.b16 %v1989
  %v2141 = vunpack.c.l.b16 %v1990
  %v2142 = vunpack.c.h.b16 %v1990
  %v2143 = vunpack.c.l.b16 %v1991
  %v2144 = vunpack.c.h.b16 %v1991
  %v2145 = vunpack.c.l.b16 %v1992
  %v2146 = vunpack.c.h.b16 %v1992
  %v2147 = vunpack.c.l.b16 %v1993
  %v2148 = vunpack.c.h.b16 %v1993
  %v2149 = vunpack.c.l.b16 %v1994
  %v2150 = vunpack.c.h.b16 %v1994
  %v2151 = vunpack.c.l.b16 %v1995
  %v2152 = vunpack.c.h.b16 %v1995
  %v2153 = vunpack.c.l.b16 %v1996
  %v2154 = vunpack.c.h.b16 %v1996
  %v2155 = vunpack.c.l.b16 %v1997
  %v2156 = vunpack.c.h.b16 %v1997
  %v2157 = vunpack.c.l.b16 %v1998
  %v2158 = vunpack.c.h.b16 %v1998
  %v2159 = vunpack.c.l.b16 %v1999
  %v2160 = vunpack.c.h.b16 %v1999
  %v2161 = vunpack.c.l.b16 %v2000
  %v2162 = vunpack.c.h.b16 %v2000
  %v2163 = vunpack.c.l.b16 %v2001
  %v2164 = vunpack.c.h.b16 %v2001
  %v2165 = vunpack.c.l.b16 %v2002
  %v2166 = vunpack.c.h.b16 %v2002
  %v2167 = vunpack.c.l.b16 %v2003
  %v2168 = vunpack.c.h.b16 %v2003
  %v2169 = vunpack.c.l.b16 %v2004
  %v2170 = vunpack.c.h.b16 %v2004
  %v2171 = vunpack.c.l.b16 %v2005
  %v2172 = vunpack.c.h.b16 %v2005
  %v2173 = vunpack.c.l.b16 %v2006
  %v2174 = vunpack.c.h.b16 %v2006
  %v2175 = vunpack.c.l.b16 %v2007
  %v2176 = vunpack.c.h.b16 %v2007
  %v2177 = vunpack.c.l.b16 %v2008
  %v2178 = vunpack.c.h.b16 %v2008
  %v2179 = vunpack.c.l.b16 %v2009
  %v2180 = vunpack.c.h.b16 %v2009
  %v2181 = vunpack.c.l.b16 %v2010
  %v2182 = vunpack.c.h.b16 %v2010
  %v2183 = vunpack.c.l.b16 %v2011
  %v2184 = vunpack.c.h.b16 %v2011
  %v2185 = vunpack.c.l.b16 %v2012
  %v2186 = vunpack.c.h.b16 %v2012
  %v2187 = vunpack.c.l.b16 %v2013
  %v2188 = vunpack.c.h.b16 %v2013
  %v2189 = vunpack.c.l.b16 %v2014
  %v2190 = vunpack.c.h.b16 %v2014
  %v2191 = vunpack.c.l.b16 %v2015
  %v2192 = vunpack.c.h.b16 %v2015
  %v2193 = vunpack.c.l.b16 %v2016
  %v2194 = vunpack.c.h.b16 %v2016
  %v2195 = vunpack.c.l.b16 %v2017
  %v2196 = vunpack.c.h.b16 %v2017
  %v2197 = vunpack.c.l.b16 %v2018
  %v2198 = vunpack.c.h.b16 %v2018
  %v2199 = vunpack.c.l.b16 %v2019
  %v2200 = vunpack.c.h.b16 %v2019
  %v2201 = vunpack.c.l.b16 %v2020
  %v2202 = vunpack.c.h.b16 %v2020
  %v2203 = vunpack.c.l.b16 %v2021
  %v2204 = vunpack.c.h.b16 %v2021
  %v2205 = vunpack.c.l.b16 %v2022
  %v2206 = vunpack.c.h.b16 %v2022
  %v2207 = vunpack.c.l.b16 %v2023
  %v2208 = vunpack.c.h.b16 %v2023
  %v2209 = vunpack.c.l.b16 %v2024
  %v2210 = vunpack.c.h.b16 %v2024
  %v2211 = vunpack.c.l.b16 %v2025
  %v2212 = vunpack.c.h.b16 %v2025
  %v2213 = vunpack.c.l.b16 %v2026
  %v2214 = vunpack.c.h.b16 %v2026
  %v2215 = vunpack.c.l.b16 %v2027
  %v2216 = vunpack.c.h.b16 %v2027
  %v2217 = vunpack.c.l.b16 %v2028
  %v2218 = vunpack.c.h.b16 %v2028
  %v2219 = vunpack.c.l.b16 %v2029
  %v2220 = vunpack.c.h.b16 %v2029
  %v2221 = vunpack.c.l.b16 %v2030
  %v2222 = vunpack.c.h.b16 %v2030
  %v2223 = vunpack.c.l.b16 %v2031
  %v2224 = vunpack.c.h.b16 %v2031
  %v2225 = vunpack.c.l.b16 %v2032
  %v2226 = vunpack.c.h.b16 %v2032
  %v2227 = vunpack.c.l.b16 %v2033
  %v2228 = vunpack.c.h.b16 %v2033
  %v2229 = vunpack.c.l.b16 %v2034
  %v2230 = vunpack.c.h.b16 %v2034
  %v2231 = vunpack.c.l.b16 %v2035
  %v2232 = vunpack.c.h.b16 %v2035
  %v2233 = vunpack.c.l.b16 %v2036
  %v2234 = vunpack.c.h.b16 %v2036
  %v2235 = vunpack.c.l.b16 %v2037
  %v2236 = vunpack.c.h.b16 %v2037
  %v2237 = vunpack.c.l.b16 %v2038
  %v2238 = vunpack.c.h.b16 %v2038
  %v2239 = vunpack.c.l.b16 %v2039
  %v2240 = vunpack.c.h.b16 %v2039
  %v2241 = vunpack.c.l.b16 %v2040
  %v2242 = vunpack.c.h.b16 %v2040
  %v2243 = vunpack.c.l.b16 %v2041
  %v2244 = vunpack.c.h.b16 %v2041
  %v2245 = vunpack.c.l.b16 %v2042
  %v2246 = vunpack.c.h.b16 %v2042
  %v2247 = vpack.c.b16 %v2121, %v2119
  %v2248 = vpack.c.b16 %v2122, %v2120
  %v2249 = vpack.c.b16 %v2125, %v2123
  %v2250 = vpack.c.b16 %v2126, %v2124
  %v2251 = vpack.c.b16 %v2129, %v2127
  %v2252 = vpack.c.b16 %v2130, %v2128
  %v2253 = vpack.c.b16 %v2133, %v2131
  %v2254 = vpack.c.b16 %v2134, %v2132
  %v2255 = vpack.c.b16 %v2137, %v2135
  %v2256 = vpack.c.b16 %v2138, %v2136
  %v2257 = vpack.c.b16 %v2141, %v2139
  %v2258 = vpack.c.b16 %v2142, %v2140
  %v2259 = vpack.c.b16 %v2145, %v2143
  %v2260 = vpack.c.b16 %v2146, %v2144
  %v2261 = vpack.c.b16 %v2149, %v2147
  %v2262 = vpack.c.b16 %v2150, %v2148
  %v2263 = vpack.c.b16 %v2153, %v2151
  %v2264 = vpack.c.b16 %v2154, %v2152
  %v2265 = vpack.c.b16 %v2157, %v2155
  %v2266 = vpack.c.b16 %v2158, %v2156
  %v2267 = vpack.c.b16 %v2161, %v2159
  %v2268 = vpack.c.b16 %v2162, %v2160
  %v2269 = vpack.c.b16 %v2165, %v2163
  %v2270 = vpack.c.b16 %v2166, %v2164
  %v2271 = vpack.c.b16 %v2169, %v2167
  %v2272 = vpack.c.b16 %v2170, %v2168
  %v2273 = vpack.c.b16 %v2173, %v2171
  %v2274 = vpack.c.b16 %v2174, %v2172
  %v2275 = vpack.c.b16 %v2177, %v2175
  %v2276 = vpack.c.b16 %v2178, %v2176
  %v2277 = vpack.c.b16 %v2181, %v2179
  %v2278 = vpack.c.b16 %v2182, %v2180
  %v2279 = vpack.c.b16 %v2185, %v2183
  %v2280 = vpack.c.b16 %v2186, %v2184
  %v2281 = vpack.c.b16 %v2189, %v2187
  %v2282 = vpack.c.b16 %v2190, %v2188
  %v2283 = vpack.c.b16 %v2193, %v2191
  %v2284 = vpack.c.b16 %v2194, %v2192
  %v2285 = vpack.c.b16 %v2197, %v2195
  %v2286 = vpack.c.b16 %v2198, %v2196
  %v2287 = vpack.c.b16 %v2201, %v2199
  %v2288 = vpack.c.b16 %v2202, %v2200
  %v2289 = vpack.c.b16 %v2205, %v2203
  %v2290 = vpack.c.b16 %v2206, %v2204
  %v2291 = vpack.c.b16 %v2209, %v2207
  %v2292 = vpack.c.b16 %v2210, %v2208
  %v2293 = vpack.c.b16 %v2213, %v2211
  %v2294 = vpack.c.b16 %v2214, %v2212
  %v2295 = vpack.c.b16 %v2217, %v2215
  %v2296 = vpack.c.b16 %v2218, %v2216
  %v2297 = vpack.c.b16 %v2221, %v2219
  %v2298 = vpack.c.b16 %v2222, %v2220
  %v2299 = vpack.c.b16 %v2225, %v2223
  %v2300 = vpack.c.b16 %v2226, %v2224
  %v2301 = vpack.c.b16 %v2229, %v2227
  %v2302 = vpack.c.b16 %v2230, %v2228
  %v2303 = vpack.c.b16 %v2233, %v2231
  %v2304 = vpack.c.b16 %v2234, %v2232
  %v2305 = vpack.c.b16 %v2237, %v2235
  %v2306 = vpack.c.b16 %v2238, %v2236
  %v2307 = vpack.c.b16 %v2241, %v2239
  %v2308 = vpack.c.b16 %v2242, %v2240
  %v2309 = vpack.c.b16 %v2245, %v2243
  %v2310 = vpack.c.b16 %v2246, %v2244
  %2375 = vmatprep.subr.bf16.mxu0 %v2262
  %2376 = vmatpush1.bf16.msra.mxu0 %v2261
  %2377 = vmatprep.subr.bf16.mxu0 %v2260
  %2378 = vmatpush1.bf16.msra.mxu0 %v2259
  %2379 = vmatprep.subr.bf16.mxu0 %v2258
  %2380 = vmatpush1.bf16.msra.mxu0 %v2257
  %2381 = vmatprep.subr.bf16.mxu0 %v2256
  %2382 = vmatpush1.bf16.msra.mxu0 %v2255
  %2383 = vmatprep.subr.bf16.mxu0 %v2254
  %2384 = vmatpush1.bf16.msra.mxu0 %v2253
  %2385 = vmatprep.subr.bf16.mxu0 %v2252
  %2386 = vmatpush1.bf16.msra.mxu0 %v2251
  %2387 = vmatprep.subr.bf16.mxu0 %v2250
  %2388 = vmatpush1.bf16.msra.mxu0 %v2249
  %2389 = vmatprep.subr.bf16.mxu0 %v2248
  %2390 = vmatpush1.bf16.msra.mxu0 %v2247
  %2391 = vmatprep.subr.bf16.mxu0 %v2278
  %2392 = vmatpush2.bf16.msra.mxu0 %v2277
  %2393 = vmatprep.subr.bf16.mxu0 %v2276
  %2394 = vmatpush2.bf16.msra.mxu0 %v2275
  %2395 = vmatprep.subr.bf16.mxu0 %v2274
  %2396 = vmatpush2.bf16.msra.mxu0 %v2273
  %2397 = vmatprep.subr.bf16.mxu0 %v2272
  %2398 = vmatpush2.bf16.msra.mxu0 %v2271
  %2399 = vmatprep.subr.bf16.mxu0 %v2270
  %2400 = vmatpush2.bf16.msra.mxu0 %v2269
  %2401 = vmatprep.subr.bf16.mxu0 %v2268
  %2402 = vmatpush2.bf16.msra.mxu0 %v2267
  %2403 = vmatprep.subr.bf16.mxu0 %v2266
  %2404 = vmatpush2.bf16.msra.mxu0 %v2265
  %2405 = vmatprep.subr.bf16.mxu0 %v2264
  %2406 = vmatpush2.bf16.msra.mxu0 %v2263
  %2407 = vmatprep.mubr.bf16.mxu0 %v1976
  %2408 = vmatmul.mubr.bf16.gmra.mxu0 %v1975
  %v2409 = vpop.f32.mrf.mxu0
  %v2410 = vadd.f32 %v2048, %v2409
  %v2411 = vpop.f32.mrf.mxu0
  %v2412 = vadd.f32 %v2052, %v2411
  %v2413 = vpop.f32.mrf.mxu0
  %v2414 = vpop.f32.mrf.mxu0
  %2415 = vdwg.mxu0
  %2416 = vmatprep.subr.bf16.mxu0 %v2294
  %2417 = vmatpush1.bf16.msra.mxu0 %v2293
  %2418 = vmatprep.subr.bf16.mxu0 %v2292
  %2419 = vmatpush1.bf16.msra.mxu0 %v2291
  %2420 = vmatprep.subr.bf16.mxu0 %v2290
  %2421 = vmatpush1.bf16.msra.mxu0 %v2289
  %2422 = vmatprep.subr.bf16.mxu0 %v2288
  %2423 = vmatpush1.bf16.msra.mxu0 %v2287
  %2424 = vmatprep.subr.bf16.mxu0 %v2286
  %2425 = vmatpush1.bf16.msra.mxu0 %v2285
  %2426 = vmatprep.subr.bf16.mxu0 %v2284
  %2427 = vmatpush1.bf16.msra.mxu0 %v2283
  %2428 = vmatprep.subr.bf16.mxu0 %v2282
  %2429 = vmatpush1.bf16.msra.mxu0 %v2281
  %2430 = vmatprep.subr.bf16.mxu0 %v2280
  %2431 = vmatpush1.bf16.msra.mxu0 %v2279
  %2432 = vmatprep.subr.bf16.mxu0 %v2310
  %2433 = vmatpush2.bf16.msra.mxu0 %v2309
  %2434 = vmatprep.subr.bf16.mxu0 %v2308
  %2435 = vmatpush2.bf16.msra.mxu0 %v2307
  %2436 = vmatprep.subr.bf16.mxu0 %v2306
  %2437 = vmatpush2.bf16.msra.mxu0 %v2305
  %2438 = vmatprep.subr.bf16.mxu0 %v2304
  %2439 = vmatpush2.bf16.msra.mxu0 %v2303
  %2440 = vmatprep.subr.bf16.mxu0 %v2302
  %2441 = vmatpush2.bf16.msra.mxu0 %v2301
  %2442 = vmatprep.subr.bf16.mxu0 %v2300
  %2443 = vmatpush2.bf16.msra.mxu0 %v2299
  %2444 = vmatprep.subr.bf16.mxu0 %v2298
  %2445 = vmatpush2.bf16.msra.mxu0 %v2297
  %2446 = vmatprep.subr.bf16.mxu0 %v2296
  %2447 = vmatpush2.bf16.msra.mxu0 %v2295
  %2448 = vmatprep.mubr.bf16.mxu0 %v1978
  %2449 = vmatmul.mubr.bf16.gmra.mxu0 %v1977
  %v2450 = vpop.f32.mrf.mxu0
  %v2451 = vadd.f32 %v2410, %v2450
  %v2452 = vpop.f32.mrf.mxu0
  %v2453 = vadd.f32 %v2412, %v2452
  %v2454 = vpop.f32.mrf.mxu0
  %v2455 = vpop.f32.mrf.mxu0
  %2456 = vdwg.mxu0
  %v2457 = vmul.f32 %v2451, 0.2
  %v2458 = vmul.f32 %v2453, 0.2
  %v2459 = vmax.f32 %v2451, %v2457
  %v2460 = vmax.f32 %v2453, %v2458
  %v2461 = vpack.c.bf16 %v2459, %v2459
  %v2462 = vpack.c.bf16 %v2460, %v2460
  %v2463 = vld [vmem:[%s5] sm:$0xf]
  %v2464 = vld [vmem:[%s5 + $0x4] sm:$0xf]
  %v2465 = vld [vmem:[%s5 + $0x8] sm:$0xf]
  %v2466 = vld [vmem:[%s5 + $0xc] sm:$0xf]
  %v2467 = vld [vmem:[%s5 + $0x10] sm:$0xf]
  %v2468 = vld [vmem:[%s5 + $0x14] sm:$0xf]
  %v2469 = vld [vmem:[%s5 + $0x18] sm:$0xf]
  %v2470 = vld [vmem:[%s5 + $0x1c] sm:$0xf]
  %v2471 = vld [vmem:[%s5 + $0x20] sm:$0xf]
  %v2472 = vld [vmem:[%s5 + $0x24] sm:$0xf]
  %v2473 = vld [vmem:[%s5 + $0x28] sm:$0xf]
  %v2474 = vld [vmem:[%s5 + $0x2c] sm:$0xf]
  %v2475 = vld [vmem:[%s5 + $0x30] sm:$0xf]
  %v2476 = vld [vmem:[%s5 + $0x34] sm:$0xf]
  %v2477 = vld [vmem:[%s5 + $0x38] sm:$0xf]
  %v2478 = vld [vmem:[%s5 + $0x3c] sm:$0xf]
  %v2479 = vld [vmem:[%s5 + $0x40] sm:$0xf]
  %v2480 = vld [vmem:[%s5 + $0x44] sm:$0xf]
  %v2481 = vld [vmem:[%s5 + $0x48] sm:$0xf]
  %v2482 = vld [vmem:[%s5 + $0x4c] sm:$0xf]
  %v2483 = vld [vmem:[%s5 + $0x50] sm:$0xf]
  %v2484 = vld [vmem:[%s5 + $0x54] sm:$0xf]
  %v2485 = vld [vmem:[%s5 + $0x58] sm:$0xf]
  %v2486 = vld [vmem:[%s5 + $0x5c] sm:$0xf]
  %v2487 = vld [vmem:[%s5 + $0x60] sm:$0xf]
  %v2488 = vld [vmem:[%s5 + $0x64] sm:$0xf]
  %v2489 = vld [vmem:[%s5 + $0x68] sm:$0xf]
  %v2490 = vld [vmem:[%s5 + $0x6c] sm:$0xf]
  %v2491 = vld [vmem:[%s5 + $0x70] sm:$0xf]
  %v2492 = vld [vmem:[%s5 + $0x74] sm:$0xf]
  %v2493 = vld [vmem:[%s5 + $0x78] sm:$0xf]
  %v2494 = vld [vmem:[%s5 + $0x7c] sm:$0xf]
  %v2495 = vld [vmem:[%s6] sm:$0x1]
  %v2497 = vlaneseq
  %v2498 = vshrl.u32 %v2497, 7
  %v2499 = vsub.s32 0, %v2498
  %v2500 = vrot.slane %v2495, %v2499
  %v2534 = vunpack.c.l.b16 %v2463
  %v2535 = vunpack.c.l.b16 %v2464
  %v2536 = vunpack.c.l.b16 %v2465
  %v2537 = vunpack.c.l.b16 %v2466
  %v2538 = vunpack.c.l.b16 %v2467
  %v2539 = vunpack.c.l.b16 %v2468
  %v2540 = vunpack.c.l.b16 %v2469
  %v2541 = vunpack.c.l.b16 %v2470
  %v2542 = vunpack.c.l.b16 %v2471
  %v2543 = vunpack.c.l.b16 %v2472
  %v2544 = vunpack.c.l.b16 %v2473
  %v2545 = vunpack.c.l.b16 %v2474
  %v2546 = vunpack.c.l.b16 %v2475
  %v2547 = vunpack.c.l.b16 %v2476
  %v2548 = vunpack.c.l.b16 %v2477
  %v2549 = vunpack.c.l.b16 %v2478
  %v2550 = vunpack.c.l.b16 %v2479
  %v2551 = vunpack.c.l.b16 %v2480
  %v2552 = vunpack.c.l.b16 %v2481
  %v2553 = vunpack.c.l.b16 %v2482
  %v2554 = vunpack.c.l.b16 %v2483
  %v2555 = vunpack.c.l.b16 %v2484
  %v2556 = vunpack.c.l.b16 %v2485
  %v2557 = vunpack.c.l.b16 %v2486
  %v2558 = vunpack.c.l.b16 %v2487
  %v2559 = vunpack.c.l.b16 %v2488
  %v2560 = vunpack.c.l.b16 %v2489
  %v2561 = vunpack.c.l.b16 %v2490
  %v2562 = vunpack.c.l.b16 %v2491
  %v2563 = vunpack.c.l.b16 %v2492
  %v2564 = vunpack.c.l.b16 %v2493
  %v2565 = vunpack.c.l.b16 %v2494
  %v2566 = vpack.c.b16 %v2535, %v2534
  %v2567 = vpack.c.b16 %v2537, %v2536
  %v2568 = vpack.c.b16 %v2539, %v2538
  %v2569 = vpack.c.b16 %v2541, %v2540
  %v2570 = vpack.c.b16 %v2543, %v2542
  %v2571 = vpack.c.b16 %v2545, %v2544
  %v2572 = vpack.c.b16 %v2547, %v2546
  %v2573 = vpack.c.b16 %v2549, %v2548
  %v2574 = vpack.c.b16 %v2551, %v2550
  %v2575 = vpack.c.b16 %v2553, %v2552
  %v2576 = vpack.c.b16 %v2555, %v2554
  %v2577 = vpack.c.b16 %v2557, %v2556
  %v2578 = vpack.c.b16 %v2559, %v2558
  %v2579 = vpack.c.b16 %v2561, %v2560
  %v2580 = vpack.c.b16 %v2563, %v2562
  %v2581 = vpack.c.b16 %v2565, %v2564
  %2598 = vmatprep.subr.bf16.mxu0 0
  %2599 = vmatpush1.bf16.msra.mxu0 %v2573
  %2600 = vmatprep.subr.bf16.mxu0 0
  %2601 = vmatpush1.bf16.msra.mxu0 %v2572
  %2602 = vmatprep.subr.bf16.mxu0 0
  %2603 = vmatpush1.bf16.msra.mxu0 %v2571
  %2604 = vmatprep.subr.bf16.mxu0 0
  %2605 = vmatpush1.bf16.msra.mxu0 %v2570
  %2606 = vmatprep.subr.bf16.mxu0 0
  %2607 = vmatpush1.bf16.msra.mxu0 %v2569
  %2608 = vmatprep.subr.bf16.mxu0 0
  %2609 = vmatpush1.bf16.msra.mxu0 %v2568
  %2610 = vmatprep.subr.bf16.mxu0 0
  %2611 = vmatpush1.bf16.msra.mxu0 %v2567
  %2612 = vmatprep.subr.bf16.mxu0 0
  %2613 = vmatpush1.bf16.msra.mxu0 %v2566
  %2614 = vmatprep.subr.bf16.mxu0 0
  %2615 = vmatpush2.bf16.msra.mxu0 %v2581
  %2616 = vmatprep.subr.bf16.mxu0 0
  %2617 = vmatpush2.bf16.msra.mxu0 %v2580
  %2618 = vmatprep.subr.bf16.mxu0 0
  %2619 = vmatpush2.bf16.msra.mxu0 %v2579
  %2620 = vmatprep.subr.bf16.mxu0 0
  %2621 = vmatpush2.bf16.msra.mxu0 %v2578
  %2622 = vmatprep.subr.bf16.mxu0 0
  %2623 = vmatpush2.bf16.msra.mxu0 %v2577
  %2624 = vmatprep.subr.bf16.mxu0 0
  %2625 = vmatpush2.bf16.msra.mxu0 %v2576
  %2626 = vmatprep.subr.bf16.mxu0 0
  %2627 = vmatpush2.bf16.msra.mxu0 %v2575
  %2628 = vmatprep.subr.bf16.mxu0 0
  %2629 = vmatpush2.bf16.msra.mxu0 %v2574
  %2630 = vmatprep.mubr.bf16.mxu0 %v2462
  %2631 = vmatmul.mubr.bf16.gmra.mxu0 %v2461
  %v2632 = vpop.f32.mrf.mxu0
  %v2633 = vadd.f32 %v2500, %v2632
  %v2634 = vpop.f32.mrf.mxu0
  %v2635 = vpop.f32.mrf.mxu0
  %v2636 = vpop.f32.mrf.mxu0
  %2637 = vdwg.mxu0
  %vm2638 = vcmask 66560
  %2639 = vst.msk [vmem:[%s7] sm:$0x3] %vm2638, %v2633
  // Predicated region
  $region30: #{dgcnn_feat_forward.15} parent=0 // pred_check
    _
  $region31: #{dgcnn_feat_forward.15} parent=0 // pred_check_branch
    %2641 = sbr.rel (0) target = $region33
  $region32: #{dgcnn_feat_forward.15} parent=0 // pred_region
    _
  $region33: #{dgcnn_feat_forward.15} parent=0 // pred_fallthru
    _
  // Predicated region
  $region34: #{dgcnn_feat_forward.15} parent=0 // pred_check
    _
  $region35: #{dgcnn_feat_forward.15} parent=0 // pred_check_branch
    %2643 = sbr.rel (0) target = $region37
  $region36: #{dgcnn_feat_forward.15} parent=0 // pred_region
    _
  $region37: #{dgcnn_feat_forward.15} parent=0 // pred_fallthru
    _

// kernel: dgcnn_feat_forward.18
$region0: #{dgcnn_feat_forward.18}
  #allocation0 [shape = 'u32[]', space=smem, size = 0x4, offset = 0x4, fixed_abs, tag = 'smem constant byte address 0x4 - core index']
  #allocation1 [shape = 'u32[144,128]{1,0:T(1,128)}', space=vmem, size = 0x12000, scoped, tag = 'internal scratch']
  %s0 = inlined_call_operand.vmem [shape: f32[2,16,64], index: 0, kind: input, shape index: {}, may-alias: {0,1}]
  %s1 = inlined_call_operand.vmem [shape: f32[2,16,64], index: 1, kind: input, shape index: {}, may-alias: {0,1}]
  %s2 = inlined_call_operand.vmem [shape: f32[2,16,16], index: 2, kind: output, shape index: {}]
  %s3 = sld [smem:[#allocation0]]
  $region41: #{dgcnn_feat_forward.18} parent=0
    _
  %s5 = ssub.s32 1, %s3
  %s6 = scalar_select 0, %s5, %s3
  loop: start=0, step=1, limit=4
  $region2: #{dgcnn_feat_forward.18} parent=0 // loop_pre_header
    _
  $region3: #{dgcnn_feat_forward.18} parent=0 // loop_header
    %s8 = sphi 0, %s12
    %p9 = scmp.ge.s32.totalorder %s8, 4
    %s15 = sphi 0, %s34
    %s16 = sphi 0, %s30
    %s17 = sphi 0, %s26
    %s18 = sphi 0, %s15
    %s19 = sphi 0, %s16
    %s20 = sphi 0, %s17
    %s21 = sphi 0, %s18
    %s22 = sphi 0, %s19
    %s23 = sphi 0, %s20
    %s39 = sphi 0, %s41
    %s42 = sphi 0, %s39
    %s43 = sphi 0, %s42
    %s59 = sphi 0, %s43
    %s67 = sphi 0, %s69
    %s70 = sphi 0, %s67
    %s71 = sphi 0, %s70
    %s87 = sphi 0, %s71
    %s97 = sphi 0, %s99
    %s100 = sphi 0, %s97
    %s101 = sphi 0, %s100
    %s117 = sphi 0, %s101
  $region4: #{dgcnn_feat_forward.18} parent=0 // loop_header_branch
    %11 = sbr.rel (%p9) target = $region8
  $region5: #{dgcnn_feat_forward.18} parent=0 // loop_body
    %s13 = ssub.s32 %s8, 1
    %s14 = ssub.s32 %s8, 2
    %s24 = sadd.s32 1, %s17
    %p25 = scmp.ge.s32.totalorder %s24, 1
    %s26 = scalar_select %p25, 0, %s24
    %s27 = sadd.s32 1, %s16
    %s28 = scalar_select %p25, %s27, %s16
    %p29 = scmp.ge.s32.totalorder %s28, 1
    %s30 = scalar_select %p29, 0, %s28
    %s31 = sadd.s32 1, %s15
    %s32 = scalar_select %p29, %s31, %s15
    %p33 = scmp.ge.s32.totalorder %s32, 2
    %s34 = scalar_select %p33, 0, %s32
    %s35 = ssub.s32 %s15, %s34
    %s36 = ssub.s32 %s16, %s30
    %s37 = sor.u32 %s35, %s36
    %p38 = scmp.eq.s32.totalorder %s37, 0
    %s40 = sadd.s32 %s39, 1
    %s41 = scalar_select %p38, %s39, %s40
    %p44 = pneg %p38
    %p45 = scmp.eq.s32.totalorder %s8, 1
    %p46 = por %p44, %p45
    %p47 = scmp.ne.s32.totalorder %s39, %s42
    %p48 = scmp.eq.s32.totalorder %s8, 0
    %p49 = por %p47, %p48
    %p50 = scmp.ne.s32.totalorder %s39, %s42
    %p51 = scmp.eq.s32.totalorder %s13, 1
    %p52 = por %p50, %p51
    %p53 = scmp.ne.s32.totalorder %s42, %s43
    %p54 = scmp.eq.s32.totalorder %s13, 0
    %p55 = por %p53, %p54
    %p56 = scmp.ne.s32.totalorder %s42, %s43
    %p57 = scmp.eq.s32.totalorder %s14, 1
    %p58 = por %p56, %p57
    %p60 = scmp.ne.s32.totalorder %s43, %s59
    %p61 = scmp.eq.s32.totalorder %s14, 0
    %p62 = por %p60, %p61
    %s63 = ssub.s32 %s15, %s34
    %s64 = ssub.s32 %s17, %s26
    %s65 = sor.u32 %s63, %s64
    %p66 = scmp.eq.s32.totalorder %s65, 0
    %s68 = sadd.s32 %s67, 1
    %s69 = scalar_select %p66, %s67, %s68
    %p72 = pneg %p66
    %p73 = scmp.eq.s32.totalorder %s8, 1
    %p74 = por %p72, %p73
    %p75 = scmp.ne.s32.totalorder %s67, %s70
    %p76 = scmp.eq.s32.totalorder %s8, 0
    %p77 = por %p75, %p76
    %p78 = scmp.ne.s32.totalorder %s67, %s70
    %p79 = scmp.eq.s32.totalorder %s13, 1
    %p80 = por %p78, %p79
    %p81 = scmp.ne.s32.totalorder %s70, %s71
    %p82 = scmp.eq.s32.totalorder %s13, 0
    %p83 = por %p81, %p82
    %p84 = scmp.ne.s32.totalorder %s70, %s71
    %p85 = scmp.eq.s32.totalorder %s14, 1
    %p86 = por %p84, %p85
    %p88 = scmp.ne.s32.totalorder %s71, %s87
    %p89 = scmp.eq.s32.totalorder %s14, 0
    %p90 = por %p88, %p89
    %s91 = ssub.s32 %s15, %s34
    %s92 = ssub.s32 %s16, %s30
    %s93 = sor.u32 %s91, %s92
    %s94 = ssub.s32 %s17, %s26
    %s95 = sor.u32 %s93, %s94
    %p96 = scmp.eq.s32.totalorder %s95, 0
    %s98 = sadd.s32 %s97, 1
    %s99 = scalar_select %p96, %s97, %s98
    %p102 = pneg %p96
    %p103 = scmp.eq.s32.totalorder %s8, 1
    %p104 = por %p102, %p103
    %p105 = scmp.ne.s32.totalorder %s97, %s100
    %p106 = scmp.eq.s32.totalorder %s8, 0
    %p107 = por %p105, %p106
    %p108 = scmp.ne.s32.totalorder %s97, %s100
    %p109 = scmp.eq.s32.totalorder %s13, 1
    %p110 = por %p108, %p109
    %p111 = scmp.ne.s32.totalorder %s100, %s101
    %p112 = scmp.eq.s32.totalorder %s13, 0
    %p113 = por %p111, %p112
    %p114 = scmp.ne.s32.totalorder %s100, %s101
    %p115 = scmp.eq.s32.totalorder %s14, 1
    %p116 = por %p114, %p115
    %p118 = scmp.ne.s32.totalorder %s101, %s117
    %p119 = scmp.eq.s32.totalorder %s14, 0
    %p120 = por %p118, %p119
    %p121 = scmp.le.s32.totalorder 1, %s8
    %p122 = scmp.lt.s32.totalorder %s8, 3
    %p123 = pnand %p121, %p122
    %p124 = pneg %p123
    // Predicated region
    $region9: #{dgcnn_feat_forward.18} parent=5 // pred_check
      _
    $region10: #{dgcnn_feat_forward.18} parent=5 // pred_check_branch
      %126 = sbr.rel (%p123) target = $region12
    $region11: #{dgcnn_feat_forward.18} parent=5 // pred_region
      %s127 = ssub.s32 %s8, 1
    $region12: #{dgcnn_feat_forward.18} parent=5 // pred_fallthru
      _
    %p128 = scmp.lt.s32.totalorder %s8, 2
    // Predicated region
    $region13: #{dgcnn_feat_forward.18} parent=5 // pred_check
      %p129 = pneg %p128
    $region14: #{dgcnn_feat_forward.18} parent=5 // pred_check_branch
      %131 = sbr.rel (%p129) target = $region16
    $region15: #{dgcnn_feat_forward.18} parent=5 // pred_region
      // Predicated region
      $region17: #{dgcnn_feat_forward.18} parent=15 // pred_check
        %p132 = pneg %p49
      $region18: #{dgcnn_feat_forward.18} parent=15 // pred_check_branch
        %134 = sbr.rel (%p132) target = $region20
      $region19: #{dgcnn_feat_forward.18} parent=15 // pred_region
        %s135 = smul.u32 2, %s16
        %p136 = scmp.lt.s32.totalorder %s15, 1
        %s137 = scalar_select %p136, %s15, 1
        %p138 = scmp.lt.s32.totalorder %s135, 1
        %s139 = scalar_select %p138, %s135, 1
        %s140 = smul.addr %s137, 2
        %s141 = sadd.s32 %s139, %s140
        %s142 = smul.addr %s141, 8
        %s143 = scalar_lea.vmem %s0, %s142
        %s144 = smul.u32 2, %s16
      $region20: #{dgcnn_feat_forward.18} parent=15 // pred_fallthru
        _
      // Predicated region
      $region21: #{dgcnn_feat_forward.18} parent=15 // pred_check
        %p145 = pneg %p77
      $region22: #{dgcnn_feat_forward.18} parent=15 // pred_check_branch
        %147 = sbr.rel (%p145) target = $region24
      $region23: #{dgcnn_feat_forward.18} parent=15 // pred_region
        %s148 = smul.u32 2, %s17
        %p149 = scmp.lt.s32.totalorder %s15, 1
        %s150 = scalar_select %p149, %s15, 1
        %p151 = scmp.lt.s32.totalorder %s148, 1
        %s152 = scalar_select %p151, %s148, 1
        %s153 = smul.addr %s150, 2
        %s154 = sadd.s32 %s152, %s153
        %s155 = smul.addr %s154, 8
        %s156 = scalar_lea.vmem %s1, %s155
        %s157 = smul.u32 2, %s17
      $region24: #{dgcnn_feat_forward.18} parent=15 // pred_fallthru
        _
    $region16: #{dgcnn_feat_forward.18} parent=5 // pred_fallthru
      _
    %p158 = scmp.le.s32.totalorder 1, %s8
    %p159 = scmp.lt.s32.totalorder %s8, 3
    %p160 = pnand %p158, %p159
    %p161 = pneg %p160
    // Predicated region
    $region25: #{dgcnn_feat_forward.18} parent=5 // pred_check
      _
    $region26: #{dgcnn_feat_forward.18} parent=5 // pred_check_branch
      %163 = sbr.rel (%p160) target = $region28
    $region27: #{dgcnn_feat_forward.18} parent=5 // pred_region
      %s164 = ssub.s32 %s8, 1
      %s165 = smul.u32 2, %s19
      %p166 = scmp.lt.s32.totalorder %s18, 1
      %s167 = scalar_select %p166, %s18, 1
      %p168 = scmp.lt.s32.totalorder %s165, 1
      %s169 = scalar_select %p168, %s165, 1
      %s170 = smul.addr %s167, 2
      %s171 = sadd.s32 %s169, %s170
      %s172 = smul.addr %s171, 8
      %s173 = scalar_lea.vmem %s0, %s172
      %p174 = pneg %p55
      %p175 = pneg %p52
      %s176 = smul.u32 2, %s20
      %p177 = scmp.lt.s32.totalorder %s18, 1
      %s178 = scalar_select %p177, %s18, 1
      %p179 = scmp.lt.s32.totalorder %s176, 1
      %s180 = scalar_select %p179, %s176, 1
      %s181 = smul.addr %s178, 2
      %s182 = sadd.s32 %s180, %s181
      %s183 = smul.addr %s182, 8
      %s184 = scalar_lea.vmem %s1, %s183
      %p185 = pneg %p83
      %p186 = pneg %p80
      %p187 = pneg %p113
      %p188 = pneg %p110
      %s189 = smul.u32 2, %s19
      %p190 = scmp.lt.s32.totalorder %s18, 1
      %s191 = scalar_select %p190, %s18, 1
      %p192 = scmp.lt.s32.totalorder %s189, 1
      %s193 = scalar_select %p192, %s189, 1
      %p194 = scmp.lt.s32.totalorder %s20, 0
      %s195 = scalar_select %p194, %s20, 0
      %s196 = sadd.s32 %s195, %s193
      %s197 = smul.addr %s191, 2
      %s198 = sadd.s32 %s196, %s197
      %s199 = smul.addr %s198, 8
      %s200 = scalar_lea.vmem %s2, %s199
      %s201 = smul.u32 2, %s19
      %p202 = scmp.lt.s32.totalorder %s18, 1
      %s203 = scalar_select %p202, %s18, 1
      %p204 = scmp.lt.s32.totalorder %s201, 1
      %s205 = scalar_select %p204, %s201, 1
      %s206 = smul.addr %s203, 2
      %s207 = sadd.s32 %s205, %s206
      %s208 = smul.addr %s207, 8
      %s209 = scalar_lea.vmem %s0, %s208
      %s210 = smul.u32 2, %s19
      %s211 = smul.u32 2, %s20
      %p212 = scmp.lt.s32.totalorder %s18, 1
      %s213 = scalar_select %p212, %s18, 1
      %p214 = scmp.lt.s32.totalorder %s211, 1
      %s215 = scalar_select %p214, %s211, 1
      %s216 = smul.addr %s213, 2
      %s217 = sadd.s32 %s215, %s216
      %s218 = smul.addr %s217, 8
      %s219 = scalar_lea.vmem %s1, %s218
      %s220 = smul.u32 2, %s20
      %s221 = smul.u32 2, %s19
      %p222 = scmp.lt.s32.totalorder %s18, 1
      %s223 = scalar_select %p222, %s18, 1
      %p224 = scmp.lt.s32.totalorder %s221, 1
      %s225 = scalar_select %p224, %s221, 1
      %p226 = scmp.lt.s32.totalorder %s20, 0
      %s227 = scalar_select %p226, %s20, 0
      %s228 = sadd.s32 %s227, %s225
      %s229 = smul.addr %s223, 2
      %s230 = sadd.s32 %s228, %s229
      %s231 = smul.addr %s230, 8
      %s232 = scalar_lea.vmem %s2, %s231
      %s233 = smul.u32 2, %s19
      %v234 = vld [vmem:[%s209] sm:$0xff]
      %v235 = vld [vmem:[%s209 + $0x8] sm:$0xff]
      %v236 = vld [vmem:[%s219] sm:$0xff]
      %v237 = vld [vmem:[%s219 + $0x8] sm:$0xff]
      %vm238 = vcmask 523264
      %v240 = vsel %vm238, %v234, 0
      %v243 = vsel %vm238, %v235, 0
      %v246 = vsel %vm238, %v236, 0
      %v249 = vsel %vm238, %v237, 0
      %251 = vmatprep.subr.mxu0 0.0
      %252 = vmatpush1.xpose.msra.mxu0 0.0
      %253 = vmatprep.subr.mxu0 0.0
      %254 = vmatpush1.xpose.msra.mxu0 0.0
      %255 = vmatprep.subr.mxu0 0.0
      %256 = vmatpush1.xpose.msra.mxu0 0.0
      %257 = vmatprep.subr.mxu0 0.0
      %258 = vmatpush1.xpose.msra.mxu0 0.0
      %259 = vmatprep.subr.mxu0 0.0
      %260 = vmatpush1.xpose.msra.mxu0 0.0
      %261 = vmatprep.subr.mxu0 0.0
      %262 = vmatpush1.xpose.msra.mxu0 0.0
      %263 = vmatprep.subr.mxu0 0.0
      %264 = vmatpush1.xpose.msra.mxu0 0.0
      %265 = vmatprep.subr.mxu0 0.0
      %266 = vmatpush1.xpose.msra.mxu0 0.0
      %267 = vmatprep.subr.mxu0 0.0
      %268 = vmatpush1.xpose.msra.mxu0 0.0
      %269 = vmatprep.subr.mxu0 0.0
      %270 = vmatpush1.xpose.msra.mxu0 0.0
      %271 = vmatprep.subr.mxu0 0.0
      %272 = vmatpush1.xpose.msra.mxu0 0.0
      %273 = vmatprep.subr.mxu0 0.0
      %274 = vmatpush1.xpose.msra.mxu0 0.0
      %275 = vmatprep.subr.mxu0 0.0
      %276 = vmatpush1.xpose.msra.mxu0 0.0
      %277 = vmatprep.subr.mxu0 0.0
      %278 = vmatpush1.xpose.msra.mxu0 0.0
      %279 = vmatprep.subr.mxu0 0.0
      %280 = vmatpush1.xpose.msra.mxu0 %v249
      %281 = vmatprep.subr.mxu0 0.0
      %282 = vmatpush1.xpose.msra.mxu0 %v246
      %283 = vmatprep.subr.mxu0 0.0
      %284 = vmatpush2.xpose.msra.mxu0 0.0
      %285 = vmatprep.subr.mxu0 0.0
      %286 = vmatpush2.xpose.msra.mxu0 0.0
      %287 = vmatprep.subr.mxu0 0.0
      %288 = vmatpush2.xpose.msra.mxu0 0.0
      %289 = vmatprep.subr.mxu0 0.0
      %290 = vmatpush2.xpose.msra.mxu0 0.0
      %291 = vmatprep.subr.mxu0 0.0
      %292 = vmatpush2.xpose.msra.mxu0 0.0
      %293 = vmatprep.subr.mxu0 0.0
      %294 = vmatpush2.xpose.msra.mxu0 0.0
      %295 = vmatprep.subr.mxu0 0.0
      %296 = vmatpush2.xpose.msra.mxu0 0.0
      %297 = vmatprep.subr.mxu0 0.0
      %298 = vmatpush2.xpose.msra.mxu0 0.0
      %299 = vmatprep.subr.mxu0 0.0
      %300 = vmatpush2.xpose.msra.mxu0 0.0
      %301 = vmatprep.subr.mxu0 0.0
      %302 = vmatpush2.xpose.msra.mxu0 0.0
      %303 = vmatprep.subr.mxu0 0.0
      %304 = vmatpush2.xpose.msra.mxu0 0.0
      %305 = vmatprep.subr.mxu0 0.0
      %306 = vmatpush2.xpose.msra.mxu0 0.0
      %307 = vmatprep.subr.mxu0 0.0
      %308 = vmatpush2.xpose.msra.mxu0 0.0
      %309 = vmatprep.subr.mxu0 0.0
      %310 = vmatpush2.xpose.msra.mxu0 0.0
      %311 = vmatprep.subr.mxu0 0.0
      %312 = vmatpush2.xpose.msra.mxu0 0.0
      %313 = vmatprep.subr.mxu0 0.0
      %314 = vmatpush2.xpose.msra.mxu0 0.0
      %315 = vmatprep.mubr.f32.mxu0 0.0
      %316 = vmatmul.mubr.f32.gmra.mxu0 %v240
      %v317 = vpop.f32.mrf.mxu0
      %v318 = vadd.f32 0.0, %v317
      %v319 = vpop.f32.mrf.mxu0
      %320 = vmatprep.mubr.f32.mxu0 0.0
      %321 = vmatmul.mubr.f32.gmra.mxu0 %v243
      %v322 = vpop.f32.mrf.mxu0
      %v323 = vadd.f32 0.0, %v322
      %v324 = vpop.f32.mrf.mxu0
      %325 = vdwg.mxu0
      %v326 = vmul.f32 %v234, %v234
      %v327 = vmul.f32 %v235, %v235
      %v328 = vsel %vm238, %v326, 0.0
      %329 = vadd.xlane.f32.xlu0 %v328
      %v330 = vpop.xlane.xlu0 %329
      %v331 = vsel %vm238, %v327, 0.0
      %332 = vadd.xlane.f32.xlu0 %v331
      %v333 = vpop.xlane.xlu0 %332
      %v334 = vmul.f32 %v236, %v236
      %v335 = vmul.f32 %v237, %v237
      %v336 = vsel %vm238, %v334, 0.0
      %337 = vadd.xlane.f32.xlu0 %v336
      %v338 = vpop.xlane.xlu0 %337
      %v339 = vsel %vm238, %v335, 0.0
      %340 = vadd.xlane.f32.xlu0 %v339
      %v341 = vpop.xlane.xlu0 %340
      %v342 = vmul.f32 %v318, 2.0
      %v343 = vmul.f32 %v323, 2.0
      %v344 = vsub.f32 %v342, %v330
      %v345 = vsub.f32 %v343, %v333
      %346 = vxpose.xlu0.b32.start [1/16] %v338, 128
      %347 = vxpose.xlu0.b32.cont [2/16] %v341, 128
      %348 = vxpose.xlu0.b32.cont [3/16] 0.0, 128
      %349 = vxpose.xlu0.b32.cont [4/16] 0.0, 128
      %350 = vxpose.xlu0.b32.cont [5/16] 0.0, 128
      %351 = vxpose.xlu0.b32.cont [6/16] 0.0, 128
      %352 = vxpose.xlu0.b32.cont [7/16] 0.0, 128
      %353 = vxpose.xlu0.b32.cont [8/16] 0.0, 128
      %354 = vxpose.xlu0.b32.cont [9/16] 0.0, 128
      %355 = vxpose.xlu0.b32.cont [10/16] 0.0, 128
      %356 = vxpose.xlu0.b32.cont [11/16] 0.0, 128
      %357 = vxpose.xlu0.b32.cont [12/16] 0.0, 128
      %358 = vxpose.xlu0.b32.cont [13/16] 0.0, 128
      %359 = vxpose.xlu0.b32.cont [14/16] 0.0, 128
      %360 = vxpose.xlu0.b32.cont [15/16] 0.0, 128
      %361 = vxpose.xlu0.b32.end [16/16] 0.0, 128
      %v362 = vpop.trf.xlu0
      %v363 = vpop.trf.xlu0
      %v364 = vpop.trf.xlu0
      %v365 = vpop.trf.xlu0
      %v366 = vpop.trf.xlu0
      %v367 = vpop.trf.xlu0
      %v368 = vpop.trf.xlu0
      %v369 = vpop.trf.xlu0
      %v370 = vpop.trf.xlu0
      %v371 = vpop.trf.xlu0
      %v372 = vpop.trf.xlu0
      %v373 = vpop.trf.xlu0
      %v374 = vpop.trf.xlu0
      %v375 = vpop.trf.xlu0
      %v376 = vpop.trf.xlu0
      %v377 = vpop.trf.xlu0
      %v378 = vlaneseq
      %v379 = vshrl.u32 %v378, 7
      %v380 = vsub.s32 0, %v379
      %v381 = vrot.slane %v362, %v380
      %v382 = vsub.f32 %v344, %v381
      %v383 = vsub.f32 %v345, %v381
      %vm384 = vcmask 130048
      %385 = vst.msk [vmem:[%s232] sm:$0xff] %vm384, %v382
      %386 = vst.msk [vmem:[%s232 + $0x8] sm:$0xff] %vm384, %v383
      %s387 = smul.u32 2, %s19
      %p388 = scmp.lt.s32.totalorder %s18, 1
      %s389 = scalar_select %p388, %s18, 1
      %p390 = scmp.lt.s32.totalorder %s387, 1
      %s391 = scalar_select %p390, %s387, 1
      %p392 = scmp.lt.s32.totalorder %s20, 0
      %s393 = scalar_select %p392, %s20, 0
      %s394 = sadd.s32 %s393, %s391
      %s395 = smul.addr %s389, 2
      %s396 = sadd.s32 %s394, %s395
      %s397 = smul.addr %s396, 8
      %s398 = scalar_lea.vmem %s2, %s397
      // Predicated region
      $region29: #{dgcnn_feat_forward.18} parent=27 // pred_check
        %p399 = pneg %p110
      $region30: #{dgcnn_feat_forward.18} parent=27 // pred_check_branch
        %401 = sbr.rel (%p399) target = $region32
      $region31: #{dgcnn_feat_forward.18} parent=27 // pred_region
        %s402 = smul.u32 2, %s19
      $region32: #{dgcnn_feat_forward.18} parent=27 // pred_fallthru
        _
    $region28: #{dgcnn_feat_forward.18} parent=5 // pred_fallthru
      _
    %p403 = scmp.le.s32.totalorder 2, %s8
    // Predicated region
    $region33: #{dgcnn_feat_forward.18} parent=5 // pred_check
      %p404 = pneg %p403
    $region34: #{dgcnn_feat_forward.18} parent=5 // pred_check_branch
      %406 = sbr.rel (%p404) target = $region36
    $region35: #{dgcnn_feat_forward.18} parent=5 // pred_region
      %s407 = ssub.s32 %s8, 2
      // Predicated region
      $region37: #{dgcnn_feat_forward.18} parent=35 // pred_check
        %p408 = pneg %p116
      $region38: #{dgcnn_feat_forward.18} parent=35 // pred_check_branch
        %410 = sbr.rel (%p408) target = $region40
      $region39: #{dgcnn_feat_forward.18} parent=35 // pred_region
        %s411 = smul.u32 2, %s22
        %p412 = scmp.lt.s32.totalorder %s21, 1
        %s413 = scalar_select %p412, %s21, 1
        %p414 = scmp.lt.s32.totalorder %s411, 1
        %s415 = scalar_select %p414, %s411, 1
        %p416 = scmp.lt.s32.totalorder %s23, 0
        %s417 = scalar_select %p416, %s23, 0
        %s418 = sadd.s32 %s417, %s415
        %s419 = smul.addr %s413, 2
        %s420 = sadd.s32 %s418, %s419
        %s421 = smul.addr %s420, 8
        %s422 = scalar_lea.vmem %s2, %s421
      $region40: #{dgcnn_feat_forward.18} parent=35 // pred_fallthru
        _
    $region36: #{dgcnn_feat_forward.18} parent=5 // pred_fallthru
      _
  $region6: #{dgcnn_feat_forward.18} parent=0 // loop_footer
    %s12 = sadd.s32 1, %s8
  $region7: #{dgcnn_feat_forward.18} parent=0 // loop_footer_branch
    %7 = sbr.rel target = $region3
  $region8: #{dgcnn_feat_forward.18} parent=0 // loop_exit
    _

// kernel: dgcnn_feat_forward.21
$region0: #{dgcnn_feat_forward.21}
  #allocation0 [shape = 'u32[]', space=smem, size = 0x4, offset = 0x4, fixed_abs, tag = 'smem constant byte address 0x4 - core index']
  #allocation1 [shape = 'u32[144,128]{1,0:T(1,128)}', space=vmem, size = 0x12000, scoped, tag = 'internal scratch']
  %s0 = inlined_call_operand.vmem [shape: f32[2,16,64], index: 0, kind: input, shape index: {}]
  %s1 = inlined_call_operand.vmem [shape: bf16[2,8,16,64], index: 1, kind: input, shape index: {}]
  %s2 = inlined_call_operand.vmem [shape: bf16[64,64], index: 2, kind: input, shape index: {}]
  %s3 = inlined_call_operand.vmem [shape: bf16[64,64], index: 3, kind: input, shape index: {}]
  %s4 = inlined_call_operand.vmem [shape: f32[1,64], index: 4, kind: input, shape index: {}]
  %s5 = inlined_call_operand.vmem [shape: f32[2,16,64], index: 5, kind: output, shape index: {}]
  %s6 = sld [smem:[#allocation0]]
  $region53: #{dgcnn_feat_forward.21} parent=0
    _
  %s8 = ssub.s32 1, %s6
  %s9 = scalar_select 0, %s8, %s6
  loop: start=0, step=1, limit=4
  $region2: #{dgcnn_feat_forward.21} parent=0 // loop_pre_header
    _
  $region3: #{dgcnn_feat_forward.21} parent=0 // loop_header
    %s11 = sphi 0, %s15
    %p12 = scmp.ge.s32.totalorder %s11, 4
    %s18 = sphi 0, %s30
    %s19 = sphi 0, %s26
    %s20 = sphi 0, %s18
    %s21 = sphi 0, %s19
    %s22 = sphi 0, %s20
    %s23 = sphi 0, %s21
    %s35 = sphi 0, %s37
    %s38 = sphi 0, %s35
    %s39 = sphi 0, %s38
    %s55 = sphi 0, %s39
    %s63 = sphi 0, %s65
    %s66 = sphi 0, %s63
    %s67 = sphi 0, %s66
    %s83 = sphi 0, %s67
    %s87 = sphi 0, %s87
    %s89 = sphi 0, %s87
    %s90 = sphi 0, %s89
    %s104 = sphi 0, %s90
    %s108 = sphi 0, %s108
    %s110 = sphi 0, %s108
    %s111 = sphi 0, %s110
    %s125 = sphi 0, %s111
    %s129 = sphi 0, %s129
    %s131 = sphi 0, %s129
    %s132 = sphi 0, %s131
    %s146 = sphi 0, %s132
    %s154 = sphi 0, %s156
    %s157 = sphi 0, %s154
    %s158 = sphi 0, %s157
    %s174 = sphi 0, %s158
  $region4: #{dgcnn_feat_forward.21} parent=0 // loop_header_branch
    %14 = sbr.rel (%p12) target = $region8
  $region5: #{dgcnn_feat_forward.21} parent=0 // loop_body
    %s16 = ssub.s32 %s11, 1
    %s17 = ssub.s32 %s11, 2
    %s24 = sadd.s32 1, %s19
    %p25 = scmp.ge.s32.totalorder %s24, 1
    %s26 = scalar_select %p25, 0, %s24
    %s27 = sadd.s32 1, %s18
    %s28 = scalar_select %p25, %s27, %s18
    %p29 = scmp.ge.s32.totalorder %s28, 2
    %s30 = scalar_select %p29, 0, %s28
    %s31 = ssub.s32 %s18, %s30
    %s32 = ssub.s32 %s19, %s26
    %s33 = sor.u32 %s31, %s32
    %p34 = scmp.eq.s32.totalorder %s33, 0
    %s36 = sadd.s32 %s35, 1
    %s37 = scalar_select %p34, %s35, %s36
    %p40 = pneg %p34
    %p41 = scmp.eq.s32.totalorder %s11, 1
    %p42 = por %p40, %p41
    %p43 = scmp.ne.s32.totalorder %s35, %s38
    %p44 = scmp.eq.s32.totalorder %s11, 0
    %p45 = por %p43, %p44
    %p46 = scmp.ne.s32.totalorder %s35, %s38
    %p47 = scmp.eq.s32.totalorder %s16, 1
    %p48 = por %p46, %p47
    %p49 = scmp.ne.s32.totalorder %s38, %s39
    %p50 = scmp.eq.s32.totalorder %s16, 0
    %p51 = por %p49, %p50
    %p52 = scmp.ne.s32.totalorder %s38, %s39
    %p53 = scmp.eq.s32.totalorder %s17, 1
    %p54 = por %p52, %p53
    %p56 = scmp.ne.s32.totalorder %s39, %s55
    %p57 = scmp.eq.s32.totalorder %s17, 0
    %p58 = por %p56, %p57
    %s59 = ssub.s32 %s18, %s30
    %s60 = ssub.s32 %s19, %s26
    %s61 = sor.u32 %s59, %s60
    %p62 = scmp.eq.s32.totalorder %s61, 0
    %s64 = sadd.s32 %s63, 1
    %s65 = scalar_select %p62, %s63, %s64
    %p68 = pneg %p62
    %p69 = scmp.eq.s32.totalorder %s11, 1
    %p70 = por %p68, %p69
    %p71 = scmp.ne.s32.totalorder %s63, %s66
    %p72 = scmp.eq.s32.totalorder %s11, 0
    %p73 = por %p71, %p72
    %p74 = scmp.ne.s32.totalorder %s63, %s66
    %p75 = scmp.eq.s32.totalorder %s16, 1
    %p76 = por %p74, %p75
    %p77 = scmp.ne.s32.totalorder %s66, %s67
    %p78 = scmp.eq.s32.totalorder %s16, 0
    %p79 = por %p77, %p78
    %p80 = scmp.ne.s32.totalorder %s66, %s67
    %p81 = scmp.eq.s32.totalorder %s17, 1
    %p82 = por %p80, %p81
    %p84 = scmp.ne.s32.totalorder %s67, %s83
    %p85 = scmp.eq.s32.totalorder %s17, 0
    %p86 = por %p84, %p85
    %s88 = sadd.s32 %s87, 1
    %p91 = scmp.eq.s32.totalorder %s11, 1
    %p92 = scmp.ne.s32.totalorder %s87, %s89
    %p93 = scmp.eq.s32.totalorder %s11, 0
    %p94 = por %p92, %p93
    %p95 = scmp.ne.s32.totalorder %s87, %s89
    %p96 = scmp.eq.s32.totalorder %s16, 1
    %p97 = por %p95, %p96
    %p98 = scmp.ne.s32.totalorder %s89, %s90
    %p99 = scmp.eq.s32.totalorder %s16, 0
    %p100 = por %p98, %p99
    %p101 = scmp.ne.s32.totalorder %s89, %s90
    %p102 = scmp.eq.s32.totalorder %s17, 1
    %p103 = por %p101, %p102
    %p105 = scmp.ne.s32.totalorder %s90, %s104
    %p106 = scmp.eq.s32.totalorder %s17, 0
    %p107 = por %p105, %p106
    %s109 = sadd.s32 %s108, 1
    %p112 = scmp.eq.s32.totalorder %s11, 1
    %p113 = scmp.ne.s32.totalorder %s108, %s110
    %p114 = scmp.eq.s32.totalorder %s11, 0
    %p115 = por %p113, %p114
    %p116 = scmp.ne.s32.totalorder %s108, %s110
    %p117 = scmp.eq.s32.totalorder %s16, 1
    %p118 = por %p116, %p117
    %p119 = scmp.ne.s32.totalorder %s110, %s111
    %p120 = scmp.eq.s32.totalorder %s16, 0
    %p121 = por %p119, %p120
    %p122 = scmp.ne.s32.totalorder %s110, %s111
    %p123 = scmp.eq.s32.totalorder %s17, 1
    %p124 = por %p122, %p123
    %p126 = scmp.ne.s32.totalorder %s111, %s125
    %p127 = scmp.eq.s32.totalorder %s17, 0
    %p128 = por %p126, %p127
    %s130 = sadd.s32 %s129, 1
    %p133 = scmp.eq.s32.totalorder %s11, 1
    %p134 = scmp.ne.s32.totalorder %s129, %s131
    %p135 = scmp.eq.s32.totalorder %s11, 0
    %p136 = por %p134, %p135
    %p137 = scmp.ne.s32.totalorder %s129, %s131
    %p138 = scmp.eq.s32.totalorder %s16, 1
    %p139 = por %p137, %p138
    %p140 = scmp.ne.s32.totalorder %s131, %s132
    %p141 = scmp.eq.s32.totalorder %s16, 0
    %p142 = por %p140, %p141
    %p143 = scmp.ne.s32.totalorder %s131, %s132
    %p144 = scmp.eq.s32.totalorder %s17, 1
    %p145 = por %p143, %p144
    %p147 = scmp.ne.s32.totalorder %s132, %s146
    %p148 = scmp.eq.s32.totalorder %s17, 0
    %p149 = por %p147, %p148
    %s150 = ssub.s32 %s18, %s30
    %s151 = ssub.s32 %s19, %s26
    %s152 = sor.u32 %s150, %s151
    %p153 = scmp.eq.s32.totalorder %s152, 0
    %s155 = sadd.s32 %s154, 1
    %s156 = scalar_select %p153, %s154, %s155
    %p159 = pneg %p153
    %p160 = scmp.eq.s32.totalorder %s11, 1
    %p161 = por %p159, %p160
    %p162 = scmp.ne.s32.totalorder %s154, %s157
    %p163 = scmp.eq.s32.totalorder %s11, 0
    %p164 = por %p162, %p163
    %p165 = scmp.ne.s32.totalorder %s154, %s157
    %p166 = scmp.eq.s32.totalorder %s16, 1
    %p167 = por %p165, %p166
    %p168 = scmp.ne.s32.totalorder %s157, %s158
    %p169 = scmp.eq.s32.totalorder %s16, 0
    %p170 = por %p168, %p169
    %p171 = scmp.ne.s32.totalorder %s157, %s158
    %p172 = scmp.eq.s32.totalorder %s17, 1
    %p173 = por %p171, %p172
    %p175 = scmp.ne.s32.totalorder %s158, %s174
    %p176 = scmp.eq.s32.totalorder %s17, 0
    %p177 = por %p175, %p176
    %p178 = scmp.le.s32.totalorder 1, %s11
    %p179 = scmp.lt.s32.totalorder %s11, 3
    %p180 = pnand %p178, %p179
    %p181 = pneg %p180
    // Predicated region
    $region9: #{dgcnn_feat_forward.21} parent=5 // pred_check
      _
    $region10: #{dgcnn_feat_forward.21} parent=5 // pred_check_branch
      %183 = sbr.rel (%p180) target = $region12
    $region11: #{dgcnn_feat_forward.21} parent=5 // pred_region
      %s184 = ssub.s32 %s11, 1
      // Predicated region
      $region13: #{dgcnn_feat_forward.21} parent=11 // pred_check
        %p185 = pneg %p100
      $region14: #{dgcnn_feat_forward.21} parent=11 // pred_check_branch
        %187 = sbr.rel (%p185) target = $region16
      $region15: #{dgcnn_feat_forward.21} parent=11 // pred_region
        _
      $region16: #{dgcnn_feat_forward.21} parent=11 // pred_fallthru
        _
      // Predicated region
      $region17: #{dgcnn_feat_forward.21} parent=11 // pred_check
        %p188 = pneg %p121
      $region18: #{dgcnn_feat_forward.21} parent=11 // pred_check_branch
        %190 = sbr.rel (%p188) target = $region20
      $region19: #{dgcnn_feat_forward.21} parent=11 // pred_region
        _
      $region20: #{dgcnn_feat_forward.21} parent=11 // pred_fallthru
        _
      // Predicated region
      $region21: #{dgcnn_feat_forward.21} parent=11 // pred_check
        %p191 = pneg %p142
      $region22: #{dgcnn_feat_forward.21} parent=11 // pred_check_branch
        %193 = sbr.rel (%p191) target = $region24
      $region23: #{dgcnn_feat_forward.21} parent=11 // pred_region
        _
      $region24: #{dgcnn_feat_forward.21} parent=11 // pred_fallthru
        _
    $region12: #{dgcnn_feat_forward.21} parent=5 // pred_fallthru
      _
    %p194 = scmp.lt.s32.totalorder %s11, 2
    // Predicated region
    $region25: #{dgcnn_feat_forward.21} parent=5 // pred_check
      %p195 = pneg %p194
    $region26: #{dgcnn_feat_forward.21} parent=5 // pred_check_branch
      %197 = sbr.rel (%p195) target = $region28
    $region27: #{dgcnn_feat_forward.21} parent=5 // pred_region
      // Predicated region
      $region29: #{dgcnn_feat_forward.21} parent=27 // pred_check
        %p198 = pneg %p45
      $region30: #{dgcnn_feat_forward.21} parent=27 // pred_check_branch
        %200 = sbr.rel (%p198) target = $region32
      $region31: #{dgcnn_feat_forward.21} parent=27 // pred_region
        %s201 = smul.u32 2, %s19
        %p202 = scmp.lt.s32.totalorder %s18, 1
        %s203 = scalar_select %p202, %s18, 1
        %p204 = scmp.lt.s32.totalorder %s201, 1
        %s205 = scalar_select %p204, %s201, 1
        %s206 = smul.addr %s203, 2
        %s207 = sadd.s32 %s205, %s206
        %s208 = smul.addr %s207, 8
        %s209 = scalar_lea.vmem %s0, %s208
        %s210 = smul.u32 2, %s19
      $region32: #{dgcnn_feat_forward.21} parent=27 // pred_fallthru
        _
      // Predicated region
      $region33: #{dgcnn_feat_forward.21} parent=27 // pred_check
        %p211 = pneg %p73
      $region34: #{dgcnn_feat_forward.21} parent=27 // pred_check_branch
        %213 = sbr.rel (%p211) target = $region36
      $region35: #{dgcnn_feat_forward.21} parent=27 // pred_region
        %s214 = smul.u32 2, %s19
        %p215 = scmp.lt.s32.totalorder %s18, 1
        %s216 = scalar_select %p215, %s18, 1
        %p217 = scmp.lt.s32.totalorder %s214, 1
        %s218 = scalar_select %p217, %s214, 1
        %s219 = smul.addr %s216, 16
        %s220 = sadd.s32 %s218, %s219
        %s221 = smul.addr %s220, 4
        %s222 = scalar_lea.vmem %s1, %s221
        %s223 = smul.u32 2, %s19
      $region36: #{dgcnn_feat_forward.21} parent=27 // pred_fallthru
        _
    $region28: #{dgcnn_feat_forward.21} parent=5 // pred_fallthru
      _
    %p224 = scmp.le.s32.totalorder 1, %s11
    %p225 = scmp.lt.s32.totalorder %s11, 3
    %p226 = pnand %p224, %p225
    %p227 = pneg %p226
    // Predicated region
    $region37: #{dgcnn_feat_forward.21} parent=5 // pred_check
      _
    $region38: #{dgcnn_feat_forward.21} parent=5 // pred_check_branch
      %229 = sbr.rel (%p226) target = $region40
    $region39: #{dgcnn_feat_forward.21} parent=5 // pred_region
      %s230 = ssub.s32 %s11, 1
      %s231 = smul.u32 2, %s21
      %p232 = scmp.lt.s32.totalorder %s20, 1
      %s233 = scalar_select %p232, %s20, 1
      %p234 = scmp.lt.s32.totalorder %s231, 1
      %s235 = scalar_select %p234, %s231, 1
      %s236 = smul.addr %s233, 2
      %s237 = sadd.s32 %s235, %s236
      %s238 = smul.addr %s237, 8
      %s239 = scalar_lea.vmem %s0, %s238
      %p240 = pneg %p51
      %p241 = pneg %p48
      %s242 = smul.u32 2, %s21
      %p243 = scmp.lt.s32.totalorder %s20, 1
      %s244 = scalar_select %p243, %s20, 1
      %p245 = scmp.lt.s32.totalorder %s242, 1
      %s246 = scalar_select %p245, %s242, 1
      %s247 = smul.addr %s244, 16
      %s248 = sadd.s32 %s246, %s247
      %s249 = smul.addr %s248, 4
      %s250 = scalar_lea.vmem %s1, %s249
      %p251 = pneg %p79
      %p252 = pneg %p76
      %p253 = pneg %p100
      %p254 = pneg %p97
      %p255 = pneg %p121
      %p256 = pneg %p118
      %p257 = pneg %p142
      %p258 = pneg %p139
      %p259 = pneg %p170
      %p260 = pneg %p167
      %s261 = smul.u32 2, %s21
      %p262 = scmp.lt.s32.totalorder %s20, 1
      %s263 = scalar_select %p262, %s20, 1
      %p264 = scmp.lt.s32.totalorder %s261, 1
      %s265 = scalar_select %p264, %s261, 1
      %s266 = smul.addr %s263, 2
      %s267 = sadd.s32 %s265, %s266
      %s268 = smul.addr %s267, 8
      %s269 = scalar_lea.vmem %s5, %s268
      %s270 = smul.u32 2, %s21
      %p271 = scmp.lt.s32.totalorder %s20, 1
      %s272 = scalar_select %p271, %s20, 1
      %p273 = scmp.lt.s32.totalorder %s270, 1
      %s274 = scalar_select %p273, %s270, 1
      %s275 = smul.addr %s272, 2
      %s276 = sadd.s32 %s274, %s275
      %s277 = smul.addr %s276, 8
      %s278 = scalar_lea.vmem %s0, %s277
      %s279 = smul.u32 2, %s21
      %s280 = smul.u32 2, %s21
      %p281 = scmp.lt.s32.totalorder %s20, 1
      %s282 = scalar_select %p281, %s20, 1
      %p283 = scmp.lt.s32.totalorder %s280, 1
      %s284 = scalar_select %p283, %s280, 1
      %s285 = smul.addr %s282, 16
      %s286 = sadd.s32 %s284, %s285
      %s287 = smul.addr %s286, 4
      %s288 = scalar_lea.vmem %s1, %s287
      %s289 = smul.u32 2, %s21
      %s290 = smul.u32 2, %s21
      %p291 = scmp.lt.s32.totalorder %s20, 1
      %s292 = scalar_select %p291, %s20, 1
      %p293 = scmp.lt.s32.totalorder %s290, 1
      %s294 = scalar_select %p293, %s290, 1
      %s295 = smul.addr %s292, 2
      %s296 = sadd.s32 %s294, %s295
      %s297 = smul.addr %s296, 8
      %s298 = scalar_lea.vmem %s5, %s297
      %s299 = smul.u32 2, %s21
      %v301 = vld [vmem:[%s278] sm:$0xff]
      %v302 = vld [vmem:[%s278 + $0x8] sm:$0xff]
      %v303 = vpack.c.bf16 %v302, %v301
      %v304 = vld [vmem:[%s3] sm:$0xf]
      %v305 = vld [vmem:[%s3 + $0x4] sm:$0xf]
      %v306 = vld [vmem:[%s3 + $0x8] sm:$0xf]
      %v307 = vld [vmem:[%s3 + $0xc] sm:$0xf]
      %v308 = vld [vmem:[%s3 + $0x10] sm:$0xf]
      %v309 = vld [vmem:[%s3 + $0x14] sm:$0xf]
      %v310 = vld [vmem:[%s3 + $0x18] sm:$0xf]
      %v311 = vld [vmem:[%s3 + $0x1c] sm:$0xf]
      %v312 = vld [vmem:[%s4] sm:$0x1]
      %v314 = vlaneseq
      %v315 = vshrl.u32 %v314, 7
      %v316 = vsub.s32 0, %v315
      %v317 = vrot.slane %v312, %v316
      %v327 = vunpack.c.l.b16 %v304
      %v328 = vunpack.c.l.b16 %v305
      %v329 = vunpack.c.l.b16 %v306
      %v330 = vunpack.c.l.b16 %v307
      %v331 = vunpack.c.l.b16 %v308
      %v332 = vunpack.c.l.b16 %v309
      %v333 = vunpack.c.l.b16 %v310
      %v334 = vunpack.c.l.b16 %v311
      %v335 = vpack.c.b16 %v328, %v327
      %v336 = vpack.c.b16 %v330, %v329
      %v337 = vpack.c.b16 %v332, %v331
      %v338 = vpack.c.b16 %v334, %v333
      %vm343 = vcmask 523264
      %v345 = vsel %vm343, %v303, 0
      %347 = vmatprep.subr.bf16.mxu0 0
      %348 = vmatpush1.bf16.msra.mxu0 0
      %349 = vmatprep.subr.bf16.mxu0 0
      %350 = vmatpush1.bf16.msra.mxu0 0
      %351 = vmatprep.subr.bf16.mxu0 0
      %352 = vmatpush1.bf16.msra.mxu0 0
      %353 = vmatprep.subr.bf16.mxu0 0
      %354 = vmatpush1.bf16.msra.mxu0 0
      %355 = vmatprep.subr.bf16.mxu0 0
      %356 = vmatpush1.bf16.msra.mxu0 %v338
      %357 = vmatprep.subr.bf16.mxu0 0
      %358 = vmatpush1.bf16.msra.mxu0 %v337
      %359 = vmatprep.subr.bf16.mxu0 0
      %360 = vmatpush1.bf16.msra.mxu0 %v336
      %361 = vmatprep.subr.bf16.mxu0 0
      %362 = vmatpush1.bf16.msra.mxu0 %v335
      %363 = vmatprep.subr.bf16.mxu0 0
      %364 = vmatpush2.bf16.msra.mxu0 0
      %365 = vmatprep.subr.bf16.mxu0 0
      %366 = vmatpush2.bf16.msra.mxu0 0
      %367 = vmatprep.subr.bf16.mxu0 0
      %368 = vmatpush2.bf16.msra.mxu0 0
      %369 = vmatprep.subr.bf16.mxu0 0
      %370 = vmatpush2.bf16.msra.mxu0 0
      %371 = vmatprep.subr.bf16.mxu0 0
      %372 = vmatpush2.bf16.msra.mxu0 0
      %373 = vmatprep.subr.bf16.mxu0 0
      %374 = vmatpush2.bf16.msra.mxu0 0
      %375 = vmatprep.subr.bf16.mxu0 0
      %376 = vmatpush2.bf16.msra.mxu0 0
      %377 = vmatprep.subr.bf16.mxu0 0
      %378 = vmatpush2.bf16.msra.mxu0 0
      %379 = vmatprep.mubr.bf16.mxu0 0
      %380 = vmatmul.mubr.bf16.gmra.mxu0 %v345
      %v381 = vpop.f32.mrf.mxu0
      %v382 = vadd.f32 %v317, %v381
      %v383 = vpop.f32.mrf.mxu0
      %v384 = vpop.f32.mrf.mxu0
      %v385 = vadd.f32 %v317, %v384
      %v386 = vpop.f32.mrf.mxu0
      %387 = vdwg.mxu0
      %v388 = vld [vmem:[%s288] sm:$0xf]
      %v389 = vld [vmem:[%s288 + $0x4] sm:$0xf]
      %v390 = vld [vmem:[%s288 + $0x8] sm:$0xf]
      %v391 = vld [vmem:[%s288 + $0xc] sm:$0xf]
      %v392 = vld [vmem:[%s288 + $0x10] sm:$0xf]
      %v393 = vld [vmem:[%s288 + $0x14] sm:$0xf]
      %v394 = vld [vmem:[%s288 + $0x18] sm:$0xf]
      %v395 = vld [vmem:[%s288 + $0x1c] sm:$0xf]
      %v396 = vld [vmem:[%s288 + $0x20] sm:$0xf]
      %v397 = vld [vmem:[%s288 + $0x24] sm:$0xf]
      %v398 = vld [vmem:[%s288 + $0x28] sm:$0xf]
      %v399 = vld [vmem:[%s288 + $0x2c] sm:$0xf]
      %v400 = vld [vmem:[%s288 + $0x30] sm:$0xf]
      %v401 = vld [vmem:[%s288 + $0x34] sm:$0xf]
      %v402 = vld [vmem:[%s288 + $0x38] sm:$0xf]
      %v403 = vld [vmem:[%s288 + $0x3c] sm:$0xf]
      %v404 = vld [vmem:[%s2] sm:$0xf]
      %v405 = vld [vmem:[%s2 + $0x4] sm:$0xf]
      %v406 = vld [vmem:[%s2 + $0x8] sm:$0xf]
      %v407 = vld [vmem:[%s2 + $0xc] sm:$0xf]
      %v408 = vld [vmem:[%s2 + $0x10] sm:$0xf]
      %v409 = vld [vmem:[%s2 + $0x14] sm:$0xf]
      %v410 = vld [vmem:[%s2 + $0x18] sm:$0xf]
      %v411 = vld [vmem:[%s2 + $0x1c] sm:$0xf]
      %v428 = vunpack.c.l.b16 %v388
      %v429 = vunpack.c.l.b16 %v389
      %v430 = vunpack.c.l.b16 %v390
      %v431 = vunpack.c.l.b16 %v391
      %v432 = vunpack.c.l.b16 %v392
      %v433 = vunpack.c.l.b16 %v393
      %v434 = vunpack.c.l.b16 %v394
      %v435 = vunpack.c.l.b16 %v395
      %v436 = vunpack.c.l.b16 %v396
      %v437 = vunpack.c.l.b16 %v397
      %v438 = vunpack.c.l.b16 %v398
      %v439 = vunpack.c.l.b16 %v399
      %v440 = vunpack.c.l.b16 %v400
      %v441 = vunpack.c.l.b16 %v401
      %v442 = vunpack.c.l.b16 %v402
      %v443 = vunpack.c.l.b16 %v403
      %v444 = vpack.c.b16 %v429, %v428
      %v445 = vpack.c.b16 %v431, %v430
      %v446 = vpack.c.b16 %v433, %v432
      %v447 = vpack.c.b16 %v435, %v434
      %v448 = vpack.c.b16 %v437, %v436
      %v449 = vpack.c.b16 %v439, %v438
      %v450 = vpack.c.b16 %v441, %v440
      %v451 = vpack.c.b16 %v443, %v442
      %v460 = vunpack.c.l.b16 %v404
      %v461 = vunpack.c.l.b16 %v405
      %v462 = vunpack.c.l.b16 %v406
      %v463 = vunpack.c.l.b16 %v407
      %v464 = vunpack.c.l.b16 %v408
      %v465 = vunpack.c.l.b16 %v409
      %v466 = vunpack.c.l.b16 %v410
      %v467 = vunpack.c.l.b16 %v411
      %v468 = vpack.c.b16 %v461, %v460
      %v469 = vpack.c.b16 %v463, %v462
      %v470 = vpack.c.b16 %v465, %v464
      %v471 = vpack.c.b16 %v467, %v466
      %v477 = vsel %vm343, %v444, 0
      %v480 = vsel %vm343, %v445, 0
      %v483 = vsel %vm343, %v446, 0
      %v486 = vsel %vm343, %v447, 0
      %v489 = vsel %vm343, %v448, 0
      %v492 = vsel %vm343, %v449, 0
      %v495 = vsel %vm343, %v450, 0
      %v498 = vsel %vm343, %v451, 0
      %500 = vmatprep.subr.bf16.mxu0 0
      %501 = vmatpush1.bf16.msra.mxu0 0
      %502 = vmatprep.subr.bf16.mxu0 0
      %503 = vmatpush1.bf16.msra.mxu0 0
      %504 = vmatprep.subr.bf16.mxu0 0
      %505 = vmatpush1.bf16.msra.mxu0 0
      %506 = vmatprep.subr.bf16.mxu0 0
      %507 = vmatpush1.bf16.msra.mxu0 0
      %508 = vmatprep.subr.bf16.mxu0 0
      %509 = vmatpush1.bf16.msra.mxu0 %v471
      %510 = vmatprep.subr.bf16.mxu0 0
      %511 = vmatpush1.bf16.msra.mxu0 %v470
      %512 = vmatprep.subr.bf16.mxu0 0
      %513 = vmatpush1.bf16.msra.mxu0 %v469
      %514 = vmatprep.subr.bf16.mxu0 0
      %515 = vmatpush1.bf16.msra.mxu0 %v468
      %516 = vmatprep.subr.bf16.mxu0 0
      %517 = vmatpush2.bf16.msra.mxu0 0
      %518 = vmatprep.subr.bf16.mxu0 0
      %519 = vmatpush2.bf16.msra.mxu0 0
      %520 = vmatprep.subr.bf16.mxu0 0
      %521 = vmatpush2.bf16.msra.mxu0 0
      %522 = vmatprep.subr.bf16.mxu0 0
      %523 = vmatpush2.bf16.msra.mxu0 0
      %524 = vmatprep.subr.bf16.mxu0 0
      %525 = vmatpush2.bf16.msra.mxu0 0
      %526 = vmatprep.subr.bf16.mxu0 0
      %527 = vmatpush2.bf16.msra.mxu0 0
      %528 = vmatprep.subr.bf16.mxu0 0
      %529 = vmatpush2.bf16.msra.mxu0 0
      %530 = vmatprep.subr.bf16.mxu0 0
      %531 = vmatpush2.bf16.msra.mxu0 0
      %532 = vmatprep.mubr.bf16.mxu0 0
      %533 = vmatmul.mubr.bf16.gmra.mxu0 %v477
      %v534 = vpop.f32.mrf.mxu0
      %v535 = vadd.f32 0.0, %v534
      %v536 = vpop.f32.mrf.mxu0
      %v537 = vpop.f32.mrf.mxu0
      %v538 = vadd.f32 0.0, %v537
      %v539 = vpop.f32.mrf.mxu0
      %540 = vmatprep.mubr.bf16.mxu0 0
      %541 = vmatmul.mubr.bf16.gmra.mxu0 %v480
      %v542 = vpop.f32.mrf.mxu0
      %v543 = vadd.f32 0.0, %v542
      %v544 = vpop.f32.mrf.mxu0
      %v545 = vpop.f32.mrf.mxu0
      %v546 = vadd.f32 0.0, %v545
      %v547 = vpop.f32.mrf.mxu0
      %548 = vmatprep.mubr.bf16.mxu0 0
      %549 = vmatmul.mubr.bf16.gmra.mxu0 %v483
      %v550 = vpop.f32.mrf.mxu0
      %v551 = vadd.f32 0.0, %v550
      %v552 = vpop.f32.mrf.mxu0
      %v553 = vpop.f32.mrf.mxu0
      %v554 = vadd.f32 0.0, %v553
      %v555 = vpop.f32.mrf.mxu0
      %556 = vmatprep.mubr.bf16.mxu0 0
      %557 = vmatmul.mubr.bf16.gmra.mxu0 %v486
      %v558 = vpop.f32.mrf.mxu0
      %v559 = vadd.f32 0.0, %v558
      %v560 = vpop.f32.mrf.mxu0
      %v561 = vpop.f32.mrf.mxu0
      %v562 = vadd.f32 0.0, %v561
      %v563 = vpop.f32.mrf.mxu0
      %564 = vmatprep.mubr.bf16.mxu0 0
      %565 = vmatmul.mubr.bf16.gmra.mxu0 %v489
      %v566 = vpop.f32.mrf.mxu0
      %v567 = vadd.f32 0.0, %v566
      %v568 = vpop.f32.mrf.mxu0
      %v569 = vpop.f32.mrf.mxu0
      %v570 = vadd.f32 0.0, %v569
      %v571 = vpop.f32.mrf.mxu0
      %572 = vmatprep.mubr.bf16.mxu0 0
      %573 = vmatmul.mubr.bf16.gmra.mxu0 %v492
      %v574 = vpop.f32.mrf.mxu0
      %v575 = vadd.f32 0.0, %v574
      %v576 = vpop.f32.mrf.mxu0
      %v577 = vpop.f32.mrf.mxu0
      %v578 = vadd.f32 0.0, %v577
      %v579 = vpop.f32.mrf.mxu0
      %580 = vmatprep.mubr.bf16.mxu0 0
      %581 = vmatmul.mubr.bf16.gmra.mxu0 %v495
      %v582 = vpop.f32.mrf.mxu0
      %v583 = vadd.f32 0.0, %v582
      %v584 = vpop.f32.mrf.mxu0
      %v585 = vpop.f32.mrf.mxu0
      %v586 = vadd.f32 0.0, %v585
      %v587 = vpop.f32.mrf.mxu0
      %588 = vmatprep.mubr.bf16.mxu0 0
      %589 = vmatmul.mubr.bf16.gmra.mxu0 %v498
      %v590 = vpop.f32.mrf.mxu0
      %v591 = vadd.f32 0.0, %v590
      %v592 = vpop.f32.mrf.mxu0
      %v593 = vpop.f32.mrf.mxu0
      %v594 = vadd.f32 0.0, %v593
      %v595 = vpop.f32.mrf.mxu0
      %596 = vdwg.mxu0
      %v597 = vadd.f32 %v535, %v382
      %v598 = vadd.f32 %v538, %v385
      %v599 = vadd.f32 %v543, %v382
      %v600 = vadd.f32 %v546, %v385
      %v601 = vadd.f32 %v551, %v382
      %v602 = vadd.f32 %v554, %v385
      %v603 = vadd.f32 %v559, %v382
      %v604 = vadd.f32 %v562, %v385
      %v605 = vadd.f32 %v567, %v382
      %v606 = vadd.f32 %v570, %v385
      %v607 = vadd.f32 %v575, %v382
      %v608 = vadd.f32 %v578, %v385
      %v609 = vadd.f32 %v583, %v382
      %v610 = vadd.f32 %v586, %v385
      %v611 = vadd.f32 %v591, %v382
      %v612 = vadd.f32 %v594, %v385
      %v613 = vmul.f32 %v597, 0.2
      %v614 = vmul.f32 %v598, 0.2
      %v615 = vmul.f32 %v599, 0.2
      %v616 = vmul.f32 %v600, 0.2
      %v617 = vmul.f32 %v601, 0.2
      %v618 = vmul.f32 %v602, 0.2
      %v619 = vmul.f32 %v603, 0.2
      %v620 = vmul.f32 %v604, 0.2
      %v621 = vmul.f32 %v605, 0.2
      %v622 = vmul.f32 %v606, 0.2
      %v623 = vmul.f32 %v607, 0.2
      %v624 = vmul.f32 %v608, 0.2
      %v625 = vmul.f32 %v609, 0.2
      %v626 = vmul.f32 %v610, 0.2
      %v627 = vmul.f32 %v611, 0.2
      %v628 = vmul.f32 %v612, 0.2
      %v629 = vmax.f32 %v597, %v613
      %v630 = vmax.f32 %v598, %v614
      %v631 = vmax.f32 %v599, %v615
      %v632 = vmax.f32 %v600, %v616
      %v633 = vmax.f32 %v601, %v617
      %v634 = vmax.f32 %v602, %v618
      %v635 = vmax.f32 %v603, %v619
      %v636 = vmax.f32 %v604, %v620
      %v637 = vmax.f32 %v605, %v621
      %v638 = vmax.f32 %v606, %v622
      %v639 = vmax.f32 %v607, %v623
      %v640 = vmax.f32 %v608, %v624
      %v641 = vmax.f32 %v609, %v625
      %v642 = vmax.f32 %v610, %v626
      %v643 = vmax.f32 %v611, %v627
      %v644 = vmax.f32 %v612, %v628
      %v645 = vsel %vm343, %v629, -inf
      %v646 = vsel %vm343, %v631, -inf
      %v647 = vsel %vm343, %v633, -inf
      %v648 = vmax.f32 %v645, %v647
      %v649 = vsel %vm343, %v635, -inf
      %v650 = vmax.f32 %v646, %v649
      %v651 = vsel %vm343, %v637, -inf
      %v652 = vmax.f32 %v648, %v651
      %v653 = vsel %vm343, %v639, -inf
      %v654 = vmax.f32 %v650, %v653
      %v655 = vsel %vm343, %v641, -inf
      %v656 = vmax.f32 %v652, %v655
      %v657 = vsel %vm343, %v643, -inf
      %v658 = vmax.f32 %v654, %v657
      %v659 = vmax.f32 %v656, %v658
      %v660 = vsel %vm343, %v630, -inf
      %v661 = vsel %vm343, %v632, -inf
      %v662 = vsel %vm343, %v634, -inf
      %v663 = vmax.f32 %v660, %v662
      %v664 = vsel %vm343, %v636, -inf
      %v665 = vmax.f32 %v661, %v664
      %v666 = vsel %vm343, %v638, -inf
      %v667 = vmax.f32 %v663, %v666
      %v668 = vsel %vm343, %v640, -inf
      %v669 = vmax.f32 %v665, %v668
      %v670 = vsel %vm343, %v642, -inf
      %v671 = vmax.f32 %v667, %v670
      %v672 = vsel %vm343, %v644, -inf
      %v673 = vmax.f32 %v669, %v672
      %v674 = vmax.f32 %v671, %v673
      %675 = vst.msk [vmem:[%s298] sm:$0xff] %vm343, %v659
      %676 = vst.msk [vmem:[%s298 + $0x8] sm:$0xff] %vm343, %v674
      %s677 = smul.u32 2, %s21
      %p678 = scmp.lt.s32.totalorder %s20, 1
      %s679 = scalar_select %p678, %s20, 1
      %p680 = scmp.lt.s32.totalorder %s677, 1
      %s681 = scalar_select %p680, %s677, 1
      %s682 = smul.addr %s679, 2
      %s683 = sadd.s32 %s681, %s682
      %s684 = smul.addr %s683, 8
      %s685 = scalar_lea.vmem %s5, %s684
      // Predicated region
      $region41: #{dgcnn_feat_forward.21} parent=39 // pred_check
        %p686 = pneg %p167
      $region42: #{dgcnn_feat_forward.21} parent=39 // pred_check_branch
        %688 = sbr.rel (%p686) target = $region44
      $region43: #{dgcnn_feat_forward.21} parent=39 // pred_region
        %s689 = smul.u32 2, %s21
      $region44: #{dgcnn_feat_forward.21} parent=39 // pred_fallthru
        _
    $region40: #{dgcnn_feat_forward.21} parent=5 // pred_fallthru
      _
    %p690 = scmp.le.s32.totalorder 2, %s11
    // Predicated region
    $region45: #{dgcnn_feat_forward.21} parent=5 // pred_check
      %p691 = pneg %p690
    $region46: #{dgcnn_feat_forward.21} parent=5 // pred_check_branch
      %693 = sbr.rel (%p691) target = $region48
    $region47: #{dgcnn_feat_forward.21} parent=5 // pred_region
      %s694 = ssub.s32 %s11, 2
      // Predicated region
      $region49: #{dgcnn_feat_forward.21} parent=47 // pred_check
        %p695 = pneg %p173
      $region50: #{dgcnn_feat_forward.21} parent=47 // pred_check_branch
        %697 = sbr.rel (%p695) target = $region52
      $region51: #{dgcnn_feat_forward.21} parent=47 // pred_region
        %s698 = smul.u32 2, %s23
        %p699 = scmp.lt.s32.totalorder %s22, 1
        %s700 = scalar_select %p699, %s22, 1
        %p701 = scmp.lt.s32.totalorder %s698, 1
        %s702 = scalar_select %p701, %s698, 1
        %s703 = smul.addr %s700, 2
        %s704 = sadd.s32 %s702, %s703
        %s705 = smul.addr %s704, 8
        %s706 = scalar_lea.vmem %s5, %s705
      $region52: #{dgcnn_feat_forward.21} parent=47 // pred_fallthru
        _
    $region48: #{dgcnn_feat_forward.21} parent=5 // pred_fallthru
      _
  $region6: #{dgcnn_feat_forward.21} parent=0 // loop_footer
    %s15 = sadd.s32 1, %s11
  $region7: #{dgcnn_feat_forward.21} parent=0 // loop_footer_branch
    %10 = sbr.rel target = $region3
  $region8: #{dgcnn_feat_forward.21} parent=0 // loop_exit
    _

// kernel: dgcnn_feat_forward.22
$region0: #{dgcnn_feat_forward.22}
  #allocation0 [shape = 'u32[]', space=smem, size = 0x4, offset = 0x4, fixed_abs, tag = 'smem constant byte address 0x4 - core index']
  #allocation1 [shape = 'u32[144,128]{1,0:T(1,128)}', space=vmem, size = 0x12000, scoped, tag = 'internal scratch']
  %s0 = inlined_call_operand.vmem [shape: f32[2,16,64], index: 0, kind: input, shape index: {}]
  %s1 = inlined_call_operand.vmem [shape: f32[2,16,64], index: 1, kind: input, shape index: {}]
  %s2 = inlined_call_operand.vmem [shape: f32[2,16,64], index: 2, kind: input, shape index: {}]
  %s3 = inlined_call_operand.vmem [shape: bf16[192,128], index: 3, kind: input, shape index: {}]
  %s4 = inlined_call_operand.vmem [shape: f32[1,128], index: 4, kind: input, shape index: {}]
  %s5 = inlined_call_operand.vmem [shape: f32[2,1,128], index: 5, kind: output, shape index: {}]
  %s6 = sld [smem:[#allocation0]]
  $region57: #{dgcnn_feat_forward.22} parent=0
    _
  %s8 = ssub.s32 1, %s6
  %s9 = scalar_select 0, %s8, %s6
  loop: start=0, step=1, limit=4
  $region2: #{dgcnn_feat_forward.22} parent=0 // loop_pre_header
    _
  $region3: #{dgcnn_feat_forward.22} parent=0 // loop_header
    %s11 = sphi 0, %s15
    %p12 = scmp.ge.s32.totalorder %s11, 4
    %s18 = sphi 0, %s37
    %s19 = sphi 0, %s33
    %s20 = sphi 0, %s29
    %s21 = sphi 0, %s18
    %s22 = sphi 0, %s19
    %s23 = sphi 0, %s20
    %s24 = sphi 0, %s21
    %s25 = sphi 0, %s22
    %s26 = sphi 0, %s23
    %s42 = sphi 0, %s44
    %s45 = sphi 0, %s42
    %s46 = sphi 0, %s45
    %s62 = sphi 0, %s46
    %s70 = sphi 0, %s72
    %s73 = sphi 0, %s70
    %s74 = sphi 0, %s73
    %s90 = sphi 0, %s74
    %s98 = sphi 0, %s100
    %s101 = sphi 0, %s98
    %s102 = sphi 0, %s101
    %s118 = sphi 0, %s102
    %s124 = sphi 0, %s126
    %s127 = sphi 0, %s124
    %s128 = sphi 0, %s127
    %s144 = sphi 0, %s128
    %s150 = sphi 0, %s152
    %s153 = sphi 0, %s150
    %s154 = sphi 0, %s153
    %s170 = sphi 0, %s154
    %s178 = sphi 0, %s180
    %s181 = sphi 0, %s178
    %s182 = sphi 0, %s181
    %s198 = sphi 0, %s182
  $region4: #{dgcnn_feat_forward.22} parent=0 // loop_header_branch
    %14 = sbr.rel (%p12) target = $region8
  $region5: #{dgcnn_feat_forward.22} parent=0 // loop_body
    %s16 = ssub.s32 %s11, 1
    %s17 = ssub.s32 %s11, 2
    %s27 = sadd.s32 1, %s20
    %p28 = scmp.ge.s32.totalorder %s27, 1
    %s29 = scalar_select %p28, 0, %s27
    %s30 = sadd.s32 1, %s19
    %s31 = scalar_select %p28, %s30, %s19
    %p32 = scmp.ge.s32.totalorder %s31, 1
    %s33 = scalar_select %p32, 0, %s31
    %s34 = sadd.s32 1, %s18
    %s35 = scalar_select %p32, %s34, %s18
    %p36 = scmp.ge.s32.totalorder %s35, 2
    %s37 = scalar_select %p36, 0, %s35
    %s38 = ssub.s32 %s18, %s37
    %s39 = ssub.s32 %s20, %s29
    %s40 = sor.u32 %s38, %s39
    %p41 = scmp.eq.s32.totalorder %s40, 0
    %s43 = sadd.s32 %s42, 1
    %s44 = scalar_select %p41, %s42, %s43
    %p47 = pneg %p41
    %p48 = scmp.eq.s32.totalorder %s11, 1
    %p49 = por %p47, %p48
    %p50 = scmp.ne.s32.totalorder %s42, %s45
    %p51 = scmp.eq.s32.totalorder %s11, 0
    %p52 = por %p50, %p51
    %p53 = scmp.ne.s32.totalorder %s42, %s45
    %p54 = scmp.eq.s32.totalorder %s16, 1
    %p55 = por %p53, %p54
    %p56 = scmp.ne.s32.totalorder %s45, %s46
    %p57 = scmp.eq.s32.totalorder %s16, 0
    %p58 = por %p56, %p57
    %p59 = scmp.ne.s32.totalorder %s45, %s46
    %p60 = scmp.eq.s32.totalorder %s17, 1
    %p61 = por %p59, %p60
    %p63 = scmp.ne.s32.totalorder %s46, %s62
    %p64 = scmp.eq.s32.totalorder %s17, 0
    %p65 = por %p63, %p64
    %s66 = ssub.s32 %s18, %s37
    %s67 = ssub.s32 %s20, %s29
    %s68 = sor.u32 %s66, %s67
    %p69 = scmp.eq.s32.totalorder %s68, 0
    %s71 = sadd.s32 %s70, 1
    %s72 = scalar_select %p69, %s70, %s71
    %p75 = pneg %p69
    %p76 = scmp.eq.s32.totalorder %s11, 1
    %p77 = por %p75, %p76
    %p78 = scmp.ne.s32.totalorder %s70, %s73
    %p79 = scmp.eq.s32.totalorder %s11, 0
    %p80 = por %p78, %p79
    %p81 = scmp.ne.s32.totalorder %s70, %s73
    %p82 = scmp.eq.s32.totalorder %s16, 1
    %p83 = por %p81, %p82
    %p84 = scmp.ne.s32.totalorder %s73, %s74
    %p85 = scmp.eq.s32.totalorder %s16, 0
    %p86 = por %p84, %p85
    %p87 = scmp.ne.s32.totalorder %s73, %s74
    %p88 = scmp.eq.s32.totalorder %s17, 1
    %p89 = por %p87, %p88
    %p91 = scmp.ne.s32.totalorder %s74, %s90
    %p92 = scmp.eq.s32.totalorder %s17, 0
    %p93 = por %p91, %p92
    %s94 = ssub.s32 %s18, %s37
    %s95 = ssub.s32 %s20, %s29
    %s96 = sor.u32 %s94, %s95
    %p97 = scmp.eq.s32.totalorder %s96, 0
    %s99 = sadd.s32 %s98, 1
    %s100 = scalar_select %p97, %s98, %s99
    %p103 = pneg %p97
    %p104 = scmp.eq.s32.totalorder %s11, 1
    %p105 = por %p103, %p104
    %p106 = scmp.ne.s32.totalorder %s98, %s101
    %p107 = scmp.eq.s32.totalorder %s11, 0
    %p108 = por %p106, %p107
    %p109 = scmp.ne.s32.totalorder %s98, %s101
    %p110 = scmp.eq.s32.totalorder %s16, 1
    %p111 = por %p109, %p110
    %p112 = scmp.ne.s32.totalorder %s101, %s102
    %p113 = scmp.eq.s32.totalorder %s16, 0
    %p114 = por %p112, %p113
    %p115 = scmp.ne.s32.totalorder %s101, %s102
    %p116 = scmp.eq.s32.totalorder %s17, 1
    %p117 = por %p115, %p116
    %p119 = scmp.ne.s32.totalorder %s102, %s118
    %p120 = scmp.eq.s32.totalorder %s17, 0
    %p121 = por %p119, %p120
    %s122 = ssub.s32 %s19, %s33
    %p123 = scmp.eq.s32.totalorder %s122, 0
    %s125 = sadd.s32 %s124, 1
    %s126 = scalar_select %p123, %s124, %s125
    %p129 = pneg %p123
    %p130 = scmp.eq.s32.totalorder %s11, 1
    %p131 = por %p129, %p130
    %p132 = scmp.ne.s32.totalorder %s124, %s127
    %p133 = scmp.eq.s32.totalorder %s11, 0
    %p134 = por %p132, %p133
    %p135 = scmp.ne.s32.totalorder %s124, %s127
    %p136 = scmp.eq.s32.totalorder %s16, 1
    %p137 = por %p135, %p136
    %p138 = scmp.ne.s32.totalorder %s127, %s128
    %p139 = scmp.eq.s32.totalorder %s16, 0
    %p140 = por %p138, %p139
    %p141 = scmp.ne.s32.totalorder %s127, %s128
    %p142 = scmp.eq.s32.totalorder %s17, 1
    %p143 = por %p141, %p142
    %p145 = scmp.ne.s32.totalorder %s128, %s144
    %p146 = scmp.eq.s32.totalorder %s17, 0
    %p147 = por %p145, %p146
    %s148 = ssub.s32 %s19, %s33
    %p149 = scmp.eq.s32.totalorder %s148, 0
    %s151 = sadd.s32 %s150, 1
    %s152 = scalar_select %p149, %s150, %s151
    %p155 = pneg %p149
    %p156 = scmp.eq.s32.totalorder %s11, 1
    %p157 = por %p155, %p156
    %p158 = scmp.ne.s32.totalorder %s150, %s153
    %p159 = scmp.eq.s32.totalorder %s11, 0
    %p160 = por %p158, %p159
    %p161 = scmp.ne.s32.totalorder %s150, %s153
    %p162 = scmp.eq.s32.totalorder %s16, 1
    %p163 = por %p161, %p162
    %p164 = scmp.ne.s32.totalorder %s153, %s154
    %p165 = scmp.eq.s32.totalorder %s16, 0
    %p166 = por %p164, %p165
    %p167 = scmp.ne.s32.totalorder %s153, %s154
    %p168 = scmp.eq.s32.totalorder %s17, 1
    %p169 = por %p167, %p168
    %p171 = scmp.ne.s32.totalorder %s154, %s170
    %p172 = scmp.eq.s32.totalorder %s17, 0
    %p173 = por %p171, %p172
    %s174 = ssub.s32 %s18, %s37
    %s175 = ssub.s32 %s19, %s33
    %s176 = sor.u32 %s174, %s175
    %p177 = scmp.eq.s32.totalorder %s176, 0
    %s179 = sadd.s32 %s178, 1
    %s180 = scalar_select %p177, %s178, %s179
    %p183 = pneg %p177
    %p184 = scmp.eq.s32.totalorder %s11, 1
    %p185 = por %p183, %p184
    %p186 = scmp.ne.s32.totalorder %s178, %s181
    %p187 = scmp.eq.s32.totalorder %s11, 0
    %p188 = por %p186, %p187
    %p189 = scmp.ne.s32.totalorder %s178, %s181
    %p190 = scmp.eq.s32.totalorder %s16, 1
    %p191 = por %p189, %p190
    %p192 = scmp.ne.s32.totalorder %s181, %s182
    %p193 = scmp.eq.s32.totalorder %s16, 0
    %p194 = por %p192, %p193
    %p195 = scmp.ne.s32.totalorder %s181, %s182
    %p196 = scmp.eq.s32.totalorder %s17, 1
    %p197 = por %p195, %p196
    %p199 = scmp.ne.s32.totalorder %s182, %s198
    %p200 = scmp.eq.s32.totalorder %s17, 0
    %p201 = por %p199, %p200
    %p202 = scmp.le.s32.totalorder 1, %s11
    %p203 = scmp.lt.s32.totalorder %s11, 3
    %p204 = pnand %p202, %p203
    %p205 = pneg %p204
    // Predicated region
    $region9: #{dgcnn_feat_forward.22} parent=5 // pred_check
      _
    $region10: #{dgcnn_feat_forward.22} parent=5 // pred_check_branch
      %207 = sbr.rel (%p204) target = $region12
    $region11: #{dgcnn_feat_forward.22} parent=5 // pred_region
      %s208 = ssub.s32 %s11, 1
      // Predicated region
      $region13: #{dgcnn_feat_forward.22} parent=11 // pred_check
        %p209 = pneg %p140
      $region14: #{dgcnn_feat_forward.22} parent=11 // pred_check_branch
        %211 = sbr.rel (%p209) target = $region16
      $region15: #{dgcnn_feat_forward.22} parent=11 // pred_region
        %p212 = scmp.lt.s32.totalorder %s22, 0
        %s213 = scalar_select %p212, %s22, 0
        %s214 = smul.addr %s213, 4
        %s215 = scalar_lea.vmem %s3, %s214
      $region16: #{dgcnn_feat_forward.22} parent=11 // pred_fallthru
        _
      // Predicated region
      $region17: #{dgcnn_feat_forward.22} parent=11 // pred_check
        %p216 = pneg %p166
      $region18: #{dgcnn_feat_forward.22} parent=11 // pred_check_branch
        %218 = sbr.rel (%p216) target = $region20
      $region19: #{dgcnn_feat_forward.22} parent=11 // pred_region
        %p219 = scmp.lt.s32.totalorder %s22, 0
        %s220 = scalar_select %p219, %s22, 0
        %s221 = scalar_lea.vmem %s4, %s220
      $region20: #{dgcnn_feat_forward.22} parent=11 // pred_fallthru
        _
    $region12: #{dgcnn_feat_forward.22} parent=5 // pred_fallthru
      _
    %p222 = scmp.lt.s32.totalorder %s11, 2
    // Predicated region
    $region21: #{dgcnn_feat_forward.22} parent=5 // pred_check
      %p223 = pneg %p222
    $region22: #{dgcnn_feat_forward.22} parent=5 // pred_check_branch
      %225 = sbr.rel (%p223) target = $region24
    $region23: #{dgcnn_feat_forward.22} parent=5 // pred_region
      // Predicated region
      $region25: #{dgcnn_feat_forward.22} parent=23 // pred_check
        %p226 = pneg %p52
      $region26: #{dgcnn_feat_forward.22} parent=23 // pred_check_branch
        %228 = sbr.rel (%p226) target = $region28
      $region27: #{dgcnn_feat_forward.22} parent=23 // pred_region
        %s229 = smul.u32 2, %s20
        %p230 = scmp.lt.s32.totalorder %s18, 1
        %s231 = scalar_select %p230, %s18, 1
        %p232 = scmp.lt.s32.totalorder %s229, 1
        %s233 = scalar_select %p232, %s229, 1
        %s234 = smul.addr %s231, 2
        %s235 = sadd.s32 %s233, %s234
        %s236 = smul.addr %s235, 8
        %s237 = scalar_lea.vmem %s0, %s236
        %s238 = smul.u32 2, %s20
      $region28: #{dgcnn_feat_forward.22} parent=23 // pred_fallthru
        _
      // Predicated region
      $region29: #{dgcnn_feat_forward.22} parent=23 // pred_check
        %p239 = pneg %p80
      $region30: #{dgcnn_feat_forward.22} parent=23 // pred_check_branch
        %241 = sbr.rel (%p239) target = $region32
      $region31: #{dgcnn_feat_forward.22} parent=23 // pred_region
        %s242 = smul.u32 2, %s20
        %p243 = scmp.lt.s32.totalorder %s18, 1
        %s244 = scalar_select %p243, %s18, 1
        %p245 = scmp.lt.s32.totalorder %s242, 1
        %s246 = scalar_select %p245, %s242, 1
        %s247 = smul.addr %s244, 2
        %s248 = sadd.s32 %s246, %s247
        %s249 = smul.addr %s248, 8
        %s250 = scalar_lea.vmem %s1, %s249
        %s251 = smul.u32 2, %s20
      $region32: #{dgcnn_feat_forward.22} parent=23 // pred_fallthru
        _
      // Predicated region
      $region33: #{dgcnn_feat_forward.22} parent=23 // pred_check
        %p252 = pneg %p108
      $region34: #{dgcnn_feat_forward.22} parent=23 // pred_check_branch
        %254 = sbr.rel (%p252) target = $region36
      $region35: #{dgcnn_feat_forward.22} parent=23 // pred_region
        %s255 = smul.u32 2, %s20
        %p256 = scmp.lt.s32.totalorder %s18, 1
        %s257 = scalar_select %p256, %s18, 1
        %p258 = scmp.lt.s32.totalorder %s255, 1
        %s259 = scalar_select %p258, %s255, 1
        %s260 = smul.addr %s257, 2
        %s261 = sadd.s32 %s259, %s260
        %s262 = smul.addr %s261, 8
        %s263 = scalar_lea.vmem %s2, %s262
        %s264 = smul.u32 2, %s20
      $region36: #{dgcnn_feat_forward.22} parent=23 // pred_fallthru
        _
    $region24: #{dgcnn_feat_forward.22} parent=5 // pred_fallthru
      _
    %p265 = scmp.le.s32.totalorder 1, %s11
    %p266 = scmp.lt.s32.totalorder %s11, 3
    %p267 = pnand %p265, %p266
    %p268 = pneg %p267
    // Predicated region
    $region37: #{dgcnn_feat_forward.22} parent=5 // pred_check
      _
    $region38: #{dgcnn_feat_forward.22} parent=5 // pred_check_branch
      %270 = sbr.rel (%p267) target = $region40
    $region39: #{dgcnn_feat_forward.22} parent=5 // pred_region
      %s271 = ssub.s32 %s11, 1
      %s272 = smul.u32 2, %s23
      %p273 = scmp.lt.s32.totalorder %s21, 1
      %s274 = scalar_select %p273, %s21, 1
      %p275 = scmp.lt.s32.totalorder %s272, 1
      %s276 = scalar_select %p275, %s272, 1
      %s277 = smul.addr %s274, 2
      %s278 = sadd.s32 %s276, %s277
      %s279 = smul.addr %s278, 8
      %s280 = scalar_lea.vmem %s0, %s279
      %p281 = pneg %p58
      %p282 = pneg %p55
      %s283 = smul.u32 2, %s23
      %p284 = scmp.lt.s32.totalorder %s21, 1
      %s285 = scalar_select %p284, %s21, 1
      %p286 = scmp.lt.s32.totalorder %s283, 1
      %s287 = scalar_select %p286, %s283, 1
      %s288 = smul.addr %s285, 2
      %s289 = sadd.s32 %s287, %s288
      %s290 = smul.addr %s289, 8
      %s291 = scalar_lea.vmem %s1, %s290
      %p292 = pneg %p86
      %p293 = pneg %p83
      %s294 = smul.u32 2, %s23
      %p295 = scmp.lt.s32.totalorder %s21, 1
      %s296 = scalar_select %p295, %s21, 1
      %p297 = scmp.lt.s32.totalorder %s294, 1
      %s298 = scalar_select %p297, %s294, 1
      %s299 = smul.addr %s296, 2
      %s300 = sadd.s32 %s298, %s299
      %s301 = smul.addr %s300, 8
      %s302 = scalar_lea.vmem %s2, %s301
      %p303 = pneg %p114
      %p304 = pneg %p111
      %p305 = scmp.lt.s32.totalorder %s22, 0
      %s306 = scalar_select %p305, %s22, 0
      %s307 = smul.addr %s306, 4
      %s308 = scalar_lea.vmem %s3, %s307
      %p309 = pneg %p140
      %p310 = pneg %p137
      %p311 = scmp.lt.s32.totalorder %s22, 0
      %s312 = scalar_select %p311, %s22, 0
      %s313 = scalar_lea.vmem %s4, %s312
      %p314 = pneg %p166
      %p315 = pneg %p163
      %p316 = pneg %p194
      %p317 = pneg %p191
      %p318 = scmp.lt.s32.totalorder %s21, 1
      %s319 = scalar_select %p318, %s21, 1
      %p320 = scmp.lt.s32.totalorder %s22, 0
      %s321 = scalar_select %p320, %s22, 0
      %s322 = sadd.s32 %s321, %s319
      %s323 = scalar_lea.vmem %s5, %s322
      %s324 = smul.u32 2, %s23
      %p325 = scmp.lt.s32.totalorder %s21, 1
      %s326 = scalar_select %p325, %s21, 1
      %p327 = scmp.lt.s32.totalorder %s324, 1
      %s328 = scalar_select %p327, %s324, 1
      %s329 = smul.addr %s326, 2
      %s330 = sadd.s32 %s328, %s329
      %s331 = smul.addr %s330, 8
      %s332 = scalar_lea.vmem %s0, %s331
      %s333 = smul.u32 2, %s23
      %s334 = smul.u32 2, %s23
      %p335 = scmp.lt.s32.totalorder %s21, 1
      %s336 = scalar_select %p335, %s21, 1
      %p337 = scmp.lt.s32.totalorder %s334, 1
      %s338 = scalar_select %p337, %s334, 1
      %s339 = smul.addr %s336, 2
      %s340 = sadd.s32 %s338, %s339
      %s341 = smul.addr %s340, 8
      %s342 = scalar_lea.vmem %s1, %s341
      %s343 = smul.u32 2, %s23
      %s344 = smul.u32 2, %s23
      %p345 = scmp.lt.s32.totalorder %s21, 1
      %s346 = scalar_select %p345, %s21, 1
      %p347 = scmp.lt.s32.totalorder %s344, 1
      %s348 = scalar_select %p347, %s344, 1
      %s349 = smul.addr %s346, 2
      %s350 = sadd.s32 %s348, %s349
      %s351 = smul.addr %s350, 8
      %s352 = scalar_lea.vmem %s2, %s351
      %s353 = smul.u32 2, %s23
      %p354 = scmp.lt.s32.totalorder %s22, 0
      %s355 = scalar_select %p354, %s22, 0
      %s356 = smul.addr %s355, 4
      %s357 = scalar_lea.vmem %s3, %s356
      %p358 = scmp.lt.s32.totalorder %s22, 0
      %s359 = scalar_select %p358, %s22, 0
      %s360 = scalar_lea.vmem %s4, %s359
      %p361 = scmp.lt.s32.totalorder %s21, 1
      %s362 = scalar_select %p361, %s21, 1
      %p363 = scmp.lt.s32.totalorder %s22, 0
      %s364 = scalar_select %p363, %s22, 0
      %s365 = sadd.s32 %s364, %s362
      %s366 = scalar_lea.vmem %s5, %s365
      %p368 = scmp.eq.s32.totalorder %s23, 0
      // Predicated region
      $region41: #{dgcnn_feat_forward.22} parent=39 // pred_check
        %p369 = pneg %p368
      $region42: #{dgcnn_feat_forward.22} parent=39 // pred_check_branch
        %371 = sbr.rel (%p369) target = $region44
      $region43: #{dgcnn_feat_forward.22} parent=39 // pred_region
        %372 = vst [vmem:[%s366] sm:$0x1] -inf
      $region44: #{dgcnn_feat_forward.22} parent=39 // pred_fallthru
        _
      %v373 = vld [vmem:[%s332] sm:$0xff]
      %v374 = vld [vmem:[%s332 + $0x8] sm:$0xff]
      %v375 = vpack.c.bf16 %v374, %v373
      %v376 = vld [vmem:[%s357] sm:$0xf]
      %v377 = vld [vmem:[%s357 + $0x4] sm:$0xf]
      %v378 = vld [vmem:[%s357 + $0x8] sm:$0xf]
      %v379 = vld [vmem:[%s357 + $0xc] sm:$0xf]
      %v380 = vld [vmem:[%s357 + $0x10] sm:$0xf]
      %v381 = vld [vmem:[%s357 + $0x14] sm:$0xf]
      %v382 = vld [vmem:[%s357 + $0x18] sm:$0xf]
      %v383 = vld [vmem:[%s357 + $0x1c] sm:$0xf]
      %v384 = vld [vmem:[%s342] sm:$0xff]
      %v385 = vld [vmem:[%s342 + $0x8] sm:$0xff]
      %v386 = vpack.c.bf16 %v385, %v384
      %v387 = vld [vmem:[%s357 + $0x20] sm:$0xf]
      %v388 = vld [vmem:[%s357 + $0x24] sm:$0xf]
      %v389 = vld [vmem:[%s357 + $0x28] sm:$0xf]
      %v390 = vld [vmem:[%s357 + $0x2c] sm:$0xf]
      %v391 = vld [vmem:[%s357 + $0x30] sm:$0xf]
      %v392 = vld [vmem:[%s357 + $0x34] sm:$0xf]
      %v393 = vld [vmem:[%s357 + $0x38] sm:$0xf]
      %v394 = vld [vmem:[%s357 + $0x3c] sm:$0xf]
      %v403 = vunpack.c.l.b16 %v387
      %v404 = vunpack.c.l.b16 %v388
      %v405 = vunpack.c.l.b16 %v389
      %v406 = vunpack.c.l.b16 %v390
      %v407 = vunpack.c.l.b16 %v391
      %v408 = vunpack.c.l.b16 %v392
      %v409 = vunpack.c.l.b16 %v393
      %v410 = vunpack.c.l.b16 %v394
      %v411 = vpack.c.b16 %v404, %v403
      %v412 = vpack.c.b16 %v406, %v405
      %v413 = vpack.c.b16 %v408, %v407
      %v414 = vpack.c.b16 %v410, %v409
      %vm419 = vcmask 523264
      %v421 = vsel %vm419, %v386, 0
      %423 = vmatprep.subr.bf16.mxu0 0
      %424 = vmatpush1.bf16.msra.mxu0 0
      %425 = vmatprep.subr.bf16.mxu0 0
      %426 = vmatpush1.bf16.msra.mxu0 0
      %427 = vmatprep.subr.bf16.mxu0 0
      %428 = vmatpush1.bf16.msra.mxu0 0
      %429 = vmatprep.subr.bf16.mxu0 0
      %430 = vmatpush1.bf16.msra.mxu0 0
      %431 = vmatprep.subr.bf16.mxu0 0
      %432 = vmatpush1.bf16.msra.mxu0 %v414
      %433 = vmatprep.subr.bf16.mxu0 0
      %434 = vmatpush1.bf16.msra.mxu0 %v413
      %435 = vmatprep.subr.bf16.mxu0 0
      %436 = vmatpush1.bf16.msra.mxu0 %v412
      %437 = vmatprep.subr.bf16.mxu0 0
      %438 = vmatpush1.bf16.msra.mxu0 %v411
      %439 = vmatprep.subr.bf16.mxu0 0
      %440 = vmatpush2.bf16.msra.mxu0 0
      %441 = vmatprep.subr.bf16.mxu0 0
      %442 = vmatpush2.bf16.msra.mxu0 0
      %443 = vmatprep.subr.bf16.mxu0 0
      %444 = vmatpush2.bf16.msra.mxu0 0
      %445 = vmatprep.subr.bf16.mxu0 0
      %446 = vmatpush2.bf16.msra.mxu0 0
      %447 = vmatprep.subr.bf16.mxu0 0
      %448 = vmatpush2.bf16.msra.mxu0 0
      %449 = vmatprep.subr.bf16.mxu0 0
      %450 = vmatpush2.bf16.msra.mxu0 0
      %451 = vmatprep.subr.bf16.mxu0 0
      %452 = vmatpush2.bf16.msra.mxu0 0
      %453 = vmatprep.subr.bf16.mxu0 0
      %454 = vmatpush2.bf16.msra.mxu0 0
      %455 = vmatprep.mubr.bf16.mxu0 0
      %456 = vmatmul.mubr.bf16.gmra.mxu0 %v421
      %v457 = vpop.f32.mrf.mxu0
      %v458 = vadd.f32 0.0, %v457
      %v459 = vpop.f32.mrf.mxu0
      %v460 = vpop.f32.mrf.mxu0
      %v461 = vadd.f32 0.0, %v460
      %v462 = vpop.f32.mrf.mxu0
      %463 = vdwg.mxu0
      %v472 = vunpack.c.l.b16 %v376
      %v473 = vunpack.c.l.b16 %v377
      %v474 = vunpack.c.l.b16 %v378
      %v475 = vunpack.c.l.b16 %v379
      %v476 = vunpack.c.l.b16 %v380
      %v477 = vunpack.c.l.b16 %v381
      %v478 = vunpack.c.l.b16 %v382
      %v479 = vunpack.c.l.b16 %v383
      %v480 = vpack.c.b16 %v473, %v472
      %v481 = vpack.c.b16 %v475, %v474
      %v482 = vpack.c.b16 %v477, %v476
      %v483 = vpack.c.b16 %v479, %v478
      %v489 = vsel %vm419, %v375, 0
      %491 = vmatprep.subr.bf16.mxu0 0
      %492 = vmatpush1.bf16.msra.mxu0 0
      %493 = vmatprep.subr.bf16.mxu0 0
      %494 = vmatpush1.bf16.msra.mxu0 0
      %495 = vmatprep.subr.bf16.mxu0 0
      %496 = vmatpush1.bf16.msra.mxu0 0
      %497 = vmatprep.subr.bf16.mxu0 0
      %498 = vmatpush1.bf16.msra.mxu0 0
      %499 = vmatprep.subr.bf16.mxu0 0
      %500 = vmatpush1.bf16.msra.mxu0 %v483
      %501 = vmatprep.subr.bf16.mxu0 0
      %502 = vmatpush1.bf16.msra.mxu0 %v482
      %503 = vmatprep.subr.bf16.mxu0 0
      %504 = vmatpush1.bf16.msra.mxu0 %v481
      %505 = vmatprep.subr.bf16.mxu0 0
      %506 = vmatpush1.bf16.msra.mxu0 %v480
      %507 = vmatprep.subr.bf16.mxu0 0
      %508 = vmatpush2.bf16.msra.mxu0 0
      %509 = vmatprep.subr.bf16.mxu0 0
      %510 = vmatpush2.bf16.msra.mxu0 0
      %511 = vmatprep.subr.bf16.mxu0 0
      %512 = vmatpush2.bf16.msra.mxu0 0
      %513 = vmatprep.subr.bf16.mxu0 0
      %514 = vmatpush2.bf16.msra.mxu0 0
      %515 = vmatprep.subr.bf16.mxu0 0
      %516 = vmatpush2.bf16.msra.mxu0 0
      %517 = vmatprep.subr.bf16.mxu0 0
      %518 = vmatpush2.bf16.msra.mxu0 0
      %519 = vmatprep.subr.bf16.mxu0 0
      %520 = vmatpush2.bf16.msra.mxu0 0
      %521 = vmatprep.subr.bf16.mxu0 0
      %522 = vmatpush2.bf16.msra.mxu0 0
      %523 = vmatprep.mubr.bf16.mxu0 0
      %524 = vmatmul.mubr.bf16.gmra.mxu0 %v489
      %v525 = vpop.f32.mrf.mxu0
      %v526 = vadd.f32 %v458, %v525
      %v527 = vpop.f32.mrf.mxu0
      %v528 = vpop.f32.mrf.mxu0
      %v529 = vadd.f32 %v461, %v528
      %v530 = vpop.f32.mrf.mxu0
      %531 = vdwg.mxu0
      %v532 = vld [vmem:[%s352] sm:$0xff]
      %v533 = vld [vmem:[%s352 + $0x8] sm:$0xff]
      %v534 = vpack.c.bf16 %v533, %v532
      %v535 = vld [vmem:[%s357 + $0x40] sm:$0xf]
      %v536 = vld [vmem:[%s357 + $0x44] sm:$0xf]
      %v537 = vld [vmem:[%s357 + $0x48] sm:$0xf]
      %v538 = vld [vmem:[%s357 + $0x4c] sm:$0xf]
      %v539 = vld [vmem:[%s357 + $0x50] sm:$0xf]
      %v540 = vld [vmem:[%s357 + $0x54] sm:$0xf]
      %v541 = vld [vmem:[%s357 + $0x58] sm:$0xf]
      %v542 = vld [vmem:[%s357 + $0x5c] sm:$0xf]
      %v551 = vunpack.c.l.b16 %v535
      %v552 = vunpack.c.l.b16 %v536
      %v553 = vunpack.c.l.b16 %v537
      %v554 = vunpack.c.l.b16 %v538
      %v555 = vunpack.c.l.b16 %v539
      %v556 = vunpack.c.l.b16 %v540
      %v557 = vunpack.c.l.b16 %v541
      %v558 = vunpack.c.l.b16 %v542
      %v559 = vpack.c.b16 %v552, %v551
      %v560 = vpack.c.b16 %v554, %v553
      %v561 = vpack.c.b16 %v556, %v555
      %v562 = vpack.c.b16 %v558, %v557
      %v568 = vsel %vm419, %v534, 0
      %570 = vmatprep.subr.bf16.mxu0 0
      %571 = vmatpush1.bf16.msra.mxu0 0
      %572 = vmatprep.subr.bf16.mxu0 0
      %573 = vmatpush1.bf16.msra.mxu0 0
      %574 = vmatprep.subr.bf16.mxu0 0
      %575 = vmatpush1.bf16.msra.mxu0 0
      %576 = vmatprep.subr.bf16.mxu0 0
      %577 = vmatpush1.bf16.msra.mxu0 0
      %578 = vmatprep.subr.bf16.mxu0 0
      %579 = vmatpush1.bf16.msra.mxu0 %v562
      %580 = vmatprep.subr.bf16.mxu0 0
      %581 = vmatpush1.bf16.msra.mxu0 %v561
      %582 = vmatprep.subr.bf16.mxu0 0
      %583 = vmatpush1.bf16.msra.mxu0 %v560
      %584 = vmatprep.subr.bf16.mxu0 0
      %585 = vmatpush1.bf16.msra.mxu0 %v559
      %586 = vmatprep.subr.bf16.mxu0 0
      %587 = vmatpush2.bf16.msra.mxu0 0
      %588 = vmatprep.subr.bf16.mxu0 0
      %589 = vmatpush2.bf16.msra.mxu0 0
      %590 = vmatprep.subr.bf16.mxu0 0
      %591 = vmatpush2.bf16.msra.mxu0 0
      %592 = vmatprep.subr.bf16.mxu0 0
      %593 = vmatpush2.bf16.msra.mxu0 0
      %594 = vmatprep.subr.bf16.mxu0 0
      %595 = vmatpush2.bf16.msra.mxu0 0
      %596 = vmatprep.subr.bf16.mxu0 0
      %597 = vmatpush2.bf16.msra.mxu0 0
      %598 = vmatprep.subr.bf16.mxu0 0
      %599 = vmatpush2.bf16.msra.mxu0 0
      %600 = vmatprep.subr.bf16.mxu0 0
      %601 = vmatpush2.bf16.msra.mxu0 0
      %602 = vmatprep.mubr.bf16.mxu0 0
      %603 = vmatmul.mubr.bf16.gmra.mxu0 %v568
      %v604 = vpop.f32.mrf.mxu0
      %v605 = vadd.f32 0.0, %v604
      %v606 = vpop.f32.mrf.mxu0
      %v607 = vpop.f32.mrf.mxu0
      %v608 = vadd.f32 0.0, %v607
      %v609 = vpop.f32.mrf.mxu0
      %610 = vdwg.mxu0
      %v611 = vadd.f32 %v526, %v605
      %v612 = vadd.f32 %v529, %v608
      %v613 = vld [vmem:[%s360] sm:$0x1]
      %v615 = vlaneseq
      %v616 = vshrl.u32 %v615, 7
      %v617 = vsub.s32 0, %v616
      %v618 = vrot.slane %v613, %v617
      %v620 = vadd.f32 %v611, %v618
      %v621 = vadd.f32 %v612, %v618
      %v622 = vmul.f32 %v620, 0.2
      %v623 = vmul.f32 %v621, 0.2
      %v624 = vmax.f32 %v620, %v622
      %v625 = vmax.f32 %v621, %v623
      %v626 = vmax.f32 %v624, %v625
      %v627 = vrot.slane %v626, 4
      %v628 = vmax.f32 %v626, %v627
      %v629 = vrot.slane %v628, 2
      %v630 = vmax.f32 %v628, %v629
      %v631 = vrot.slane %v630, 1
      %v632 = vmax.f32 %v630, %v631
      %v633 = vld [vmem:[%s366] sm:$0x1]
      %v634 = vmax.f32 %v633, %v632
      %635 = vst [vmem:[%s366] sm:$0x1] %v634
      %p636 = scmp.lt.s32.totalorder %s21, 1
      %s637 = scalar_select %p636, %s21, 1
      %p638 = scmp.lt.s32.totalorder %s22, 0
      %s639 = scalar_select %p638, %s22, 0
      %s640 = sadd.s32 %s639, %s637
      %s641 = scalar_lea.vmem %s5, %s640
      // Predicated region
      $region45: #{dgcnn_feat_forward.22} parent=39 // pred_check
        %p642 = pneg %p191
      $region46: #{dgcnn_feat_forward.22} parent=39 // pred_check_branch
        %644 = sbr.rel (%p642) target = $region48
      $region47: #{dgcnn_feat_forward.22} parent=39 // pred_region
        _
      $region48: #{dgcnn_feat_forward.22} parent=39 // pred_fallthru
        _
    $region40: #{dgcnn_feat_forward.22} parent=5 // pred_fallthru
      _
    %p645 = scmp.le.s32.totalorder 2, %s11
    // Predicated region
    $region49: #{dgcnn_feat_forward.22} parent=5 // pred_check
      %p646 = pneg %p645
    $region50: #{dgcnn_feat_forward.22} parent=5 // pred_check_branch
      %648 = sbr.rel (%p646) target = $region52
    $region51: #{dgcnn_feat_forward.22} parent=5 // pred_region
      %s649 = ssub.s32 %s11, 2
      // Predicated region
      $region53: #{dgcnn_feat_forward.22} parent=51 // pred_check
        %p650 = pneg %p197
      $region54: #{dgcnn_feat_forward.22} parent=51 // pred_check_branch
        %652 = sbr.rel (%p650) target = $region56
      $region55: #{dgcnn_feat_forward.22} parent=51 // pred_region
        %p653 = scmp.lt.s32.totalorder %s24, 1
        %s654 = scalar_select %p653, %s24, 1
        %p655 = scmp.lt.s32.totalorder %s25, 0
        %s656 = scalar_select %p655, %s25, 0
        %s657 = sadd.s32 %s656, %s654
        %s658 = scalar_lea.vmem %s5, %s657
      $region56: #{dgcnn_feat_forward.22} parent=51 // pred_fallthru
        _
    $region52: #{dgcnn_feat_forward.22} parent=5 // pred_fallthru
      _
  $region6: #{dgcnn_feat_forward.22} parent=0 // loop_footer
    %s15 = sadd.s32 1, %s11
  $region7: #{dgcnn_feat_forward.22} parent=0 // loop_footer_branch
    %10 = sbr.rel target = $region3
  $region8: #{dgcnn_feat_forward.22} parent=0 // loop_exit
    _

// kernel: dgcnn_feat_forward.19
$region0: #{dgcnn_feat_forward.19}
  #allocation0 [shape = 'u32[]', space=smem, size = 0x4, offset = 0x4, fixed_abs, tag = 'smem constant byte address 0x4 - core index']
  #allocation1 [shape = 'u32[144,128]{1,0:T(1,128)}', space=vmem, size = 0x12000, scoped, tag = 'internal scratch']
  %s0 = inlined_call_operand.vmem [shape: f32[2,16,64], index: 0, kind: input, shape index: {}]
  %s1 = inlined_call_operand.vmem [shape: bf16[2,8,16,64], index: 1, kind: input, shape index: {}]
  %s2 = inlined_call_operand.vmem [shape: bf16[64,64], index: 2, kind: input, shape index: {}]
  %s3 = inlined_call_operand.vmem [shape: bf16[64,64], index: 3, kind: input, shape index: {}]
  %s4 = inlined_call_operand.vmem [shape: f32[1,64], index: 4, kind: input, shape index: {}]
  %s5 = inlined_call_operand.vmem [shape: bf16[64,64], index: 5, kind: input, shape index: {}]
  %s6 = inlined_call_operand.vmem [shape: f32[1,64], index: 6, kind: input, shape index: {}]
  %s7 = inlined_call_operand.vmem [shape: f32[2,16,64], index: 7, kind: output, shape index: {}]
  %s8 = sld [smem:[#allocation0]]
  $region61: #{dgcnn_feat_forward.19} parent=0
    _
  %s10 = ssub.s32 1, %s8
  %s11 = scalar_select 0, %s10, %s8
  loop: start=0, step=1, limit=4
  $region2: #{dgcnn_feat_forward.19} parent=0 // loop_pre_header
    _
  $region3: #{dgcnn_feat_forward.19} parent=0 // loop_header
    %s13 = sphi 0, %s17
    %p14 = scmp.ge.s32.totalorder %s13, 4
    %s20 = sphi 0, %s32
    %s21 = sphi 0, %s28
    %s22 = sphi 0, %s20
    %s23 = sphi 0, %s21
    %s24 = sphi 0, %s22
    %s25 = sphi 0, %s23
    %s37 = sphi 0, %s39
    %s40 = sphi 0, %s37
    %s41 = sphi 0, %s40
    %s57 = sphi 0, %s41
    %s65 = sphi 0, %s67
    %s68 = sphi 0, %s65
    %s69 = sphi 0, %s68
    %s85 = sphi 0, %s69
    %s89 = sphi 0, %s89
    %s91 = sphi 0, %s89
    %s92 = sphi 0, %s91
    %s106 = sphi 0, %s92
    %s110 = sphi 0, %s110
    %s112 = sphi 0, %s110
    %s113 = sphi 0, %s112
    %s127 = sphi 0, %s113
    %s131 = sphi 0, %s131
    %s133 = sphi 0, %s131
    %s134 = sphi 0, %s133
    %s148 = sphi 0, %s134
    %s152 = sphi 0, %s152
    %s154 = sphi 0, %s152
    %s155 = sphi 0, %s154
    %s169 = sphi 0, %s155
    %s173 = sphi 0, %s173
    %s175 = sphi 0, %s173
    %s176 = sphi 0, %s175
    %s190 = sphi 0, %s176
    %s198 = sphi 0, %s200
    %s201 = sphi 0, %s198
    %s202 = sphi 0, %s201
    %s218 = sphi 0, %s202
  $region4: #{dgcnn_feat_forward.19} parent=0 // loop_header_branch
    %16 = sbr.rel (%p14) target = $region8
  $region5: #{dgcnn_feat_forward.19} parent=0 // loop_body
    %s18 = ssub.s32 %s13, 1
    %s19 = ssub.s32 %s13, 2
    %s26 = sadd.s32 1, %s21
    %p27 = scmp.ge.s32.totalorder %s26, 1
    %s28 = scalar_select %p27, 0, %s26
    %s29 = sadd.s32 1, %s20
    %s30 = scalar_select %p27, %s29, %s20
    %p31 = scmp.ge.s32.totalorder %s30, 2
    %s32 = scalar_select %p31, 0, %s30
    %s33 = ssub.s32 %s20, %s32
    %s34 = ssub.s32 %s21, %s28
    %s35 = sor.u32 %s33, %s34
    %p36 = scmp.eq.s32.totalorder %s35, 0
    %s38 = sadd.s32 %s37, 1
    %s39 = scalar_select %p36, %s37, %s38
    %p42 = pneg %p36
    %p43 = scmp.eq.s32.totalorder %s13, 1
    %p44 = por %p42, %p43
    %p45 = scmp.ne.s32.totalorder %s37, %s40
    %p46 = scmp.eq.s32.totalorder %s13, 0
    %p47 = por %p45, %p46
    %p48 = scmp.ne.s32.totalorder %s37, %s40
    %p49 = scmp.eq.s32.totalorder %s18, 1
    %p50 = por %p48, %p49
    %p51 = scmp.ne.s32.totalorder %s40, %s41
    %p52 = scmp.eq.s32.totalorder %s18, 0
    %p53 = por %p51, %p52
    %p54 = scmp.ne.s32.totalorder %s40, %s41
    %p55 = scmp.eq.s32.totalorder %s19, 1
    %p56 = por %p54, %p55
    %p58 = scmp.ne.s32.totalorder %s41, %s57
    %p59 = scmp.eq.s32.totalorder %s19, 0
    %p60 = por %p58, %p59
    %s61 = ssub.s32 %s20, %s32
    %s62 = ssub.s32 %s21, %s28
    %s63 = sor.u32 %s61, %s62
    %p64 = scmp.eq.s32.totalorder %s63, 0
    %s66 = sadd.s32 %s65, 1
    %s67 = scalar_select %p64, %s65, %s66
    %p70 = pneg %p64
    %p71 = scmp.eq.s32.totalorder %s13, 1
    %p72 = por %p70, %p71
    %p73 = scmp.ne.s32.totalorder %s65, %s68
    %p74 = scmp.eq.s32.totalorder %s13, 0
    %p75 = por %p73, %p74
    %p76 = scmp.ne.s32.totalorder %s65, %s68
    %p77 = scmp.eq.s32.totalorder %s18, 1
    %p78 = por %p76, %p77
    %p79 = scmp.ne.s32.totalorder %s68, %s69
    %p80 = scmp.eq.s32.totalorder %s18, 0
    %p81 = por %p79, %p80
    %p82 = scmp.ne.s32.totalorder %s68, %s69
    %p83 = scmp.eq.s32.totalorder %s19, 1
    %p84 = por %p82, %p83
    %p86 = scmp.ne.s32.totalorder %s69, %s85
    %p87 = scmp.eq.s32.totalorder %s19, 0
    %p88 = por %p86, %p87
    %s90 = sadd.s32 %s89, 1
    %p93 = scmp.eq.s32.totalorder %s13, 1
    %p94 = scmp.ne.s32.totalorder %s89, %s91
    %p95 = scmp.eq.s32.totalorder %s13, 0
    %p96 = por %p94, %p95
    %p97 = scmp.ne.s32.totalorder %s89, %s91
    %p98 = scmp.eq.s32.totalorder %s18, 1
    %p99 = por %p97, %p98
    %p100 = scmp.ne.s32.totalorder %s91, %s92
    %p101 = scmp.eq.s32.totalorder %s18, 0
    %p102 = por %p100, %p101
    %p103 = scmp.ne.s32.totalorder %s91, %s92
    %p104 = scmp.eq.s32.totalorder %s19, 1
    %p105 = por %p103, %p104
    %p107 = scmp.ne.s32.totalorder %s92, %s106
    %p108 = scmp.eq.s32.totalorder %s19, 0
    %p109 = por %p107, %p108
    %s111 = sadd.s32 %s110, 1
    %p114 = scmp.eq.s32.totalorder %s13, 1
    %p115 = scmp.ne.s32.totalorder %s110, %s112
    %p116 = scmp.eq.s32.totalorder %s13, 0
    %p117 = por %p115, %p116
    %p118 = scmp.ne.s32.totalorder %s110, %s112
    %p119 = scmp.eq.s32.totalorder %s18, 1
    %p120 = por %p118, %p119
    %p121 = scmp.ne.s32.totalorder %s112, %s113
    %p122 = scmp.eq.s32.totalorder %s18, 0
    %p123 = por %p121, %p122
    %p124 = scmp.ne.s32.totalorder %s112, %s113
    %p125 = scmp.eq.s32.totalorder %s19, 1
    %p126 = por %p124, %p125
    %p128 = scmp.ne.s32.totalorder %s113, %s127
    %p129 = scmp.eq.s32.totalorder %s19, 0
    %p130 = por %p128, %p129
    %s132 = sadd.s32 %s131, 1
    %p135 = scmp.eq.s32.totalorder %s13, 1
    %p136 = scmp.ne.s32.totalorder %s131, %s133
    %p137 = scmp.eq.s32.totalorder %s13, 0
    %p138 = por %p136, %p137
    %p139 = scmp.ne.s32.totalorder %s131, %s133
    %p140 = scmp.eq.s32.totalorder %s18, 1
    %p141 = por %p139, %p140
    %p142 = scmp.ne.s32.totalorder %s133, %s134
    %p143 = scmp.eq.s32.totalorder %s18, 0
    %p144 = por %p142, %p143
    %p145 = scmp.ne.s32.totalorder %s133, %s134
    %p146 = scmp.eq.s32.totalorder %s19, 1
    %p147 = por %p145, %p146
    %p149 = scmp.ne.s32.totalorder %s134, %s148
    %p150 = scmp.eq.s32.totalorder %s19, 0
    %p151 = por %p149, %p150
    %s153 = sadd.s32 %s152, 1
    %p156 = scmp.eq.s32.totalorder %s13, 1
    %p157 = scmp.ne.s32.totalorder %s152, %s154
    %p158 = scmp.eq.s32.totalorder %s13, 0
    %p159 = por %p157, %p158
    %p160 = scmp.ne.s32.totalorder %s152, %s154
    %p161 = scmp.eq.s32.totalorder %s18, 1
    %p162 = por %p160, %p161
    %p163 = scmp.ne.s32.totalorder %s154, %s155
    %p164 = scmp.eq.s32.totalorder %s18, 0
    %p165 = por %p163, %p164
    %p166 = scmp.ne.s32.totalorder %s154, %s155
    %p167 = scmp.eq.s32.totalorder %s19, 1
    %p168 = por %p166, %p167
    %p170 = scmp.ne.s32.totalorder %s155, %s169
    %p171 = scmp.eq.s32.totalorder %s19, 0
    %p172 = por %p170, %p171
    %s174 = sadd.s32 %s173, 1
    %p177 = scmp.eq.s32.totalorder %s13, 1
    %p178 = scmp.ne.s32.totalorder %s173, %s175
    %p179 = scmp.eq.s32.totalorder %s13, 0
    %p180 = por %p178, %p179
    %p181 = scmp.ne.s32.totalorder %s173, %s175
    %p182 = scmp.eq.s32.totalorder %s18, 1
    %p183 = por %p181, %p182
    %p184 = scmp.ne.s32.totalorder %s175, %s176
    %p185 = scmp.eq.s32.totalorder %s18, 0
    %p186 = por %p184, %p185
    %p187 = scmp.ne.s32.totalorder %s175, %s176
    %p188 = scmp.eq.s32.totalorder %s19, 1
    %p189 = por %p187, %p188
    %p191 = scmp.ne.s32.totalorder %s176, %s190
    %p192 = scmp.eq.s32.totalorder %s19, 0
    %p193 = por %p191, %p192
    %s194 = ssub.s32 %s20, %s32
    %s195 = ssub.s32 %s21, %s28
    %s196 = sor.u32 %s194, %s195
    %p197 = scmp.eq.s32.totalorder %s196, 0
    %s199 = sadd.s32 %s198, 1
    %s200 = scalar_select %p197, %s198, %s199
    %p203 = pneg %p197
    %p204 = scmp.eq.s32.totalorder %s13, 1
    %p205 = por %p203, %p204
    %p206 = scmp.ne.s32.totalorder %s198, %s201
    %p207 = scmp.eq.s32.totalorder %s13, 0
    %p208 = por %p206, %p207
    %p209 = scmp.ne.s32.totalorder %s198, %s201
    %p210 = scmp.eq.s32.totalorder %s18, 1
    %p211 = por %p209, %p210
    %p212 = scmp.ne.s32.totalorder %s201, %s202
    %p213 = scmp.eq.s32.totalorder %s18, 0
    %p214 = por %p212, %p213
    %p215 = scmp.ne.s32.totalorder %s201, %s202
    %p216 = scmp.eq.s32.totalorder %s19, 1
    %p217 = por %p215, %p216
    %p219 = scmp.ne.s32.totalorder %s202, %s218
    %p220 = scmp.eq.s32.totalorder %s19, 0
    %p221 = por %p219, %p220
    %p222 = scmp.le.s32.totalorder 1, %s13
    %p223 = scmp.lt.s32.totalorder %s13, 3
    %p224 = pnand %p222, %p223
    %p225 = pneg %p224
    // Predicated region
    $region9: #{dgcnn_feat_forward.19} parent=5 // pred_check
      _
    $region10: #{dgcnn_feat_forward.19} parent=5 // pred_check_branch
      %227 = sbr.rel (%p224) target = $region12
    $region11: #{dgcnn_feat_forward.19} parent=5 // pred_region
      %s228 = ssub.s32 %s13, 1
      // Predicated region
      $region13: #{dgcnn_feat_forward.19} parent=11 // pred_check
        %p229 = pneg %p102
      $region14: #{dgcnn_feat_forward.19} parent=11 // pred_check_branch
        %231 = sbr.rel (%p229) target = $region16
      $region15: #{dgcnn_feat_forward.19} parent=11 // pred_region
        _
      $region16: #{dgcnn_feat_forward.19} parent=11 // pred_fallthru
        _
      // Predicated region
      $region17: #{dgcnn_feat_forward.19} parent=11 // pred_check
        %p232 = pneg %p123
      $region18: #{dgcnn_feat_forward.19} parent=11 // pred_check_branch
        %234 = sbr.rel (%p232) target = $region20
      $region19: #{dgcnn_feat_forward.19} parent=11 // pred_region
        _
      $region20: #{dgcnn_feat_forward.19} parent=11 // pred_fallthru
        _
      // Predicated region
      $region21: #{dgcnn_feat_forward.19} parent=11 // pred_check
        %p235 = pneg %p144
      $region22: #{dgcnn_feat_forward.19} parent=11 // pred_check_branch
        %237 = sbr.rel (%p235) target = $region24
      $region23: #{dgcnn_feat_forward.19} parent=11 // pred_region
        _
      $region24: #{dgcnn_feat_forward.19} parent=11 // pred_fallthru
        _
      // Predicated region
      $region25: #{dgcnn_feat_forward.19} parent=11 // pred_check
        %p238 = pneg %p165
      $region26: #{dgcnn_feat_forward.19} parent=11 // pred_check_branch
        %240 = sbr.rel (%p238) target = $region28
      $region27: #{dgcnn_feat_forward.19} parent=11 // pred_region
        _
      $region28: #{dgcnn_feat_forward.19} parent=11 // pred_fallthru
        _
      // Predicated region
      $region29: #{dgcnn_feat_forward.19} parent=11 // pred_check
        %p241 = pneg %p186
      $region30: #{dgcnn_feat_forward.19} parent=11 // pred_check_branch
        %243 = sbr.rel (%p241) target = $region32
      $region31: #{dgcnn_feat_forward.19} parent=11 // pred_region
        _
      $region32: #{dgcnn_feat_forward.19} parent=11 // pred_fallthru
        _
    $region12: #{dgcnn_feat_forward.19} parent=5 // pred_fallthru
      _
    %p244 = scmp.lt.s32.totalorder %s13, 2
    // Predicated region
    $region33: #{dgcnn_feat_forward.19} parent=5 // pred_check
      %p245 = pneg %p244
    $region34: #{dgcnn_feat_forward.19} parent=5 // pred_check_branch
      %247 = sbr.rel (%p245) target = $region36
    $region35: #{dgcnn_feat_forward.19} parent=5 // pred_region
      // Predicated region
      $region37: #{dgcnn_feat_forward.19} parent=35 // pred_check
        %p248 = pneg %p47
      $region38: #{dgcnn_feat_forward.19} parent=35 // pred_check_branch
        %250 = sbr.rel (%p248) target = $region40
      $region39: #{dgcnn_feat_forward.19} parent=35 // pred_region
        %s251 = smul.u32 2, %s21
        %p252 = scmp.lt.s32.totalorder %s20, 1
        %s253 = scalar_select %p252, %s20, 1
        %p254 = scmp.lt.s32.totalorder %s251, 1
        %s255 = scalar_select %p254, %s251, 1
        %s256 = smul.addr %s253, 2
        %s257 = sadd.s32 %s255, %s256
        %s258 = smul.addr %s257, 8
        %s259 = scalar_lea.vmem %s0, %s258
        %s260 = smul.u32 2, %s21
      $region40: #{dgcnn_feat_forward.19} parent=35 // pred_fallthru
        _
      // Predicated region
      $region41: #{dgcnn_feat_forward.19} parent=35 // pred_check
        %p261 = pneg %p75
      $region42: #{dgcnn_feat_forward.19} parent=35 // pred_check_branch
        %263 = sbr.rel (%p261) target = $region44
      $region43: #{dgcnn_feat_forward.19} parent=35 // pred_region
        %s264 = smul.u32 2, %s21
        %p265 = scmp.lt.s32.totalorder %s20, 1
        %s266 = scalar_select %p265, %s20, 1
        %p267 = scmp.lt.s32.totalorder %s264, 1
        %s268 = scalar_select %p267, %s264, 1
        %s269 = smul.addr %s266, 16
        %s270 = sadd.s32 %s268, %s269
        %s271 = smul.addr %s270, 4
        %s272 = scalar_lea.vmem %s1, %s271
        %s273 = smul.u32 2, %s21
      $region44: #{dgcnn_feat_forward.19} parent=35 // pred_fallthru
        _
    $region36: #{dgcnn_feat_forward.19} parent=5 // pred_fallthru
      _
    %p274 = scmp.le.s32.totalorder 1, %s13
    %p275 = scmp.lt.s32.totalorder %s13, 3
    %p276 = pnand %p274, %p275
    %p277 = pneg %p276
    // Predicated region
    $region45: #{dgcnn_feat_forward.19} parent=5 // pred_check
      _
    $region46: #{dgcnn_feat_forward.19} parent=5 // pred_check_branch
      %279 = sbr.rel (%p276) target = $region48
    $region47: #{dgcnn_feat_forward.19} parent=5 // pred_region
      %s280 = ssub.s32 %s13, 1
      %s281 = smul.u32 2, %s23
      %p282 = scmp.lt.s32.totalorder %s22, 1
      %s283 = scalar_select %p282, %s22, 1
      %p284 = scmp.lt.s32.totalorder %s281, 1
      %s285 = scalar_select %p284, %s281, 1
      %s286 = smul.addr %s283, 2
      %s287 = sadd.s32 %s285, %s286
      %s288 = smul.addr %s287, 8
      %s289 = scalar_lea.vmem %s0, %s288
      %p290 = pneg %p53
      %p291 = pneg %p50
      %s292 = smul.u32 2, %s23
      %p293 = scmp.lt.s32.totalorder %s22, 1
      %s294 = scalar_select %p293, %s22, 1
      %p295 = scmp.lt.s32.totalorder %s292, 1
      %s296 = scalar_select %p295, %s292, 1
      %s297 = smul.addr %s294, 16
      %s298 = sadd.s32 %s296, %s297
      %s299 = smul.addr %s298, 4
      %s300 = scalar_lea.vmem %s1, %s299
      %p301 = pneg %p81
      %p302 = pneg %p78
      %p303 = pneg %p102
      %p304 = pneg %p99
      %p305 = pneg %p123
      %p306 = pneg %p120
      %p307 = pneg %p144
      %p308 = pneg %p141
      %p309 = pneg %p165
      %p310 = pneg %p162
      %p311 = pneg %p186
      %p312 = pneg %p183
      %p313 = pneg %p214
      %p314 = pneg %p211
      %s315 = smul.u32 2, %s23
      %p316 = scmp.lt.s32.totalorder %s22, 1
      %s317 = scalar_select %p316, %s22, 1
      %p318 = scmp.lt.s32.totalorder %s315, 1
      %s319 = scalar_select %p318, %s315, 1
      %s320 = smul.addr %s317, 2
      %s321 = sadd.s32 %s319, %s320
      %s322 = smul.addr %s321, 8
      %s323 = scalar_lea.vmem %s7, %s322
      %s324 = smul.u32 2, %s23
      %p325 = scmp.lt.s32.totalorder %s22, 1
      %s326 = scalar_select %p325, %s22, 1
      %p327 = scmp.lt.s32.totalorder %s324, 1
      %s328 = scalar_select %p327, %s324, 1
      %s329 = smul.addr %s326, 2
      %s330 = sadd.s32 %s328, %s329
      %s331 = smul.addr %s330, 8
      %s332 = scalar_lea.vmem %s0, %s331
      %s333 = smul.u32 2, %s23
      %s334 = smul.u32 2, %s23
      %p335 = scmp.lt.s32.totalorder %s22, 1
      %s336 = scalar_select %p335, %s22, 1
      %p337 = scmp.lt.s32.totalorder %s334, 1
      %s338 = scalar_select %p337, %s334, 1
      %s339 = smul.addr %s336, 16
      %s340 = sadd.s32 %s338, %s339
      %s341 = smul.addr %s340, 4
      %s342 = scalar_lea.vmem %s1, %s341
      %s343 = smul.u32 2, %s23
      %s344 = smul.u32 2, %s23
      %p345 = scmp.lt.s32.totalorder %s22, 1
      %s346 = scalar_select %p345, %s22, 1
      %p347 = scmp.lt.s32.totalorder %s344, 1
      %s348 = scalar_select %p347, %s344, 1
      %s349 = smul.addr %s346, 2
      %s350 = sadd.s32 %s348, %s349
      %s351 = smul.addr %s350, 8
      %s352 = scalar_lea.vmem %s7, %s351
      %s353 = smul.u32 2, %s23
      %v355 = vld [vmem:[%s332] sm:$0xff]
      %v356 = vld [vmem:[%s332 + $0x8] sm:$0xff]
      %v357 = vpack.c.bf16 %v356, %v355
      %v358 = vld [vmem:[%s3] sm:$0xf]
      %v359 = vld [vmem:[%s3 + $0x4] sm:$0xf]
      %v360 = vld [vmem:[%s3 + $0x8] sm:$0xf]
      %v361 = vld [vmem:[%s3 + $0xc] sm:$0xf]
      %v362 = vld [vmem:[%s3 + $0x10] sm:$0xf]
      %v363 = vld [vmem:[%s3 + $0x14] sm:$0xf]
      %v364 = vld [vmem:[%s3 + $0x18] sm:$0xf]
      %v365 = vld [vmem:[%s3 + $0x1c] sm:$0xf]
      %v366 = vld [vmem:[%s4] sm:$0x1]
      %v368 = vlaneseq
      %v369 = vshrl.u32 %v368, 7
      %v370 = vsub.s32 0, %v369
      %v371 = vrot.slane %v366, %v370
      %v381 = vunpack.c.l.b16 %v358
      %v382 = vunpack.c.l.b16 %v359
      %v383 = vunpack.c.l.b16 %v360
      %v384 = vunpack.c.l.b16 %v361
      %v385 = vunpack.c.l.b16 %v362
      %v386 = vunpack.c.l.b16 %v363
      %v387 = vunpack.c.l.b16 %v364
      %v388 = vunpack.c.l.b16 %v365
      %v389 = vpack.c.b16 %v382, %v381
      %v390 = vpack.c.b16 %v384, %v383
      %v391 = vpack.c.b16 %v386, %v385
      %v392 = vpack.c.b16 %v388, %v387
      %vm397 = vcmask 523264
      %v399 = vsel %vm397, %v357, 0
      %401 = vmatprep.subr.bf16.mxu0 0
      %402 = vmatpush1.bf16.msra.mxu0 0
      %403 = vmatprep.subr.bf16.mxu0 0
      %404 = vmatpush1.bf16.msra.mxu0 0
      %405 = vmatprep.subr.bf16.mxu0 0
      %406 = vmatpush1.bf16.msra.mxu0 0
      %407 = vmatprep.subr.bf16.mxu0 0
      %408 = vmatpush1.bf16.msra.mxu0 0
      %409 = vmatprep.subr.bf16.mxu0 0
      %410 = vmatpush1.bf16.msra.mxu0 %v392
      %411 = vmatprep.subr.bf16.mxu0 0
      %412 = vmatpush1.bf16.msra.mxu0 %v391
      %413 = vmatprep.subr.bf16.mxu0 0
      %414 = vmatpush1.bf16.msra.mxu0 %v390
      %415 = vmatprep.subr.bf16.mxu0 0
      %416 = vmatpush1.bf16.msra.mxu0 %v389
      %417 = vmatprep.subr.bf16.mxu0 0
      %418 = vmatpush2.bf16.msra.mxu0 0
      %419 = vmatprep.subr.bf16.mxu0 0
      %420 = vmatpush2.bf16.msra.mxu0 0
      %421 = vmatprep.subr.bf16.mxu0 0
      %422 = vmatpush2.bf16.msra.mxu0 0
      %423 = vmatprep.subr.bf16.mxu0 0
      %424 = vmatpush2.bf16.msra.mxu0 0
      %425 = vmatprep.subr.bf16.mxu0 0
      %426 = vmatpush2.bf16.msra.mxu0 0
      %427 = vmatprep.subr.bf16.mxu0 0
      %428 = vmatpush2.bf16.msra.mxu0 0
      %429 = vmatprep.subr.bf16.mxu0 0
      %430 = vmatpush2.bf16.msra.mxu0 0
      %431 = vmatprep.subr.bf16.mxu0 0
      %432 = vmatpush2.bf16.msra.mxu0 0
      %433 = vmatprep.mubr.bf16.mxu0 0
      %434 = vmatmul.mubr.bf16.gmra.mxu0 %v399
      %v435 = vpop.f32.mrf.mxu0
      %v436 = vadd.f32 %v371, %v435
      %v437 = vpop.f32.mrf.mxu0
      %v438 = vpop.f32.mrf.mxu0
      %v439 = vadd.f32 %v371, %v438
      %v440 = vpop.f32.mrf.mxu0
      %441 = vdwg.mxu0
      %v442 = vld [vmem:[%s342] sm:$0xf]
      %v443 = vld [vmem:[%s342 + $0x4] sm:$0xf]
      %v444 = vld [vmem:[%s342 + $0x8] sm:$0xf]
      %v445 = vld [vmem:[%s342 + $0xc] sm:$0xf]
      %v446 = vld [vmem:[%s342 + $0x10] sm:$0xf]
      %v447 = vld [vmem:[%s342 + $0x14] sm:$0xf]
      %v448 = vld [vmem:[%s342 + $0x18] sm:$0xf]
      %v449 = vld [vmem:[%s342 + $0x1c] sm:$0xf]
      %v450 = vld [vmem:[%s342 + $0x20] sm:$0xf]
      %v451 = vld [vmem:[%s342 + $0x24] sm:$0xf]
      %v452 = vld [vmem:[%s342 + $0x28] sm:$0xf]
      %v453 = vld [vmem:[%s342 + $0x2c] sm:$0xf]
      %v454 = vld [vmem:[%s342 + $0x30] sm:$0xf]
      %v455 = vld [vmem:[%s342 + $0x34] sm:$0xf]
      %v456 = vld [vmem:[%s342 + $0x38] sm:$0xf]
      %v457 = vld [vmem:[%s342 + $0x3c] sm:$0xf]
      %v458 = vld [vmem:[%s2] sm:$0xf]
      %v459 = vld [vmem:[%s2 + $0x4] sm:$0xf]
      %v460 = vld [vmem:[%s2 + $0x8] sm:$0xf]
      %v461 = vld [vmem:[%s2 + $0xc] sm:$0xf]
      %v462 = vld [vmem:[%s2 + $0x10] sm:$0xf]
      %v463 = vld [vmem:[%s2 + $0x14] sm:$0xf]
      %v464 = vld [vmem:[%s2 + $0x18] sm:$0xf]
      %v465 = vld [vmem:[%s2 + $0x1c] sm:$0xf]
      %v482 = vunpack.c.l.b16 %v442
      %v483 = vunpack.c.l.b16 %v443
      %v484 = vunpack.c.l.b16 %v444
      %v485 = vunpack.c.l.b16 %v445
      %v486 = vunpack.c.l.b16 %v446
      %v487 = vunpack.c.l.b16 %v447
      %v488 = vunpack.c.l.b16 %v448
      %v489 = vunpack.c.l.b16 %v449
      %v490 = vunpack.c.l.b16 %v450
      %v491 = vunpack.c.l.b16 %v451
      %v492 = vunpack.c.l.b16 %v452
      %v493 = vunpack.c.l.b16 %v453
      %v494 = vunpack.c.l.b16 %v454
      %v495 = vunpack.c.l.b16 %v455
      %v496 = vunpack.c.l.b16 %v456
      %v497 = vunpack.c.l.b16 %v457
      %v498 = vpack.c.b16 %v483, %v482
      %v499 = vpack.c.b16 %v485, %v484
      %v500 = vpack.c.b16 %v487, %v486
      %v501 = vpack.c.b16 %v489, %v488
      %v502 = vpack.c.b16 %v491, %v490
      %v503 = vpack.c.b16 %v493, %v492
      %v504 = vpack.c.b16 %v495, %v494
      %v505 = vpack.c.b16 %v497, %v496
      %v514 = vunpack.c.l.b16 %v458
      %v515 = vunpack.c.l.b16 %v459
      %v516 = vunpack.c.l.b16 %v460
      %v517 = vunpack.c.l.b16 %v461
      %v518 = vunpack.c.l.b16 %v462
      %v519 = vunpack.c.l.b16 %v463
      %v520 = vunpack.c.l.b16 %v464
      %v521 = vunpack.c.l.b16 %v465
      %v522 = vpack.c.b16 %v515, %v514
      %v523 = vpack.c.b16 %v517, %v516
      %v524 = vpack.c.b16 %v519, %v518
      %v525 = vpack.c.b16 %v521, %v520
      %v531 = vsel %vm397, %v498, 0
      %v534 = vsel %vm397, %v499, 0
      %v537 = vsel %vm397, %v500, 0
      %v540 = vsel %vm397, %v501, 0
      %v543 = vsel %vm397, %v502, 0
      %v546 = vsel %vm397, %v503, 0
      %v549 = vsel %vm397, %v504, 0
      %v552 = vsel %vm397, %v505, 0
      %554 = vmatprep.subr.bf16.mxu0 0
      %555 = vmatpush1.bf16.msra.mxu0 0
      %556 = vmatprep.subr.bf16.mxu0 0
      %557 = vmatpush1.bf16.msra.mxu0 0
      %558 = vmatprep.subr.bf16.mxu0 0
      %559 = vmatpush1.bf16.msra.mxu0 0
      %560 = vmatprep.subr.bf16.mxu0 0
      %561 = vmatpush1.bf16.msra.mxu0 0
      %562 = vmatprep.subr.bf16.mxu0 0
      %563 = vmatpush1.bf16.msra.mxu0 %v525
      %564 = vmatprep.subr.bf16.mxu0 0
      %565 = vmatpush1.bf16.msra.mxu0 %v524
      %566 = vmatprep.subr.bf16.mxu0 0
      %567 = vmatpush1.bf16.msra.mxu0 %v523
      %568 = vmatprep.subr.bf16.mxu0 0
      %569 = vmatpush1.bf16.msra.mxu0 %v522
      %570 = vmatprep.subr.bf16.mxu0 0
      %571 = vmatpush2.bf16.msra.mxu0 0
      %572 = vmatprep.subr.bf16.mxu0 0
      %573 = vmatpush2.bf16.msra.mxu0 0
      %574 = vmatprep.subr.bf16.mxu0 0
      %575 = vmatpush2.bf16.msra.mxu0 0
      %576 = vmatprep.subr.bf16.mxu0 0
      %577 = vmatpush2.bf16.msra.mxu0 0
      %578 = vmatprep.subr.bf16.mxu0 0
      %579 = vmatpush2.bf16.msra.mxu0 0
      %580 = vmatprep.subr.bf16.mxu0 0
      %581 = vmatpush2.bf16.msra.mxu0 0
      %582 = vmatprep.subr.bf16.mxu0 0
      %583 = vmatpush2.bf16.msra.mxu0 0
      %584 = vmatprep.subr.bf16.mxu0 0
      %585 = vmatpush2.bf16.msra.mxu0 0
      %586 = vmatprep.mubr.bf16.mxu0 0
      %587 = vmatmul.mubr.bf16.gmra.mxu0 %v531
      %v588 = vpop.f32.mrf.mxu0
      %v589 = vadd.f32 0.0, %v588
      %v590 = vpop.f32.mrf.mxu0
      %v591 = vpop.f32.mrf.mxu0
      %v592 = vadd.f32 0.0, %v591
      %v593 = vpop.f32.mrf.mxu0
      %594 = vmatprep.mubr.bf16.mxu0 0
      %595 = vmatmul.mubr.bf16.gmra.mxu0 %v534
      %v596 = vpop.f32.mrf.mxu0
      %v597 = vadd.f32 0.0, %v596
      %v598 = vpop.f32.mrf.mxu0
      %v599 = vpop.f32.mrf.mxu0
      %v600 = vadd.f32 0.0, %v599
      %v601 = vpop.f32.mrf.mxu0
      %602 = vmatprep.mubr.bf16.mxu0 0
      %603 = vmatmul.mubr.bf16.gmra.mxu0 %v537
      %v604 = vpop.f32.mrf.mxu0
      %v605 = vadd.f32 0.0, %v604
      %v606 = vpop.f32.mrf.mxu0
      %v607 = vpop.f32.mrf.mxu0
      %v608 = vadd.f32 0.0, %v607
      %v609 = vpop.f32.mrf.mxu0
      %610 = vmatprep.mubr.bf16.mxu0 0
      %611 = vmatmul.mubr.bf16.gmra.mxu0 %v540
      %v612 = vpop.f32.mrf.mxu0
      %v613 = vadd.f32 0.0, %v612
      %v614 = vpop.f32.mrf.mxu0
      %v615 = vpop.f32.mrf.mxu0
      %v616 = vadd.f32 0.0, %v615
      %v617 = vpop.f32.mrf.mxu0
      %618 = vmatprep.mubr.bf16.mxu0 0
      %619 = vmatmul.mubr.bf16.gmra.mxu0 %v543
      %v620 = vpop.f32.mrf.mxu0
      %v621 = vadd.f32 0.0, %v620
      %v622 = vpop.f32.mrf.mxu0
      %v623 = vpop.f32.mrf.mxu0
      %v624 = vadd.f32 0.0, %v623
      %v625 = vpop.f32.mrf.mxu0
      %626 = vmatprep.mubr.bf16.mxu0 0
      %627 = vmatmul.mubr.bf16.gmra.mxu0 %v546
      %v628 = vpop.f32.mrf.mxu0
      %v629 = vadd.f32 0.0, %v628
      %v630 = vpop.f32.mrf.mxu0
      %v631 = vpop.f32.mrf.mxu0
      %v632 = vadd.f32 0.0, %v631
      %v633 = vpop.f32.mrf.mxu0
      %634 = vmatprep.mubr.bf16.mxu0 0
      %635 = vmatmul.mubr.bf16.gmra.mxu0 %v549
      %v636 = vpop.f32.mrf.mxu0
      %v637 = vadd.f32 0.0, %v636
      %v638 = vpop.f32.mrf.mxu0
      %v639 = vpop.f32.mrf.mxu0
      %v640 = vadd.f32 0.0, %v639
      %v641 = vpop.f32.mrf.mxu0
      %642 = vmatprep.mubr.bf16.mxu0 0
      %643 = vmatmul.mubr.bf16.gmra.mxu0 %v552
      %v644 = vpop.f32.mrf.mxu0
      %v645 = vadd.f32 0.0, %v644
      %v646 = vpop.f32.mrf.mxu0
      %v647 = vpop.f32.mrf.mxu0
      %v648 = vadd.f32 0.0, %v647
      %v649 = vpop.f32.mrf.mxu0
      %650 = vdwg.mxu0
      %v651 = vadd.f32 %v589, %v436
      %v652 = vadd.f32 %v592, %v439
      %v653 = vadd.f32 %v597, %v436
      %v654 = vadd.f32 %v600, %v439
      %v655 = vadd.f32 %v605, %v436
      %v656 = vadd.f32 %v608, %v439
      %v657 = vadd.f32 %v613, %v436
      %v658 = vadd.f32 %v616, %v439
      %v659 = vadd.f32 %v621, %v436
      %v660 = vadd.f32 %v624, %v439
      %v661 = vadd.f32 %v629, %v436
      %v662 = vadd.f32 %v632, %v439
      %v663 = vadd.f32 %v637, %v436
      %v664 = vadd.f32 %v640, %v439
      %v665 = vadd.f32 %v645, %v436
      %v666 = vadd.f32 %v648, %v439
      %v667 = vmul.f32 %v651, 0.2
      %v668 = vmul.f32 %v652, 0.2
      %v669 = vmul.f32 %v653, 0.2
      %v670 = vmul.f32 %v654, 0.2
      %v671 = vmul.f32 %v655, 0.2
      %v672 = vmul.f32 %v656, 0.2
      %v673 = vmul.f32 %v657, 0.2
      %v674 = vmul.f32 %v658, 0.2
      %v675 = vmul.f32 %v659, 0.2
      %v676 = vmul.f32 %v660, 0.2
      %v677 = vmul.f32 %v661, 0.2
      %v678 = vmul.f32 %v662, 0.2
      %v679 = vmul.f32 %v663, 0.2
      %v680 = vmul.f32 %v664, 0.2
      %v681 = vmul.f32 %v665, 0.2
      %v682 = vmul.f32 %v666, 0.2
      %v683 = vmax.f32 %v651, %v667
      %v684 = vmax.f32 %v652, %v668
      %v685 = vmax.f32 %v653, %v669
      %v686 = vmax.f32 %v654, %v670
      %v687 = vmax.f32 %v655, %v671
      %v688 = vmax.f32 %v656, %v672
      %v689 = vmax.f32 %v657, %v673
      %v690 = vmax.f32 %v658, %v674
      %v691 = vmax.f32 %v659, %v675
      %v692 = vmax.f32 %v660, %v676
      %v693 = vmax.f32 %v661, %v677
      %v694 = vmax.f32 %v662, %v678
      %v695 = vmax.f32 %v663, %v679
      %v696 = vmax.f32 %v664, %v680
      %v697 = vmax.f32 %v665, %v681
      %v698 = vmax.f32 %v666, %v682
      %v699 = vpack.c.bf16 %v684, %v683
      %v700 = vpack.c.bf16 %v686, %v685
      %v701 = vpack.c.bf16 %v688, %v687
      %v702 = vpack.c.bf16 %v690, %v689
      %v703 = vpack.c.bf16 %v692, %v691
      %v704 = vpack.c.bf16 %v694, %v693
      %v705 = vpack.c.bf16 %v696, %v695
      %v706 = vpack.c.bf16 %v698, %v697
      %v707 = vld [vmem:[%s5] sm:$0xf]
      %v708 = vld [vmem:[%s5 + $0x4] sm:$0xf]
      %v709 = vld [vmem:[%s5 + $0x8] sm:$0xf]
      %v710 = vld [vmem:[%s5 + $0xc] sm:$0xf]
      %v711 = vld [vmem:[%s5 + $0x10] sm:$0xf]
      %v712 = vld [vmem:[%s5 + $0x14] sm:$0xf]
      %v713 = vld [vmem:[%s5 + $0x18] sm:$0xf]
      %v714 = vld [vmem:[%s5 + $0x1c] sm:$0xf]
      %v723 = vunpack.c.l.b16 %v707
      %v724 = vunpack.c.l.b16 %v708
      %v725 = vunpack.c.l.b16 %v709
      %v726 = vunpack.c.l.b16 %v710
      %v727 = vunpack.c.l.b16 %v711
      %v728 = vunpack.c.l.b16 %v712
      %v729 = vunpack.c.l.b16 %v713
      %v730 = vunpack.c.l.b16 %v714
      %v731 = vpack.c.b16 %v724, %v723
      %v732 = vpack.c.b16 %v726, %v725
      %v733 = vpack.c.b16 %v728, %v727
      %v734 = vpack.c.b16 %v730, %v729
      %v740 = vsel %vm397, %v699, 0
      %v743 = vsel %vm397, %v700, 0
      %v746 = vsel %vm397, %v701, 0
      %v749 = vsel %vm397, %v702, 0
      %v752 = vsel %vm397, %v703, 0
      %v755 = vsel %vm397, %v704, 0
      %v758 = vsel %vm397, %v705, 0
      %v761 = vsel %vm397, %v706, 0
      %763 = vmatprep.subr.bf16.mxu0 0
      %764 = vmatpush1.bf16.msra.mxu0 0
      %765 = vmatprep.subr.bf16.mxu0 0
      %766 = vmatpush1.bf16.msra.mxu0 0
      %767 = vmatprep.subr.bf16.mxu0 0
      %768 = vmatpush1.bf16.msra.mxu0 0
      %769 = vmatprep.subr.bf16.mxu0 0
      %770 = vmatpush1.bf16.msra.mxu0 0
      %771 = vmatprep.subr.bf16.mxu0 0
      %772 = vmatpush1.bf16.msra.mxu0 %v734
      %773 = vmatprep.subr.bf16.mxu0 0
      %774 = vmatpush1.bf16.msra.mxu0 %v733
      %775 = vmatprep.subr.bf16.mxu0 0
      %776 = vmatpush1.bf16.msra.mxu0 %v732
      %777 = vmatprep.subr.bf16.mxu0 0
      %778 = vmatpush1.bf16.msra.mxu0 %v731
      %779 = vmatprep.subr.bf16.mxu0 0
      %780 = vmatpush2.bf16.msra.mxu0 0
      %781 = vmatprep.subr.bf16.mxu0 0
      %782 = vmatpush2.bf16.msra.mxu0 0
      %783 = vmatprep.subr.bf16.mxu0 0
      %784 = vmatpush2.bf16.msra.mxu0 0
      %785 = vmatprep.subr.bf16.mxu0 0
      %786 = vmatpush2.bf16.msra.mxu0 0
      %787 = vmatprep.subr.bf16.mxu0 0
      %788 = vmatpush2.bf16.msra.mxu0 0
      %789 = vmatprep.subr.bf16.mxu0 0
      %790 = vmatpush2.bf16.msra.mxu0 0
      %791 = vmatprep.subr.bf16.mxu0 0
      %792 = vmatpush2.bf16.msra.mxu0 0
      %793 = vmatprep.subr.bf16.mxu0 0
      %794 = vmatpush2.bf16.msra.mxu0 0
      %795 = vmatprep.mubr.bf16.mxu0 0
      %796 = vmatmul.mubr.bf16.gmra.mxu0 %v740
      %v797 = vpop.f32.mrf.mxu0
      %v798 = vadd.f32 0.0, %v797
      %v799 = vpop.f32.mrf.mxu0
      %v800 = vpop.f32.mrf.mxu0
      %v801 = vadd.f32 0.0, %v800
      %v802 = vpop.f32.mrf.mxu0
      %803 = vmatprep.mubr.bf16.mxu0 0
      %804 = vmatmul.mubr.bf16.gmra.mxu0 %v743
      %v805 = vpop.f32.mrf.mxu0
      %v806 = vadd.f32 0.0, %v805
      %v807 = vpop.f32.mrf.mxu0
      %v808 = vpop.f32.mrf.mxu0
      %v809 = vadd.f32 0.0, %v808
      %v810 = vpop.f32.mrf.mxu0
      %811 = vmatprep.mubr.bf16.mxu0 0
      %812 = vmatmul.mubr.bf16.gmra.mxu0 %v746
      %v813 = vpop.f32.mrf.mxu0
      %v814 = vadd.f32 0.0, %v813
      %v815 = vpop.f32.mrf.mxu0
      %v816 = vpop.f32.mrf.mxu0
      %v817 = vadd.f32 0.0, %v816
      %v818 = vpop.f32.mrf.mxu0
      %819 = vmatprep.mubr.bf16.mxu0 0
      %820 = vmatmul.mubr.bf16.gmra.mxu0 %v749
      %v821 = vpop.f32.mrf.mxu0
      %v822 = vadd.f32 0.0, %v821
      %v823 = vpop.f32.mrf.mxu0
      %v824 = vpop.f32.mrf.mxu0
      %v825 = vadd.f32 0.0, %v824
      %v826 = vpop.f32.mrf.mxu0
      %827 = vmatprep.mubr.bf16.mxu0 0
      %828 = vmatmul.mubr.bf16.gmra.mxu0 %v752
      %v829 = vpop.f32.mrf.mxu0
      %v830 = vadd.f32 0.0, %v829
      %v831 = vpop.f32.mrf.mxu0
      %v832 = vpop.f32.mrf.mxu0
      %v833 = vadd.f32 0.0, %v832
      %v834 = vpop.f32.mrf.mxu0
      %835 = vmatprep.mubr.bf16.mxu0 0
      %836 = vmatmul.mubr.bf16.gmra.mxu0 %v755
      %v837 = vpop.f32.mrf.mxu0
      %v838 = vadd.f32 0.0, %v837
      %v839 = vpop.f32.mrf.mxu0
      %v840 = vpop.f32.mrf.mxu0
      %v841 = vadd.f32 0.0, %v840
      %v842 = vpop.f32.mrf.mxu0
      %843 = vmatprep.mubr.bf16.mxu0 0
      %844 = vmatmul.mubr.bf16.gmra.mxu0 %v758
      %v845 = vpop.f32.mrf.mxu0
      %v846 = vadd.f32 0.0, %v845
      %v847 = vpop.f32.mrf.mxu0
      %v848 = vpop.f32.mrf.mxu0
      %v849 = vadd.f32 0.0, %v848
      %v850 = vpop.f32.mrf.mxu0
      %851 = vmatprep.mubr.bf16.mxu0 0
      %852 = vmatmul.mubr.bf16.gmra.mxu0 %v761
      %v853 = vpop.f32.mrf.mxu0
      %v854 = vadd.f32 0.0, %v853
      %v855 = vpop.f32.mrf.mxu0
      %v856 = vpop.f32.mrf.mxu0
      %v857 = vadd.f32 0.0, %v856
      %v858 = vpop.f32.mrf.mxu0
      %859 = vdwg.mxu0
      %v860 = vld [vmem:[%s6] sm:$0x1]
      %v862 = vlaneseq
      %v863 = vshrl.u32 %v862, 7
      %v864 = vsub.s32 0, %v863
      %v865 = vrot.slane %v860, %v864
      %v867 = vadd.f32 %v798, %v865
      %v868 = vadd.f32 %v801, %v865
      %v869 = vadd.f32 %v806, %v865
      %v870 = vadd.f32 %v809, %v865
      %v871 = vadd.f32 %v814, %v865
      %v872 = vadd.f32 %v817, %v865
      %v873 = vadd.f32 %v822, %v865
      %v874 = vadd.f32 %v825, %v865
      %v875 = vadd.f32 %v830, %v865
      %v876 = vadd.f32 %v833, %v865
      %v877 = vadd.f32 %v838, %v865
      %v878 = vadd.f32 %v841, %v865
      %v879 = vadd.f32 %v846, %v865
      %v880 = vadd.f32 %v849, %v865
      %v881 = vadd.f32 %v854, %v865
      %v882 = vadd.f32 %v857, %v865
      %v883 = vmul.f32 %v867, 0.2
      %v884 = vmul.f32 %v868, 0.2
      %v885 = vmul.f32 %v869, 0.2
      %v886 = vmul.f32 %v870, 0.2
      %v887 = vmul.f32 %v871, 0.2
      %v888 = vmul.f32 %v872, 0.2
      %v889 = vmul.f32 %v873, 0.2
      %v890 = vmul.f32 %v874, 0.2
      %v891 = vmul.f32 %v875, 0.2
      %v892 = vmul.f32 %v876, 0.2
      %v893 = vmul.f32 %v877, 0.2
      %v894 = vmul.f32 %v878, 0.2
      %v895 = vmul.f32 %v879, 0.2
      %v896 = vmul.f32 %v880, 0.2
      %v897 = vmul.f32 %v881, 0.2
      %v898 = vmul.f32 %v882, 0.2
      %v899 = vmax.f32 %v867, %v883
      %v900 = vmax.f32 %v868, %v884
      %v901 = vmax.f32 %v869, %v885
      %v902 = vmax.f32 %v870, %v886
      %v903 = vmax.f32 %v871, %v887
      %v904 = vmax.f32 %v872, %v888
      %v905 = vmax.f32 %v873, %v889
      %v906 = vmax.f32 %v874, %v890
      %v907 = vmax.f32 %v875, %v891
      %v908 = vmax.f32 %v876, %v892
      %v909 = vmax.f32 %v877, %v893
      %v910 = vmax.f32 %v878, %v894
      %v911 = vmax.f32 %v879, %v895
      %v912 = vmax.f32 %v880, %v896
      %v913 = vmax.f32 %v881, %v897
      %v914 = vmax.f32 %v882, %v898
      %v915 = vsel %vm397, %v899, -inf
      %v916 = vsel %vm397, %v901, -inf
      %v917 = vsel %vm397, %v903, -inf
      %v918 = vmax.f32 %v915, %v917
      %v919 = vsel %vm397, %v905, -inf
      %v920 = vmax.f32 %v916, %v919
      %v921 = vsel %vm397, %v907, -inf
      %v922 = vmax.f32 %v918, %v921
      %v923 = vsel %vm397, %v909, -inf
      %v924 = vmax.f32 %v920, %v923
      %v925 = vsel %vm397, %v911, -inf
      %v926 = vmax.f32 %v922, %v925
      %v927 = vsel %vm397, %v913, -inf
      %v928 = vmax.f32 %v924, %v927
      %v929 = vmax.f32 %v926, %v928
      %v930 = vsel %vm397, %v900, -inf
      %v931 = vsel %vm397, %v902, -inf
      %v932 = vsel %vm397, %v904, -inf
      %v933 = vmax.f32 %v930, %v932
      %v934 = vsel %vm397, %v906, -inf
      %v935 = vmax.f32 %v931, %v934
      %v936 = vsel %vm397, %v908, -inf
      %v937 = vmax.f32 %v933, %v936
      %v938 = vsel %vm397, %v910, -inf
      %v939 = vmax.f32 %v935, %v938
      %v940 = vsel %vm397, %v912, -inf
      %v941 = vmax.f32 %v937, %v940
      %v942 = vsel %vm397, %v914, -inf
      %v943 = vmax.f32 %v939, %v942
      %v944 = vmax.f32 %v941, %v943
      %945 = vst.msk [vmem:[%s352] sm:$0xff] %vm397, %v929
      %946 = vst.msk [vmem:[%s352 + $0x8] sm:$0xff] %vm397, %v944
      %s947 = smul.u32 2, %s23
      %p948 = scmp.lt.s32.totalorder %s22, 1
      %s949 = scalar_select %p948, %s22, 1
      %p950 = scmp.lt.s32.totalorder %s947, 1
      %s951 = scalar_select %p950, %s947, 1
      %s952 = smul.addr %s949, 2
      %s953 = sadd.s32 %s951, %s952
      %s954 = smul.addr %s953, 8
      %s955 = scalar_lea.vmem %s7, %s954
      // Predicated region
      $region49: #{dgcnn_feat_forward.19} parent=47 // pred_check
        %p956 = pneg %p211
      $region50: #{dgcnn_feat_forward.19} parent=47 // pred_check_branch
        %958 = sbr.rel (%p956) target = $region52
      $region51: #{dgcnn_feat_forward.19} parent=47 // pred_region
        %s959 = smul.u32 2, %s23
      $region52: #{dgcnn_feat_forward.19} parent=47 // pred_fallthru
        _
    $region48: #{dgcnn_feat_forward.19} parent=5 // pred_fallthru
      _
    %p960 = scmp.le.s32.totalorder 2, %s13
    // Predicated region
    $region53: #{dgcnn_feat_forward.19} parent=5 // pred_check
      %p961 = pneg %p960
    $region54: #{dgcnn_feat_forward.19} parent=5 // pred_check_branch
      %963 = sbr.rel (%p961) target = $region56
    $region55: #{dgcnn_feat_forward.19} parent=5 // pred_region
      %s964 = ssub.s32 %s13, 2
      // Predicated region
      $region57: #{dgcnn_feat_forward.19} parent=55 // pred_check
        %p965 = pneg %p217
      $region58: #{dgcnn_feat_forward.19} parent=55 // pred_check_branch
        %967 = sbr.rel (%p965) target = $region60
      $region59: #{dgcnn_feat_forward.19} parent=55 // pred_region
        %s968 = smul.u32 2, %s25
        %p969 = scmp.lt.s32.totalorder %s24, 1
        %s970 = scalar_select %p969, %s24, 1
        %p971 = scmp.lt.s32.totalorder %s968, 1
        %s972 = scalar_select %p971, %s968, 1
        %s973 = smul.addr %s970, 2
        %s974 = sadd.s32 %s972, %s973
        %s975 = smul.addr %s974, 8
        %s976 = scalar_lea.vmem %s7, %s975
      $region60: #{dgcnn_feat_forward.19} parent=55 // pred_fallthru
        _
    $region56: #{dgcnn_feat_forward.19} parent=5 // pred_fallthru
      _
  $region6: #{dgcnn_feat_forward.19} parent=0 // loop_footer
    %s17 = sadd.s32 1, %s13
  $region7: #{dgcnn_feat_forward.19} parent=0 // loop_footer_branch
    %12 = sbr.rel target = $region3
  $region8: #{dgcnn_feat_forward.19} parent=0 // loop_exit
    _

// kernel: dgcnn_feat_forward.23
$region0: #{dgcnn_feat_forward.23}
  #allocation0 [shape = 'u32[]', space=smem, size = 0x4, offset = 0x4, fixed_abs, tag = 'smem constant byte address 0x4 - core index']
  #allocation1 [shape = 'u32[144,128]{1,0:T(1,128)}', space=vmem, size = 0x12000, scoped, tag = 'internal scratch']
  %s0 = inlined_call_operand.vmem [shape: f32[2,128,1], index: 0, kind: input, shape index: {}]
  %s1 = inlined_call_operand.vmem [shape: f32[2,16,64], index: 1, kind: input, shape index: {}]
  %s2 = inlined_call_operand.vmem [shape: f32[2,16,64], index: 2, kind: input, shape index: {}]
  %s3 = inlined_call_operand.vmem [shape: f32[2,16,64], index: 3, kind: input, shape index: {}]
  %s4 = inlined_call_operand.vmem [shape: f32[2,320,16], index: 4, kind: output, shape index: {}]
  %s5 = sld [smem:[#allocation0]]
  $region49: #{dgcnn_feat_forward.23} parent=0
    _
  %s7 = ssub.s32 1, %s5
  %s8 = scalar_select 0, %s7, %s5
  loop: start=0, step=1, limit=4
  $region2: #{dgcnn_feat_forward.23} parent=0 // loop_pre_header
    _
  $region3: #{dgcnn_feat_forward.23} parent=0 // loop_header
    %s10 = sphi 0, %s14
    %p11 = scmp.ge.s32.totalorder %s10, 4
    %s17 = sphi 0, %s29
    %s18 = sphi 0, %s25
    %s19 = sphi 0, %s17
    %s20 = sphi 0, %s18
    %s21 = sphi 0, %s19
    %s22 = sphi 0, %s20
    %s32 = sphi 0, %s34
    %s35 = sphi 0, %s32
    %s36 = sphi 0, %s35
    %s52 = sphi 0, %s36
    %s60 = sphi 0, %s62
    %s63 = sphi 0, %s60
    %s64 = sphi 0, %s63
    %s80 = sphi 0, %s64
    %s88 = sphi 0, %s90
    %s91 = sphi 0, %s88
    %s92 = sphi 0, %s91
    %s108 = sphi 0, %s92
    %s116 = sphi 0, %s118
    %s119 = sphi 0, %s116
    %s120 = sphi 0, %s119
    %s136 = sphi 0, %s120
    %s144 = sphi 0, %s146
    %s147 = sphi 0, %s144
    %s148 = sphi 0, %s147
    %s164 = sphi 0, %s148
  $region4: #{dgcnn_feat_forward.23} parent=0 // loop_header_branch
    %13 = sbr.rel (%p11) target = $region8
  $region5: #{dgcnn_feat_forward.23} parent=0 // loop_body
    %s15 = ssub.s32 %s10, 1
    %s16 = ssub.s32 %s10, 2
    %s23 = sadd.s32 1, %s18
    %p24 = scmp.ge.s32.totalorder %s23, 1
    %s25 = scalar_select %p24, 0, %s23
    %s26 = sadd.s32 1, %s17
    %s27 = scalar_select %p24, %s26, %s17
    %p28 = scmp.ge.s32.totalorder %s27, 2
    %s29 = scalar_select %p28, 0, %s27
    %s30 = ssub.s32 %s17, %s29
    %p31 = scmp.eq.s32.totalorder %s30, 0
    %s33 = sadd.s32 %s32, 1
    %s34 = scalar_select %p31, %s32, %s33
    %p37 = pneg %p31
    %p38 = scmp.eq.s32.totalorder %s10, 1
    %p39 = por %p37, %p38
    %p40 = scmp.ne.s32.totalorder %s32, %s35
    %p41 = scmp.eq.s32.totalorder %s10, 0
    %p42 = por %p40, %p41
    %p43 = scmp.ne.s32.totalorder %s32, %s35
    %p44 = scmp.eq.s32.totalorder %s15, 1
    %p45 = por %p43, %p44
    %p46 = scmp.ne.s32.totalorder %s35, %s36
    %p47 = scmp.eq.s32.totalorder %s15, 0
    %p48 = por %p46, %p47
    %p49 = scmp.ne.s32.totalorder %s35, %s36
    %p50 = scmp.eq.s32.totalorder %s16, 1
    %p51 = por %p49, %p50
    %p53 = scmp.ne.s32.totalorder %s36, %s52
    %p54 = scmp.eq.s32.totalorder %s16, 0
    %p55 = por %p53, %p54
    %s56 = ssub.s32 %s17, %s29
    %s57 = ssub.s32 %s18, %s25
    %s58 = sor.u32 %s56, %s57
    %p59 = scmp.eq.s32.totalorder %s58, 0
    %s61 = sadd.s32 %s60, 1
    %s62 = scalar_select %p59, %s60, %s61
    %p65 = pneg %p59
    %p66 = scmp.eq.s32.totalorder %s10, 1
    %p67 = por %p65, %p66
    %p68 = scmp.ne.s32.totalorder %s60, %s63
    %p69 = scmp.eq.s32.totalorder %s10, 0
    %p70 = por %p68, %p69
    %p71 = scmp.ne.s32.totalorder %s60, %s63
    %p72 = scmp.eq.s32.totalorder %s15, 1
    %p73 = por %p71, %p72
    %p74 = scmp.ne.s32.totalorder %s63, %s64
    %p75 = scmp.eq.s32.totalorder %s15, 0
    %p76 = por %p74, %p75
    %p77 = scmp.ne.s32.totalorder %s63, %s64
    %p78 = scmp.eq.s32.totalorder %s16, 1
    %p79 = por %p77, %p78
    %p81 = scmp.ne.s32.totalorder %s64, %s80
    %p82 = scmp.eq.s32.totalorder %s16, 0
    %p83 = por %p81, %p82
    %s84 = ssub.s32 %s17, %s29
    %s85 = ssub.s32 %s18, %s25
    %s86 = sor.u32 %s84, %s85
    %p87 = scmp.eq.s32.totalorder %s86, 0
    %s89 = sadd.s32 %s88, 1
    %s90 = scalar_select %p87, %s88, %s89
    %p93 = pneg %p87
    %p94 = scmp.eq.s32.totalorder %s10, 1
    %p95 = por %p93, %p94
    %p96 = scmp.ne.s32.totalorder %s88, %s91
    %p97 = scmp.eq.s32.totalorder %s10, 0
    %p98 = por %p96, %p97
    %p99 = scmp.ne.s32.totalorder %s88, %s91
    %p100 = scmp.eq.s32.totalorder %s15, 1
    %p101 = por %p99, %p100
    %p102 = scmp.ne.s32.totalorder %s91, %s92
    %p103 = scmp.eq.s32.totalorder %s15, 0
    %p104 = por %p102, %p103
    %p105 = scmp.ne.s32.totalorder %s91, %s92
    %p106 = scmp.eq.s32.totalorder %s16, 1
    %p107 = por %p105, %p106
    %p109 = scmp.ne.s32.totalorder %s92, %s108
    %p110 = scmp.eq.s32.totalorder %s16, 0
    %p111 = por %p109, %p110
    %s112 = ssub.s32 %s17, %s29
    %s113 = ssub.s32 %s18, %s25
    %s114 = sor.u32 %s112, %s113
    %p115 = scmp.eq.s32.totalorder %s114, 0
    %s117 = sadd.s32 %s116, 1
    %s118 = scalar_select %p115, %s116, %s117
    %p121 = pneg %p115
    %p122 = scmp.eq.s32.totalorder %s10, 1
    %p123 = por %p121, %p122
    %p124 = scmp.ne.s32.totalorder %s116, %s119
    %p125 = scmp.eq.s32.totalorder %s10, 0
    %p126 = por %p124, %p125
    %p127 = scmp.ne.s32.totalorder %s116, %s119
    %p128 = scmp.eq.s32.totalorder %s15, 1
    %p129 = por %p127, %p128
    %p130 = scmp.ne.s32.totalorder %s119, %s120
    %p131 = scmp.eq.s32.totalorder %s15, 0
    %p132 = por %p130, %p131
    %p133 = scmp.ne.s32.totalorder %s119, %s120
    %p134 = scmp.eq.s32.totalorder %s16, 1
    %p135 = por %p133, %p134
    %p137 = scmp.ne.s32.totalorder %s120, %s136
    %p138 = scmp.eq.s32.totalorder %s16, 0
    %p139 = por %p137, %p138
    %s140 = ssub.s32 %s17, %s29
    %s141 = ssub.s32 %s18, %s25
    %s142 = sor.u32 %s140, %s141
    %p143 = scmp.eq.s32.totalorder %s142, 0
    %s145 = sadd.s32 %s144, 1
    %s146 = scalar_select %p143, %s144, %s145
    %p149 = pneg %p143
    %p150 = scmp.eq.s32.totalorder %s10, 1
    %p151 = por %p149, %p150
    %p152 = scmp.ne.s32.totalorder %s144, %s147
    %p153 = scmp.eq.s32.totalorder %s10, 0
    %p154 = por %p152, %p153
    %p155 = scmp.ne.s32.totalorder %s144, %s147
    %p156 = scmp.eq.s32.totalorder %s15, 1
    %p157 = por %p155, %p156
    %p158 = scmp.ne.s32.totalorder %s147, %s148
    %p159 = scmp.eq.s32.totalorder %s15, 0
    %p160 = por %p158, %p159
    %p161 = scmp.ne.s32.totalorder %s147, %s148
    %p162 = scmp.eq.s32.totalorder %s16, 1
    %p163 = por %p161, %p162
    %p165 = scmp.ne.s32.totalorder %s148, %s164
    %p166 = scmp.eq.s32.totalorder %s16, 0
    %p167 = por %p165, %p166
    %p168 = scmp.le.s32.totalorder 1, %s10
    %p169 = scmp.lt.s32.totalorder %s10, 3
    %p170 = pnand %p168, %p169
    %p171 = pneg %p170
    // Predicated region
    $region9: #{dgcnn_feat_forward.23} parent=5 // pred_check
      _
    $region10: #{dgcnn_feat_forward.23} parent=5 // pred_check_branch
      %173 = sbr.rel (%p170) target = $region12
    $region11: #{dgcnn_feat_forward.23} parent=5 // pred_region
      %s174 = ssub.s32 %s10, 1
    $region12: #{dgcnn_feat_forward.23} parent=5 // pred_fallthru
      _
    %p175 = scmp.lt.s32.totalorder %s10, 2
    // Predicated region
    $region13: #{dgcnn_feat_forward.23} parent=5 // pred_check
      %p176 = pneg %p175
    $region14: #{dgcnn_feat_forward.23} parent=5 // pred_check_branch
      %178 = sbr.rel (%p176) target = $region16
    $region15: #{dgcnn_feat_forward.23} parent=5 // pred_region
      // Predicated region
      $region17: #{dgcnn_feat_forward.23} parent=15 // pred_check
        %p179 = pneg %p42
      $region18: #{dgcnn_feat_forward.23} parent=15 // pred_check_branch
        %181 = sbr.rel (%p179) target = $region20
      $region19: #{dgcnn_feat_forward.23} parent=15 // pred_region
        %p182 = scmp.lt.s32.totalorder %s17, 1
        %s183 = scalar_select %p182, %s17, 1
        %s184 = smul.addr %s183, 16
        %s185 = smul.addr %s184, 8
        %s186 = scalar_lea.vmem %s0, %s185
      $region20: #{dgcnn_feat_forward.23} parent=15 // pred_fallthru
        _
      // Predicated region
      $region21: #{dgcnn_feat_forward.23} parent=15 // pred_check
        %p187 = pneg %p70
      $region22: #{dgcnn_feat_forward.23} parent=15 // pred_check_branch
        %189 = sbr.rel (%p187) target = $region24
      $region23: #{dgcnn_feat_forward.23} parent=15 // pred_region
        %s190 = smul.u32 2, %s18
        %p191 = scmp.lt.s32.totalorder %s17, 1
        %s192 = scalar_select %p191, %s17, 1
        %p193 = scmp.lt.s32.totalorder %s190, 1
        %s194 = scalar_select %p193, %s190, 1
        %s195 = smul.addr %s192, 2
        %s196 = sadd.s32 %s194, %s195
        %s197 = smul.addr %s196, 8
        %s198 = scalar_lea.vmem %s1, %s197
        %s199 = smul.u32 2, %s18
      $region24: #{dgcnn_feat_forward.23} parent=15 // pred_fallthru
        _
      // Predicated region
      $region25: #{dgcnn_feat_forward.23} parent=15 // pred_check
        %p200 = pneg %p98
      $region26: #{dgcnn_feat_forward.23} parent=15 // pred_check_branch
        %202 = sbr.rel (%p200) target = $region28
      $region27: #{dgcnn_feat_forward.23} parent=15 // pred_region
        %s203 = smul.u32 2, %s18
        %p204 = scmp.lt.s32.totalorder %s17, 1
        %s205 = scalar_select %p204, %s17, 1
        %p206 = scmp.lt.s32.totalorder %s203, 1
        %s207 = scalar_select %p206, %s203, 1
        %s208 = smul.addr %s205, 2
        %s209 = sadd.s32 %s207, %s208
        %s210 = smul.addr %s209, 8
        %s211 = scalar_lea.vmem %s2, %s210
        %s212 = smul.u32 2, %s18
      $region28: #{dgcnn_feat_forward.23} parent=15 // pred_fallthru
        _
      // Predicated region
      $region29: #{dgcnn_feat_forward.23} parent=15 // pred_check
        %p213 = pneg %p126
      $region30: #{dgcnn_feat_forward.23} parent=15 // pred_check_branch
        %215 = sbr.rel (%p213) target = $region32
      $region31: #{dgcnn_feat_forward.23} parent=15 // pred_region
        %s216 = smul.u32 2, %s18
        %p217 = scmp.lt.s32.totalorder %s17, 1
        %s218 = scalar_select %p217, %s17, 1
        %p219 = scmp.lt.s32.totalorder %s216, 1
        %s220 = scalar_select %p219, %s216, 1
        %s221 = smul.addr %s218, 2
        %s222 = sadd.s32 %s220, %s221
        %s223 = smul.addr %s222, 8
        %s224 = scalar_lea.vmem %s3, %s223
        %s225 = smul.u32 2, %s18
      $region32: #{dgcnn_feat_forward.23} parent=15 // pred_fallthru
        _
    $region16: #{dgcnn_feat_forward.23} parent=5 // pred_fallthru
      _
    %p226 = scmp.le.s32.totalorder 1, %s10
    %p227 = scmp.lt.s32.totalorder %s10, 3
    %p228 = pnand %p226, %p227
    %p229 = pneg %p228
    // Predicated region
    $region33: #{dgcnn_feat_forward.23} parent=5 // pred_check
      _
    $region34: #{dgcnn_feat_forward.23} parent=5 // pred_check_branch
      %231 = sbr.rel (%p228) target = $region36
    $region35: #{dgcnn_feat_forward.23} parent=5 // pred_region
      %s232 = ssub.s32 %s10, 1
      %p233 = scmp.lt.s32.totalorder %s19, 1
      %s234 = scalar_select %p233, %s19, 1
      %s235 = smul.addr %s234, 16
      %s236 = smul.addr %s235, 8
      %s237 = scalar_lea.vmem %s0, %s236
      %p238 = pneg %p48
      %p239 = pneg %p45
      %s240 = smul.u32 2, %s20
      %p241 = scmp.lt.s32.totalorder %s19, 1
      %s242 = scalar_select %p241, %s19, 1
      %p243 = scmp.lt.s32.totalorder %s240, 1
      %s244 = scalar_select %p243, %s240, 1
      %s245 = smul.addr %s242, 2
      %s246 = sadd.s32 %s244, %s245
      %s247 = smul.addr %s246, 8
      %s248 = scalar_lea.vmem %s1, %s247
      %p249 = pneg %p76
      %p250 = pneg %p73
      %s251 = smul.u32 2, %s20
      %p252 = scmp.lt.s32.totalorder %s19, 1
      %s253 = scalar_select %p252, %s19, 1
      %p254 = scmp.lt.s32.totalorder %s251, 1
      %s255 = scalar_select %p254, %s251, 1
      %s256 = smul.addr %s253, 2
      %s257 = sadd.s32 %s255, %s256
      %s258 = smul.addr %s257, 8
      %s259 = scalar_lea.vmem %s2, %s258
      %p260 = pneg %p104
      %p261 = pneg %p101
      %s262 = smul.u32 2, %s20
      %p263 = scmp.lt.s32.totalorder %s19, 1
      %s264 = scalar_select %p263, %s19, 1
      %p265 = scmp.lt.s32.totalorder %s262, 1
      %s266 = scalar_select %p265, %s262, 1
      %s267 = smul.addr %s264, 2
      %s268 = sadd.s32 %s266, %s267
      %s269 = smul.addr %s268, 8
      %s270 = scalar_lea.vmem %s3, %s269
      %p271 = pneg %p132
      %p272 = pneg %p129
      %p273 = pneg %p160
      %p274 = pneg %p157
      %p275 = scmp.lt.s32.totalorder %s19, 1
      %s276 = scalar_select %p275, %s19, 1
      %p277 = scmp.lt.s32.totalorder %s20, 0
      %s278 = scalar_select %p277, %s20, 0
      %s279 = smul.addr %s276, 40
      %s280 = sadd.s32 %s278, %s279
      %s281 = smul.addr %s280, 8
      %s282 = scalar_lea.vmem %s4, %s281
      %p283 = scmp.lt.s32.totalorder %s19, 1
      %s284 = scalar_select %p283, %s19, 1
      %s285 = smul.addr %s284, 16
      %s286 = smul.addr %s285, 8
      %s287 = scalar_lea.vmem %s0, %s286
      %s288 = smul.u32 2, %s20
      %p289 = scmp.lt.s32.totalorder %s19, 1
      %s290 = scalar_select %p289, %s19, 1
      %p291 = scmp.lt.s32.totalorder %s288, 1
      %s292 = scalar_select %p291, %s288, 1
      %s293 = smul.addr %s290, 2
      %s294 = sadd.s32 %s292, %s293
      %s295 = smul.addr %s294, 8
      %s296 = scalar_lea.vmem %s1, %s295
      %s297 = smul.u32 2, %s20
      %s298 = smul.u32 2, %s20
      %p299 = scmp.lt.s32.totalorder %s19, 1
      %s300 = scalar_select %p299, %s19, 1
      %p301 = scmp.lt.s32.totalorder %s298, 1
      %s302 = scalar_select %p301, %s298, 1
      %s303 = smul.addr %s300, 2
      %s304 = sadd.s32 %s302, %s303
      %s305 = smul.addr %s304, 8
      %s306 = scalar_lea.vmem %s2, %s305
      %s307 = smul.u32 2, %s20
      %s308 = smul.u32 2, %s20
      %p309 = scmp.lt.s32.totalorder %s19, 1
      %s310 = scalar_select %p309, %s19, 1
      %p311 = scmp.lt.s32.totalorder %s308, 1
      %s312 = scalar_select %p311, %s308, 1
      %s313 = smul.addr %s310, 2
      %s314 = sadd.s32 %s312, %s313
      %s315 = smul.addr %s314, 8
      %s316 = scalar_lea.vmem %s3, %s315
      %s317 = smul.u32 2, %s20
      %p318 = scmp.lt.s32.totalorder %s19, 1
      %s319 = scalar_select %p318, %s19, 1
      %p320 = scmp.lt.s32.totalorder %s20, 0
      %s321 = scalar_select %p320, %s20, 0
      %s322 = smul.addr %s319, 40
      %s323 = sadd.s32 %s321, %s322
      %s324 = smul.addr %s323, 8
      %s325 = scalar_lea.vmem %s4, %s324
      %v326 = vld [vmem:[%s287] sm:$0xff]
      %v327 = vld [vmem:[%s287 + $0x8] sm:$0xff]
      %v328 = vld [vmem:[%s287 + $0x10] sm:$0xff]
      %v329 = vld [vmem:[%s287 + $0x18] sm:$0xff]
      %v330 = vld [vmem:[%s287 + $0x20] sm:$0xff]
      %v331 = vld [vmem:[%s287 + $0x28] sm:$0xff]
      %v332 = vld [vmem:[%s287 + $0x30] sm:$0xff]
      %v333 = vld [vmem:[%s287 + $0x38] sm:$0xff]
      %v334 = vld [vmem:[%s287 + $0x40] sm:$0xff]
      %v335 = vld [vmem:[%s287 + $0x48] sm:$0xff]
      %v336 = vld [vmem:[%s287 + $0x50] sm:$0xff]
      %v337 = vld [vmem:[%s287 + $0x58] sm:$0xff]
      %v338 = vld [vmem:[%s287 + $0x60] sm:$0xff]
      %v339 = vld [vmem:[%s287 + $0x68] sm:$0xff]
      %v340 = vld [vmem:[%s287 + $0x70] sm:$0xff]
      %v341 = vld [vmem:[%s287 + $0x78] sm:$0xff]
      %343 = vset.pattern.permute.xlu0 0
      %344 = vperm.xlu0 %343, %v326
      %v345 = vpop.permute.xlu0 %344
      %348 = vset.pattern.permute.xlu0 0
      %349 = vperm.xlu0 %348, %v327
      %v350 = vpop.permute.xlu0 %349
      %353 = vset.pattern.permute.xlu0 0
      %354 = vperm.xlu0 %353, %v328
      %v355 = vpop.permute.xlu0 %354
      %358 = vset.pattern.permute.xlu0 0
      %359 = vperm.xlu0 %358, %v329
      %v360 = vpop.permute.xlu0 %359
      %363 = vset.pattern.permute.xlu0 0
      %364 = vperm.xlu0 %363, %v330
      %v365 = vpop.permute.xlu0 %364
      %368 = vset.pattern.permute.xlu0 0
      %369 = vperm.xlu0 %368, %v331
      %v370 = vpop.permute.xlu0 %369
      %373 = vset.pattern.permute.xlu0 0
      %374 = vperm.xlu0 %373, %v332
      %v375 = vpop.permute.xlu0 %374
      %378 = vset.pattern.permute.xlu0 0
      %379 = vperm.xlu0 %378, %v333
      %v380 = vpop.permute.xlu0 %379
      %383 = vset.pattern.permute.xlu0 0
      %384 = vperm.xlu0 %383, %v334
      %v385 = vpop.permute.xlu0 %384
      %388 = vset.pattern.permute.xlu0 0
      %389 = vperm.xlu0 %388, %v335
      %v390 = vpop.permute.xlu0 %389
      %393 = vset.pattern.permute.xlu0 0
      %394 = vperm.xlu0 %393, %v336
      %v395 = vpop.permute.xlu0 %394
      %398 = vset.pattern.permute.xlu0 0
      %399 = vperm.xlu0 %398, %v337
      %v400 = vpop.permute.xlu0 %399
      %403 = vset.pattern.permute.xlu0 0
      %404 = vperm.xlu0 %403, %v338
      %v405 = vpop.permute.xlu0 %404
      %408 = vset.pattern.permute.xlu0 0
      %409 = vperm.xlu0 %408, %v339
      %v410 = vpop.permute.xlu0 %409
      %413 = vset.pattern.permute.xlu0 0
      %414 = vperm.xlu0 %413, %v340
      %v415 = vpop.permute.xlu0 %414
      %418 = vset.pattern.permute.xlu0 0
      %419 = vperm.xlu0 %418, %v341
      %v420 = vpop.permute.xlu0 %419
      %vm422 = vcmask 130048
      %423 = vst.msk [vmem:[%s325] sm:$0xff] %vm422, %v345
      %424 = vst.msk [vmem:[%s325 + $0x8] sm:$0xff] %vm422, %v350
      %425 = vst.msk [vmem:[%s325 + $0x10] sm:$0xff] %vm422, %v355
      %426 = vst.msk [vmem:[%s325 + $0x18] sm:$0xff] %vm422, %v360
      %427 = vst.msk [vmem:[%s325 + $0x20] sm:$0xff] %vm422, %v365
      %428 = vst.msk [vmem:[%s325 + $0x28] sm:$0xff] %vm422, %v370
      %429 = vst.msk [vmem:[%s325 + $0x30] sm:$0xff] %vm422, %v375
      %430 = vst.msk [vmem:[%s325 + $0x38] sm:$0xff] %vm422, %v380
      %431 = vst.msk [vmem:[%s325 + $0x40] sm:$0xff] %vm422, %v385
      %432 = vst.msk [vmem:[%s325 + $0x48] sm:$0xff] %vm422, %v390
      %433 = vst.msk [vmem:[%s325 + $0x50] sm:$0xff] %vm422, %v395
      %434 = vst.msk [vmem:[%s325 + $0x58] sm:$0xff] %vm422, %v400
      %435 = vst.msk [vmem:[%s325 + $0x60] sm:$0xff] %vm422, %v405
      %436 = vst.msk [vmem:[%s325 + $0x68] sm:$0xff] %vm422, %v410
      %437 = vst.msk [vmem:[%s325 + $0x70] sm:$0xff] %vm422, %v415
      %438 = vst.msk [vmem:[%s325 + $0x78] sm:$0xff] %vm422, %v420
      %v439 = vld [vmem:[%s296] sm:$0xff]
      %v440 = vld [vmem:[%s296 + $0x8] sm:$0xff]
      %441 = vxpose.xlu0.b32.start [1/16] %v439, 128
      %442 = vxpose.xlu0.b32.cont [2/16] %v440, 128
      %443 = vxpose.xlu0.b32.cont [3/16] 0.0, 128
      %444 = vxpose.xlu0.b32.cont [4/16] 0.0, 128
      %445 = vxpose.xlu0.b32.cont [5/16] 0.0, 128
      %446 = vxpose.xlu0.b32.cont [6/16] 0.0, 128
      %447 = vxpose.xlu0.b32.cont [7/16] 0.0, 128
      %448 = vxpose.xlu0.b32.cont [8/16] 0.0, 128
      %449 = vxpose.xlu0.b32.cont [9/16] 0.0, 128
      %450 = vxpose.xlu0.b32.cont [10/16] 0.0, 128
      %451 = vxpose.xlu0.b32.cont [11/16] 0.0, 128
      %452 = vxpose.xlu0.b32.cont [12/16] 0.0, 128
      %453 = vxpose.xlu0.b32.cont [13/16] 0.0, 128
      %454 = vxpose.xlu0.b32.cont [14/16] 0.0, 128
      %455 = vxpose.xlu0.b32.cont [15/16] 0.0, 128
      %456 = vxpose.xlu0.b32.end [16/16] 0.0, 128
      %v457 = vpop.trf.xlu0
      %v458 = vpop.trf.xlu0
      %v459 = vpop.trf.xlu0
      %v460 = vpop.trf.xlu0
      %v461 = vpop.trf.xlu0
      %v462 = vpop.trf.xlu0
      %v463 = vpop.trf.xlu0
      %v464 = vpop.trf.xlu0
      %v465 = vpop.trf.xlu0
      %v466 = vpop.trf.xlu0
      %v467 = vpop.trf.xlu0
      %v468 = vpop.trf.xlu0
      %v469 = vpop.trf.xlu0
      %v470 = vpop.trf.xlu0
      %v471 = vpop.trf.xlu0
      %v472 = vpop.trf.xlu0
      %473 = vst.msk [vmem:[%s325 + $0x80] sm:$0xff] %vm422, %v457
      %474 = vst.msk [vmem:[%s325 + $0x88] sm:$0xff] %vm422, %v458
      %475 = vst.msk [vmem:[%s325 + $0x90] sm:$0xff] %vm422, %v459
      %476 = vst.msk [vmem:[%s325 + $0x98] sm:$0xff] %vm422, %v460
      %477 = vst.msk [vmem:[%s325 + $0xa0] sm:$0xff] %vm422, %v461
      %478 = vst.msk [vmem:[%s325 + $0xa8] sm:$0xff] %vm422, %v462
      %479 = vst.msk [vmem:[%s325 + $0xb0] sm:$0xff] %vm422, %v463
      %480 = vst.msk [vmem:[%s325 + $0xb8] sm:$0xff] %vm422, %v464
      %v481 = vld [vmem:[%s306] sm:$0xff]
      %v482 = vld [vmem:[%s306 + $0x8] sm:$0xff]
      %483 = vxpose.xlu0.b32.start [1/16] %v481, 128
      %484 = vxpose.xlu0.b32.cont [2/16] %v482, 128
      %485 = vxpose.xlu0.b32.cont [3/16] 0.0, 128
      %486 = vxpose.xlu0.b32.cont [4/16] 0.0, 128
      %487 = vxpose.xlu0.b32.cont [5/16] 0.0, 128
      %488 = vxpose.xlu0.b32.cont [6/16] 0.0, 128
      %489 = vxpose.xlu0.b32.cont [7/16] 0.0, 128
      %490 = vxpose.xlu0.b32.cont [8/16] 0.0, 128
      %491 = vxpose.xlu0.b32.cont [9/16] 0.0, 128
      %492 = vxpose.xlu0.b32.cont [10/16] 0.0, 128
      %493 = vxpose.xlu0.b32.cont [11/16] 0.0, 128
      %494 = vxpose.xlu0.b32.cont [12/16] 0.0, 128
      %495 = vxpose.xlu0.b32.cont [13/16] 0.0, 128
      %496 = vxpose.xlu0.b32.cont [14/16] 0.0, 128
      %497 = vxpose.xlu0.b32.cont [15/16] 0.0, 128
      %498 = vxpose.xlu0.b32.end [16/16] 0.0, 128
      %v499 = vpop.trf.xlu0
      %v500 = vpop.trf.xlu0
      %v501 = vpop.trf.xlu0
      %v502 = vpop.trf.xlu0
      %v503 = vpop.trf.xlu0
      %v504 = vpop.trf.xlu0
      %v505 = vpop.trf.xlu0
      %v506 = vpop.trf.xlu0
      %v507 = vpop.trf.xlu0
      %v508 = vpop.trf.xlu0
      %v509 = vpop.trf.xlu0
      %v510 = vpop.trf.xlu0
      %v511 = vpop.trf.xlu0
      %v512 = vpop.trf.xlu0
      %v513 = vpop.trf.xlu0
      %v514 = vpop.trf.xlu0
      %515 = vst.msk [vmem:[%s325 + $0xc0] sm:$0xff] %vm422, %v499
      %516 = vst.msk [vmem:[%s325 + $0xc8] sm:$0xff] %vm422, %v500
      %517 = vst.msk [vmem:[%s325 + $0xd0] sm:$0xff] %vm422, %v501
      %518 = vst.msk [vmem:[%s325 + $0xd8] sm:$0xff] %vm422, %v502
      %519 = vst.msk [vmem:[%s325 + $0xe0] sm:$0xff] %vm422, %v503
      %520 = vst.msk [vmem:[%s325 + $0xe8] sm:$0xff] %vm422, %v504
      %521 = vst.msk [vmem:[%s325 + $0xf0] sm:$0xff] %vm422, %v505
      %522 = vst.msk [vmem:[%s325 + $0xf8] sm:$0xff] %vm422, %v506
      %v523 = vld [vmem:[%s316] sm:$0xff]
      %v524 = vld [vmem:[%s316 + $0x8] sm:$0xff]
      %525 = vxpose.xlu0.b32.start [1/16] %v523, 128
      %526 = vxpose.xlu0.b32.cont [2/16] %v524, 128
      %527 = vxpose.xlu0.b32.cont [3/16] 0.0, 128
      %528 = vxpose.xlu0.b32.cont [4/16] 0.0, 128
      %529 = vxpose.xlu0.b32.cont [5/16] 0.0, 128
      %530 = vxpose.xlu0.b32.cont [6/16] 0.0, 128
      %531 = vxpose.xlu0.b32.cont [7/16] 0.0, 128
      %532 = vxpose.xlu0.b32.cont [8/16] 0.0, 128
      %533 = vxpose.xlu0.b32.cont [9/16] 0.0, 128
      %534 = vxpose.xlu0.b32.cont [10/16] 0.0, 128
      %535 = vxpose.xlu0.b32.cont [11/16] 0.0, 128
      %536 = vxpose.xlu0.b32.cont [12/16] 0.0, 128
      %537 = vxpose.xlu0.b32.cont [13/16] 0.0, 128
      %538 = vxpose.xlu0.b32.cont [14/16] 0.0, 128
      %539 = vxpose.xlu0.b32.cont [15/16] 0.0, 128
      %540 = vxpose.xlu0.b32.end [16/16] 0.0, 128
      %v541 = vpop.trf.xlu0
      %v542 = vpop.trf.xlu0
      %v543 = vpop.trf.xlu0
      %v544 = vpop.trf.xlu0
      %v545 = vpop.trf.xlu0
      %v546 = vpop.trf.xlu0
      %v547 = vpop.trf.xlu0
      %v548 = vpop.trf.xlu0
      %v549 = vpop.trf.xlu0
      %v550 = vpop.trf.xlu0
      %v551 = vpop.trf.xlu0
      %v552 = vpop.trf.xlu0
      %v553 = vpop.trf.xlu0
      %v554 = vpop.trf.xlu0
      %v555 = vpop.trf.xlu0
      %v556 = vpop.trf.xlu0
      %557 = vst.msk [vmem:[%s325 + $0x100] sm:$0xff] %vm422, %v541
      %558 = vst.msk [vmem:[%s325 + $0x108] sm:$0xff] %vm422, %v542
      %559 = vst.msk [vmem:[%s325 + $0x110] sm:$0xff] %vm422, %v543
      %560 = vst.msk [vmem:[%s325 + $0x118] sm:$0xff] %vm422, %v544
      %561 = vst.msk [vmem:[%s325 + $0x120] sm:$0xff] %vm422, %v545
      %562 = vst.msk [vmem:[%s325 + $0x128] sm:$0xff] %vm422, %v546
      %563 = vst.msk [vmem:[%s325 + $0x130] sm:$0xff] %vm422, %v547
      %564 = vst.msk [vmem:[%s325 + $0x138] sm:$0xff] %vm422, %v548
      %p565 = scmp.lt.s32.totalorder %s19, 1
      %s566 = scalar_select %p565, %s19, 1
      %p567 = scmp.lt.s32.totalorder %s20, 0
      %s568 = scalar_select %p567, %s20, 0
      %s569 = smul.addr %s566, 40
      %s570 = sadd.s32 %s568, %s569
      %s571 = smul.addr %s570, 8
      %s572 = scalar_lea.vmem %s4, %s571
      // Predicated region
      $region37: #{dgcnn_feat_forward.23} parent=35 // pred_check
        %p573 = pneg %p157
      $region38: #{dgcnn_feat_forward.23} parent=35 // pred_check_branch
        %575 = sbr.rel (%p573) target = $region40
      $region39: #{dgcnn_feat_forward.23} parent=35 // pred_region
        _
      $region40: #{dgcnn_feat_forward.23} parent=35 // pred_fallthru
        _
    $region36: #{dgcnn_feat_forward.23} parent=5 // pred_fallthru
      _
    %p576 = scmp.le.s32.totalorder 2, %s10
    // Predicated region
    $region41: #{dgcnn_feat_forward.23} parent=5 // pred_check
      %p577 = pneg %p576
    $region42: #{dgcnn_feat_forward.23} parent=5 // pred_check_branch
      %579 = sbr.rel (%p577) target = $region44
    $region43: #{dgcnn_feat_forward.23} parent=5 // pred_region
      %s580 = ssub.s32 %s10, 2
      // Predicated region
      $region45: #{dgcnn_feat_forward.23} parent=43 // pred_check
        %p581 = pneg %p163
      $region46: #{dgcnn_feat_forward.23} parent=43 // pred_check_branch
        %583 = sbr.rel (%p581) target = $region48
      $region47: #{dgcnn_feat_forward.23} parent=43 // pred_region
        %p584 = scmp.lt.s32.totalorder %s21, 1
        %s585 = scalar_select %p584, %s21, 1
        %p586 = scmp.lt.s32.totalorder %s22, 0
        %s587 = scalar_select %p586, %s22, 0
        %s588 = smul.addr %s585, 40
        %s589 = sadd.s32 %s587, %s588
        %s590 = smul.addr %s589, 8
        %s591 = scalar_lea.vmem %s4, %s590
      $region48: #{dgcnn_feat_forward.23} parent=43 // pred_fallthru
        _
    $region44: #{dgcnn_feat_forward.23} parent=5 // pred_fallthru
      _
  $region6: #{dgcnn_feat_forward.23} parent=0 // loop_footer
    %s14 = sadd.s32 1, %s10
  $region7: #{dgcnn_feat_forward.23} parent=0 // loop_footer_branch
    %9 = sbr.rel target = $region3
  $region8: #{dgcnn_feat_forward.23} parent=0 // loop_exit
    _

</llo_original>
